<compile_context>
chip_gen: v7x
topology: tpu7x:2x2x1
jax: 0.10.0
libtpu: 0.0.40
codegen_flags: <defaults>
</compile_context>

<pallas_src>
import math
from functools import partial

import jax
import jax.numpy as jnp
from jax.experimental import pallas as pl
from jax.experimental.pallas import tpu as pltpu


# ----------------------------------------------------------------------------
# helpers
# ----------------------------------------------------------------------------
def _layernorm(v, gamma, beta, eps=1e-5):
    """LayerNorm matching PyTorch (unbiased=False), f32 math, rsqrt on EUP."""
    mean = jnp.mean(v, axis=-1, keepdims=True)
    cen = v - mean
    var = jnp.mean(cen * cen, axis=-1, keepdims=True)
    return cen * jax.lax.rsqrt(var + eps) * gamma + beta


# ----------------------------------------------------------------------------
# kernel 1: LN1 + QKV projection (full-width E x E matmuls on the MXU)
# ----------------------------------------------------------------------------
def ln1_qkv_kernel(x_ref, wq_ref, wk_ref, wv_ref, sc1_ref, sh1_ref,
                   q_ref, k_ref, v_ref, *, scale):
    x = x_ref[0]                                             # (T, E) f32
    xn = _layernorm(x, sc1_ref[0], sh1_ref[0])               # f32
    xn_b = xn.astype(jnp.bfloat16)

    q = jnp.dot(xn_b, wq_ref[...], preferred_element_type=jnp.float32) * scale
    k = jnp.dot(xn_b, wk_ref[...], preferred_element_type=jnp.float32)
    v = jnp.dot(xn_b, wv_ref[...], preferred_element_type=jnp.float32)

    q_ref[0] = q.astype(q_ref.dtype)
    k_ref[0] = k.astype(k_ref.dtype)
    v_ref[0] = v.astype(v_ref.dtype)


# ----------------------------------------------------------------------------
# kernel 2: batched-head causal attention + output proj + LN2 + GELU FF
# ----------------------------------------------------------------------------
def attn_ff_kernel(x_ref, q_ref, k_ref, v_ref,
                   wo_ref, bo_ref, w1_ref, b1_ref, w2_ref, b2_ref,
                   sc2_ref, sh2_ref, o_ref):
    x = x_ref[0]                                             # (T, E) f32
    q = q_ref[0]                                             # (H, T, hd) bf16, pre-scaled
    k = k_ref[0]                                             # (H, T, hd) bf16
    v = v_ref[0]                                             # (H, T, hd) bf16
    H, T, hd = q.shape

    # additive causal mask, computed once and shared by all heads
    row = jax.lax.broadcasted_iota(jnp.int32, (T, T), 0)
    col = jax.lax.broadcasted_iota(jnp.int32, (T, T), 1)
    mask_add = jnp.where(col <= row, jnp.float32(0.0), jnp.float32(-1e30))

    # scores: batched over heads, contraction feeds MXU directly (no .T)
    s = jnp.einsum('hqd,hkd->hqk', q, k,
                   preferred_element_type=jnp.float32)       # (H, T, T) f32
    s = s + mask_add[None, :, :]

    # numerically stable softmax; reciprocal on the EUP
    m = jnp.max(s, axis=-1, keepdims=True)
    p = jnp.exp(s - m)
    denom = jnp.sum(p, axis=-1, keepdims=True)
    p = p * pl.reciprocal(denom, approx=True)

    ctx = jnp.einsum('hqk,hkd->hqd', p.astype(jnp.bfloat16), v,
                     preferred_element_type=jnp.float32)     # (H, T, hd) f32

    # output projection with head-split W_o (H, hd, E); sum over heads
    per_head = jnp.einsum('hqd,hde->hqe', ctx.astype(jnp.bfloat16), wo_ref[...],
                          preferred_element_type=jnp.float32)   # (H, T, E) f32
    attn_out = jnp.sum(per_head, axis=0) + bo_ref[0]
    # drop_shortcut: identity (rate 0.0 / eval)
    x = x + attn_out

    # feed-forward sub-block
    xn2 = _layernorm(x, sc2_ref[0], sh2_ref[0])
    h1 = jnp.dot(xn2.astype(jnp.bfloat16), w1_ref[...],
                 preferred_element_type=jnp.float32) + b1_ref[0]
    c = jnp.float32(math.sqrt(2.0 / math.pi))
    g = 0.5 * h1 * (1.0 + jnp.tanh(c * (h1 + 0.044715 * (h1 * h1 * h1))))  # GELU (tanh)
    ff = jnp.dot(g.astype(jnp.bfloat16), w2_ref[...],
                 preferred_element_type=jnp.float32) + b2_ref[0]
    # drop_shortcut: identity (rate 0.0 / eval)
    o_ref[0] = (x + ff).astype(o_ref.dtype)


# ----------------------------------------------------------------------------
# wrapper
# ----------------------------------------------------------------------------
def transformer_block(x, params, n_heads):
    B, T, E = x.shape
    assert E % n_heads == 0
    hd = E // n_heads
    bf16 = jnp.bfloat16

    # one-time weight prep (bf16 matmul operands; head-split output projection)
    wq = params["wq"].astype(bf16)
    wk = params["wk"].astype(bf16)
    wv = params["wv"].astype(bf16)
    wo_h = params["wo"].reshape(n_heads, hd, E).astype(bf16)   # (H, hd, E)
    w1 = params["w1"].astype(bf16)
    w2 = params["w2"].astype(bf16)

    # fully-resident, single-buffered VMEM operands (constant block index)
    def resident():
        return pl.BlockSpec(memory_space=pltpu.MemorySpace.VMEM)

    def seq_spec():
        return pl.BlockSpec((1, T, E), lambda b: (b, 0, 0))

    def head_spec():
        return pl.BlockSpec((1, n_heads, T, hd), lambda b: (b, 0, 0, 0))

    cparams = pltpu.CompilerParams(
        dimension_semantics=("parallel",),
        vmem_limit_bytes=64 * 1024 * 1024,
    )

    # ---- kernel 1: LN1 + QKV projection ----
    q, k, v = pl.pallas_call(
        partial(ln1_qkv_kernel, scale=1.0 / math.sqrt(hd)),
        out_shape=tuple(jax.ShapeDtypeStruct((B, T, E), bf16) for _ in range(3)),
        grid=(B,),
        in_specs=[seq_spec()] + [resident() for _ in range(5)],
        out_specs=tuple(seq_spec() for _ in range(3)),
        compiler_params=cparams,
    )(x, wq, wk, wv, params["sc1"], params["sh1"])

    # layout plumbing in XLA (not in-kernel): (B, T, E) -> (B, H, T, hd)
    def to_heads(a):
        return a.reshape(B, T, n_heads, hd).transpose(0, 2, 1, 3)

    # ---- kernel 2: attention + output proj + LN2 + FF ----
    out = pl.pallas_call(
        attn_ff_kernel,
        out_shape=jax.ShapeDtypeStruct((B, T, E), x.dtype),
        grid=(B,),
        in_specs=[seq_spec(), head_spec(), head_spec(), head_spec()]
                 + [resident() for _ in range(8)],
        out_specs=seq_spec(),
        compiler_params=cparams,
    )(x, to_heads(q), to_heads(k), to_heads(v),
      wo_h, params["bo"], w1, params["b1"], w2, params["b2"],
      params["sc2"], params["sh2"])
    return out


# ----------------------------------------------------------------------------
# pure-JAX f32 reference (matches the PyTorch module in eval mode)
# ----------------------------------------------------------------------------
def reference(x, p, n_heads):
    eps = 1e-5
    B, T, E = x.shape
    hd = E // n_heads

    def ln(v, gamma, beta):
        mean = v.mean(-1, keepdims=True)
        var = ((v - mean) ** 2).mean(-1, keepdims=True)
        return gamma * (v - mean) / jnp.sqrt(var + eps) + beta

    shortcut = x
    xn = ln(x, p["sc1"][0], p["sh1"][0])
    q = xn @ p["wq"]
    k = xn @ p["wk"]
    v = xn @ p["wv"]
    q = q.reshape(B, T, n_heads, hd).transpose(0, 2, 1, 3)
    k = k.reshape(B, T, n_heads, hd).transpose(0, 2, 1, 3)
    v = v.reshape(B, T, n_heads, hd).transpose(0, 2, 1, 3)
    s = jnp.einsum("bhqd,bhkd->bhqk", q, k) / jnp.sqrt(jnp.float32(hd))
    mask = jnp.tril(jnp.ones((T, T), bool))
    s = jnp.where(mask, s, -jnp.inf)
    w = jax.nn.softmax(s, axis=-1)
    ctx = jnp.einsum("bhqk,bhkd->bhqd", w, v).transpose(0, 2, 1, 3).reshape(B, T, E)
    x = shortcut + (ctx @ p["wo"] + p["bo"][0])

    shortcut = x
    xn2 = ln(x, p["sc2"][0], p["sh2"][0])
    h = xn2 @ p["w1"] + p["b1"][0]
    c = math.sqrt(2.0 / math.pi)
    g = 0.5 * h * (1.0 + jnp.tanh(c * (h + 0.044715 * h ** 3)))
    return shortcut + (g @ p["w2"] + p["b2"][0])


if __name__ == "__main__":
    cfg = dict(emb_dim=256, context_length=64, n_heads=4,
               drop_rate_attn=0.0, drop_rate_shortcut=0.0, qkv_bias=False)
    B, T, E = 2, cfg["context_length"], cfg["emb_dim"]
    H4 = 4 * E

    key = jax.random.PRNGKey(0)
    keys = jax.random.split(key, 13)
    init = lambda k, shape: (0.02 * jax.random.normal(k, shape)).astype(jnp.float32)

    params = {
        # qkv_bias=False -> no q/k/v biases
        "wq": init(keys[0], (E, E)),
        "wk": init(keys[1], (E, E)),
        "wv": init(keys[2], (E, E)),
        "wo": init(keys[3], (E, E)),
        "bo": init(keys[4], (1, E)),
        "w1": init(keys[5], (E, H4)),
        "b1": init(keys[6], (1, H4)),
        "w2": init(keys[7], (H4, E)),
        "b2": init(keys[8], (1, E)),
        "sc1": (1.0 + init(keys[9], (1, E))).astype(jnp.float32),
        "sh1": init(keys[10], (1, E)),
        "sc2": (1.0 + init(keys[11], (1, E))).astype(jnp.float32),
        "sh2": init(keys[12], (1, E)),
    }

    x = jax.random.normal(jax.random.PRNGKey(1), (B, T, E), dtype=jnp.float32)

    fwd = jax.jit(lambda xx, pp: transformer_block(xx, pp, cfg["n_heads"]))
    out = jax.block_until_ready(fwd(x, params))

    ref = reference(x, params, cfg["n_heads"])
    assert out.shape == (B, T, E)
    # bf16 MXU operands + approx reciprocal -> relaxed tolerance vs f32 reference
    assert jnp.allclose(out, ref, rtol=2e-2, atol=2e-2), "mismatch vs reference"

    print("KERNEL_OK")
</pallas_src>

<mosaic_0001>
module attributes {stable_mosaic.version = 11 : i64} {
  func.func @ln1_qkv_kernel(%arg0: i32, %arg1: memref<1x64x256xf32, #tpu.memory_space<vmem>>, %arg2: memref<256x256xbf16, #tpu.memory_space<vmem>>, %arg3: memref<256x256xbf16, #tpu.memory_space<vmem>>, %arg4: memref<256x256xbf16, #tpu.memory_space<vmem>>, %arg5: memref<1x256xf32, #tpu.memory_space<vmem>>, %arg6: memref<1x256xf32, #tpu.memory_space<vmem>>, %arg7: memref<1x64x256xbf16, #tpu.memory_space<vmem>>, %arg8: memref<1x64x256xbf16, #tpu.memory_space<vmem>>, %arg9: memref<1x64x256xbf16, #tpu.memory_space<vmem>>) attributes {dimension_semantics = [#tpu.dimension_semantics<parallel>], iteration_bounds = array<i64: 2>, scalar_prefetch = 0 : i64, scratch_operands = 0 : i64, tpu.core_type = #tpu.core_type<tc>, window_params = [{transform_indices = @transform_0, window_bounds = array<i64: 1, 64, 256>}, {pipeline_mode = #tpu.pipeline_mode<synchronous>, transform_indices = @transform_1, window_bounds = array<i64: 256, 256>}, {pipeline_mode = #tpu.pipeline_mode<synchronous>, transform_indices = @transform_2, window_bounds = array<i64: 256, 256>}, {pipeline_mode = #tpu.pipeline_mode<synchronous>, transform_indices = @transform_3, window_bounds = array<i64: 256, 256>}, {pipeline_mode = #tpu.pipeline_mode<synchronous>, transform_indices = @transform_4, window_bounds = array<i64: 1, 256>}, {pipeline_mode = #tpu.pipeline_mode<synchronous>, transform_indices = @transform_5, window_bounds = array<i64: 1, 256>}, {transform_indices = @transform_6, window_bounds = array<i64: 1, 64, 256>}, {transform_indices = @transform_7, window_bounds = array<i64: 1, 64, 256>}, {transform_indices = @transform_8, window_bounds = array<i64: 1, 64, 256>}]} {
    %c0 = arith.constant 0 : index
    %c0_0 = arith.constant 0 : index
    %c0_1 = arith.constant 0 : index
    %0 = vector.load %arg1[%c0, %c0_0, %c0_1] : memref<1x64x256xf32, #tpu.memory_space<vmem>>, vector<1x64x256xf32>
    %1 = vector.shape_cast %0 : vector<1x64x256xf32> to vector<64x256xf32>
    %c0_2 = arith.constant 0 : index
    %c0_3 = arith.constant 0 : index
    %2 = vector.load %arg5[%c0_2, %c0_3] : memref<1x256xf32, #tpu.memory_space<vmem>>, vector<1x256xf32>
    %3 = vector.shape_cast %2 : vector<1x256xf32> to vector<256xf32>
    %c0_4 = arith.constant 0 : index
    %c0_5 = arith.constant 0 : index
    %4 = vector.load %arg6[%c0_4, %c0_5] : memref<1x256xf32, #tpu.memory_space<vmem>>, vector<1x256xf32>
    %5 = vector.shape_cast %4 : vector<1x256xf32> to vector<256xf32>
    %cst = arith.constant dense<0.000000e+00> : vector<64xf32>
    %6 = vector.multi_reduction <add>, %1, %cst [1] : vector<64x256xf32> to vector<64xf32>
    %7 = vector.shape_cast %6 : vector<64xf32> to vector<64x1xf32>
    %cst_6 = arith.constant 2.560000e+02 : f32
    %8 = vector.broadcast %cst_6 : f32 to vector<64x1xf32>
    %9 = arith.divf %7, %8 : vector<64x1xf32>
    %10 = vector.broadcast %9 : vector<64x1xf32> to vector<64x256xf32>
    %11 = arith.subf %1, %10 : vector<64x256xf32>
    %12 = arith.mulf %11, %11 : vector<64x256xf32>
    %cst_7 = arith.constant dense<0.000000e+00> : vector<64xf32>
    %13 = vector.multi_reduction <add>, %12, %cst_7 [1] : vector<64x256xf32> to vector<64xf32>
    %14 = vector.shape_cast %13 : vector<64xf32> to vector<64x1xf32>
    %cst_8 = arith.constant 2.560000e+02 : f32
    %15 = vector.broadcast %cst_8 : f32 to vector<64x1xf32>
    %16 = arith.divf %14, %15 : vector<64x1xf32>
    %cst_9 = arith.constant 9.99999974E-6 : f32
    %17 = vector.broadcast %cst_9 : f32 to vector<64x1xf32>
    %18 = arith.addf %16, %17 : vector<64x1xf32>
    %19 = math.rsqrt %18 : vector<64x1xf32>
    %20 = vector.broadcast %19 : vector<64x1xf32> to vector<64x256xf32>
    %21 = arith.mulf %11, %20 : vector<64x256xf32>
    %22 = vector.shape_cast %3 : vector<256xf32> to vector<1x256xf32>
    %23 = vector.broadcast %22 : vector<1x256xf32> to vector<64x256xf32>
    %24 = arith.mulf %21, %23 : vector<64x256xf32>
    %25 = vector.shape_cast %5 : vector<256xf32> to vector<1x256xf32>
    %26 = vector.broadcast %25 : vector<1x256xf32> to vector<64x256xf32>
    %27 = arith.addf %24, %26 : vector<64x256xf32>
    %28 = arith.truncf %27 : vector<64x256xf32> to vector<64x256xbf16>
    %c0_10 = arith.constant 0 : index
    %c0_11 = arith.constant 0 : index
    %29 = vector.load %arg2[%c0_10, %c0_11] : memref<256x256xbf16, #tpu.memory_space<vmem>>, vector<256x256xbf16>
    %cst_12 = arith.constant dense<0.000000e+00> : vector<64x256xf32>
    %30 = tpu.matmul %28, %29, %cst_12 {dimension_numbers = #tpu.dot_dimension_numbers<[1], [0], [0], [1], [0, 0, 1, 1], [], []>} : vector<64x256xbf16>, vector<256x256xbf16>, vector<64x256xf32> -> vector<64x256xf32>
    %cst_13 = arith.constant 1.250000e-01 : f32
    %31 = vector.broadcast %cst_13 : f32 to vector<64x256xf32>
    %32 = arith.mulf %30, %31 : vector<64x256xf32>
    %c0_14 = arith.constant 0 : index
    %c0_15 = arith.constant 0 : index
    %33 = vector.load %arg3[%c0_14, %c0_15] : memref<256x256xbf16, #tpu.memory_space<vmem>>, vector<256x256xbf16>
    %cst_16 = arith.constant dense<0.000000e+00> : vector<64x256xf32>
    %34 = tpu.matmul %28, %33, %cst_16 {dimension_numbers = #tpu.dot_dimension_numbers<[1], [0], [0], [1], [0, 0, 1, 1], [], []>} : vector<64x256xbf16>, vector<256x256xbf16>, vector<64x256xf32> -> vector<64x256xf32>
    %c0_17 = arith.constant 0 : index
    %c0_18 = arith.constant 0 : index
    %35 = vector.load %arg4[%c0_17, %c0_18] : memref<256x256xbf16, #tpu.memory_space<vmem>>, vector<256x256xbf16>
    %cst_19 = arith.constant dense<0.000000e+00> : vector<64x256xf32>
    %36 = tpu.matmul %28, %35, %cst_19 {dimension_numbers = #tpu.dot_dimension_numbers<[1], [0], [0], [1], [0, 0, 1, 1], [], []>} : vector<64x256xbf16>, vector<256x256xbf16>, vector<64x256xf32> -> vector<64x256xf32>
    %37 = arith.truncf %32 : vector<64x256xf32> to vector<64x256xbf16>
    %c0_20 = arith.constant 0 : index
    %c0_21 = arith.constant 0 : index
    %c0_22 = arith.constant 0 : index
    %38 = vector.load %arg7[%c0_20, %c0_21, %c0_22] : memref<1x64x256xbf16, #tpu.memory_space<vmem>>, vector<1x64x256xbf16>
    %39 = vector.shape_cast %38 : vector<1x64x256xbf16> to vector<64x256xbf16>
    %40 = vector.shape_cast %37 : vector<64x256xbf16> to vector<1x64x256xbf16>
    tpu.vector_store %arg7[%c0_20, %c0_21, %c0_22], %40 {strides = array<i32>} : memref<1x64x256xbf16, #tpu.memory_space<vmem>>, vector<1x64x256xbf16>,
    %41 = arith.truncf %34 : vector<64x256xf32> to vector<64x256xbf16>
    %c0_23 = arith.constant 0 : index
    %c0_24 = arith.constant 0 : index
    %c0_25 = arith.constant 0 : index
    %42 = vector.load %arg8[%c0_23, %c0_24, %c0_25] : memref<1x64x256xbf16, #tpu.memory_space<vmem>>, vector<1x64x256xbf16>
    %43 = vector.shape_cast %42 : vector<1x64x256xbf16> to vector<64x256xbf16>
    %44 = vector.shape_cast %41 : vector<64x256xbf16> to vector<1x64x256xbf16>
    tpu.vector_store %arg8[%c0_23, %c0_24, %c0_25], %44 {strides = array<i32>} : memref<1x64x256xbf16, #tpu.memory_space<vmem>>, vector<1x64x256xbf16>,
    %45 = arith.truncf %36 : vector<64x256xf32> to vector<64x256xbf16>
    %c0_26 = arith.constant 0 : index
    %c0_27 = arith.constant 0 : index
    %c0_28 = arith.constant 0 : index
    %46 = vector.load %arg9[%c0_26, %c0_27, %c0_28] : memref<1x64x256xbf16, #tpu.memory_space<vmem>>, vector<1x64x256xbf16>
    %47 = vector.shape_cast %46 : vector<1x64x256xbf16> to vector<64x256xbf16>
    %48 = vector.shape_cast %45 : vector<64x256xbf16> to vector<1x64x256xbf16>
    tpu.vector_store %arg9[%c0_26, %c0_27, %c0_28], %48 {strides = array<i32>} : memref<1x64x256xbf16, #tpu.memory_space<vmem>>, vector<1x64x256xbf16>,
    return
  }
  func.func @transform_0(%arg0: i32) -> (i32, i32, i32) {
    %c0_i32 = arith.constant 0 : i32
    %c0_i32_0 = arith.constant 0 : i32
    %c0_i32_1 = arith.constant 0 : i32
    return %arg0, %c0_i32, %c0_i32_0 : i32, i32, i32
  }
  func.func @transform_1(%arg0: i32) -> (i32, i32) {
    %c0_i32 = arith.constant 0 : i32
    %c0_i32_0 = arith.constant 0 : i32
    %c0_i32_1 = arith.constant 0 : i32
    return %c0_i32, %c0_i32_0 : i32, i32
  }
  func.func @transform_2(%arg0: i32) -> (i32, i32) {
    %c0_i32 = arith.constant 0 : i32
    %c0_i32_0 = arith.constant 0 : i32
    %c0_i32_1 = arith.constant 0 : i32
    return %c0_i32, %c0_i32_0 : i32, i32
  }
  func.func @transform_3(%arg0: i32) -> (i32, i32) {
    %c0_i32 = arith.constant 0 : i32
    %c0_i32_0 = arith.constant 0 : i32
    %c0_i32_1 = arith.constant 0 : i32
    return %c0_i32, %c0_i32_0 : i32, i32
  }
  func.func @transform_4(%arg0: i32) -> (i32, i32) {
    %c0_i32 = arith.constant 0 : i32
    %c0_i32_0 = arith.constant 0 : i32
    %c0_i32_1 = arith.constant 0 : i32
    return %c0_i32, %c0_i32_0 : i32, i32
  }
  func.func @transform_5(%arg0: i32) -> (i32, i32) {
    %c0_i32 = arith.constant 0 : i32
    %c0_i32_0 = arith.constant 0 : i32
    %c0_i32_1 = arith.constant 0 : i32
    return %c0_i32, %c0_i32_0 : i32, i32
  }
  func.func @transform_6(%arg0: i32) -> (i32, i32, i32) {
    %c0_i32 = arith.constant 0 : i32
    %c0_i32_0 = arith.constant 0 : i32
    %c0_i32_1 = arith.constant 0 : i32
    return %arg0, %c0_i32, %c0_i32_0 : i32, i32, i32
  }
  func.func @transform_7(%arg0: i32) -> (i32, i32, i32) {
    %c0_i32 = arith.constant 0 : i32
    %c0_i32_0 = arith.constant 0 : i32
    %c0_i32_1 = arith.constant 0 : i32
    return %arg0, %c0_i32, %c0_i32_0 : i32, i32, i32
  }
  func.func @transform_8(%arg0: i32) -> (i32, i32, i32) {
    %c0_i32 = arith.constant 0 : i32
    %c0_i32_0 = arith.constant 0 : i32
    %c0_i32_1 = arith.constant 0 : i32
    return %arg0, %c0_i32, %c0_i32_0 : i32, i32, i32
  }
}

module attributes {stable_mosaic.version = 11 : i64} {
  func.func @attn_ff_kernel(%arg0: i32, %arg1: memref<1x64x256xf32, #tpu.memory_space<vmem>>, %arg2: memref<1x4x64x64xbf16, #tpu.memory_space<vmem>>, %arg3: memref<1x4x64x64xbf16, #tpu.memory_space<vmem>>, %arg4: memref<1x4x64x64xbf16, #tpu.memory_space<vmem>>, %arg5: memref<4x64x256xbf16, #tpu.memory_space<vmem>>, %arg6: memref<1x256xf32, #tpu.memory_space<vmem>>, %arg7: memref<256x1024xbf16, #tpu.memory_space<vmem>>, %arg8: memref<1x1024xf32, #tpu.memory_space<vmem>>, %arg9: memref<1024x256xbf16, #tpu.memory_space<vmem>>, %arg10: memref<1x256xf32, #tpu.memory_space<vmem>>, %arg11: memref<1x256xf32, #tpu.memory_space<vmem>>, %arg12: memref<1x256xf32, #tpu.memory_space<vmem>>, %arg13: memref<1x64x256xf32, #tpu.memory_space<vmem>>) attributes {dimension_semantics = [#tpu.dimension_semantics<parallel>], iteration_bounds = array<i64: 2>, scalar_prefetch = 0 : i64, scratch_operands = 0 : i64, tpu.core_type = #tpu.core_type<tc>, window_params = [{transform_indices = @transform_0, window_bounds = array<i64: 1, 64, 256>}, {transform_indices = @transform_1, window_bounds = array<i64: 1, 4, 64, 64>}, {transform_indices = @transform_2, window_bounds = array<i64: 1, 4, 64, 64>}, {transform_indices = @transform_3, window_bounds = array<i64: 1, 4, 64, 64>}, {pipeline_mode = #tpu.pipeline_mode<synchronous>, transform_indices = @transform_4, window_bounds = array<i64: 4, 64, 256>}, {pipeline_mode = #tpu.pipeline_mode<synchronous>, transform_indices = @transform_5, window_bounds = array<i64: 1, 256>}, {pipeline_mode = #tpu.pipeline_mode<synchronous>, transform_indices = @transform_6, window_bounds = array<i64: 256, 1024>}, {pipeline_mode = #tpu.pipeline_mode<synchronous>, transform_indices = @transform_7, window_bounds = array<i64: 1, 1024>}, {pipeline_mode = #tpu.pipeline_mode<synchronous>, transform_indices = @transform_8, window_bounds = array<i64: 1024, 256>}, {pipeline_mode = #tpu.pipeline_mode<synchronous>, transform_indices = @transform_9, window_bounds = array<i64: 1, 256>}, {pipeline_mode = #tpu.pipeline_mode<synchronous>, transform_indices = @transform_10, window_bounds = array<i64: 1, 256>}, {pipeline_mode = #tpu.pipeline_mode<synchronous>, transform_indices = @transform_11, window_bounds = array<i64: 1, 256>}, {transform_indices = @transform_12, window_bounds = array<i64: 1, 64, 256>}]} {
    %c0 = arith.constant 0 : index
    %c0_0 = arith.constant 0 : index
    %c0_1 = arith.constant 0 : index
    %0 = vector.load %arg1[%c0, %c0_0, %c0_1] : memref<1x64x256xf32, #tpu.memory_space<vmem>>, vector<1x64x256xf32>
    %1 = vector.shape_cast %0 : vector<1x64x256xf32> to vector<64x256xf32>
    %c0_2 = arith.constant 0 : index
    %c0_3 = arith.constant 0 : index
    %c0_4 = arith.constant 0 : index
    %c0_5 = arith.constant 0 : index
    %2 = vector.load %arg2[%c0_2, %c0_3, %c0_4, %c0_5] : memref<1x4x64x64xbf16, #tpu.memory_space<vmem>>, vector<1x4x64x64xbf16>
    %3 = vector.shape_cast %2 : vector<1x4x64x64xbf16> to vector<4x64x64xbf16>
    %c0_6 = arith.constant 0 : index
    %c0_7 = arith.constant 0 : index
    %c0_8 = arith.constant 0 : index
    %c0_9 = arith.constant 0 : index
    %4 = vector.load %arg3[%c0_6, %c0_7, %c0_8, %c0_9] : memref<1x4x64x64xbf16, #tpu.memory_space<vmem>>, vector<1x4x64x64xbf16>
    %5 = vector.shape_cast %4 : vector<1x4x64x64xbf16> to vector<4x64x64xbf16>
    %c0_10 = arith.constant 0 : index
    %c0_11 = arith.constant 0 : index
    %c0_12 = arith.constant 0 : index
    %c0_13 = arith.constant 0 : index
    %6 = vector.load %arg4[%c0_10, %c0_11, %c0_12, %c0_13] : memref<1x4x64x64xbf16, #tpu.memory_space<vmem>>, vector<1x4x64x64xbf16>
    %7 = vector.shape_cast %6 : vector<1x4x64x64xbf16> to vector<4x64x64xbf16>
    %8 = tpu.iota {dimensions = array<i32: 0>} : vector<64x64xi32>
    %9 = tpu.iota {dimensions = array<i32: 1>} : vector<64x64xi32>
    %10 = arith.cmpi sle, %9, %8 : vector<64x64xi32>
    %cst = arith.constant 0.000000e+00 : f32
    %cst_14 = arith.constant -1.000000e+30 : f32
    %11 = vector.broadcast %cst : f32 to vector<64x64xf32>
    %12 = vector.broadcast %cst_14 : f32 to vector<64x64xf32>
    %13 = arith.select %10, %11, %12 : vector<64x64xi1>, vector<64x64xf32>
    "tpu.trace_start"() <{level = 10 : i32, message = "hqd,hkd->hqk"}> : () -> ()
    %cst_15 = arith.constant dense<0.000000e+00> : vector<4x64x64xf32>
    %14 = tpu.matmul %3, %5, %cst_15 {dimension_numbers = #tpu.dot_dimension_numbers<[2], [2], [1], [1], [0, 0, 0, 1, 1, 1], [0], [0]>} : vector<4x64x64xbf16>, vector<4x64x64xbf16>, vector<4x64x64xf32> -> vector<4x64x64xf32>
    "tpu.trace_stop"() : () -> ()
    %15 = vector.shape_cast %13 : vector<64x64xf32> to vector<1x64x64xf32>
    %16 = vector.broadcast %15 : vector<1x64x64xf32> to vector<4x64x64xf32>
    %17 = arith.addf %14, %16 : vector<4x64x64xf32>
    %cst_16 = arith.constant dense<0xFF800000> : vector<4x64xf32>
    %18 = vector.multi_reduction <maximumf>, %17, %cst_16 [2] : vector<4x64x64xf32> to vector<4x64xf32>
    %19 = vector.shape_cast %18 : vector<4x64xf32> to vector<4x64x1xf32>
    %20 = vector.broadcast %19 : vector<4x64x1xf32> to vector<4x64x64xf32>
    %21 = arith.subf %17, %20 : vector<4x64x64xf32>
    %22 = math.exp %21 : vector<4x64x64xf32>
    %cst_17 = arith.constant dense<0.000000e+00> : vector<4x64xf32>
    %23 = vector.multi_reduction <add>, %22, %cst_17 [2] : vector<4x64x64xf32> to vector<4x64xf32>
    %24 = vector.shape_cast %23 : vector<4x64xf32> to vector<4x64x1xf32>
    %25 = tpu.reciprocal %24 {approx = true} : vector<4x64x1xf32> -> vector<4x64x1xf32>
    %26 = vector.broadcast %25 : vector<4x64x1xf32> to vector<4x64x64xf32>
    %27 = arith.mulf %22, %26 : vector<4x64x64xf32>
    %28 = arith.truncf %27 : vector<4x64x64xf32> to vector<4x64x64xbf16>
    "tpu.trace_start"() <{level = 10 : i32, message = "hqk,hkd->hqd"}> : () -> ()
    %cst_18 = arith.constant dense<0.000000e+00> : vector<4x64x64xf32>
    %29 = tpu.matmul %28, %7, %cst_18 {dimension_numbers = #tpu.dot_dimension_numbers<[2], [1], [1], [2], [0, 0, 0, 1, 1, 2], [0], [0]>} : vector<4x64x64xbf16>, vector<4x64x64xbf16>, vector<4x64x64xf32> -> vector<4x64x64xf32>
    "tpu.trace_stop"() : () -> ()
    %30 = arith.truncf %29 : vector<4x64x64xf32> to vector<4x64x64xbf16>
    %c0_19 = arith.constant 0 : index
    %c0_20 = arith.constant 0 : index
    %c0_21 = arith.constant 0 : index
    %31 = vector.load %arg5[%c0_19, %c0_20, %c0_21] : memref<4x64x256xbf16, #tpu.memory_space<vmem>>, vector<4x64x256xbf16>
    "tpu.trace_start"() <{level = 10 : i32, message = "hqd,hde->hqe"}> : () -> ()
    %cst_22 = arith.constant dense<0.000000e+00> : vector<4x64x256xf32>
    %32 = tpu.matmul %30, %31, %cst_22 {dimension_numbers = #tpu.dot_dimension_numbers<[2], [1], [1], [2], [0, 0, 0, 1, 1, 2], [0], [0]>} : vector<4x64x64xbf16>, vector<4x64x256xbf16>, vector<4x64x256xf32> -> vector<4x64x256xf32>
    "tpu.trace_stop"() : () -> ()
    %cst_23 = arith.constant dense<0.000000e+00> : vector<64x256xf32>
    %33 = vector.multi_reduction <add>, %32, %cst_23 [0] : vector<4x64x256xf32> to vector<64x256xf32>
    %c0_24 = arith.constant 0 : index
    %c0_25 = arith.constant 0 : index
    %34 = vector.load %arg6[%c0_24, %c0_25] : memref<1x256xf32, #tpu.memory_space<vmem>>, vector<1x256xf32>
    %35 = vector.shape_cast %34 : vector<1x256xf32> to vector<256xf32>
    %36 = vector.shape_cast %35 : vector<256xf32> to vector<1x256xf32>
    %37 = vector.broadcast %36 : vector<1x256xf32> to vector<64x256xf32>
    %38 = arith.addf %33, %37 : vector<64x256xf32>
    %39 = arith.addf %1, %38 : vector<64x256xf32>
    %c0_26 = arith.constant 0 : index
    %c0_27 = arith.constant 0 : index
    %40 = vector.load %arg11[%c0_26, %c0_27] : memref<1x256xf32, #tpu.memory_space<vmem>>, vector<1x256xf32>
    %41 = vector.shape_cast %40 : vector<1x256xf32> to vector<256xf32>
    %c0_28 = arith.constant 0 : index
    %c0_29 = arith.constant 0 : index
    %42 = vector.load %arg12[%c0_28, %c0_29] : memref<1x256xf32, #tpu.memory_space<vmem>>, vector<1x256xf32>
    %43 = vector.shape_cast %42 : vector<1x256xf32> to vector<256xf32>
    %cst_30 = arith.constant dense<0.000000e+00> : vector<64xf32>
    %44 = vector.multi_reduction <add>, %39, %cst_30 [1] : vector<64x256xf32> to vector<64xf32>
    %45 = vector.shape_cast %44 : vector<64xf32> to vector<64x1xf32>
    %cst_31 = arith.constant 2.560000e+02 : f32
    %46 = vector.broadcast %cst_31 : f32 to vector<64x1xf32>
    %47 = arith.divf %45, %46 : vector<64x1xf32>
    %48 = vector.broadcast %47 : vector<64x1xf32> to vector<64x256xf32>
    %49 = arith.subf %39, %48 : vector<64x256xf32>
    %50 = arith.mulf %49, %49 : vector<64x256xf32>
    %cst_32 = arith.constant dense<0.000000e+00> : vector<64xf32>
    %51 = vector.multi_reduction <add>, %50, %cst_32 [1] : vector<64x256xf32> to vector<64xf32>
    %52 = vector.shape_cast %51 : vector<64xf32> to vector<64x1xf32>
    %cst_33 = arith.constant 2.560000e+02 : f32
    %53 = vector.broadcast %cst_33 : f32 to vector<64x1xf32>
    %54 = arith.divf %52, %53 : vector<64x1xf32>
    %cst_34 = arith.constant 9.99999974E-6 : f32
    %55 = vector.broadcast %cst_34 : f32 to vector<64x1xf32>
    %56 = arith.addf %54, %55 : vector<64x1xf32>
    %57 = math.rsqrt %56 : vector<64x1xf32>
    %58 = vector.broadcast %57 : vector<64x1xf32> to vector<64x256xf32>
    %59 = arith.mulf %49, %58 : vector<64x256xf32>
    %60 = vector.shape_cast %41 : vector<256xf32> to vector<1x256xf32>
    %61 = vector.broadcast %60 : vector<1x256xf32> to vector<64x256xf32>
    %62 = arith.mulf %59, %61 : vector<64x256xf32>
    %63 = vector.shape_cast %43 : vector<256xf32> to vector<1x256xf32>
    %64 = vector.broadcast %63 : vector<1x256xf32> to vector<64x256xf32>
    %65 = arith.addf %62, %64 : vector<64x256xf32>
    %66 = arith.truncf %65 : vector<64x256xf32> to vector<64x256xbf16>
    %c0_35 = arith.constant 0 : index
    %c0_36 = arith.constant 0 : index
    %67 = vector.load %arg7[%c0_35, %c0_36] : memref<256x1024xbf16, #tpu.memory_space<vmem>>, vector<256x1024xbf16>
    %cst_37 = arith.constant dense<0.000000e+00> : vector<64x1024xf32>
    %68 = tpu.matmul %66, %67, %cst_37 {dimension_numbers = #tpu.dot_dimension_numbers<[1], [0], [0], [1], [0, 0, 1, 1], [], []>} : vector<64x256xbf16>, vector<256x1024xbf16>, vector<64x1024xf32> -> vector<64x1024xf32>
    %c0_38 = arith.constant 0 : index
    %c0_39 = arith.constant 0 : index
    %69 = vector.load %arg8[%c0_38, %c0_39] : memref<1x1024xf32, #tpu.memory_space<vmem>>, vector<1x1024xf32>
    %70 = vector.shape_cast %69 : vector<1x1024xf32> to vector<1024xf32>
    %71 = vector.shape_cast %70 : vector<1024xf32> to vector<1x1024xf32>
    %72 = vector.broadcast %71 : vector<1x1024xf32> to vector<64x1024xf32>
    %73 = arith.addf %68, %72 : vector<64x1024xf32>
    %cst_40 = arith.constant 5.000000e-01 : f32
    %74 = vector.broadcast %cst_40 : f32 to vector<64x1024xf32>
    %75 = arith.mulf %74, %73 : vector<64x1024xf32>
    %76 = arith.mulf %73, %73 : vector<64x1024xf32>
    %77 = arith.mulf %76, %73 : vector<64x1024xf32>
    %cst_41 = arith.constant 4.471500e-02 : f32
    %78 = vector.broadcast %cst_41 : f32 to vector<64x1024xf32>
    %79 = arith.mulf %78, %77 : vector<64x1024xf32>
    %80 = arith.addf %73, %79 : vector<64x1024xf32>
    %cst_42 = arith.constant 0.797884583 : f32
    %81 = vector.broadcast %cst_42 : f32 to vector<64x1024xf32>
    %82 = arith.mulf %81, %80 : vector<64x1024xf32>
    %83 = math.tanh %82 : vector<64x1024xf32>
    %cst_43 = arith.constant 1.000000e+00 : f32
    %84 = vector.broadcast %cst_43 : f32 to vector<64x1024xf32>
    %85 = arith.addf %84, %83 : vector<64x1024xf32>
    %86 = arith.mulf %75, %85 : vector<64x1024xf32>
    %87 = arith.truncf %86 : vector<64x1024xf32> to vector<64x1024xbf16>
    %c0_44 = arith.constant 0 : index
    %c0_45 = arith.constant 0 : index
    %88 = vector.load %arg9[%c0_44, %c0_45] : memref<1024x256xbf16, #tpu.memory_space<vmem>>, vector<1024x256xbf16>
    %cst_46 = arith.constant dense<0.000000e+00> : vector<64x256xf32>
    %89 = tpu.matmul %87, %88, %cst_46 {dimension_numbers = #tpu.dot_dimension_numbers<[1], [0], [0], [1], [0, 0, 1, 1], [], []>} : vector<64x1024xbf16>, vector<1024x256xbf16>, vector<64x256xf32> -> vector<64x256xf32>
    %c0_47 = arith.constant 0 : index
    %c0_48 = arith.constant 0 : index
    %90 = vector.load %arg10[%c0_47, %c0_48] : memref<1x256xf32, #tpu.memory_space<vmem>>, vector<1x256xf32>
    %91 = vector.shape_cast %90 : vector<1x256xf32> to vector<256xf32>
    %92 = vector.shape_cast %91 : vector<256xf32> to vector<1x256xf32>
    %93 = vector.broadcast %92 : vector<1x256xf32> to vector<64x256xf32>
    %94 = arith.addf %89, %93 : vector<64x256xf32>
    %95 = arith.addf %39, %94 : vector<64x256xf32>
    %c0_49 = arith.constant 0 : index
    %c0_50 = arith.constant 0 : index
    %c0_51 = arith.constant 0 : index
    %96 = vector.load %arg13[%c0_49, %c0_50, %c0_51] : memref<1x64x256xf32, #tpu.memory_space<vmem>>, vector<1x64x256xf32>
    %97 = vector.shape_cast %96 : vector<1x64x256xf32> to vector<64x256xf32>
    %98 = vector.shape_cast %95 : vector<64x256xf32> to vector<1x64x256xf32>
    tpu.vector_store %arg13[%c0_49, %c0_50, %c0_51], %98 {strides = array<i32>} : memref<1x64x256xf32, #tpu.memory_space<vmem>>, vector<1x64x256xf32>,
    return
  }
  func.func @transform_0(%arg0: i32) -> (i32, i32, i32) {
    %c0_i32 = arith.constant 0 : i32
    %c0_i32_0 = arith.constant 0 : i32
    %c0_i32_1 = arith.constant 0 : i32
    return %arg0, %c0_i32, %c0_i32_0 : i32, i32, i32
  }
  func.func @transform_1(%arg0: i32) -> (i32, i32, i32, i32) {
    %c0_i32 = arith.constant 0 : i32
    %c0_i32_0 = arith.constant 0 : i32
    %c0_i32_1 = arith.constant 0 : i32
    %c0_i32_2 = arith.constant 0 : i32
    return %arg0, %c0_i32, %c0_i32_0, %c0_i32_1 : i32, i32, i32, i32
  }
  func.func @transform_2(%arg0: i32) -> (i32, i32, i32, i32) {
    %c0_i32 = arith.constant 0 : i32
    %c0_i32_0 = arith.constant 0 : i32
    %c0_i32_1 = arith.constant 0 : i32
    %c0_i32_2 = arith.constant 0 : i32
    return %arg0, %c0_i32, %c0_i32_0, %c0_i32_1 : i32, i32, i32, i32
  }
  func.func @transform_3(%arg0: i32) -> (i32, i32, i32, i32) {
    %c0_i32 = arith.constant 0 : i32
    %c0_i32_0 = arith.constant 0 : i32
    %c0_i32_1 = arith.constant 0 : i32
    %c0_i32_2 = arith.constant 0 : i32
    return %arg0, %c0_i32, %c0_i32_0, %c0_i32_1 : i32, i32, i32, i32
  }
  func.func @transform_4(%arg0: i32) -> (i32, i32, i32) {
    %c0_i32 = arith.constant 0 : i32
    %c0_i32_0 = arith.constant 0 : i32
    %c0_i32_1 = arith.constant 0 : i32
    %c0_i32_2 = arith.constant 0 : i32
    return %c0_i32, %c0_i32_0, %c0_i32_1 : i32, i32, i32
  }
  func.func @transform_5(%arg0: i32) -> (i32, i32) {
    %c0_i32 = arith.constant 0 : i32
    %c0_i32_0 = arith.constant 0 : i32
    %c0_i32_1 = arith.constant 0 : i32
    return %c0_i32, %c0_i32_0 : i32, i32
  }
  func.func @transform_6(%arg0: i32) -> (i32, i32) {
    %c0_i32 = arith.constant 0 : i32
    %c0_i32_0 = arith.constant 0 : i32
    %c0_i32_1 = arith.constant 0 : i32
    return %c0_i32, %c0_i32_0 : i32, i32
  }
  func.func @transform_7(%arg0: i32) -> (i32, i32) {
    %c0_i32 = arith.constant 0 : i32
    %c0_i32_0 = arith.constant 0 : i32
    %c0_i32_1 = arith.constant 0 : i32
    return %c0_i32, %c0_i32_0 : i32, i32
  }
  func.func @transform_8(%arg0: i32) -> (i32, i32) {
    %c0_i32 = arith.constant 0 : i32
    %c0_i32_0 = arith.constant 0 : i32
    %c0_i32_1 = arith.constant 0 : i32
    return %c0_i32, %c0_i32_0 : i32, i32
  }
  func.func @transform_9(%arg0: i32) -> (i32, i32) {
    %c0_i32 = arith.constant 0 : i32
    %c0_i32_0 = arith.constant 0 : i32
    %c0_i32_1 = arith.constant 0 : i32
    return %c0_i32, %c0_i32_0 : i32, i32
  }
  func.func @transform_10(%arg0: i32) -> (i32, i32) {
    %c0_i32 = arith.constant 0 : i32
    %c0_i32_0 = arith.constant 0 : i32
    %c0_i32_1 = arith.constant 0 : i32
    return %c0_i32, %c0_i32_0 : i32, i32
  }
  func.func @transform_11(%arg0: i32) -> (i32, i32) {
    %c0_i32 = arith.constant 0 : i32
    %c0_i32_0 = arith.constant 0 : i32
    %c0_i32_1 = arith.constant 0 : i32
    return %c0_i32, %c0_i32_0 : i32, i32
  }
  func.func @transform_12(%arg0: i32) -> (i32, i32, i32) {
    %c0_i32 = arith.constant 0 : i32
    %c0_i32_0 = arith.constant 0 : i32
    %c0_i32_1 = arith.constant 0 : i32
    return %arg0, %c0_i32, %c0_i32_0 : i32, i32, i32
  }
}

</mosaic_0001>

<llo_original>
// kernel: _lambda_.2
$region0: #{_lambda_.2}
  #allocation0 [shape = 'u32[]', space=smem, size = 0x4, offset = 0x4, fixed_abs, tag = 'smem constant byte address 0x4 - core index']
  #allocation1 [shape = 'u32[144,128]{1,0:T(1,128)}', space=vmem, size = 0x12000, scoped, tag = 'internal scratch']
  %s0 = inlined_call_operand.hbm [shape: f32[2,64,256], index: 0, kind: input, shape index: {}]
  %s1 = inlined_call_operand.hbm [shape: bf16[256,256], index: 1, kind: input, shape index: {}]
  %s2 = inlined_call_operand.hbm [shape: bf16[256,256], index: 2, kind: input, shape index: {}]
  %s3 = inlined_call_operand.hbm [shape: bf16[256,256], index: 3, kind: input, shape index: {}]
  %s4 = inlined_call_operand.hbm [shape: f32[1,256], index: 4, kind: input, shape index: {}]
  %s5 = inlined_call_operand.hbm [shape: f32[1,256], index: 5, kind: input, shape index: {}]
  %s6 = inlined_call_operand.hbm [shape: bf16[2,64,256], index: 6, kind: output, shape index: {0}]
  %s7 = inlined_call_operand.hbm [shape: bf16[2,64,256], index: 7, kind: output, shape index: {1}]
  %s8 = inlined_call_operand.hbm [shape: bf16[2,64,256], index: 8, kind: output, shape index: {2}]
  %9 = xla_tuple %s6, %s7, %s8
  %s10 = sld [smem:[#allocation0]]
  $region97: #{_lambda_.2} parent=0
    _
  %s12 = ssub.s32 1, %s10
  %s13 = scalar_select 0, %s12, %s10
  $region1: #{_lambda_.2} parent=0
    #allocation2 [shape = 'u8[131072]{0}', space=vmem, size = 0x20000, scoped, tag = 'input window, operand 0']
    #allocation3 [shape = 's32[2]{0}', space=sflag, size = 0x8, scoped, tag = 'scoped memory for _lambda_.2']
    #allocation4 [shape = 's32[2]{0}', space=sflag, size = 0x8, scoped, tag = 'scoped memory for _lambda_.2']
    #allocation5 [shape = 'u8[131072]{0}', space=vmem, size = 0x20000, scoped, tag = 'input window, operand 1, single buffered']
    #allocation6 [shape = 's32[1]{0}', space=sflag, size = 0x4, scoped, tag = 'scoped memory for _lambda_.2']
    #allocation7 [shape = 'u8[131072]{0}', space=vmem, size = 0x20000, scoped, tag = 'input window, operand 2, single buffered']
    #allocation8 [shape = 'u8[131072]{0}', space=vmem, size = 0x20000, scoped, tag = 'input window, operand 3, single buffered']
    #allocation9 [shape = 's32[1]{0}', space=sflag, size = 0x4, scoped, tag = 'scoped memory for _lambda_.2']
    #allocation10 [shape = 'u8[1024]{0}', space=vmem, size = 0x400, scoped, tag = 'input window, operand 4, single buffered']
    #allocation11 [shape = 'u8[1024]{0}', space=vmem, size = 0x400, scoped, tag = 'input window, operand 5, single buffered']
    #allocation12 [shape = 's32[1]{0}', space=sflag, size = 0x4, scoped, tag = 'scoped memory for _lambda_.2']
    #allocation13 [shape = 'u8[65536]{0}', space=vmem, size = 0x10000, scoped, tag = 'output window, operand 0']
    #allocation14 [shape = 'u8[65536]{0}', space=vmem, size = 0x10000, scoped, tag = 'output window, operand 1']
    #allocation15 [shape = 's32[2]{0}', space=sflag, size = 0x8, scoped, tag = 'scoped memory for _lambda_.2']
    #allocation16 [shape = 'u8[65536]{0}', space=vmem, size = 0x10000, scoped, tag = 'output window, operand 2']
    %14 = vsyncpa [#allocation3], 0
    %s15 = scalar_lea.sflag [#allocation3], 1
    %16 = vsyncpa %s15, 0
    %17 = vsyncpa [#allocation6], 0
    %18 = vsyncpa [#allocation9], 0
    %19 = vsyncpa [#allocation12], 0
    %20 = vsyncpa [#allocation4], 0
    %s21 = scalar_lea.sflag [#allocation4], 1
    %22 = vsyncpa %s21, 0
    %23 = vsyncpa [#allocation15], 0
    %s24 = scalar_lea.sflag [#allocation15], 1
    %25 = vsyncpa %s24, 0
    loop: start=0, step=1, limit=4
    $region2: #{_lambda_.2} parent=1 // loop_pre_header
      _
    $region3: #{_lambda_.2} parent=1 // loop_header
      %s27 = sphi 0, %s31
      %p28 = scmp.ge.s32.totalorder %s27, 4
      %s37 = sphi 0, %s39
      %s40 = sphi 0, %s37
      %s41 = sphi 0, %s40
      %s57 = sphi 0, %s41
      %s61 = sphi 0, %s61
      %s63 = sphi 0, %s61
      %s64 = sphi 0, %s63
      %s78 = sphi 0, %s64
      %s82 = sphi 0, %s82
      %s84 = sphi 0, %s82
      %s85 = sphi 0, %s84
      %s99 = sphi 0, %s85
      %s103 = sphi 0, %s103
      %s105 = sphi 0, %s103
      %s106 = sphi 0, %s105
      %s120 = sphi 0, %s106
      %s124 = sphi 0, %s124
      %s126 = sphi 0, %s124
      %s127 = sphi 0, %s126
      %s141 = sphi 0, %s127
      %s145 = sphi 0, %s145
      %s147 = sphi 0, %s145
      %s148 = sphi 0, %s147
      %s162 = sphi 0, %s148
      %s168 = sphi 0, %s170
      %s171 = sphi 0, %s168
      %s172 = sphi 0, %s171
      %s188 = sphi 0, %s172
      %s194 = sphi 0, %s196
      %s197 = sphi 0, %s194
      %s198 = sphi 0, %s197
      %s214 = sphi 0, %s198
      %s220 = sphi 0, %s222
      %s223 = sphi 0, %s220
      %s224 = sphi 0, %s223
      %s240 = sphi 0, %s224
    $region4: #{_lambda_.2} parent=1 // loop_header_branch
      %30 = sbr.rel (%p28) target = $region8
    $region5: #{_lambda_.2} parent=1 // loop_body
      %s32 = ssub.s32 %s27, 1
      %s33 = ssub.s32 %s27, 2
      %s34 = sadd.s32 %s27, 1
      %s35 = ssub.s32 %s27, %s34
      %p36 = scmp.eq.s32.totalorder %s35, 0
      %s38 = sadd.s32 %s37, 1
      %s39 = scalar_select %p36, %s37, %s38
      %p42 = pneg %p36
      %p43 = scmp.eq.s32.totalorder %s27, 1
      %p44 = por %p42, %p43
      %p45 = scmp.ne.s32.totalorder %s37, %s40
      %p46 = scmp.eq.s32.totalorder %s27, 0
      %p47 = por %p45, %p46
      %p48 = scmp.ne.s32.totalorder %s37, %s40
      %p49 = scmp.eq.s32.totalorder %s32, 1
      %p50 = por %p48, %p49
      %p51 = scmp.ne.s32.totalorder %s40, %s41
      %p52 = scmp.eq.s32.totalorder %s32, 0
      %p53 = por %p51, %p52
      %p54 = scmp.ne.s32.totalorder %s40, %s41
      %p55 = scmp.eq.s32.totalorder %s33, 1
      %p56 = por %p54, %p55
      %p58 = scmp.ne.s32.totalorder %s41, %s57
      %p59 = scmp.eq.s32.totalorder %s33, 0
      %p60 = por %p58, %p59
      %s62 = sadd.s32 %s61, 1
      %p65 = scmp.eq.s32.totalorder %s27, 1
      %p66 = scmp.ne.s32.totalorder %s61, %s63
      %p67 = scmp.eq.s32.totalorder %s27, 0
      %p68 = por %p66, %p67
      %p69 = scmp.ne.s32.totalorder %s61, %s63
      %p70 = scmp.eq.s32.totalorder %s32, 1
      %p71 = por %p69, %p70
      %p72 = scmp.ne.s32.totalorder %s63, %s64
      %p73 = scmp.eq.s32.totalorder %s32, 0
      %p74 = por %p72, %p73
      %p75 = scmp.ne.s32.totalorder %s63, %s64
      %p76 = scmp.eq.s32.totalorder %s33, 1
      %p77 = por %p75, %p76
      %p79 = scmp.ne.s32.totalorder %s64, %s78
      %p80 = scmp.eq.s32.totalorder %s33, 0
      %p81 = por %p79, %p80
      %s83 = sadd.s32 %s82, 1
      %p86 = scmp.eq.s32.totalorder %s27, 1
      %p87 = scmp.ne.s32.totalorder %s82, %s84
      %p88 = scmp.eq.s32.totalorder %s27, 0
      %p89 = por %p87, %p88
      %p90 = scmp.ne.s32.totalorder %s82, %s84
      %p91 = scmp.eq.s32.totalorder %s32, 1
      %p92 = por %p90, %p91
      %p93 = scmp.ne.s32.totalorder %s84, %s85
      %p94 = scmp.eq.s32.totalorder %s32, 0
      %p95 = por %p93, %p94
      %p96 = scmp.ne.s32.totalorder %s84, %s85
      %p97 = scmp.eq.s32.totalorder %s33, 1
      %p98 = por %p96, %p97
      %p100 = scmp.ne.s32.totalorder %s85, %s99
      %p101 = scmp.eq.s32.totalorder %s33, 0
      %p102 = por %p100, %p101
      %s104 = sadd.s32 %s103, 1
      %p107 = scmp.eq.s32.totalorder %s27, 1
      %p108 = scmp.ne.s32.totalorder %s103, %s105
      %p109 = scmp.eq.s32.totalorder %s27, 0
      %p110 = por %p108, %p109
      %p111 = scmp.ne.s32.totalorder %s103, %s105
      %p112 = scmp.eq.s32.totalorder %s32, 1
      %p113 = por %p111, %p112
      %p114 = scmp.ne.s32.totalorder %s105, %s106
      %p115 = scmp.eq.s32.totalorder %s32, 0
      %p116 = por %p114, %p115
      %p117 = scmp.ne.s32.totalorder %s105, %s106
      %p118 = scmp.eq.s32.totalorder %s33, 1
      %p119 = por %p117, %p118
      %p121 = scmp.ne.s32.totalorder %s106, %s120
      %p122 = scmp.eq.s32.totalorder %s33, 0
      %p123 = por %p121, %p122
      %s125 = sadd.s32 %s124, 1
      %p128 = scmp.eq.s32.totalorder %s27, 1
      %p129 = scmp.ne.s32.totalorder %s124, %s126
      %p130 = scmp.eq.s32.totalorder %s27, 0
      %p131 = por %p129, %p130
      %p132 = scmp.ne.s32.totalorder %s124, %s126
      %p133 = scmp.eq.s32.totalorder %s32, 1
      %p134 = por %p132, %p133
      %p135 = scmp.ne.s32.totalorder %s126, %s127
      %p136 = scmp.eq.s32.totalorder %s32, 0
      %p137 = por %p135, %p136
      %p138 = scmp.ne.s32.totalorder %s126, %s127
      %p139 = scmp.eq.s32.totalorder %s33, 1
      %p140 = por %p138, %p139
      %p142 = scmp.ne.s32.totalorder %s127, %s141
      %p143 = scmp.eq.s32.totalorder %s33, 0
      %p144 = por %p142, %p143
      %s146 = sadd.s32 %s145, 1
      %p149 = scmp.eq.s32.totalorder %s27, 1
      %p150 = scmp.ne.s32.totalorder %s145, %s147
      %p151 = scmp.eq.s32.totalorder %s27, 0
      %p152 = por %p150, %p151
      %p153 = scmp.ne.s32.totalorder %s145, %s147
      %p154 = scmp.eq.s32.totalorder %s32, 1
      %p155 = por %p153, %p154
      %p156 = scmp.ne.s32.totalorder %s147, %s148
      %p157 = scmp.eq.s32.totalorder %s32, 0
      %p158 = por %p156, %p157
      %p159 = scmp.ne.s32.totalorder %s147, %s148
      %p160 = scmp.eq.s32.totalorder %s33, 1
      %p161 = por %p159, %p160
      %p163 = scmp.ne.s32.totalorder %s148, %s162
      %p164 = scmp.eq.s32.totalorder %s33, 0
      %p165 = por %p163, %p164
      %s166 = ssub.s32 %s27, %s34
      %p167 = scmp.eq.s32.totalorder %s166, 0
      %s169 = sadd.s32 %s168, 1
      %s170 = scalar_select %p167, %s168, %s169
      %p173 = pneg %p167
      %p174 = scmp.eq.s32.totalorder %s27, 1
      %p175 = por %p173, %p174
      %p176 = scmp.ne.s32.totalorder %s168, %s171
      %p177 = scmp.eq.s32.totalorder %s27, 0
      %p178 = por %p176, %p177
      %p179 = scmp.ne.s32.totalorder %s168, %s171
      %p180 = scmp.eq.s32.totalorder %s32, 1
      %p181 = por %p179, %p180
      %p182 = scmp.ne.s32.totalorder %s171, %s172
      %p183 = scmp.eq.s32.totalorder %s32, 0
      %p184 = por %p182, %p183
      %p185 = scmp.ne.s32.totalorder %s171, %s172
      %p186 = scmp.eq.s32.totalorder %s33, 1
      %p187 = por %p185, %p186
      %p189 = scmp.ne.s32.totalorder %s172, %s188
      %p190 = scmp.eq.s32.totalorder %s33, 0
      %p191 = por %p189, %p190
      %s192 = ssub.s32 %s27, %s34
      %p193 = scmp.eq.s32.totalorder %s192, 0
      %s195 = sadd.s32 %s194, 1
      %s196 = scalar_select %p193, %s194, %s195
      %p199 = pneg %p193
      %p200 = scmp.eq.s32.totalorder %s27, 1
      %p201 = por %p199, %p200
      %p202 = scmp.ne.s32.totalorder %s194, %s197
      %p203 = scmp.eq.s32.totalorder %s27, 0
      %p204 = por %p202, %p203
      %p205 = scmp.ne.s32.totalorder %s194, %s197
      %p206 = scmp.eq.s32.totalorder %s32, 1
      %p207 = por %p205, %p206
      %p208 = scmp.ne.s32.totalorder %s197, %s198
      %p209 = scmp.eq.s32.totalorder %s32, 0
      %p210 = por %p208, %p209
      %p211 = scmp.ne.s32.totalorder %s197, %s198
      %p212 = scmp.eq.s32.totalorder %s33, 1
      %p213 = por %p211, %p212
      %p215 = scmp.ne.s32.totalorder %s198, %s214
      %p216 = scmp.eq.s32.totalorder %s33, 0
      %p217 = por %p215, %p216
      %s218 = ssub.s32 %s27, %s34
      %p219 = scmp.eq.s32.totalorder %s218, 0
      %s221 = sadd.s32 %s220, 1
      %s222 = scalar_select %p219, %s220, %s221
      %p225 = pneg %p219
      %p226 = scmp.eq.s32.totalorder %s27, 1
      %p227 = por %p225, %p226
      %p228 = scmp.ne.s32.totalorder %s220, %s223
      %p229 = scmp.eq.s32.totalorder %s27, 0
      %p230 = por %p228, %p229
      %p231 = scmp.ne.s32.totalorder %s220, %s223
      %p232 = scmp.eq.s32.totalorder %s32, 1
      %p233 = por %p231, %p232
      %p234 = scmp.ne.s32.totalorder %s223, %s224
      %p235 = scmp.eq.s32.totalorder %s32, 0
      %p236 = por %p234, %p235
      %p237 = scmp.ne.s32.totalorder %s223, %s224
      %p238 = scmp.eq.s32.totalorder %s33, 1
      %p239 = por %p237, %p238
      %p241 = scmp.ne.s32.totalorder %s224, %s240
      %p242 = scmp.eq.s32.totalorder %s33, 0
      %p243 = por %p241, %p242
      %p244 = scmp.le.s32.totalorder 1, %s27
      %p245 = scmp.lt.s32.totalorder %s27, 3
      %p246 = pnand %p244, %p245
      %p247 = pneg %p246
      // Predicated region
      $region9: #{_lambda_.2} parent=5 // pred_check
        _
      $region10: #{_lambda_.2} parent=5 // pred_check_branch
        %249 = sbr.rel (%p246) target = $region12
      $region11: #{_lambda_.2} parent=5 // pred_region
        %s250 = ssub.s32 %s27, 1
        // Predicated region
        $region13: #{_lambda_.2} parent=11 // pred_check
          %p251 = pneg %p74
        $region14: #{_lambda_.2} parent=11 // pred_check_branch
          %253 = sbr.rel (%p251) target = $region16
        $region15: #{_lambda_.2} parent=11 // pred_region
          %s255 = ssub.s32 4096, 4096
          %256 = vsyncadd [#allocation6], %s255
          %s257 = sshll.u32 [#allocation5], 4
          %s258 = int_to_ptr.vmem [resolvable:$true] %s257
          %263 = dma.hbm_to_vmem [thread:$0]  %s1, 4096, %s258, [#allocation6], 128, 128, 8
        $region16: #{_lambda_.2} parent=11 // pred_fallthru
          _
        // Predicated region
        $region17: #{_lambda_.2} parent=11 // pred_check
          %p264 = pneg %p95
        $region18: #{_lambda_.2} parent=11 // pred_check_branch
          %266 = sbr.rel (%p264) target = $region20
        $region19: #{_lambda_.2} parent=11 // pred_region
          %s268 = ssub.s32 4096, 4096
          %269 = vsyncadd [#allocation6], %s268
          %s270 = sshll.u32 [#allocation7], 4
          %s271 = int_to_ptr.vmem [resolvable:$true] %s270
          %276 = dma.hbm_to_vmem [thread:$0]  %s2, 4096, %s271, [#allocation6], 128, 128, 8
        $region20: #{_lambda_.2} parent=11 // pred_fallthru
          _
        // Predicated region
        $region21: #{_lambda_.2} parent=11 // pred_check
          %p277 = pneg %p116
        $region22: #{_lambda_.2} parent=11 // pred_check_branch
          %279 = sbr.rel (%p277) target = $region24
        $region23: #{_lambda_.2} parent=11 // pred_region
          %s281 = ssub.s32 4096, 4096
          %282 = vsyncadd [#allocation9], %s281
          %s283 = sshll.u32 [#allocation8], 4
          %s284 = int_to_ptr.vmem [resolvable:$true] %s283
          %289 = dma.hbm_to_vmem [thread:$0]  %s3, 4096, %s284, [#allocation9], 128, 128, 8
        $region24: #{_lambda_.2} parent=11 // pred_fallthru
          _
        // Predicated region
        $region25: #{_lambda_.2} parent=11 // pred_check
          %p290 = pneg %p137
        $region26: #{_lambda_.2} parent=11 // pred_check_branch
          %292 = sbr.rel (%p290) target = $region28
        $region27: #{_lambda_.2} parent=11 // pred_region
          %s294 = ssub.s32 32, 32
          %295 = vsyncadd [#allocation9], %s294
          %s297 = sshll.u32 [#allocation10], 4
          %s298 = int_to_ptr.vmem [resolvable:$true] %s297
          %300 = dma.hbm_to_vmem [thread:$0]  %s4, 32, %s298, [#allocation9]
        $region28: #{_lambda_.2} parent=11 // pred_fallthru
          _
        // Predicated region
        $region29: #{_lambda_.2} parent=11 // pred_check
          %p301 = pneg %p158
        $region30: #{_lambda_.2} parent=11 // pred_check_branch
          %303 = sbr.rel (%p301) target = $region32
        $region31: #{_lambda_.2} parent=11 // pred_region
          %s305 = ssub.s32 32, 32
          %306 = vsyncadd [#allocation12], %s305
          %s308 = sshll.u32 [#allocation11], 4
          %s309 = int_to_ptr.vmem [resolvable:$true] %s308
          %311 = dma.hbm_to_vmem [thread:$0]  %s5, 32, %s309, [#allocation12]
        $region32: #{_lambda_.2} parent=11 // pred_fallthru
          _
      $region12: #{_lambda_.2} parent=5 // pred_fallthru
        _
      %p312 = scmp.lt.s32.totalorder %s27, 2
      // Predicated region
      $region33: #{_lambda_.2} parent=5 // pred_check
        %p313 = pneg %p312
      $region34: #{_lambda_.2} parent=5 // pred_check_branch
        %315 = sbr.rel (%p313) target = $region36
      $region35: #{_lambda_.2} parent=5 // pred_region
        // Predicated region
        $region37: #{_lambda_.2} parent=35 // pred_check
          %p316 = pneg %p47
        $region38: #{_lambda_.2} parent=35 // pred_check_branch
          %318 = sbr.rel (%p316) target = $region40
        $region39: #{_lambda_.2} parent=35 // pred_region
          %s319 = sand.u32 %s37, 1
          %s320 = scalar_lea.sflag [#allocation3], %s319
          %s321 = sand.u32 %s37, 1
          %s322 = smul.addr %s321, 128
          %s323 = scalar_lea.vmem [#allocation2], %s322
          %s325 = ssub.s32 2048, 2048
          %326 = vsyncadd %s320, %s325
          %s327 = smul.addr %s27, 16
          %s328 = smul.addr %s327, 128
          %s329 = scalar_lea.hbm %s0, %s328
          %s330 = sshll.u32 %s323, 4
          %s331 = int_to_ptr.vmem [resolvable:$true] %s330
          %336 = dma.hbm_to_vmem [thread:$0]  %s329, 2048, %s331, %s320, 256, 256, 16
        $region40: #{_lambda_.2} parent=35 // pred_fallthru
          _
      $region36: #{_lambda_.2} parent=5 // pred_fallthru
        _
      %p337 = scmp.le.s32.totalorder 1, %s27
      %p338 = scmp.lt.s32.totalorder %s27, 3
      %p339 = pnand %p337, %p338
      %p340 = pneg %p339
      // Predicated region
      $region41: #{_lambda_.2} parent=5 // pred_check
        _
      $region42: #{_lambda_.2} parent=5 // pred_check_branch
        %342 = sbr.rel (%p339) target = $region44
      $region43: #{_lambda_.2} parent=5 // pred_region
        %s343 = ssub.s32 %s27, 1
        %s344 = sand.u32 %s40, 1
        %s345 = scalar_lea.sflag [#allocation3], %s344
        %s346 = sand.u32 %s40, 1
        %s347 = smul.addr %s346, 128
        %s348 = scalar_lea.vmem [#allocation2], %s347
        // Predicated region
        $region45: #{_lambda_.2} parent=43 // pred_check
          %p349 = pneg %p53
        $region46: #{_lambda_.2} parent=43 // pred_check_branch
          %351 = sbr.rel (%p349) target = $region48
        $region47: #{_lambda_.2} parent=43 // pred_region
          %352 = dma.done %s345, 2048
        $region48: #{_lambda_.2} parent=43 // pred_fallthru
          _
        // Predicated region
        $region49: #{_lambda_.2} parent=43 // pred_check
          %p353 = pneg %p74
        $region50: #{_lambda_.2} parent=43 // pred_check_branch
          %355 = sbr.rel (%p353) target = $region52
        $region51: #{_lambda_.2} parent=43 // pred_region
          %356 = dma.done [#allocation6], 4096
        $region52: #{_lambda_.2} parent=43 // pred_fallthru
          _
        // Predicated region
        $region53: #{_lambda_.2} parent=43 // pred_check
          %p357 = pneg %p95
        $region54: #{_lambda_.2} parent=43 // pred_check_branch
          %359 = sbr.rel (%p357) target = $region56
        $region55: #{_lambda_.2} parent=43 // pred_region
          %360 = dma.done [#allocation6], 4096
        $region56: #{_lambda_.2} parent=43 // pred_fallthru
          _
        // Predicated region
        $region57: #{_lambda_.2} parent=43 // pred_check
          %p361 = pneg %p116
        $region58: #{_lambda_.2} parent=43 // pred_check_branch
          %363 = sbr.rel (%p361) target = $region60
        $region59: #{_lambda_.2} parent=43 // pred_region
          %364 = dma.done [#allocation9], 4096
        $region60: #{_lambda_.2} parent=43 // pred_fallthru
          _
        // Predicated region
        $region61: #{_lambda_.2} parent=43 // pred_check
          %p365 = pneg %p137
        $region62: #{_lambda_.2} parent=43 // pred_check_branch
          %367 = sbr.rel (%p365) target = $region64
        $region63: #{_lambda_.2} parent=43 // pred_region
          %368 = dma.done [#allocation9], 32
        $region64: #{_lambda_.2} parent=43 // pred_fallthru
          _
        // Predicated region
        $region65: #{_lambda_.2} parent=43 // pred_check
          %p369 = pneg %p158
        $region66: #{_lambda_.2} parent=43 // pred_check_branch
          %371 = sbr.rel (%p369) target = $region68
        $region67: #{_lambda_.2} parent=43 // pred_region
          %372 = dma.done [#allocation12], 32
        $region68: #{_lambda_.2} parent=43 // pred_fallthru
          _
        %s373 = sand.u32 %s40, 1
        %s374 = scalar_lea.sflag [#allocation3], %s373
        %s375 = sand.u32 %s40, 1
        %s376 = smul.addr %s375, 128
        %s377 = scalar_lea.vmem [#allocation2], %s376
        %p378 = pneg %p53
        %p379 = pneg %p50
        %p380 = pneg %p74
        %p381 = pneg %p71
        %p382 = pneg %p95
        %p383 = pneg %p92
        %p384 = pneg %p116
        %p385 = pneg %p113
        %p386 = pneg %p137
        %p387 = pneg %p134
        %p388 = pneg %p158
        %p389 = pneg %p155
        %p390 = pneg %p184
        %p391 = pneg %p181
        %s392 = sand.u32 %s171, 1
        %s393 = scalar_lea.sflag [#allocation4], %s392
        %s394 = sand.u32 %s171, 1
        %s395 = smul.addr %s394, 64
        %s396 = scalar_lea.vmem [#allocation13], %s395
        %p397 = pneg %p210
        %p398 = pneg %p207
        %s399 = sand.u32 %s32, 1
        %s400 = scalar_lea.sflag [#allocation15], %s399
        %s401 = sand.u32 %s197, 1
        %s402 = smul.addr %s401, 64
        %s403 = scalar_lea.vmem [#allocation14], %s402
        %p404 = pneg %p236
        %p405 = pneg %p233
        %s406 = sand.u32 %s32, 1
        %s407 = scalar_lea.sflag [#allocation15], %s406
        %s408 = sand.u32 %s223, 1
        %s409 = smul.addr %s408, 64
        %s410 = scalar_lea.vmem [#allocation16], %s409
        %v411 = vld [vmem:[%s348] sm:$0xff]
        %v412 = vld [vmem:[%s348 + $0x8] sm:$0xff]
        %v413 = vld [vmem:[%s348 + $0x10] sm:$0xff]
        %v414 = vld [vmem:[%s348 + $0x18] sm:$0xff]
        %v415 = vld [vmem:[%s348 + $0x20] sm:$0xff]
        %v416 = vld [vmem:[%s348 + $0x28] sm:$0xff]
        %v417 = vld [vmem:[%s348 + $0x30] sm:$0xff]
        %v418 = vld [vmem:[%s348 + $0x38] sm:$0xff]
        %v419 = vld [vmem:[%s348 + $0x40] sm:$0xff]
        %v420 = vld [vmem:[%s348 + $0x48] sm:$0xff]
        %v421 = vld [vmem:[%s348 + $0x50] sm:$0xff]
        %v422 = vld [vmem:[%s348 + $0x58] sm:$0xff]
        %v423 = vld [vmem:[%s348 + $0x60] sm:$0xff]
        %v424 = vld [vmem:[%s348 + $0x68] sm:$0xff]
        %v425 = vld [vmem:[%s348 + $0x70] sm:$0xff]
        %v426 = vld [vmem:[%s348 + $0x78] sm:$0xff]
        %v427 = vld [vmem:[#allocation10] sm:$0x3]
        %v428 = vld [vmem:[#allocation11] sm:$0x3]
        %v429 = vadd.f32 %v411, %v412
        %430 = vadd.xlane.f32.xlu0 %v429
        %v431 = vpop.xlane.xlu0 %430
        %v432 = vadd.f32 %v413, %v414
        %433 = vadd.xlane.f32.xlu0 %v432
        %v434 = vpop.xlane.xlu0 %433
        %v435 = vadd.f32 %v415, %v416
        %436 = vadd.xlane.f32.xlu0 %v435
        %v437 = vpop.xlane.xlu0 %436
        %v438 = vadd.f32 %v417, %v418
        %439 = vadd.xlane.f32.xlu0 %v438
        %v440 = vpop.xlane.xlu0 %439
        %v441 = vadd.f32 %v419, %v420
        %442 = vadd.xlane.f32.xlu0 %v441
        %v443 = vpop.xlane.xlu0 %442
        %v444 = vadd.f32 %v421, %v422
        %445 = vadd.xlane.f32.xlu0 %v444
        %v446 = vpop.xlane.xlu0 %445
        %v447 = vadd.f32 %v423, %v424
        %448 = vadd.xlane.f32.xlu0 %v447
        %v449 = vpop.xlane.xlu0 %448
        %v450 = vadd.f32 %v425, %v426
        %451 = vadd.xlane.f32.xlu0 %v450
        %v452 = vpop.xlane.xlu0 %451
        %v453 = vrcp.pop 256.0
        %v454 = vmul.f32 %v431, %v453
        %v455 = vmul.f32 %v434, %v453
        %v456 = vmul.f32 %v437, %v453
        %v457 = vmul.f32 %v440, %v453
        %v458 = vmul.f32 %v443, %v453
        %v459 = vmul.f32 %v446, %v453
        %v460 = vmul.f32 %v449, %v453
        %v461 = vmul.f32 %v452, %v453
        %v462 = vsub.f32 %v411, %v454
        %v463 = vsub.f32 %v412, %v454
        %v464 = vsub.f32 %v413, %v455
        %v465 = vsub.f32 %v414, %v455
        %v466 = vsub.f32 %v415, %v456
        %v467 = vsub.f32 %v416, %v456
        %v468 = vsub.f32 %v417, %v457
        %v469 = vsub.f32 %v418, %v457
        %v470 = vsub.f32 %v419, %v458
        %v471 = vsub.f32 %v420, %v458
        %v472 = vsub.f32 %v421, %v459
        %v473 = vsub.f32 %v422, %v459
        %v474 = vsub.f32 %v423, %v460
        %v475 = vsub.f32 %v424, %v460
        %v476 = vsub.f32 %v425, %v461
        %v477 = vsub.f32 %v426, %v461
        %v478 = vmul.f32 %v462, %v462
        %v479 = vmul.f32 %v463, %v463
        %v480 = vmul.f32 %v464, %v464
        %v481 = vmul.f32 %v465, %v465
        %v482 = vmul.f32 %v466, %v466
        %v483 = vmul.f32 %v467, %v467
        %v484 = vmul.f32 %v468, %v468
        %v485 = vmul.f32 %v469, %v469
        %v486 = vmul.f32 %v470, %v470
        %v487 = vmul.f32 %v471, %v471
        %v488 = vmul.f32 %v472, %v472
        %v489 = vmul.f32 %v473, %v473
        %v490 = vmul.f32 %v474, %v474
        %v491 = vmul.f32 %v475, %v475
        %v492 = vmul.f32 %v476, %v476
        %v493 = vmul.f32 %v477, %v477
        %v494 = vadd.f32 %v478, %v479
        %495 = vadd.xlane.f32.xlu0 %v494
        %v496 = vpop.xlane.xlu0 %495
        %v497 = vadd.f32 %v480, %v481
        %498 = vadd.xlane.f32.xlu0 %v497
        %v499 = vpop.xlane.xlu0 %498
        %v500 = vadd.f32 %v482, %v483
        %501 = vadd.xlane.f32.xlu0 %v500
        %v502 = vpop.xlane.xlu0 %501
        %v503 = vadd.f32 %v484, %v485
        %504 = vadd.xlane.f32.xlu0 %v503
        %v505 = vpop.xlane.xlu0 %504
        %v506 = vadd.f32 %v486, %v487
        %507 = vadd.xlane.f32.xlu0 %v506
        %v508 = vpop.xlane.xlu0 %507
        %v509 = vadd.f32 %v488, %v489
        %510 = vadd.xlane.f32.xlu0 %v509
        %v511 = vpop.xlane.xlu0 %510
        %v512 = vadd.f32 %v490, %v491
        %513 = vadd.xlane.f32.xlu0 %v512
        %v514 = vpop.xlane.xlu0 %513
        %v515 = vadd.f32 %v492, %v493
        %516 = vadd.xlane.f32.xlu0 %v515
        %v517 = vpop.xlane.xlu0 %516
        %v518 = vmul.f32 %v496, %v453
        %v519 = vmul.f32 %v499, %v453
        %v520 = vmul.f32 %v502, %v453
        %v521 = vmul.f32 %v505, %v453
        %v522 = vmul.f32 %v508, %v453
        %v523 = vmul.f32 %v511, %v453
        %v524 = vmul.f32 %v514, %v453
        %v525 = vmul.f32 %v517, %v453
        %v526 = vadd.f32 %v518, 1e-05
        %v527 = vadd.f32 %v519, 1e-05
        %v528 = vadd.f32 %v520, 1e-05
        %v529 = vadd.f32 %v521, 1e-05
        %v530 = vadd.f32 %v522, 1e-05
        %v531 = vadd.f32 %v523, 1e-05
        %v532 = vadd.f32 %v524, 1e-05
        %v533 = vadd.f32 %v525, 1e-05
        %v534 = vrsqrt.pop %v526
        %v535 = vrsqrt.pop %v527
        %v536 = vrsqrt.pop %v528
        %v537 = vrsqrt.pop %v529
        %v538 = vrsqrt.pop %v530
        %v539 = vrsqrt.pop %v531
        %v540 = vrsqrt.pop %v532
        %v541 = vrsqrt.pop %v533
        %v542 = vmul.f32 %v462, %v534
        %v543 = vmul.f32 %v463, %v534
        %v544 = vmul.f32 %v464, %v535
        %v545 = vmul.f32 %v465, %v535
        %v546 = vmul.f32 %v466, %v536
        %v547 = vmul.f32 %v467, %v536
        %v548 = vmul.f32 %v468, %v537
        %v549 = vmul.f32 %v469, %v537
        %v550 = vmul.f32 %v470, %v538
        %v551 = vmul.f32 %v471, %v538
        %v552 = vmul.f32 %v472, %v539
        %v553 = vmul.f32 %v473, %v539
        %v554 = vmul.f32 %v474, %v540
        %v555 = vmul.f32 %v475, %v540
        %v556 = vmul.f32 %v476, %v541
        %v557 = vmul.f32 %v477, %v541
        %v559 = vlaneseq
        %v560 = vshrl.u32 %v559, 7
        %v561 = vsub.s32 0, %v560
        %v562 = vrot.slane %v427, %v561
        %v563 = vlaneseq
        %v564 = vshrl.u32 %v563, 7
        %v565 = vsub.s32 1, %v564
        %v566 = vrot.slane %v427, %v565
        %v569 = vmul.f32 %v542, %v562
        %v570 = vmul.f32 %v543, %v566
        %v571 = vmul.f32 %v544, %v562
        %v572 = vmul.f32 %v545, %v566
        %v573 = vmul.f32 %v546, %v562
        %v574 = vmul.f32 %v547, %v566
        %v575 = vmul.f32 %v548, %v562
        %v576 = vmul.f32 %v549, %v566
        %v577 = vmul.f32 %v550, %v562
        %v578 = vmul.f32 %v551, %v566
        %v579 = vmul.f32 %v552, %v562
        %v580 = vmul.f32 %v553, %v566
        %v581 = vmul.f32 %v554, %v562
        %v582 = vmul.f32 %v555, %v566
        %v583 = vmul.f32 %v556, %v562
        %v584 = vmul.f32 %v557, %v566
        %v586 = vlaneseq
        %v587 = vshrl.u32 %v586, 7
        %v588 = vsub.s32 0, %v587
        %v589 = vrot.slane %v428, %v588
        %v590 = vlaneseq
        %v591 = vshrl.u32 %v590, 7
        %v592 = vsub.s32 1, %v591
        %v593 = vrot.slane %v428, %v592
        %v596 = vadd.f32 %v569, %v589
        %v597 = vadd.f32 %v570, %v593
        %v598 = vadd.f32 %v571, %v589
        %v599 = vadd.f32 %v572, %v593
        %v600 = vadd.f32 %v573, %v589
        %v601 = vadd.f32 %v574, %v593
        %v602 = vadd.f32 %v575, %v589
        %v603 = vadd.f32 %v576, %v593
        %v604 = vadd.f32 %v577, %v589
        %v605 = vadd.f32 %v578, %v593
        %v606 = vadd.f32 %v579, %v589
        %v607 = vadd.f32 %v580, %v593
        %v608 = vadd.f32 %v581, %v589
        %v609 = vadd.f32 %v582, %v593
        %v610 = vadd.f32 %v583, %v589
        %v611 = vadd.f32 %v584, %v593
        %v612 = vpack.c.bf16 %v598, %v596
        %v613 = vpack.c.bf16 %v599, %v597
        %v614 = vpack.c.bf16 %v602, %v600
        %v615 = vpack.c.bf16 %v603, %v601
        %v616 = vpack.c.bf16 %v606, %v604
        %v617 = vpack.c.bf16 %v607, %v605
        %v618 = vpack.c.bf16 %v610, %v608
        %v619 = vpack.c.bf16 %v611, %v609
        %v620 = vld [vmem:[#allocation5] sm:$0xff]
        %v621 = vld [vmem:[#allocation5 + $0x8] sm:$0xff]
        %v622 = vld [vmem:[#allocation5 + $0x10] sm:$0xff]
        %v623 = vld [vmem:[#allocation5 + $0x18] sm:$0xff]
        %v624 = vld [vmem:[#allocation5 + $0x20] sm:$0xff]
        %v625 = vld [vmem:[#allocation5 + $0x28] sm:$0xff]
        %v626 = vld [vmem:[#allocation5 + $0x30] sm:$0xff]
        %v627 = vld [vmem:[#allocation5 + $0x38] sm:$0xff]
        %v628 = vld [vmem:[#allocation5 + $0x40] sm:$0xff]
        %v629 = vld [vmem:[#allocation5 + $0x48] sm:$0xff]
        %v630 = vld [vmem:[#allocation5 + $0x50] sm:$0xff]
        %v631 = vld [vmem:[#allocation5 + $0x58] sm:$0xff]
        %v632 = vld [vmem:[#allocation5 + $0x60] sm:$0xff]
        %v633 = vld [vmem:[#allocation5 + $0x68] sm:$0xff]
        %v634 = vld [vmem:[#allocation5 + $0x70] sm:$0xff]
        %v635 = vld [vmem:[#allocation5 + $0x78] sm:$0xff]
        %v636 = vld [vmem:[#allocation5 + $0x80] sm:$0xff]
        %v637 = vld [vmem:[#allocation5 + $0x88] sm:$0xff]
        %v638 = vld [vmem:[#allocation5 + $0x90] sm:$0xff]
        %v639 = vld [vmem:[#allocation5 + $0x98] sm:$0xff]
        %v640 = vld [vmem:[#allocation5 + $0xa0] sm:$0xff]
        %v641 = vld [vmem:[#allocation5 + $0xa8] sm:$0xff]
        %v642 = vld [vmem:[#allocation5 + $0xb0] sm:$0xff]
        %v643 = vld [vmem:[#allocation5 + $0xb8] sm:$0xff]
        %v644 = vld [vmem:[#allocation5 + $0xc0] sm:$0xff]
        %v645 = vld [vmem:[#allocation5 + $0xc8] sm:$0xff]
        %v646 = vld [vmem:[#allocation5 + $0xd0] sm:$0xff]
        %v647 = vld [vmem:[#allocation5 + $0xd8] sm:$0xff]
        %v648 = vld [vmem:[#allocation5 + $0xe0] sm:$0xff]
        %v649 = vld [vmem:[#allocation5 + $0xe8] sm:$0xff]
        %v650 = vld [vmem:[#allocation5 + $0xf0] sm:$0xff]
        %v651 = vld [vmem:[#allocation5 + $0xf8] sm:$0xff]
        %v684 = vunpack.c.l.b16 %v620
        %v685 = vunpack.c.h.b16 %v620
        %v686 = vunpack.c.l.b16 %v621
        %v687 = vunpack.c.h.b16 %v621
        %v688 = vunpack.c.l.b16 %v622
        %v689 = vunpack.c.h.b16 %v622
        %v690 = vunpack.c.l.b16 %v623
        %v691 = vunpack.c.h.b16 %v623
        %v692 = vunpack.c.l.b16 %v624
        %v693 = vunpack.c.h.b16 %v624
        %v694 = vunpack.c.l.b16 %v625
        %v695 = vunpack.c.h.b16 %v625
        %v696 = vunpack.c.l.b16 %v626
        %v697 = vunpack.c.h.b16 %v626
        %v698 = vunpack.c.l.b16 %v627
        %v699 = vunpack.c.h.b16 %v627
        %v700 = vunpack.c.l.b16 %v628
        %v701 = vunpack.c.h.b16 %v628
        %v702 = vunpack.c.l.b16 %v629
        %v703 = vunpack.c.h.b16 %v629
        %v704 = vunpack.c.l.b16 %v630
        %v705 = vunpack.c.h.b16 %v630
        %v706 = vunpack.c.l.b16 %v631
        %v707 = vunpack.c.h.b16 %v631
        %v708 = vunpack.c.l.b16 %v632
        %v709 = vunpack.c.h.b16 %v632
        %v710 = vunpack.c.l.b16 %v633
        %v711 = vunpack.c.h.b16 %v633
        %v712 = vunpack.c.l.b16 %v634
        %v713 = vunpack.c.h.b16 %v634
        %v714 = vunpack.c.l.b16 %v635
        %v715 = vunpack.c.h.b16 %v635
        %v716 = vunpack.c.l.b16 %v636
        %v717 = vunpack.c.h.b16 %v636
        %v718 = vunpack.c.l.b16 %v637
        %v719 = vunpack.c.h.b16 %v637
        %v720 = vunpack.c.l.b16 %v638
        %v721 = vunpack.c.h.b16 %v638
        %v722 = vunpack.c.l.b16 %v639
        %v723 = vunpack.c.h.b16 %v639
        %v724 = vunpack.c.l.b16 %v640
        %v725 = vunpack.c.h.b16 %v640
        %v726 = vunpack.c.l.b16 %v641
        %v727 = vunpack.c.h.b16 %v641
        %v728 = vunpack.c.l.b16 %v642
        %v729 = vunpack.c.h.b16 %v642
        %v730 = vunpack.c.l.b16 %v643
        %v731 = vunpack.c.h.b16 %v643
        %v732 = vunpack.c.l.b16 %v644
        %v733 = vunpack.c.h.b16 %v644
        %v734 = vunpack.c.l.b16 %v645
        %v735 = vunpack.c.h.b16 %v645
        %v736 = vunpack.c.l.b16 %v646
        %v737 = vunpack.c.h.b16 %v646
        %v738 = vunpack.c.l.b16 %v647
        %v739 = vunpack.c.h.b16 %v647
        %v740 = vunpack.c.l.b16 %v648
        %v741 = vunpack.c.h.b16 %v648
        %v742 = vunpack.c.l.b16 %v649
        %v743 = vunpack.c.h.b16 %v649
        %v744 = vunpack.c.l.b16 %v650
        %v745 = vunpack.c.h.b16 %v650
        %v746 = vunpack.c.l.b16 %v651
        %v747 = vunpack.c.h.b16 %v651
        %v748 = vpack.c.b16 %v686, %v684
        %v749 = vpack.c.b16 %v687, %v685
        %v750 = vpack.c.b16 %v690, %v688
        %v751 = vpack.c.b16 %v691, %v689
        %v752 = vpack.c.b16 %v694, %v692
        %v753 = vpack.c.b16 %v695, %v693
        %v754 = vpack.c.b16 %v698, %v696
        %v755 = vpack.c.b16 %v699, %v697
        %v756 = vpack.c.b16 %v702, %v700
        %v757 = vpack.c.b16 %v703, %v701
        %v758 = vpack.c.b16 %v706, %v704
        %v759 = vpack.c.b16 %v707, %v705
        %v760 = vpack.c.b16 %v710, %v708
        %v761 = vpack.c.b16 %v711, %v709
        %v762 = vpack.c.b16 %v714, %v712
        %v763 = vpack.c.b16 %v715, %v713
        %v764 = vpack.c.b16 %v718, %v716
        %v765 = vpack.c.b16 %v719, %v717
        %v766 = vpack.c.b16 %v722, %v720
        %v767 = vpack.c.b16 %v723, %v721
        %v768 = vpack.c.b16 %v726, %v724
        %v769 = vpack.c.b16 %v727, %v725
        %v770 = vpack.c.b16 %v730, %v728
        %v771 = vpack.c.b16 %v731, %v729
        %v772 = vpack.c.b16 %v734, %v732
        %v773 = vpack.c.b16 %v735, %v733
        %v774 = vpack.c.b16 %v738, %v736
        %v775 = vpack.c.b16 %v739, %v737
        %v776 = vpack.c.b16 %v742, %v740
        %v777 = vpack.c.b16 %v743, %v741
        %v778 = vpack.c.b16 %v746, %v744
        %v779 = vpack.c.b16 %v747, %v745
        %812 = vmatprep.subr.bf16.mxu0 %v749
        %813 = vmatpush1.bf16.msra.mxu0 %v748
        %814 = vmatprep.subr.bf16.mxu0 %v751
        %815 = vmatpush1.bf16.msra.mxu0 %v750
        %816 = vmatprep.subr.bf16.mxu0 %v753
        %817 = vmatpush1.bf16.msra.mxu0 %v752
        %818 = vmatprep.subr.bf16.mxu0 %v755
        %819 = vmatpush1.bf16.msra.mxu0 %v754
        %820 = vmatprep.subr.bf16.mxu0 %v757
        %821 = vmatpush1.bf16.msra.mxu0 %v756
        %822 = vmatprep.subr.bf16.mxu0 %v759
        %823 = vmatpush1.bf16.msra.mxu0 %v758
        %824 = vmatprep.subr.bf16.mxu0 %v761
        %825 = vmatpush1.bf16.msra.mxu0 %v760
        %826 = vmatprep.subr.bf16.mxu0 %v763
        %827 = vmatpush1.bf16.msra.mxu0 %v762
        %828 = vmatprep.subr.bf16.mxu0 %v765
        %829 = vmatpush1.bf16.msra.mxu0 %v764
        %830 = vmatprep.subr.bf16.mxu0 %v767
        %831 = vmatpush1.bf16.msra.mxu0 %v766
        %832 = vmatprep.subr.bf16.mxu0 %v769
        %833 = vmatpush1.bf16.msra.mxu0 %v768
        %834 = vmatprep.subr.bf16.mxu0 %v771
        %835 = vmatpush1.bf16.msra.mxu0 %v770
        %836 = vmatprep.subr.bf16.mxu0 %v773
        %837 = vmatpush1.bf16.msra.mxu0 %v772
        %838 = vmatprep.subr.bf16.mxu0 %v775
        %839 = vmatpush1.bf16.msra.mxu0 %v774
        %840 = vmatprep.subr.bf16.mxu0 %v777
        %841 = vmatpush1.bf16.msra.mxu0 %v776
        %842 = vmatprep.subr.bf16.mxu0 %v779
        %843 = vmatpush1.bf16.msra.mxu0 %v778
        %844 = vmatprep.mubr.bf16.mxu0 %v613
        %845 = vmatmul.mubr.bf16.gmra.mrb[0].mxu0 %v612
        %v846 = vpop.f32.mrb[0].mxu0
        %v847 = vadd.f32 0.0, %v846
        %v848 = vpop.f32.mrb[0].mxu0
        %v849 = vadd.f32 0.0, %v848
        %v850 = vpop.f32.mrb[0].mxu0
        %v851 = vadd.f32 0.0, %v850
        %v852 = vpop.f32.mrb[0].mxu0
        %v853 = vadd.f32 0.0, %v852
        %854 = vmatprep.mubr.bf16.mxu0 %v615
        %855 = vmatmul.mubr.bf16.gmra.mrb[0].mxu0 %v614
        %v856 = vpop.f32.mrb[0].mxu0
        %v857 = vadd.f32 0.0, %v856
        %v858 = vpop.f32.mrb[0].mxu0
        %v859 = vadd.f32 0.0, %v858
        %v860 = vpop.f32.mrb[0].mxu0
        %v861 = vadd.f32 0.0, %v860
        %v862 = vpop.f32.mrb[0].mxu0
        %v863 = vadd.f32 0.0, %v862
        %864 = vmatprep.mubr.bf16.mxu0 %v617
        %865 = vmatmul.mubr.bf16.gmra.mrb[0].mxu0 %v616
        %v866 = vpop.f32.mrb[0].mxu0
        %v867 = vadd.f32 0.0, %v866
        %v868 = vpop.f32.mrb[0].mxu0
        %v869 = vadd.f32 0.0, %v868
        %v870 = vpop.f32.mrb[0].mxu0
        %v871 = vadd.f32 0.0, %v870
        %v872 = vpop.f32.mrb[0].mxu0
        %v873 = vadd.f32 0.0, %v872
        %874 = vmatprep.mubr.bf16.mxu0 %v619
        %875 = vmatmul.mubr.bf16.gmra.mrb[0].mxu0 %v618
        %v876 = vpop.f32.mrb[0].mxu0
        %v877 = vadd.f32 0.0, %v876
        %v878 = vpop.f32.mrb[0].mxu0
        %v879 = vadd.f32 0.0, %v878
        %v880 = vpop.f32.mrb[0].mxu0
        %v881 = vadd.f32 0.0, %v880
        %v882 = vpop.f32.mrb[0].mxu0
        %v883 = vadd.f32 0.0, %v882
        %884 = vdwg.mxu0
        %v885 = vmul.f32 %v847, 0.125
        %v886 = vmul.f32 %v849, 0.125
        %v887 = vmul.f32 %v851, 0.125
        %v888 = vmul.f32 %v853, 0.125
        %v889 = vmul.f32 %v857, 0.125
        %v890 = vmul.f32 %v859, 0.125
        %v891 = vmul.f32 %v861, 0.125
        %v892 = vmul.f32 %v863, 0.125
        %v893 = vmul.f32 %v867, 0.125
        %v894 = vmul.f32 %v869, 0.125
        %v895 = vmul.f32 %v871, 0.125
        %v896 = vmul.f32 %v873, 0.125
        %v897 = vmul.f32 %v877, 0.125
        %v898 = vmul.f32 %v879, 0.125
        %v899 = vmul.f32 %v881, 0.125
        %v900 = vmul.f32 %v883, 0.125
        %v901 = vld [vmem:[#allocation7] sm:$0xff]
        %v902 = vld [vmem:[#allocation7 + $0x8] sm:$0xff]
        %v903 = vld [vmem:[#allocation7 + $0x10] sm:$0xff]
        %v904 = vld [vmem:[#allocation7 + $0x18] sm:$0xff]
        %v905 = vld [vmem:[#allocation7 + $0x20] sm:$0xff]
        %v906 = vld [vmem:[#allocation7 + $0x28] sm:$0xff]
        %v907 = vld [vmem:[#allocation7 + $0x30] sm:$0xff]
        %v908 = vld [vmem:[#allocation7 + $0x38] sm:$0xff]
        %v909 = vld [vmem:[#allocation7 + $0x40] sm:$0xff]
        %v910 = vld [vmem:[#allocation7 + $0x48] sm:$0xff]
        %v911 = vld [vmem:[#allocation7 + $0x50] sm:$0xff]
        %v912 = vld [vmem:[#allocation7 + $0x58] sm:$0xff]
        %v913 = vld [vmem:[#allocation7 + $0x60] sm:$0xff]
        %v914 = vld [vmem:[#allocation7 + $0x68] sm:$0xff]
        %v915 = vld [vmem:[#allocation7 + $0x70] sm:$0xff]
        %v916 = vld [vmem:[#allocation7 + $0x78] sm:$0xff]
        %v917 = vld [vmem:[#allocation7 + $0x80] sm:$0xff]
        %v918 = vld [vmem:[#allocation7 + $0x88] sm:$0xff]
        %v919 = vld [vmem:[#allocation7 + $0x90] sm:$0xff]
        %v920 = vld [vmem:[#allocation7 + $0x98] sm:$0xff]
        %v921 = vld [vmem:[#allocation7 + $0xa0] sm:$0xff]
        %v922 = vld [vmem:[#allocation7 + $0xa8] sm:$0xff]
        %v923 = vld [vmem:[#allocation7 + $0xb0] sm:$0xff]
        %v924 = vld [vmem:[#allocation7 + $0xb8] sm:$0xff]
        %v925 = vld [vmem:[#allocation7 + $0xc0] sm:$0xff]
        %v926 = vld [vmem:[#allocation7 + $0xc8] sm:$0xff]
        %v927 = vld [vmem:[#allocation7 + $0xd0] sm:$0xff]
        %v928 = vld [vmem:[#allocation7 + $0xd8] sm:$0xff]
        %v929 = vld [vmem:[#allocation7 + $0xe0] sm:$0xff]
        %v930 = vld [vmem:[#allocation7 + $0xe8] sm:$0xff]
        %v931 = vld [vmem:[#allocation7 + $0xf0] sm:$0xff]
        %v932 = vld [vmem:[#allocation7 + $0xf8] sm:$0xff]
        %v965 = vunpack.c.l.b16 %v901
        %v966 = vunpack.c.h.b16 %v901
        %v967 = vunpack.c.l.b16 %v902
        %v968 = vunpack.c.h.b16 %v902
        %v969 = vunpack.c.l.b16 %v903
        %v970 = vunpack.c.h.b16 %v903
        %v971 = vunpack.c.l.b16 %v904
        %v972 = vunpack.c.h.b16 %v904
        %v973 = vunpack.c.l.b16 %v905
        %v974 = vunpack.c.h.b16 %v905
        %v975 = vunpack.c.l.b16 %v906
        %v976 = vunpack.c.h.b16 %v906
        %v977 = vunpack.c.l.b16 %v907
        %v978 = vunpack.c.h.b16 %v907
        %v979 = vunpack.c.l.b16 %v908
        %v980 = vunpack.c.h.b16 %v908
        %v981 = vunpack.c.l.b16 %v909
        %v982 = vunpack.c.h.b16 %v909
        %v983 = vunpack.c.l.b16 %v910
        %v984 = vunpack.c.h.b16 %v910
        %v985 = vunpack.c.l.b16 %v911
        %v986 = vunpack.c.h.b16 %v911
        %v987 = vunpack.c.l.b16 %v912
        %v988 = vunpack.c.h.b16 %v912
        %v989 = vunpack.c.l.b16 %v913
        %v990 = vunpack.c.h.b16 %v913
        %v991 = vunpack.c.l.b16 %v914
        %v992 = vunpack.c.h.b16 %v914
        %v993 = vunpack.c.l.b16 %v915
        %v994 = vunpack.c.h.b16 %v915
        %v995 = vunpack.c.l.b16 %v916
        %v996 = vunpack.c.h.b16 %v916
        %v997 = vunpack.c.l.b16 %v917
        %v998 = vunpack.c.h.b16 %v917
        %v999 = vunpack.c.l.b16 %v918
        %v1000 = vunpack.c.h.b16 %v918
        %v1001 = vunpack.c.l.b16 %v919
        %v1002 = vunpack.c.h.b16 %v919
        %v1003 = vunpack.c.l.b16 %v920
        %v1004 = vunpack.c.h.b16 %v920
        %v1005 = vunpack.c.l.b16 %v921
        %v1006 = vunpack.c.h.b16 %v921
        %v1007 = vunpack.c.l.b16 %v922
        %v1008 = vunpack.c.h.b16 %v922
        %v1009 = vunpack.c.l.b16 %v923
        %v1010 = vunpack.c.h.b16 %v923
        %v1011 = vunpack.c.l.b16 %v924
        %v1012 = vunpack.c.h.b16 %v924
        %v1013 = vunpack.c.l.b16 %v925
        %v1014 = vunpack.c.h.b16 %v925
        %v1015 = vunpack.c.l.b16 %v926
        %v1016 = vunpack.c.h.b16 %v926
        %v1017 = vunpack.c.l.b16 %v927
        %v1018 = vunpack.c.h.b16 %v927
        %v1019 = vunpack.c.l.b16 %v928
        %v1020 = vunpack.c.h.b16 %v928
        %v1021 = vunpack.c.l.b16 %v929
        %v1022 = vunpack.c.h.b16 %v929
        %v1023 = vunpack.c.l.b16 %v930
        %v1024 = vunpack.c.h.b16 %v930
        %v1025 = vunpack.c.l.b16 %v931
        %v1026 = vunpack.c.h.b16 %v931
        %v1027 = vunpack.c.l.b16 %v932
        %v1028 = vunpack.c.h.b16 %v932
        %v1029 = vpack.c.b16 %v967, %v965
        %v1030 = vpack.c.b16 %v968, %v966
        %v1031 = vpack.c.b16 %v971, %v969
        %v1032 = vpack.c.b16 %v972, %v970
        %v1033 = vpack.c.b16 %v975, %v973
        %v1034 = vpack.c.b16 %v976, %v974
        %v1035 = vpack.c.b16 %v979, %v977
        %v1036 = vpack.c.b16 %v980, %v978
        %v1037 = vpack.c.b16 %v983, %v981
        %v1038 = vpack.c.b16 %v984, %v982
        %v1039 = vpack.c.b16 %v987, %v985
        %v1040 = vpack.c.b16 %v988, %v986
        %v1041 = vpack.c.b16 %v991, %v989
        %v1042 = vpack.c.b16 %v992, %v990
        %v1043 = vpack.c.b16 %v995, %v993
        %v1044 = vpack.c.b16 %v996, %v994
        %v1045 = vpack.c.b16 %v999, %v997
        %v1046 = vpack.c.b16 %v1000, %v998
        %v1047 = vpack.c.b16 %v1003, %v1001
        %v1048 = vpack.c.b16 %v1004, %v1002
        %v1049 = vpack.c.b16 %v1007, %v1005
        %v1050 = vpack.c.b16 %v1008, %v1006
        %v1051 = vpack.c.b16 %v1011, %v1009
        %v1052 = vpack.c.b16 %v1012, %v1010
        %v1053 = vpack.c.b16 %v1015, %v1013
        %v1054 = vpack.c.b16 %v1016, %v1014
        %v1055 = vpack.c.b16 %v1019, %v1017
        %v1056 = vpack.c.b16 %v1020, %v1018
        %v1057 = vpack.c.b16 %v1023, %v1021
        %v1058 = vpack.c.b16 %v1024, %v1022
        %v1059 = vpack.c.b16 %v1027, %v1025
        %v1060 = vpack.c.b16 %v1028, %v1026
        %1093 = vmatprep.subr.bf16.mxu0 %v1030
        %1094 = vmatpush1.bf16.msra.mxu0 %v1029
        %1095 = vmatprep.subr.bf16.mxu0 %v1032
        %1096 = vmatpush1.bf16.msra.mxu0 %v1031
        %1097 = vmatprep.subr.bf16.mxu0 %v1034
        %1098 = vmatpush1.bf16.msra.mxu0 %v1033
        %1099 = vmatprep.subr.bf16.mxu0 %v1036
        %1100 = vmatpush1.bf16.msra.mxu0 %v1035
        %1101 = vmatprep.subr.bf16.mxu0 %v1038
        %1102 = vmatpush1.bf16.msra.mxu0 %v1037
        %1103 = vmatprep.subr.bf16.mxu0 %v1040
        %1104 = vmatpush1.bf16.msra.mxu0 %v1039
        %1105 = vmatprep.subr.bf16.mxu0 %v1042
        %1106 = vmatpush1.bf16.msra.mxu0 %v1041
        %1107 = vmatprep.subr.bf16.mxu0 %v1044
        %1108 = vmatpush1.bf16.msra.mxu0 %v1043
        %1109 = vmatprep.subr.bf16.mxu0 %v1046
        %1110 = vmatpush1.bf16.msra.mxu0 %v1045
        %1111 = vmatprep.subr.bf16.mxu0 %v1048
        %1112 = vmatpush1.bf16.msra.mxu0 %v1047
        %1113 = vmatprep.subr.bf16.mxu0 %v1050
        %1114 = vmatpush1.bf16.msra.mxu0 %v1049
        %1115 = vmatprep.subr.bf16.mxu0 %v1052
        %1116 = vmatpush1.bf16.msra.mxu0 %v1051
        %1117 = vmatprep.subr.bf16.mxu0 %v1054
        %1118 = vmatpush1.bf16.msra.mxu0 %v1053
        %1119 = vmatprep.subr.bf16.mxu0 %v1056
        %1120 = vmatpush1.bf16.msra.mxu0 %v1055
        %1121 = vmatprep.subr.bf16.mxu0 %v1058
        %1122 = vmatpush1.bf16.msra.mxu0 %v1057
        %1123 = vmatprep.subr.bf16.mxu0 %v1060
        %1124 = vmatpush1.bf16.msra.mxu0 %v1059
        %1125 = vmatprep.mubr.bf16.mxu0 %v613
        %1126 = vmatmul.mubr.bf16.gmra.mrb[0].mxu0 %v612
        %v1127 = vpop.f32.mrb[0].mxu0
        %v1128 = vadd.f32 0.0, %v1127
        %v1129 = vpop.f32.mrb[0].mxu0
        %v1130 = vadd.f32 0.0, %v1129
        %v1131 = vpop.f32.mrb[0].mxu0
        %v1132 = vadd.f32 0.0, %v1131
        %v1133 = vpop.f32.mrb[0].mxu0
        %v1134 = vadd.f32 0.0, %v1133
        %1135 = vmatprep.mubr.bf16.mxu0 %v615
        %1136 = vmatmul.mubr.bf16.gmra.mrb[0].mxu0 %v614
        %v1137 = vpop.f32.mrb[0].mxu0
        %v1138 = vadd.f32 0.0, %v1137
        %v1139 = vpop.f32.mrb[0].mxu0
        %v1140 = vadd.f32 0.0, %v1139
        %v1141 = vpop.f32.mrb[0].mxu0
        %v1142 = vadd.f32 0.0, %v1141
        %v1143 = vpop.f32.mrb[0].mxu0
        %v1144 = vadd.f32 0.0, %v1143
        %1145 = vmatprep.mubr.bf16.mxu0 %v617
        %1146 = vmatmul.mubr.bf16.gmra.mrb[0].mxu0 %v616
        %v1147 = vpop.f32.mrb[0].mxu0
        %v1148 = vadd.f32 0.0, %v1147
        %v1149 = vpop.f32.mrb[0].mxu0
        %v1150 = vadd.f32 0.0, %v1149
        %v1151 = vpop.f32.mrb[0].mxu0
        %v1152 = vadd.f32 0.0, %v1151
        %v1153 = vpop.f32.mrb[0].mxu0
        %v1154 = vadd.f32 0.0, %v1153
        %1155 = vmatprep.mubr.bf16.mxu0 %v619
        %1156 = vmatmul.mubr.bf16.gmra.mrb[0].mxu0 %v618
        %v1157 = vpop.f32.mrb[0].mxu0
        %v1158 = vadd.f32 0.0, %v1157
        %v1159 = vpop.f32.mrb[0].mxu0
        %v1160 = vadd.f32 0.0, %v1159
        %v1161 = vpop.f32.mrb[0].mxu0
        %v1162 = vadd.f32 0.0, %v1161
        %v1163 = vpop.f32.mrb[0].mxu0
        %v1164 = vadd.f32 0.0, %v1163
        %1165 = vdwg.mxu0
        %v1166 = vld [vmem:[#allocation8] sm:$0xff]
        %v1167 = vld [vmem:[#allocation8 + $0x8] sm:$0xff]
        %v1168 = vld [vmem:[#allocation8 + $0x10] sm:$0xff]
        %v1169 = vld [vmem:[#allocation8 + $0x18] sm:$0xff]
        %v1170 = vld [vmem:[#allocation8 + $0x20] sm:$0xff]
        %v1171 = vld [vmem:[#allocation8 + $0x28] sm:$0xff]
        %v1172 = vld [vmem:[#allocation8 + $0x30] sm:$0xff]
        %v1173 = vld [vmem:[#allocation8 + $0x38] sm:$0xff]
        %v1174 = vld [vmem:[#allocation8 + $0x40] sm:$0xff]
        %v1175 = vld [vmem:[#allocation8 + $0x48] sm:$0xff]
        %v1176 = vld [vmem:[#allocation8 + $0x50] sm:$0xff]
        %v1177 = vld [vmem:[#allocation8 + $0x58] sm:$0xff]
        %v1178 = vld [vmem:[#allocation8 + $0x60] sm:$0xff]
        %v1179 = vld [vmem:[#allocation8 + $0x68] sm:$0xff]
        %v1180 = vld [vmem:[#allocation8 + $0x70] sm:$0xff]
        %v1181 = vld [vmem:[#allocation8 + $0x78] sm:$0xff]
        %v1182 = vld [vmem:[#allocation8 + $0x80] sm:$0xff]
        %v1183 = vld [vmem:[#allocation8 + $0x88] sm:$0xff]
        %v1184 = vld [vmem:[#allocation8 + $0x90] sm:$0xff]
        %v1185 = vld [vmem:[#allocation8 + $0x98] sm:$0xff]
        %v1186 = vld [vmem:[#allocation8 + $0xa0] sm:$0xff]
        %v1187 = vld [vmem:[#allocation8 + $0xa8] sm:$0xff]
        %v1188 = vld [vmem:[#allocation8 + $0xb0] sm:$0xff]
        %v1189 = vld [vmem:[#allocation8 + $0xb8] sm:$0xff]
        %v1190 = vld [vmem:[#allocation8 + $0xc0] sm:$0xff]
        %v1191 = vld [vmem:[#allocation8 + $0xc8] sm:$0xff]
        %v1192 = vld [vmem:[#allocation8 + $0xd0] sm:$0xff]
        %v1193 = vld [vmem:[#allocation8 + $0xd8] sm:$0xff]
        %v1194 = vld [vmem:[#allocation8 + $0xe0] sm:$0xff]
        %v1195 = vld [vmem:[#allocation8 + $0xe8] sm:$0xff]
        %v1196 = vld [vmem:[#allocation8 + $0xf0] sm:$0xff]
        %v1197 = vld [vmem:[#allocation8 + $0xf8] sm:$0xff]
        %v1230 = vunpack.c.l.b16 %v1166
        %v1231 = vunpack.c.h.b16 %v1166
        %v1232 = vunpack.c.l.b16 %v1167
        %v1233 = vunpack.c.h.b16 %v1167
        %v1234 = vunpack.c.l.b16 %v1168
        %v1235 = vunpack.c.h.b16 %v1168
        %v1236 = vunpack.c.l.b16 %v1169
        %v1237 = vunpack.c.h.b16 %v1169
        %v1238 = vunpack.c.l.b16 %v1170
        %v1239 = vunpack.c.h.b16 %v1170
        %v1240 = vunpack.c.l.b16 %v1171
        %v1241 = vunpack.c.h.b16 %v1171
        %v1242 = vunpack.c.l.b16 %v1172
        %v1243 = vunpack.c.h.b16 %v1172
        %v1244 = vunpack.c.l.b16 %v1173
        %v1245 = vunpack.c.h.b16 %v1173
        %v1246 = vunpack.c.l.b16 %v1174
        %v1247 = vunpack.c.h.b16 %v1174
        %v1248 = vunpack.c.l.b16 %v1175
        %v1249 = vunpack.c.h.b16 %v1175
        %v1250 = vunpack.c.l.b16 %v1176
        %v1251 = vunpack.c.h.b16 %v1176
        %v1252 = vunpack.c.l.b16 %v1177
        %v1253 = vunpack.c.h.b16 %v1177
        %v1254 = vunpack.c.l.b16 %v1178
        %v1255 = vunpack.c.h.b16 %v1178
        %v1256 = vunpack.c.l.b16 %v1179
        %v1257 = vunpack.c.h.b16 %v1179
        %v1258 = vunpack.c.l.b16 %v1180
        %v1259 = vunpack.c.h.b16 %v1180
        %v1260 = vunpack.c.l.b16 %v1181
        %v1261 = vunpack.c.h.b16 %v1181
        %v1262 = vunpack.c.l.b16 %v1182
        %v1263 = vunpack.c.h.b16 %v1182
        %v1264 = vunpack.c.l.b16 %v1183
        %v1265 = vunpack.c.h.b16 %v1183
        %v1266 = vunpack.c.l.b16 %v1184
        %v1267 = vunpack.c.h.b16 %v1184
        %v1268 = vunpack.c.l.b16 %v1185
        %v1269 = vunpack.c.h.b16 %v1185
        %v1270 = vunpack.c.l.b16 %v1186
        %v1271 = vunpack.c.h.b16 %v1186
        %v1272 = vunpack.c.l.b16 %v1187
        %v1273 = vunpack.c.h.b16 %v1187
        %v1274 = vunpack.c.l.b16 %v1188
        %v1275 = vunpack.c.h.b16 %v1188
        %v1276 = vunpack.c.l.b16 %v1189
        %v1277 = vunpack.c.h.b16 %v1189
        %v1278 = vunpack.c.l.b16 %v1190
        %v1279 = vunpack.c.h.b16 %v1190
        %v1280 = vunpack.c.l.b16 %v1191
        %v1281 = vunpack.c.h.b16 %v1191
        %v1282 = vunpack.c.l.b16 %v1192
        %v1283 = vunpack.c.h.b16 %v1192
        %v1284 = vunpack.c.l.b16 %v1193
        %v1285 = vunpack.c.h.b16 %v1193
        %v1286 = vunpack.c.l.b16 %v1194
        %v1287 = vunpack.c.h.b16 %v1194
        %v1288 = vunpack.c.l.b16 %v1195
        %v1289 = vunpack.c.h.b16 %v1195
        %v1290 = vunpack.c.l.b16 %v1196
        %v1291 = vunpack.c.h.b16 %v1196
        %v1292 = vunpack.c.l.b16 %v1197
        %v1293 = vunpack.c.h.b16 %v1197
        %v1294 = vpack.c.b16 %v1232, %v1230
        %v1295 = vpack.c.b16 %v1233, %v1231
        %v1296 = vpack.c.b16 %v1236, %v1234
        %v1297 = vpack.c.b16 %v1237, %v1235
        %v1298 = vpack.c.b16 %v1240, %v1238
        %v1299 = vpack.c.b16 %v1241, %v1239
        %v1300 = vpack.c.b16 %v1244, %v1242
        %v1301 = vpack.c.b16 %v1245, %v1243
        %v1302 = vpack.c.b16 %v1248, %v1246
        %v1303 = vpack.c.b16 %v1249, %v1247
        %v1304 = vpack.c.b16 %v1252, %v1250
        %v1305 = vpack.c.b16 %v1253, %v1251
        %v1306 = vpack.c.b16 %v1256, %v1254
        %v1307 = vpack.c.b16 %v1257, %v1255
        %v1308 = vpack.c.b16 %v1260, %v1258
        %v1309 = vpack.c.b16 %v1261, %v1259
        %v1310 = vpack.c.b16 %v1264, %v1262
        %v1311 = vpack.c.b16 %v1265, %v1263
        %v1312 = vpack.c.b16 %v1268, %v1266
        %v1313 = vpack.c.b16 %v1269, %v1267
        %v1314 = vpack.c.b16 %v1272, %v1270
        %v1315 = vpack.c.b16 %v1273, %v1271
        %v1316 = vpack.c.b16 %v1276, %v1274
        %v1317 = vpack.c.b16 %v1277, %v1275
        %v1318 = vpack.c.b16 %v1280, %v1278
        %v1319 = vpack.c.b16 %v1281, %v1279
        %v1320 = vpack.c.b16 %v1284, %v1282
        %v1321 = vpack.c.b16 %v1285, %v1283
        %v1322 = vpack.c.b16 %v1288, %v1286
        %v1323 = vpack.c.b16 %v1289, %v1287
        %v1324 = vpack.c.b16 %v1292, %v1290
        %v1325 = vpack.c.b16 %v1293, %v1291
        %1358 = vmatprep.subr.bf16.mxu0 %v1295
        %1359 = vmatpush1.bf16.msra.mxu0 %v1294
        %1360 = vmatprep.subr.bf16.mxu0 %v1297
        %1361 = vmatpush1.bf16.msra.mxu0 %v1296
        %1362 = vmatprep.subr.bf16.mxu0 %v1299
        %1363 = vmatpush1.bf16.msra.mxu0 %v1298
        %1364 = vmatprep.subr.bf16.mxu0 %v1301
        %1365 = vmatpush1.bf16.msra.mxu0 %v1300
        %1366 = vmatprep.subr.bf16.mxu0 %v1303
        %1367 = vmatpush1.bf16.msra.mxu0 %v1302
        %1368 = vmatprep.subr.bf16.mxu0 %v1305
        %1369 = vmatpush1.bf16.msra.mxu0 %v1304
        %1370 = vmatprep.subr.bf16.mxu0 %v1307
        %1371 = vmatpush1.bf16.msra.mxu0 %v1306
        %1372 = vmatprep.subr.bf16.mxu0 %v1309
        %1373 = vmatpush1.bf16.msra.mxu0 %v1308
        %1374 = vmatprep.subr.bf16.mxu0 %v1311
        %1375 = vmatpush1.bf16.msra.mxu0 %v1310
        %1376 = vmatprep.subr.bf16.mxu0 %v1313
        %1377 = vmatpush1.bf16.msra.mxu0 %v1312
        %1378 = vmatprep.subr.bf16.mxu0 %v1315
        %1379 = vmatpush1.bf16.msra.mxu0 %v1314
        %1380 = vmatprep.subr.bf16.mxu0 %v1317
        %1381 = vmatpush1.bf16.msra.mxu0 %v1316
        %1382 = vmatprep.subr.bf16.mxu0 %v1319
        %1383 = vmatpush1.bf16.msra.mxu0 %v1318
        %1384 = vmatprep.subr.bf16.mxu0 %v1321
        %1385 = vmatpush1.bf16.msra.mxu0 %v1320
        %1386 = vmatprep.subr.bf16.mxu0 %v1323
        %1387 = vmatpush1.bf16.msra.mxu0 %v1322
        %1388 = vmatprep.subr.bf16.mxu0 %v1325
        %1389 = vmatpush1.bf16.msra.mxu0 %v1324
        %1390 = vmatprep.mubr.bf16.mxu0 %v613
        %1391 = vmatmul.mubr.bf16.gmra.mrb[0].mxu0 %v612
        %v1392 = vpop.f32.mrb[0].mxu0
        %v1393 = vadd.f32 0.0, %v1392
        %v1394 = vpop.f32.mrb[0].mxu0
        %v1395 = vadd.f32 0.0, %v1394
        %v1396 = vpop.f32.mrb[0].mxu0
        %v1397 = vadd.f32 0.0, %v1396
        %v1398 = vpop.f32.mrb[0].mxu0
        %v1399 = vadd.f32 0.0, %v1398
        %1400 = vmatprep.mubr.bf16.mxu0 %v615
        %1401 = vmatmul.mubr.bf16.gmra.mrb[0].mxu0 %v614
        %v1402 = vpop.f32.mrb[0].mxu0
        %v1403 = vadd.f32 0.0, %v1402
        %v1404 = vpop.f32.mrb[0].mxu0
        %v1405 = vadd.f32 0.0, %v1404
        %v1406 = vpop.f32.mrb[0].mxu0
        %v1407 = vadd.f32 0.0, %v1406
        %v1408 = vpop.f32.mrb[0].mxu0
        %v1409 = vadd.f32 0.0, %v1408
        %1410 = vmatprep.mubr.bf16.mxu0 %v617
        %1411 = vmatmul.mubr.bf16.gmra.mrb[0].mxu0 %v616
        %v1412 = vpop.f32.mrb[0].mxu0
        %v1413 = vadd.f32 0.0, %v1412
        %v1414 = vpop.f32.mrb[0].mxu0
        %v1415 = vadd.f32 0.0, %v1414
        %v1416 = vpop.f32.mrb[0].mxu0
        %v1417 = vadd.f32 0.0, %v1416
        %v1418 = vpop.f32.mrb[0].mxu0
        %v1419 = vadd.f32 0.0, %v1418
        %1420 = vmatprep.mubr.bf16.mxu0 %v619
        %1421 = vmatmul.mubr.bf16.gmra.mrb[0].mxu0 %v618
        %v1422 = vpop.f32.mrb[0].mxu0
        %v1423 = vadd.f32 0.0, %v1422
        %v1424 = vpop.f32.mrb[0].mxu0
        %v1425 = vadd.f32 0.0, %v1424
        %v1426 = vpop.f32.mrb[0].mxu0
        %v1427 = vadd.f32 0.0, %v1426
        %v1428 = vpop.f32.mrb[0].mxu0
        %v1429 = vadd.f32 0.0, %v1428
        %1430 = vdwg.mxu0
        %v1431 = vpack.c.bf16 %v887, %v885
        %v1432 = vpack.c.bf16 %v888, %v886
        %v1433 = vpack.c.bf16 %v891, %v889
        %v1434 = vpack.c.bf16 %v892, %v890
        %v1435 = vpack.c.bf16 %v895, %v893
        %v1436 = vpack.c.bf16 %v896, %v894
        %v1437 = vpack.c.bf16 %v899, %v897
        %v1438 = vpack.c.bf16 %v900, %v898
        %v1447 = vunpack.c.l.b16 %v1431
        %v1448 = vunpack.c.l.b16 %v1432
        %v1449 = vunpack.c.h.b16 %v1431
        %v1450 = vunpack.c.h.b16 %v1432
        %v1451 = vunpack.c.l.b16 %v1433
        %v1452 = vunpack.c.l.b16 %v1434
        %v1453 = vunpack.c.h.b16 %v1433
        %v1454 = vunpack.c.h.b16 %v1434
        %v1455 = vunpack.c.l.b16 %v1435
        %v1456 = vunpack.c.l.b16 %v1436
        %v1457 = vunpack.c.h.b16 %v1435
        %v1458 = vunpack.c.h.b16 %v1436
        %v1459 = vunpack.c.l.b16 %v1437
        %v1460 = vunpack.c.l.b16 %v1438
        %v1461 = vunpack.c.h.b16 %v1437
        %v1462 = vunpack.c.h.b16 %v1438
        %v1463 = vpack.c.b16 %v1448, %v1447
        %v1464 = vpack.c.b16 %v1450, %v1449
        %v1465 = vpack.c.b16 %v1452, %v1451
        %v1466 = vpack.c.b16 %v1454, %v1453
        %v1467 = vpack.c.b16 %v1456, %v1455
        %v1468 = vpack.c.b16 %v1458, %v1457
        %v1469 = vpack.c.b16 %v1460, %v1459
        %v1470 = vpack.c.b16 %v1462, %v1461
        %1479 = vst [vmem:[%s396] sm:$0xff] %v1463
        %1480 = vst [vmem:[%s396 + $0x8] sm:$0xff] %v1464
        %1481 = vst [vmem:[%s396 + $0x10] sm:$0xff] %v1465
        %1482 = vst [vmem:[%s396 + $0x18] sm:$0xff] %v1466
        %1483 = vst [vmem:[%s396 + $0x20] sm:$0xff] %v1467
        %1484 = vst [vmem:[%s396 + $0x28] sm:$0xff] %v1468
        %1485 = vst [vmem:[%s396 + $0x30] sm:$0xff] %v1469
        %1486 = vst [vmem:[%s396 + $0x38] sm:$0xff] %v1470
        %v1487 = vpack.c.bf16 %v1132, %v1128
        %v1488 = vpack.c.bf16 %v1134, %v1130
        %v1489 = vpack.c.bf16 %v1142, %v1138
        %v1490 = vpack.c.bf16 %v1144, %v1140
        %v1491 = vpack.c.bf16 %v1152, %v1148
        %v1492 = vpack.c.bf16 %v1154, %v1150
        %v1493 = vpack.c.bf16 %v1162, %v1158
        %v1494 = vpack.c.bf16 %v1164, %v1160
        %v1503 = vunpack.c.l.b16 %v1487
        %v1504 = vunpack.c.l.b16 %v1488
        %v1505 = vunpack.c.h.b16 %v1487
        %v1506 = vunpack.c.h.b16 %v1488
        %v1507 = vunpack.c.l.b16 %v1489
        %v1508 = vunpack.c.l.b16 %v1490
        %v1509 = vunpack.c.h.b16 %v1489
        %v1510 = vunpack.c.h.b16 %v1490
        %v1511 = vunpack.c.l.b16 %v1491
        %v1512 = vunpack.c.l.b16 %v1492
        %v1513 = vunpack.c.h.b16 %v1491
        %v1514 = vunpack.c.h.b16 %v1492
        %v1515 = vunpack.c.l.b16 %v1493
        %v1516 = vunpack.c.l.b16 %v1494
        %v1517 = vunpack.c.h.b16 %v1493
        %v1518 = vunpack.c.h.b16 %v1494
        %v1519 = vpack.c.b16 %v1504, %v1503
        %v1520 = vpack.c.b16 %v1506, %v1505
        %v1521 = vpack.c.b16 %v1508, %v1507
        %v1522 = vpack.c.b16 %v1510, %v1509
        %v1523 = vpack.c.b16 %v1512, %v1511
        %v1524 = vpack.c.b16 %v1514, %v1513
        %v1525 = vpack.c.b16 %v1516, %v1515
        %v1526 = vpack.c.b16 %v1518, %v1517
        %1535 = vst [vmem:[%s403] sm:$0xff] %v1519
        %1536 = vst [vmem:[%s403 + $0x8] sm:$0xff] %v1520
        %1537 = vst [vmem:[%s403 + $0x10] sm:$0xff] %v1521
        %1538 = vst [vmem:[%s403 + $0x18] sm:$0xff] %v1522
        %1539 = vst [vmem:[%s403 + $0x20] sm:$0xff] %v1523
        %1540 = vst [vmem:[%s403 + $0x28] sm:$0xff] %v1524
        %1541 = vst [vmem:[%s403 + $0x30] sm:$0xff] %v1525
        %1542 = vst [vmem:[%s403 + $0x38] sm:$0xff] %v1526
        %v1543 = vpack.c.bf16 %v1397, %v1393
        %v1544 = vpack.c.bf16 %v1399, %v1395
        %v1545 = vpack.c.bf16 %v1407, %v1403
        %v1546 = vpack.c.bf16 %v1409, %v1405
        %v1547 = vpack.c.bf16 %v1417, %v1413
        %v1548 = vpack.c.bf16 %v1419, %v1415
        %v1549 = vpack.c.bf16 %v1427, %v1423
        %v1550 = vpack.c.bf16 %v1429, %v1425
        %v1559 = vunpack.c.l.b16 %v1543
        %v1560 = vunpack.c.l.b16 %v1544
        %v1561 = vunpack.c.h.b16 %v1543
        %v1562 = vunpack.c.h.b16 %v1544
        %v1563 = vunpack.c.l.b16 %v1545
        %v1564 = vunpack.c.l.b16 %v1546
        %v1565 = vunpack.c.h.b16 %v1545
        %v1566 = vunpack.c.h.b16 %v1546
        %v1567 = vunpack.c.l.b16 %v1547
        %v1568 = vunpack.c.l.b16 %v1548
        %v1569 = vunpack.c.h.b16 %v1547
        %v1570 = vunpack.c.h.b16 %v1548
        %v1571 = vunpack.c.l.b16 %v1549
        %v1572 = vunpack.c.l.b16 %v1550
        %v1573 = vunpack.c.h.b16 %v1549
        %v1574 = vunpack.c.h.b16 %v1550
        %v1575 = vpack.c.b16 %v1560, %v1559
        %v1576 = vpack.c.b16 %v1562, %v1561
        %v1577 = vpack.c.b16 %v1564, %v1563
        %v1578 = vpack.c.b16 %v1566, %v1565
        %v1579 = vpack.c.b16 %v1568, %v1567
        %v1580 = vpack.c.b16 %v1570, %v1569
        %v1581 = vpack.c.b16 %v1572, %v1571
        %v1582 = vpack.c.b16 %v1574, %v1573
        %1591 = vst [vmem:[%s410] sm:$0xff] %v1575
        %1592 = vst [vmem:[%s410 + $0x8] sm:$0xff] %v1576
        %1593 = vst [vmem:[%s410 + $0x10] sm:$0xff] %v1577
        %1594 = vst [vmem:[%s410 + $0x18] sm:$0xff] %v1578
        %1595 = vst [vmem:[%s410 + $0x20] sm:$0xff] %v1579
        %1596 = vst [vmem:[%s410 + $0x28] sm:$0xff] %v1580
        %1597 = vst [vmem:[%s410 + $0x30] sm:$0xff] %v1581
        %1598 = vst [vmem:[%s410 + $0x38] sm:$0xff] %v1582
        %s1599 = sand.u32 %s171, 1
        %s1600 = scalar_lea.sflag [#allocation4], %s1599
        %s1601 = sand.u32 %s171, 1
        %s1602 = smul.addr %s1601, 64
        %s1603 = scalar_lea.vmem [#allocation13], %s1602
        %s1604 = sand.u32 %s32, 1
        %s1605 = scalar_lea.sflag [#allocation15], %s1604
        %s1606 = sand.u32 %s197, 1
        %s1607 = smul.addr %s1606, 64
        %s1608 = scalar_lea.vmem [#allocation14], %s1607
        %s1609 = sand.u32 %s32, 1
        %s1610 = scalar_lea.sflag [#allocation15], %s1609
        %s1611 = sand.u32 %s223, 1
        %s1612 = smul.addr %s1611, 64
        %s1613 = scalar_lea.vmem [#allocation16], %s1612
        // Predicated region
        $region69: #{_lambda_.2} parent=43 // pred_check
          %p1614 = pneg %p181
        $region70: #{_lambda_.2} parent=43 // pred_check_branch
          %1616 = sbr.rel (%p1614) target = $region72
        $region71: #{_lambda_.2} parent=43 // pred_region
          %s1618 = ssub.s32 1024, 1024
          %1619 = vsyncadd %s1600, %s1618
          %s1620 = smul.addr %s32, 16
          %s1621 = smul.addr %s1620, 64
          %s1622 = scalar_lea.hbm %s6, %s1621
          %s1623 = sshll.u32 %s1603, 4
          %s1624 = int_to_ptr.vmem [resolvable:$true] %s1623
          %1629 = dma.vmem_to_hbm [thread:$0]  %s1624, 1024, %s1622, %s1600, 128, 128, 8
        $region72: #{_lambda_.2} parent=43 // pred_fallthru
          _
        // Predicated region
        $region73: #{_lambda_.2} parent=43 // pred_check
          %p1630 = pneg %p207
        $region74: #{_lambda_.2} parent=43 // pred_check_branch
          %1632 = sbr.rel (%p1630) target = $region76
        $region75: #{_lambda_.2} parent=43 // pred_region
          %s1634 = ssub.s32 1024, 1024
          %1635 = vsyncadd %s1605, %s1634
          %s1636 = smul.addr %s32, 16
          %s1637 = smul.addr %s1636, 64
          %s1638 = scalar_lea.hbm %s7, %s1637
          %s1639 = sshll.u32 %s1608, 4
          %s1640 = int_to_ptr.vmem [resolvable:$true] %s1639
          %1645 = dma.vmem_to_hbm [thread:$0]  %s1640, 1024, %s1638, %s1605, 128, 128, 8
        $region76: #{_lambda_.2} parent=43 // pred_fallthru
          _
        // Predicated region
        $region77: #{_lambda_.2} parent=43 // pred_check
          %p1646 = pneg %p233
        $region78: #{_lambda_.2} parent=43 // pred_check_branch
          %1648 = sbr.rel (%p1646) target = $region80
        $region79: #{_lambda_.2} parent=43 // pred_region
          %s1650 = ssub.s32 1024, 1024
          %1651 = vsyncadd %s1610, %s1650
          %s1652 = smul.addr %s32, 16
          %s1653 = smul.addr %s1652, 64
          %s1654 = scalar_lea.hbm %s8, %s1653
          %s1655 = sshll.u32 %s1613, 4
          %s1656 = int_to_ptr.vmem [resolvable:$true] %s1655
          %1661 = dma.vmem_to_hbm [thread:$0]  %s1656, 1024, %s1654, %s1610, 128, 128, 8
        $region80: #{_lambda_.2} parent=43 // pred_fallthru
          _
      $region44: #{_lambda_.2} parent=5 // pred_fallthru
        _
      %p1662 = scmp.le.s32.totalorder 2, %s27
      // Predicated region
      $region81: #{_lambda_.2} parent=5 // pred_check
        %p1663 = pneg %p1662
      $region82: #{_lambda_.2} parent=5 // pred_check_branch
        %1665 = sbr.rel (%p1663) target = $region84
      $region83: #{_lambda_.2} parent=5 // pred_region
        %s1666 = ssub.s32 %s27, 2
        // Predicated region
        $region85: #{_lambda_.2} parent=83 // pred_check
          %p1667 = pneg %p187
        $region86: #{_lambda_.2} parent=83 // pred_check_branch
          %1669 = sbr.rel (%p1667) target = $region88
        $region87: #{_lambda_.2} parent=83 // pred_region
          %s1670 = sand.u32 %s172, 1
          %s1671 = scalar_lea.sflag [#allocation4], %s1670
          %s1672 = sand.u32 %s172, 1
          %s1673 = smul.addr %s1672, 64
          %s1674 = scalar_lea.vmem [#allocation13], %s1673
          %1675 = dma.done %s1671, 1024
        $region88: #{_lambda_.2} parent=83 // pred_fallthru
          _
        // Predicated region
        $region89: #{_lambda_.2} parent=83 // pred_check
          %p1676 = pneg %p213
        $region90: #{_lambda_.2} parent=83 // pred_check_branch
          %1678 = sbr.rel (%p1676) target = $region92
        $region91: #{_lambda_.2} parent=83 // pred_region
          %s1679 = sand.u32 %s33, 1
          %s1680 = scalar_lea.sflag [#allocation15], %s1679
          %s1681 = sand.u32 %s198, 1
          %s1682 = smul.addr %s1681, 64
          %s1683 = scalar_lea.vmem [#allocation14], %s1682
          %1684 = dma.done %s1680, 1024
        $region92: #{_lambda_.2} parent=83 // pred_fallthru
          _
        // Predicated region
        $region93: #{_lambda_.2} parent=83 // pred_check
          %p1685 = pneg %p239
        $region94: #{_lambda_.2} parent=83 // pred_check_branch
          %1687 = sbr.rel (%p1685) target = $region96
        $region95: #{_lambda_.2} parent=83 // pred_region
          %s1688 = sand.u32 %s33, 1
          %s1689 = scalar_lea.sflag [#allocation15], %s1688
          %s1690 = sand.u32 %s224, 1
          %s1691 = smul.addr %s1690, 64
          %s1692 = scalar_lea.vmem [#allocation16], %s1691
          %1693 = dma.done %s1689, 1024
        $region96: #{_lambda_.2} parent=83 // pred_fallthru
          _
      $region84: #{_lambda_.2} parent=5 // pred_fallthru
        _
    $region6: #{_lambda_.2} parent=1 // loop_footer
      %s31 = sadd.s32 1, %s27
    $region7: #{_lambda_.2} parent=1 // loop_footer_branch
      %26 = sbr.rel target = $region3
    $region8: #{_lambda_.2} parent=1 // loop_exit
      _
    %1694 = vsyncpa [#allocation3], 1
    %s1695 = scalar_lea.sflag [#allocation3], 1
    %1696 = vsyncpa %s1695, 1
    %1697 = vsyncpa [#allocation6], 1
    %1698 = vsyncpa [#allocation9], 1
    %1699 = vsyncpa [#allocation12], 1
    %1700 = vsyncpa [#allocation4], 1
    %s1701 = scalar_lea.sflag [#allocation4], 1
    %1702 = vsyncpa %s1701, 1
    %1703 = vsyncpa [#allocation15], 1
    %s1704 = scalar_lea.sflag [#allocation15], 1
    %1705 = vsyncpa %s1704, 1

// kernel: _lambda_.3
$region0: #{_lambda_.3}
  #allocation0 [shape = 'u32[]', space=smem, size = 0x4, offset = 0x4, fixed_abs, tag = 'smem constant byte address 0x4 - core index']
  #allocation1 [shape = 'u32[144,128]{1,0:T(1,128)}', space=vmem, size = 0x12000, scoped, tag = 'internal scratch']
  %s0 = inlined_call_operand.hbm [shape: f32[2,64,256], index: 0, kind: input, shape index: {}]
  %s1 = inlined_call_operand.hbm [shape: bf16[2,4,64,64], index: 1, kind: input, shape index: {}]
  %s2 = inlined_call_operand.hbm [shape: bf16[2,4,64,64], index: 2, kind: input, shape index: {}]
  %s3 = inlined_call_operand.hbm [shape: bf16[2,4,64,64], index: 3, kind: input, shape index: {}]
  %s4 = inlined_call_operand.hbm [shape: bf16[4,64,256], index: 4, kind: input, shape index: {}]
  %s5 = inlined_call_operand.hbm [shape: f32[1,256], index: 5, kind: input, shape index: {}]
  %s6 = inlined_call_operand.hbm [shape: bf16[256,1024], index: 6, kind: input, shape index: {}]
  %s7 = inlined_call_operand.hbm [shape: f32[1,1024], index: 7, kind: input, shape index: {}]
  %s8 = inlined_call_operand.hbm [shape: bf16[1024,256], index: 8, kind: input, shape index: {}]
  %s9 = inlined_call_operand.hbm [shape: f32[1,256], index: 9, kind: input, shape index: {}]
  %s10 = inlined_call_operand.hbm [shape: f32[1,256], index: 10, kind: input, shape index: {}]
  %s11 = inlined_call_operand.hbm [shape: f32[1,256], index: 11, kind: input, shape index: {}]
  %s12 = inlined_call_operand.hbm [shape: f32[2,64,256], index: 12, kind: output, shape index: {}]
  %s13 = sld [smem:[#allocation0]]
  $region129: #{_lambda_.3} parent=0
    _
  %s15 = ssub.s32 1, %s13
  %s16 = scalar_select 0, %s15, %s13
  $region1: #{_lambda_.3} parent=0
    #allocation2 [shape = 'u8[131072]{0}', space=vmem, size = 0x20000, scoped, tag = 'input window, operand 0']
    #allocation3 [shape = 's32[2]{0}', space=sflag, size = 0x8, scoped, tag = 'scoped memory for _lambda_.3']
    #allocation4 [shape = 's32[2]{0}', space=sflag, size = 0x8, scoped, tag = 'scoped memory for _lambda_.3']
    #allocation5 [shape = 'u8[131072]{0}', space=vmem, size = 0x20000, scoped, tag = 'input window, operand 1']
    #allocation6 [shape = 's32[2]{0}', space=sflag, size = 0x8, scoped, tag = 'scoped memory for _lambda_.3']
    #allocation7 [shape = 'u8[131072]{0}', space=vmem, size = 0x20000, scoped, tag = 'input window, operand 2']
    #allocation8 [shape = 'u8[131072]{0}', space=vmem, size = 0x20000, scoped, tag = 'input window, operand 3']
    #allocation9 [shape = 's32[2]{0}', space=sflag, size = 0x8, scoped, tag = 'scoped memory for _lambda_.3']
    #allocation10 [shape = 'u8[131072]{0}', space=vmem, size = 0x20000, scoped, tag = 'input window, operand 4, single buffered']
    #allocation11 [shape = 'u8[1024]{0}', space=vmem, size = 0x400, scoped, tag = 'input window, operand 5, single buffered']
    #allocation12 [shape = 's32[1]{0}', space=sflag, size = 0x4, scoped, tag = 'scoped memory for _lambda_.3']
    #allocation13 [shape = 'u8[524288]{0}', space=vmem, size = 0x80000, scoped, tag = 'input window, operand 6, single buffered']
    #allocation14 [shape = 'u8[4096]{0}', space=vmem, size = 0x1000, scoped, tag = 'input window, operand 7, single buffered']
    #allocation15 [shape = 's32[1]{0}', space=sflag, size = 0x4, scoped, tag = 'scoped memory for _lambda_.3']
    #allocation16 [shape = 'u8[524288]{0}', space=vmem, size = 0x80000, scoped, tag = 'input window, operand 8, single buffered']
    #allocation17 [shape = 'u8[1024]{0}', space=vmem, size = 0x400, scoped, tag = 'input window, operand 9, single buffered']
    #allocation18 [shape = 's32[1]{0}', space=sflag, size = 0x4, scoped, tag = 'scoped memory for _lambda_.3']
    #allocation19 [shape = 'u8[1024]{0}', space=vmem, size = 0x400, scoped, tag = 'input window, operand 10, single buffered']
    #allocation20 [shape = 'u8[1024]{0}', space=vmem, size = 0x400, scoped, tag = 'input window, operand 11, single buffered']
    #allocation21 [shape = 's32[1]{0}', space=sflag, size = 0x4, scoped, tag = 'scoped memory for _lambda_.3']
    #allocation22 [shape = 'u8[131072]{0}', space=vmem, size = 0x20000, scoped, tag = 'output window, operand 0']
    %17 = vsyncpa [#allocation3], 0
    %s18 = scalar_lea.sflag [#allocation3], 1
    %19 = vsyncpa %s18, 0
    %20 = vsyncpa [#allocation6], 0
    %s21 = scalar_lea.sflag [#allocation6], 1
    %22 = vsyncpa %s21, 0
    %23 = vsyncpa [#allocation9], 0
    %s24 = scalar_lea.sflag [#allocation9], 1
    %25 = vsyncpa %s24, 0
    %26 = vsyncpa [#allocation12], 0
    %27 = vsyncpa [#allocation15], 0
    %28 = vsyncpa [#allocation18], 0
    %29 = vsyncpa [#allocation21], 0
    %30 = vsyncpa [#allocation4], 0
    %s31 = scalar_lea.sflag [#allocation4], 1
    %32 = vsyncpa %s31, 0
    loop: start=0, step=1, limit=4
    $region2: #{_lambda_.3} parent=1 // loop_pre_header
      _
    $region3: #{_lambda_.3} parent=1 // loop_header
      %s34 = sphi 0, %s38
      %p35 = scmp.ge.s32.totalorder %s34, 4
      %s44 = sphi 0, %s46
      %s47 = sphi 0, %s44
      %s48 = sphi 0, %s47
      %s64 = sphi 0, %s48
      %s70 = sphi 0, %s72
      %s73 = sphi 0, %s70
      %s74 = sphi 0, %s73
      %s90 = sphi 0, %s74
      %s96 = sphi 0, %s98
      %s99 = sphi 0, %s96
      %s100 = sphi 0, %s99
      %s116 = sphi 0, %s100
      %s122 = sphi 0, %s124
      %s125 = sphi 0, %s122
      %s126 = sphi 0, %s125
      %s142 = sphi 0, %s126
      %s146 = sphi 0, %s146
      %s148 = sphi 0, %s146
      %s149 = sphi 0, %s148
      %s163 = sphi 0, %s149
      %s167 = sphi 0, %s167
      %s169 = sphi 0, %s167
      %s170 = sphi 0, %s169
      %s184 = sphi 0, %s170
      %s188 = sphi 0, %s188
      %s190 = sphi 0, %s188
      %s191 = sphi 0, %s190
      %s205 = sphi 0, %s191
      %s209 = sphi 0, %s209
      %s211 = sphi 0, %s209
      %s212 = sphi 0, %s211
      %s226 = sphi 0, %s212
      %s230 = sphi 0, %s230
      %s232 = sphi 0, %s230
      %s233 = sphi 0, %s232
      %s247 = sphi 0, %s233
      %s251 = sphi 0, %s251
      %s253 = sphi 0, %s251
      %s254 = sphi 0, %s253
      %s268 = sphi 0, %s254
      %s272 = sphi 0, %s272
      %s274 = sphi 0, %s272
      %s275 = sphi 0, %s274
      %s289 = sphi 0, %s275
      %s293 = sphi 0, %s293
      %s295 = sphi 0, %s293
      %s296 = sphi 0, %s295
      %s310 = sphi 0, %s296
      %s316 = sphi 0, %s318
      %s319 = sphi 0, %s316
      %s320 = sphi 0, %s319
      %s336 = sphi 0, %s320
    $region4: #{_lambda_.3} parent=1 // loop_header_branch
      %37 = sbr.rel (%p35) target = $region8
    $region5: #{_lambda_.3} parent=1 // loop_body
      %s39 = ssub.s32 %s34, 1
      %s40 = ssub.s32 %s34, 2
      %s41 = sadd.s32 %s34, 1
      %s42 = ssub.s32 %s34, %s41
      %p43 = scmp.eq.s32.totalorder %s42, 0
      %s45 = sadd.s32 %s44, 1
      %s46 = scalar_select %p43, %s44, %s45
      %p49 = pneg %p43
      %p50 = scmp.eq.s32.totalorder %s34, 1
      %p51 = por %p49, %p50
      %p52 = scmp.ne.s32.totalorder %s44, %s47
      %p53 = scmp.eq.s32.totalorder %s34, 0
      %p54 = por %p52, %p53
      %p55 = scmp.ne.s32.totalorder %s44, %s47
      %p56 = scmp.eq.s32.totalorder %s39, 1
      %p57 = por %p55, %p56
      %p58 = scmp.ne.s32.totalorder %s47, %s48
      %p59 = scmp.eq.s32.totalorder %s39, 0
      %p60 = por %p58, %p59
      %p61 = scmp.ne.s32.totalorder %s47, %s48
      %p62 = scmp.eq.s32.totalorder %s40, 1
      %p63 = por %p61, %p62
      %p65 = scmp.ne.s32.totalorder %s48, %s64
      %p66 = scmp.eq.s32.totalorder %s40, 0
      %p67 = por %p65, %p66
      %s68 = ssub.s32 %s34, %s41
      %p69 = scmp.eq.s32.totalorder %s68, 0
      %s71 = sadd.s32 %s70, 1
      %s72 = scalar_select %p69, %s70, %s71
      %p75 = pneg %p69
      %p76 = scmp.eq.s32.totalorder %s34, 1
      %p77 = por %p75, %p76
      %p78 = scmp.ne.s32.totalorder %s70, %s73
      %p79 = scmp.eq.s32.totalorder %s34, 0
      %p80 = por %p78, %p79
      %p81 = scmp.ne.s32.totalorder %s70, %s73
      %p82 = scmp.eq.s32.totalorder %s39, 1
      %p83 = por %p81, %p82
      %p84 = scmp.ne.s32.totalorder %s73, %s74
      %p85 = scmp.eq.s32.totalorder %s39, 0
      %p86 = por %p84, %p85
      %p87 = scmp.ne.s32.totalorder %s73, %s74
      %p88 = scmp.eq.s32.totalorder %s40, 1
      %p89 = por %p87, %p88
      %p91 = scmp.ne.s32.totalorder %s74, %s90
      %p92 = scmp.eq.s32.totalorder %s40, 0
      %p93 = por %p91, %p92
      %s94 = ssub.s32 %s34, %s41
      %p95 = scmp.eq.s32.totalorder %s94, 0
      %s97 = sadd.s32 %s96, 1
      %s98 = scalar_select %p95, %s96, %s97
      %p101 = pneg %p95
      %p102 = scmp.eq.s32.totalorder %s34, 1
      %p103 = por %p101, %p102
      %p104 = scmp.ne.s32.totalorder %s96, %s99
      %p105 = scmp.eq.s32.totalorder %s34, 0
      %p106 = por %p104, %p105
      %p107 = scmp.ne.s32.totalorder %s96, %s99
      %p108 = scmp.eq.s32.totalorder %s39, 1
      %p109 = por %p107, %p108
      %p110 = scmp.ne.s32.totalorder %s99, %s100
      %p111 = scmp.eq.s32.totalorder %s39, 0
      %p112 = por %p110, %p111
      %p113 = scmp.ne.s32.totalorder %s99, %s100
      %p114 = scmp.eq.s32.totalorder %s40, 1
      %p115 = por %p113, %p114
      %p117 = scmp.ne.s32.totalorder %s100, %s116
      %p118 = scmp.eq.s32.totalorder %s40, 0
      %p119 = por %p117, %p118
      %s120 = ssub.s32 %s34, %s41
      %p121 = scmp.eq.s32.totalorder %s120, 0
      %s123 = sadd.s32 %s122, 1
      %s124 = scalar_select %p121, %s122, %s123
      %p127 = pneg %p121
      %p128 = scmp.eq.s32.totalorder %s34, 1
      %p129 = por %p127, %p128
      %p130 = scmp.ne.s32.totalorder %s122, %s125
      %p131 = scmp.eq.s32.totalorder %s34, 0
      %p132 = por %p130, %p131
      %p133 = scmp.ne.s32.totalorder %s122, %s125
      %p134 = scmp.eq.s32.totalorder %s39, 1
      %p135 = por %p133, %p134
      %p136 = scmp.ne.s32.totalorder %s125, %s126
      %p137 = scmp.eq.s32.totalorder %s39, 0
      %p138 = por %p136, %p137
      %p139 = scmp.ne.s32.totalorder %s125, %s126
      %p140 = scmp.eq.s32.totalorder %s40, 1
      %p141 = por %p139, %p140
      %p143 = scmp.ne.s32.totalorder %s126, %s142
      %p144 = scmp.eq.s32.totalorder %s40, 0
      %p145 = por %p143, %p144
      %s147 = sadd.s32 %s146, 1
      %p150 = scmp.eq.s32.totalorder %s34, 1
      %p151 = scmp.ne.s32.totalorder %s146, %s148
      %p152 = scmp.eq.s32.totalorder %s34, 0
      %p153 = por %p151, %p152
      %p154 = scmp.ne.s32.totalorder %s146, %s148
      %p155 = scmp.eq.s32.totalorder %s39, 1
      %p156 = por %p154, %p155
      %p157 = scmp.ne.s32.totalorder %s148, %s149
      %p158 = scmp.eq.s32.totalorder %s39, 0
      %p159 = por %p157, %p158
      %p160 = scmp.ne.s32.totalorder %s148, %s149
      %p161 = scmp.eq.s32.totalorder %s40, 1
      %p162 = por %p160, %p161
      %p164 = scmp.ne.s32.totalorder %s149, %s163
      %p165 = scmp.eq.s32.totalorder %s40, 0
      %p166 = por %p164, %p165
      %s168 = sadd.s32 %s167, 1
      %p171 = scmp.eq.s32.totalorder %s34, 1
      %p172 = scmp.ne.s32.totalorder %s167, %s169
      %p173 = scmp.eq.s32.totalorder %s34, 0
      %p174 = por %p172, %p173
      %p175 = scmp.ne.s32.totalorder %s167, %s169
      %p176 = scmp.eq.s32.totalorder %s39, 1
      %p177 = por %p175, %p176
      %p178 = scmp.ne.s32.totalorder %s169, %s170
      %p179 = scmp.eq.s32.totalorder %s39, 0
      %p180 = por %p178, %p179
      %p181 = scmp.ne.s32.totalorder %s169, %s170
      %p182 = scmp.eq.s32.totalorder %s40, 1
      %p183 = por %p181, %p182
      %p185 = scmp.ne.s32.totalorder %s170, %s184
      %p186 = scmp.eq.s32.totalorder %s40, 0
      %p187 = por %p185, %p186
      %s189 = sadd.s32 %s188, 1
      %p192 = scmp.eq.s32.totalorder %s34, 1
      %p193 = scmp.ne.s32.totalorder %s188, %s190
      %p194 = scmp.eq.s32.totalorder %s34, 0
      %p195 = por %p193, %p194
      %p196 = scmp.ne.s32.totalorder %s188, %s190
      %p197 = scmp.eq.s32.totalorder %s39, 1
      %p198 = por %p196, %p197
      %p199 = scmp.ne.s32.totalorder %s190, %s191
      %p200 = scmp.eq.s32.totalorder %s39, 0
      %p201 = por %p199, %p200
      %p202 = scmp.ne.s32.totalorder %s190, %s191
      %p203 = scmp.eq.s32.totalorder %s40, 1
      %p204 = por %p202, %p203
      %p206 = scmp.ne.s32.totalorder %s191, %s205
      %p207 = scmp.eq.s32.totalorder %s40, 0
      %p208 = por %p206, %p207
      %s210 = sadd.s32 %s209, 1
      %p213 = scmp.eq.s32.totalorder %s34, 1
      %p214 = scmp.ne.s32.totalorder %s209, %s211
      %p215 = scmp.eq.s32.totalorder %s34, 0
      %p216 = por %p214, %p215
      %p217 = scmp.ne.s32.totalorder %s209, %s211
      %p218 = scmp.eq.s32.totalorder %s39, 1
      %p219 = por %p217, %p218
      %p220 = scmp.ne.s32.totalorder %s211, %s212
      %p221 = scmp.eq.s32.totalorder %s39, 0
      %p222 = por %p220, %p221
      %p223 = scmp.ne.s32.totalorder %s211, %s212
      %p224 = scmp.eq.s32.totalorder %s40, 1
      %p225 = por %p223, %p224
      %p227 = scmp.ne.s32.totalorder %s212, %s226
      %p228 = scmp.eq.s32.totalorder %s40, 0
      %p229 = por %p227, %p228
      %s231 = sadd.s32 %s230, 1
      %p234 = scmp.eq.s32.totalorder %s34, 1
      %p235 = scmp.ne.s32.totalorder %s230, %s232
      %p236 = scmp.eq.s32.totalorder %s34, 0
      %p237 = por %p235, %p236
      %p238 = scmp.ne.s32.totalorder %s230, %s232
      %p239 = scmp.eq.s32.totalorder %s39, 1
      %p240 = por %p238, %p239
      %p241 = scmp.ne.s32.totalorder %s232, %s233
      %p242 = scmp.eq.s32.totalorder %s39, 0
      %p243 = por %p241, %p242
      %p244 = scmp.ne.s32.totalorder %s232, %s233
      %p245 = scmp.eq.s32.totalorder %s40, 1
      %p246 = por %p244, %p245
      %p248 = scmp.ne.s32.totalorder %s233, %s247
      %p249 = scmp.eq.s32.totalorder %s40, 0
      %p250 = por %p248, %p249
      %s252 = sadd.s32 %s251, 1
      %p255 = scmp.eq.s32.totalorder %s34, 1
      %p256 = scmp.ne.s32.totalorder %s251, %s253
      %p257 = scmp.eq.s32.totalorder %s34, 0
      %p258 = por %p256, %p257
      %p259 = scmp.ne.s32.totalorder %s251, %s253
      %p260 = scmp.eq.s32.totalorder %s39, 1
      %p261 = por %p259, %p260
      %p262 = scmp.ne.s32.totalorder %s253, %s254
      %p263 = scmp.eq.s32.totalorder %s39, 0
      %p264 = por %p262, %p263
      %p265 = scmp.ne.s32.totalorder %s253, %s254
      %p266 = scmp.eq.s32.totalorder %s40, 1
      %p267 = por %p265, %p266
      %p269 = scmp.ne.s32.totalorder %s254, %s268
      %p270 = scmp.eq.s32.totalorder %s40, 0
      %p271 = por %p269, %p270
      %s273 = sadd.s32 %s272, 1
      %p276 = scmp.eq.s32.totalorder %s34, 1
      %p277 = scmp.ne.s32.totalorder %s272, %s274
      %p278 = scmp.eq.s32.totalorder %s34, 0
      %p279 = por %p277, %p278
      %p280 = scmp.ne.s32.totalorder %s272, %s274
      %p281 = scmp.eq.s32.totalorder %s39, 1
      %p282 = por %p280, %p281
      %p283 = scmp.ne.s32.totalorder %s274, %s275
      %p284 = scmp.eq.s32.totalorder %s39, 0
      %p285 = por %p283, %p284
      %p286 = scmp.ne.s32.totalorder %s274, %s275
      %p287 = scmp.eq.s32.totalorder %s40, 1
      %p288 = por %p286, %p287
      %p290 = scmp.ne.s32.totalorder %s275, %s289
      %p291 = scmp.eq.s32.totalorder %s40, 0
      %p292 = por %p290, %p291
      %s294 = sadd.s32 %s293, 1
      %p297 = scmp.eq.s32.totalorder %s34, 1
      %p298 = scmp.ne.s32.totalorder %s293, %s295
      %p299 = scmp.eq.s32.totalorder %s34, 0
      %p300 = por %p298, %p299
      %p301 = scmp.ne.s32.totalorder %s293, %s295
      %p302 = scmp.eq.s32.totalorder %s39, 1
      %p303 = por %p301, %p302
      %p304 = scmp.ne.s32.totalorder %s295, %s296
      %p305 = scmp.eq.s32.totalorder %s39, 0
      %p306 = por %p304, %p305
      %p307 = scmp.ne.s32.totalorder %s295, %s296
      %p308 = scmp.eq.s32.totalorder %s40, 1
      %p309 = por %p307, %p308
      %p311 = scmp.ne.s32.totalorder %s296, %s310
      %p312 = scmp.eq.s32.totalorder %s40, 0
      %p313 = por %p311, %p312
      %s314 = ssub.s32 %s34, %s41
      %p315 = scmp.eq.s32.totalorder %s314, 0
      %s317 = sadd.s32 %s316, 1
      %s318 = scalar_select %p315, %s316, %s317
      %p321 = pneg %p315
      %p322 = scmp.eq.s32.totalorder %s34, 1
      %p323 = por %p321, %p322
      %p324 = scmp.ne.s32.totalorder %s316, %s319
      %p325 = scmp.eq.s32.totalorder %s34, 0
      %p326 = por %p324, %p325
      %p327 = scmp.ne.s32.totalorder %s316, %s319
      %p328 = scmp.eq.s32.totalorder %s39, 1
      %p329 = por %p327, %p328
      %p330 = scmp.ne.s32.totalorder %s319, %s320
      %p331 = scmp.eq.s32.totalorder %s39, 0
      %p332 = por %p330, %p331
      %p333 = scmp.ne.s32.totalorder %s319, %s320
      %p334 = scmp.eq.s32.totalorder %s40, 1
      %p335 = por %p333, %p334
      %p337 = scmp.ne.s32.totalorder %s320, %s336
      %p338 = scmp.eq.s32.totalorder %s40, 0
      %p339 = por %p337, %p338
      %p340 = scmp.le.s32.totalorder 1, %s34
      %p341 = scmp.lt.s32.totalorder %s34, 3
      %p342 = pnand %p340, %p341
      %p343 = pneg %p342
      // Predicated region
      $region9: #{_lambda_.3} parent=5 // pred_check
        _
      $region10: #{_lambda_.3} parent=5 // pred_check_branch
        %345 = sbr.rel (%p342) target = $region12
      $region11: #{_lambda_.3} parent=5 // pred_region
        %s346 = ssub.s32 %s34, 1
        // Predicated region
        $region13: #{_lambda_.3} parent=11 // pred_check
          %p347 = pneg %p159
        $region14: #{_lambda_.3} parent=11 // pred_check_branch
          %349 = sbr.rel (%p347) target = $region16
        $region15: #{_lambda_.3} parent=11 // pred_region
          %s351 = ssub.s32 4096, 4096
          %352 = vsyncadd [#allocation9], %s351
          %s353 = sshll.u32 [#allocation10], 4
          %s354 = int_to_ptr.vmem [resolvable:$true] %s353
          %359 = dma.hbm_to_vmem [thread:$0]  %s4, 4096, %s354, [#allocation9], 128, 128, 8
        $region16: #{_lambda_.3} parent=11 // pred_fallthru
          _
        // Predicated region
        $region17: #{_lambda_.3} parent=11 // pred_check
          %p360 = pneg %p180
        $region18: #{_lambda_.3} parent=11 // pred_check_branch
          %362 = sbr.rel (%p360) target = $region20
        $region19: #{_lambda_.3} parent=11 // pred_region
          %s364 = ssub.s32 32, 32
          %365 = vsyncadd [#allocation12], %s364
          %s367 = sshll.u32 [#allocation11], 4
          %s368 = int_to_ptr.vmem [resolvable:$true] %s367
          %370 = dma.hbm_to_vmem [thread:$0]  %s5, 32, %s368, [#allocation12]
        $region20: #{_lambda_.3} parent=11 // pred_fallthru
          _
        // Predicated region
        $region21: #{_lambda_.3} parent=11 // pred_check
          %p371 = pneg %p201
        $region22: #{_lambda_.3} parent=11 // pred_check_branch
          %373 = sbr.rel (%p371) target = $region24
        $region23: #{_lambda_.3} parent=11 // pred_region
          %s375 = ssub.s32 16384, 16384
          %376 = vsyncadd [#allocation12], %s375
          %s377 = sshll.u32 [#allocation13], 4
          %s378 = int_to_ptr.vmem [resolvable:$true] %s377
          %383 = dma.hbm_to_vmem [thread:$0]  %s6, 16384, %s378, [#allocation12], 512, 512, 32
        $region24: #{_lambda_.3} parent=11 // pred_fallthru
          _
        // Predicated region
        $region25: #{_lambda_.3} parent=11 // pred_check
          %p384 = pneg %p222
        $region26: #{_lambda_.3} parent=11 // pred_check_branch
          %386 = sbr.rel (%p384) target = $region28
        $region27: #{_lambda_.3} parent=11 // pred_region
          %s388 = ssub.s32 128, 128
          %389 = vsyncadd [#allocation15], %s388
          %s391 = sshll.u32 [#allocation14], 4
          %s392 = int_to_ptr.vmem [resolvable:$true] %s391
          %394 = dma.hbm_to_vmem [thread:$0]  %s7, 128, %s392, [#allocation15]
        $region28: #{_lambda_.3} parent=11 // pred_fallthru
          _
        // Predicated region
        $region29: #{_lambda_.3} parent=11 // pred_check
          %p395 = pneg %p243
        $region30: #{_lambda_.3} parent=11 // pred_check_branch
          %397 = sbr.rel (%p395) target = $region32
        $region31: #{_lambda_.3} parent=11 // pred_region
          %s399 = ssub.s32 16384, 16384
          %400 = vsyncadd [#allocation15], %s399
          %s401 = sshll.u32 [#allocation16], 4
          %s402 = int_to_ptr.vmem [resolvable:$true] %s401
          %407 = dma.hbm_to_vmem [thread:$0]  %s8, 16384, %s402, [#allocation15], 128, 128, 8
        $region32: #{_lambda_.3} parent=11 // pred_fallthru
          _
        // Predicated region
        $region33: #{_lambda_.3} parent=11 // pred_check
          %p408 = pneg %p264
        $region34: #{_lambda_.3} parent=11 // pred_check_branch
          %410 = sbr.rel (%p408) target = $region36
        $region35: #{_lambda_.3} parent=11 // pred_region
          %s412 = ssub.s32 32, 32
          %413 = vsyncadd [#allocation18], %s412
          %s415 = sshll.u32 [#allocation17], 4
          %s416 = int_to_ptr.vmem [resolvable:$true] %s415
          %418 = dma.hbm_to_vmem [thread:$0]  %s9, 32, %s416, [#allocation18]
        $region36: #{_lambda_.3} parent=11 // pred_fallthru
          _
        // Predicated region
        $region37: #{_lambda_.3} parent=11 // pred_check
          %p419 = pneg %p285
        $region38: #{_lambda_.3} parent=11 // pred_check_branch
          %421 = sbr.rel (%p419) target = $region40
        $region39: #{_lambda_.3} parent=11 // pred_region
          %s423 = ssub.s32 32, 32
          %424 = vsyncadd [#allocation18], %s423
          %s426 = sshll.u32 [#allocation19], 4
          %s427 = int_to_ptr.vmem [resolvable:$true] %s426
          %429 = dma.hbm_to_vmem [thread:$0]  %s10, 32, %s427, [#allocation18]
        $region40: #{_lambda_.3} parent=11 // pred_fallthru
          _
        // Predicated region
        $region41: #{_lambda_.3} parent=11 // pred_check
          %p430 = pneg %p306
        $region42: #{_lambda_.3} parent=11 // pred_check_branch
          %432 = sbr.rel (%p430) target = $region44
        $region43: #{_lambda_.3} parent=11 // pred_region
          %s434 = ssub.s32 32, 32
          %435 = vsyncadd [#allocation21], %s434
          %s437 = sshll.u32 [#allocation20], 4
          %s438 = int_to_ptr.vmem [resolvable:$true] %s437
          %440 = dma.hbm_to_vmem [thread:$0]  %s11, 32, %s438, [#allocation21]
        $region44: #{_lambda_.3} parent=11 // pred_fallthru
          _
      $region12: #{_lambda_.3} parent=5 // pred_fallthru
        _
      %p441 = scmp.lt.s32.totalorder %s34, 2
      // Predicated region
      $region45: #{_lambda_.3} parent=5 // pred_check
        %p442 = pneg %p441
      $region46: #{_lambda_.3} parent=5 // pred_check_branch
        %444 = sbr.rel (%p442) target = $region48
      $region47: #{_lambda_.3} parent=5 // pred_region
        // Predicated region
        $region49: #{_lambda_.3} parent=47 // pred_check
          %p445 = pneg %p54
        $region50: #{_lambda_.3} parent=47 // pred_check_branch
          %447 = sbr.rel (%p445) target = $region52
        $region51: #{_lambda_.3} parent=47 // pred_region
          %s448 = sand.u32 %s44, 1
          %s449 = scalar_lea.sflag [#allocation3], %s448
          %s450 = sand.u32 %s44, 1
          %s451 = smul.addr %s450, 128
          %s452 = scalar_lea.vmem [#allocation2], %s451
          %s454 = ssub.s32 2048, 2048
          %455 = vsyncadd %s449, %s454
          %s456 = smul.addr %s34, 16
          %s457 = smul.addr %s456, 128
          %s458 = scalar_lea.hbm %s0, %s457
          %s459 = sshll.u32 %s452, 4
          %s460 = int_to_ptr.vmem [resolvable:$true] %s459
          %465 = dma.hbm_to_vmem [thread:$0]  %s458, 2048, %s460, %s449, 256, 256, 16
        $region52: #{_lambda_.3} parent=47 // pred_fallthru
          _
        // Predicated region
        $region53: #{_lambda_.3} parent=47 // pred_check
          %p466 = pneg %p80
        $region54: #{_lambda_.3} parent=47 // pred_check_branch
          %468 = sbr.rel (%p466) target = $region56
        $region55: #{_lambda_.3} parent=47 // pred_region
          %s469 = sand.u32 %s34, 1
          %s470 = scalar_lea.sflag [#allocation6], %s469
          %s471 = sand.u32 %s70, 1
          %s472 = smul.addr %s471, 128
          %s473 = scalar_lea.vmem [#allocation5], %s472
          %s475 = ssub.s32 2048, 2048
          %476 = vsyncadd %s470, %s475
          %s477 = smul.addr %s34, 32
          %s478 = smul.addr %s477, 64
          %s479 = scalar_lea.hbm %s1, %s478
          %s480 = sshll.u32 %s473, 4
          %s481 = int_to_ptr.vmem [resolvable:$true] %s480
          %486 = dma.hbm_to_vmem [thread:$0]  %s479, 2048, %s481, %s470, 64, 64, 4
        $region56: #{_lambda_.3} parent=47 // pred_fallthru
          _
        // Predicated region
        $region57: #{_lambda_.3} parent=47 // pred_check
          %p487 = pneg %p106
        $region58: #{_lambda_.3} parent=47 // pred_check_branch
          %489 = sbr.rel (%p487) target = $region60
        $region59: #{_lambda_.3} parent=47 // pred_region
          %s490 = sand.u32 %s34, 1
          %s491 = scalar_lea.sflag [#allocation6], %s490
          %s492 = sand.u32 %s96, 1
          %s493 = smul.addr %s492, 128
          %s494 = scalar_lea.vmem [#allocation7], %s493
          %s496 = ssub.s32 2048, 2048
          %497 = vsyncadd %s491, %s496
          %s498 = smul.addr %s34, 32
          %s499 = smul.addr %s498, 64
          %s500 = scalar_lea.hbm %s2, %s499
          %s501 = sshll.u32 %s494, 4
          %s502 = int_to_ptr.vmem [resolvable:$true] %s501
          %507 = dma.hbm_to_vmem [thread:$0]  %s500, 2048, %s502, %s491, 64, 64, 4
        $region60: #{_lambda_.3} parent=47 // pred_fallthru
          _
        // Predicated region
        $region61: #{_lambda_.3} parent=47 // pred_check
          %p508 = pneg %p132
        $region62: #{_lambda_.3} parent=47 // pred_check_branch
          %510 = sbr.rel (%p508) target = $region64
        $region63: #{_lambda_.3} parent=47 // pred_region
          %s511 = sand.u32 %s34, 1
          %s512 = scalar_lea.sflag [#allocation9], %s511
          %s513 = sand.u32 %s122, 1
          %s514 = smul.addr %s513, 128
          %s515 = scalar_lea.vmem [#allocation8], %s514
          %s517 = ssub.s32 2048, 2048
          %518 = vsyncadd %s512, %s517
          %s519 = smul.addr %s34, 32
          %s520 = smul.addr %s519, 64
          %s521 = scalar_lea.hbm %s3, %s520
          %s522 = sshll.u32 %s515, 4
          %s523 = int_to_ptr.vmem [resolvable:$true] %s522
          %528 = dma.hbm_to_vmem [thread:$0]  %s521, 2048, %s523, %s512, 64, 64, 4
        $region64: #{_lambda_.3} parent=47 // pred_fallthru
          _
      $region48: #{_lambda_.3} parent=5 // pred_fallthru
        _
      %p529 = scmp.le.s32.totalorder 1, %s34
      %p530 = scmp.lt.s32.totalorder %s34, 3
      %p531 = pnand %p529, %p530
      %p532 = pneg %p531
      // Predicated region
      $region65: #{_lambda_.3} parent=5 // pred_check
        _
      $region66: #{_lambda_.3} parent=5 // pred_check_branch
        %534 = sbr.rel (%p531) target = $region68
      $region67: #{_lambda_.3} parent=5 // pred_region
        %s535 = ssub.s32 %s34, 1
        %s536 = sand.u32 %s47, 1
        %s537 = scalar_lea.sflag [#allocation3], %s536
        %s538 = sand.u32 %s47, 1
        %s539 = smul.addr %s538, 128
        %s540 = scalar_lea.vmem [#allocation2], %s539
        // Predicated region
        $region69: #{_lambda_.3} parent=67 // pred_check
          %p541 = pneg %p60
        $region70: #{_lambda_.3} parent=67 // pred_check_branch
          %543 = sbr.rel (%p541) target = $region72
        $region71: #{_lambda_.3} parent=67 // pred_region
          %544 = dma.done %s537, 2048
        $region72: #{_lambda_.3} parent=67 // pred_fallthru
          _
        %s545 = sand.u32 %s39, 1
        %s546 = scalar_lea.sflag [#allocation6], %s545
        %s547 = sand.u32 %s73, 1
        %s548 = smul.addr %s547, 128
        %s549 = scalar_lea.vmem [#allocation5], %s548
        // Predicated region
        $region73: #{_lambda_.3} parent=67 // pred_check
          %p550 = pneg %p86
        $region74: #{_lambda_.3} parent=67 // pred_check_branch
          %552 = sbr.rel (%p550) target = $region76
        $region75: #{_lambda_.3} parent=67 // pred_region
          %553 = dma.done %s546, 2048
        $region76: #{_lambda_.3} parent=67 // pred_fallthru
          _
        %s554 = sand.u32 %s39, 1
        %s555 = scalar_lea.sflag [#allocation6], %s554
        %s556 = sand.u32 %s99, 1
        %s557 = smul.addr %s556, 128
        %s558 = scalar_lea.vmem [#allocation7], %s557
        // Predicated region
        $region77: #{_lambda_.3} parent=67 // pred_check
          %p559 = pneg %p112
        $region78: #{_lambda_.3} parent=67 // pred_check_branch
          %561 = sbr.rel (%p559) target = $region80
        $region79: #{_lambda_.3} parent=67 // pred_region
          %562 = dma.done %s555, 2048
        $region80: #{_lambda_.3} parent=67 // pred_fallthru
          _
        %s563 = sand.u32 %s39, 1
        %s564 = scalar_lea.sflag [#allocation9], %s563
        %s565 = sand.u32 %s125, 1
        %s566 = smul.addr %s565, 128
        %s567 = scalar_lea.vmem [#allocation8], %s566
        // Predicated region
        $region81: #{_lambda_.3} parent=67 // pred_check
          %p568 = pneg %p138
        $region82: #{_lambda_.3} parent=67 // pred_check_branch
          %570 = sbr.rel (%p568) target = $region84
        $region83: #{_lambda_.3} parent=67 // pred_region
          %571 = dma.done %s564, 2048
        $region84: #{_lambda_.3} parent=67 // pred_fallthru
          _
        // Predicated region
        $region85: #{_lambda_.3} parent=67 // pred_check
          %p572 = pneg %p159
        $region86: #{_lambda_.3} parent=67 // pred_check_branch
          %574 = sbr.rel (%p572) target = $region88
        $region87: #{_lambda_.3} parent=67 // pred_region
          %575 = dma.done [#allocation9], 4096
        $region88: #{_lambda_.3} parent=67 // pred_fallthru
          _
        // Predicated region
        $region89: #{_lambda_.3} parent=67 // pred_check
          %p576 = pneg %p180
        $region90: #{_lambda_.3} parent=67 // pred_check_branch
          %578 = sbr.rel (%p576) target = $region92
        $region91: #{_lambda_.3} parent=67 // pred_region
          %579 = dma.done [#allocation12], 32
        $region92: #{_lambda_.3} parent=67 // pred_fallthru
          _
        // Predicated region
        $region93: #{_lambda_.3} parent=67 // pred_check
          %p580 = pneg %p201
        $region94: #{_lambda_.3} parent=67 // pred_check_branch
          %582 = sbr.rel (%p580) target = $region96
        $region95: #{_lambda_.3} parent=67 // pred_region
          %583 = dma.done [#allocation12], 16384
        $region96: #{_lambda_.3} parent=67 // pred_fallthru
          _
        // Predicated region
        $region97: #{_lambda_.3} parent=67 // pred_check
          %p584 = pneg %p222
        $region98: #{_lambda_.3} parent=67 // pred_check_branch
          %586 = sbr.rel (%p584) target = $region100
        $region99: #{_lambda_.3} parent=67 // pred_region
          %587 = dma.done [#allocation15], 128
        $region100: #{_lambda_.3} parent=67 // pred_fallthru
          _
        // Predicated region
        $region101: #{_lambda_.3} parent=67 // pred_check
          %p588 = pneg %p243
        $region102: #{_lambda_.3} parent=67 // pred_check_branch
          %590 = sbr.rel (%p588) target = $region104
        $region103: #{_lambda_.3} parent=67 // pred_region
          %591 = dma.done [#allocation15], 16384
        $region104: #{_lambda_.3} parent=67 // pred_fallthru
          _
        // Predicated region
        $region105: #{_lambda_.3} parent=67 // pred_check
          %p592 = pneg %p264
        $region106: #{_lambda_.3} parent=67 // pred_check_branch
          %594 = sbr.rel (%p592) target = $region108
        $region107: #{_lambda_.3} parent=67 // pred_region
          %595 = dma.done [#allocation18], 32
        $region108: #{_lambda_.3} parent=67 // pred_fallthru
          _
        // Predicated region
        $region109: #{_lambda_.3} parent=67 // pred_check
          %p596 = pneg %p285
        $region110: #{_lambda_.3} parent=67 // pred_check_branch
          %598 = sbr.rel (%p596) target = $region112
        $region111: #{_lambda_.3} parent=67 // pred_region
          %599 = dma.done [#allocation18], 32
        $region112: #{_lambda_.3} parent=67 // pred_fallthru
          _
        // Predicated region
        $region113: #{_lambda_.3} parent=67 // pred_check
          %p600 = pneg %p306
        $region114: #{_lambda_.3} parent=67 // pred_check_branch
          %602 = sbr.rel (%p600) target = $region116
        $region115: #{_lambda_.3} parent=67 // pred_region
          %603 = dma.done [#allocation21], 32
        $region116: #{_lambda_.3} parent=67 // pred_fallthru
          _
        %s604 = sand.u32 %s47, 1
        %s605 = scalar_lea.sflag [#allocation3], %s604
        %s606 = sand.u32 %s47, 1
        %s607 = smul.addr %s606, 128
        %s608 = scalar_lea.vmem [#allocation2], %s607
        %p609 = pneg %p60
        %p610 = pneg %p57
        %s611 = sand.u32 %s39, 1
        %s612 = scalar_lea.sflag [#allocation6], %s611
        %s613 = sand.u32 %s73, 1
        %s614 = smul.addr %s613, 128
        %s615 = scalar_lea.vmem [#allocation5], %s614
        %p616 = pneg %p86
        %p617 = pneg %p83
        %s618 = sand.u32 %s39, 1
        %s619 = scalar_lea.sflag [#allocation6], %s618
        %s620 = sand.u32 %s99, 1
        %s621 = smul.addr %s620, 128
        %s622 = scalar_lea.vmem [#allocation7], %s621
        %p623 = pneg %p112
        %p624 = pneg %p109
        %s625 = sand.u32 %s39, 1
        %s626 = scalar_lea.sflag [#allocation9], %s625
        %s627 = sand.u32 %s125, 1
        %s628 = smul.addr %s627, 128
        %s629 = scalar_lea.vmem [#allocation8], %s628
        %p630 = pneg %p138
        %p631 = pneg %p135
        %p632 = pneg %p159
        %p633 = pneg %p156
        %p634 = pneg %p180
        %p635 = pneg %p177
        %p636 = pneg %p201
        %p637 = pneg %p198
        %p638 = pneg %p222
        %p639 = pneg %p219
        %p640 = pneg %p243
        %p641 = pneg %p240
        %p642 = pneg %p264
        %p643 = pneg %p261
        %p644 = pneg %p285
        %p645 = pneg %p282
        %p646 = pneg %p306
        %p647 = pneg %p303
        %p648 = pneg %p332
        %p649 = pneg %p329
        %s650 = sand.u32 %s319, 1
        %s651 = scalar_lea.sflag [#allocation4], %s650
        %s652 = sand.u32 %s319, 1
        %s653 = smul.addr %s652, 128
        %s654 = scalar_lea.vmem [#allocation22], %s653
        %v656 = vld [vmem:[%s540] sm:$0xff]
        %v657 = vld [vmem:[%s540 + $0x8] sm:$0xff]
        %v658 = vld [vmem:[%s540 + $0x10] sm:$0xff]
        %v659 = vld [vmem:[%s540 + $0x18] sm:$0xff]
        %v660 = vld [vmem:[%s540 + $0x20] sm:$0xff]
        %v661 = vld [vmem:[%s540 + $0x28] sm:$0xff]
        %v662 = vld [vmem:[%s540 + $0x30] sm:$0xff]
        %v663 = vld [vmem:[%s540 + $0x38] sm:$0xff]
        %v664 = vld [vmem:[%s540 + $0x40] sm:$0xff]
        %v665 = vld [vmem:[%s540 + $0x48] sm:$0xff]
        %v666 = vld [vmem:[%s540 + $0x50] sm:$0xff]
        %v667 = vld [vmem:[%s540 + $0x58] sm:$0xff]
        %v668 = vld [vmem:[%s540 + $0x60] sm:$0xff]
        %v669 = vld [vmem:[%s540 + $0x68] sm:$0xff]
        %v670 = vld [vmem:[%s540 + $0x70] sm:$0xff]
        %v671 = vld [vmem:[%s540 + $0x78] sm:$0xff]
        %v672 = vld [vmem:[%s549] sm:$0xf]
        %v673 = vld [vmem:[%s549 + $0x4] sm:$0xf]
        %v674 = vld [vmem:[%s549 + $0x8] sm:$0xf]
        %v675 = vld [vmem:[%s549 + $0xc] sm:$0xf]
        %v676 = vld [vmem:[%s549 + $0x10] sm:$0xf]
        %v677 = vld [vmem:[%s549 + $0x14] sm:$0xf]
        %v678 = vld [vmem:[%s549 + $0x18] sm:$0xf]
        %v679 = vld [vmem:[%s549 + $0x1c] sm:$0xf]
        %v680 = vld [vmem:[%s549 + $0x20] sm:$0xf]
        %v681 = vld [vmem:[%s549 + $0x24] sm:$0xf]
        %v682 = vld [vmem:[%s549 + $0x28] sm:$0xf]
        %v683 = vld [vmem:[%s549 + $0x2c] sm:$0xf]
        %v684 = vld [vmem:[%s549 + $0x30] sm:$0xf]
        %v685 = vld [vmem:[%s549 + $0x34] sm:$0xf]
        %v686 = vld [vmem:[%s549 + $0x38] sm:$0xf]
        %v687 = vld [vmem:[%s549 + $0x3c] sm:$0xf]
        %v688 = vld [vmem:[%s549 + $0x40] sm:$0xf]
        %v689 = vld [vmem:[%s549 + $0x44] sm:$0xf]
        %v690 = vld [vmem:[%s549 + $0x48] sm:$0xf]
        %v691 = vld [vmem:[%s549 + $0x4c] sm:$0xf]
        %v692 = vld [vmem:[%s549 + $0x50] sm:$0xf]
        %v693 = vld [vmem:[%s549 + $0x54] sm:$0xf]
        %v694 = vld [vmem:[%s549 + $0x58] sm:$0xf]
        %v695 = vld [vmem:[%s549 + $0x5c] sm:$0xf]
        %v696 = vld [vmem:[%s549 + $0x60] sm:$0xf]
        %v697 = vld [vmem:[%s549 + $0x64] sm:$0xf]
        %v698 = vld [vmem:[%s549 + $0x68] sm:$0xf]
        %v699 = vld [vmem:[%s549 + $0x6c] sm:$0xf]
        %v700 = vld [vmem:[%s549 + $0x70] sm:$0xf]
        %v701 = vld [vmem:[%s549 + $0x74] sm:$0xf]
        %v702 = vld [vmem:[%s549 + $0x78] sm:$0xf]
        %v703 = vld [vmem:[%s549 + $0x7c] sm:$0xf]
        %v704 = vld [vmem:[%s558] sm:$0xf]
        %v705 = vld [vmem:[%s558 + $0x4] sm:$0xf]
        %v706 = vld [vmem:[%s558 + $0x8] sm:$0xf]
        %v707 = vld [vmem:[%s558 + $0xc] sm:$0xf]
        %v708 = vld [vmem:[%s558 + $0x10] sm:$0xf]
        %v709 = vld [vmem:[%s558 + $0x14] sm:$0xf]
        %v710 = vld [vmem:[%s558 + $0x18] sm:$0xf]
        %v711 = vld [vmem:[%s558 + $0x1c] sm:$0xf]
        %v712 = vld [vmem:[%s558 + $0x20] sm:$0xf]
        %v713 = vld [vmem:[%s558 + $0x24] sm:$0xf]
        %v714 = vld [vmem:[%s558 + $0x28] sm:$0xf]
        %v715 = vld [vmem:[%s558 + $0x2c] sm:$0xf]
        %v716 = vld [vmem:[%s558 + $0x30] sm:$0xf]
        %v717 = vld [vmem:[%s558 + $0x34] sm:$0xf]
        %v718 = vld [vmem:[%s558 + $0x38] sm:$0xf]
        %v719 = vld [vmem:[%s558 + $0x3c] sm:$0xf]
        %v720 = vld [vmem:[%s558 + $0x40] sm:$0xf]
        %v721 = vld [vmem:[%s558 + $0x44] sm:$0xf]
        %v722 = vld [vmem:[%s558 + $0x48] sm:$0xf]
        %v723 = vld [vmem:[%s558 + $0x4c] sm:$0xf]
        %v724 = vld [vmem:[%s558 + $0x50] sm:$0xf]
        %v725 = vld [vmem:[%s558 + $0x54] sm:$0xf]
        %v726 = vld [vmem:[%s558 + $0x58] sm:$0xf]
        %v727 = vld [vmem:[%s558 + $0x5c] sm:$0xf]
        %v728 = vld [vmem:[%s558 + $0x60] sm:$0xf]
        %v729 = vld [vmem:[%s558 + $0x64] sm:$0xf]
        %v730 = vld [vmem:[%s558 + $0x68] sm:$0xf]
        %v731 = vld [vmem:[%s558 + $0x6c] sm:$0xf]
        %v732 = vld [vmem:[%s558 + $0x70] sm:$0xf]
        %v733 = vld [vmem:[%s558 + $0x74] sm:$0xf]
        %v734 = vld [vmem:[%s558 + $0x78] sm:$0xf]
        %v735 = vld [vmem:[%s558 + $0x7c] sm:$0xf]
        %v736 = vld [vmem:[%s567] sm:$0xf]
        %v737 = vld [vmem:[%s567 + $0x4] sm:$0xf]
        %v738 = vld [vmem:[%s567 + $0x8] sm:$0xf]
        %v739 = vld [vmem:[%s567 + $0xc] sm:$0xf]
        %v740 = vld [vmem:[%s567 + $0x10] sm:$0xf]
        %v741 = vld [vmem:[%s567 + $0x14] sm:$0xf]
        %v742 = vld [vmem:[%s567 + $0x18] sm:$0xf]
        %v743 = vld [vmem:[%s567 + $0x1c] sm:$0xf]
        %v744 = vld [vmem:[%s567 + $0x20] sm:$0xf]
        %v745 = vld [vmem:[%s567 + $0x24] sm:$0xf]
        %v746 = vld [vmem:[%s567 + $0x28] sm:$0xf]
        %v747 = vld [vmem:[%s567 + $0x2c] sm:$0xf]
        %v748 = vld [vmem:[%s567 + $0x30] sm:$0xf]
        %v749 = vld [vmem:[%s567 + $0x34] sm:$0xf]
        %v750 = vld [vmem:[%s567 + $0x38] sm:$0xf]
        %v751 = vld [vmem:[%s567 + $0x3c] sm:$0xf]
        %v752 = vld [vmem:[%s567 + $0x40] sm:$0xf]
        %v753 = vld [vmem:[%s567 + $0x44] sm:$0xf]
        %v754 = vld [vmem:[%s567 + $0x48] sm:$0xf]
        %v755 = vld [vmem:[%s567 + $0x4c] sm:$0xf]
        %v756 = vld [vmem:[%s567 + $0x50] sm:$0xf]
        %v757 = vld [vmem:[%s567 + $0x54] sm:$0xf]
        %v758 = vld [vmem:[%s567 + $0x58] sm:$0xf]
        %v759 = vld [vmem:[%s567 + $0x5c] sm:$0xf]
        %v760 = vld [vmem:[%s567 + $0x60] sm:$0xf]
        %v761 = vld [vmem:[%s567 + $0x64] sm:$0xf]
        %v762 = vld [vmem:[%s567 + $0x68] sm:$0xf]
        %v763 = vld [vmem:[%s567 + $0x6c] sm:$0xf]
        %v764 = vld [vmem:[%s567 + $0x70] sm:$0xf]
        %v765 = vld [vmem:[%s567 + $0x74] sm:$0xf]
        %v766 = vld [vmem:[%s567 + $0x78] sm:$0xf]
        %v767 = vld [vmem:[%s567 + $0x7c] sm:$0xf]
        %v768 = vlaneseq
        %v769 = vshrl.u32 %v768, 7
        %v770 = vadd.s32 %v769, 8
        %v771 = vadd.s32 %v769, 16
        %v772 = vadd.s32 %v769, 24
        %v773 = vadd.s32 %v769, 32
        %v774 = vadd.s32 %v769, 40
        %v775 = vadd.s32 %v769, 48
        %v776 = vadd.s32 %v769, 56
        %v777 = vlaneseq
        %v778 = vand.u32 %v777, 127
        %vm779 = vcmp.le.s32.totalorder %v778, %v769
        %vm780 = vcmp.le.s32.totalorder %v778, %v770
        %vm781 = vcmp.le.s32.totalorder %v778, %v771
        %vm782 = vcmp.le.s32.totalorder %v778, %v772
        %vm783 = vcmp.le.s32.totalorder %v778, %v773
        %vm784 = vcmp.le.s32.totalorder %v778, %v774
        %vm785 = vcmp.le.s32.totalorder %v778, %v775
        %vm786 = vcmp.le.s32.totalorder %v778, %v776
        %v787 = vsel %vm779, 0.0, -1e+30
        %v788 = vsel %vm780, 0.0, -1e+30
        %v789 = vsel %vm781, 0.0, -1e+30
        %v790 = vsel %vm782, 0.0, -1e+30
        %v791 = vsel %vm783, 0.0, -1e+30
        %v792 = vsel %vm784, 0.0, -1e+30
        %v793 = vsel %vm785, 0.0, -1e+30
        %v794 = vsel %vm786, 0.0, -1e+30
        %v803 = vunpack.c.l.b16 %v672
        %v804 = vunpack.c.l.b16 %v673
        %v805 = vunpack.c.l.b16 %v674
        %v806 = vunpack.c.l.b16 %v675
        %v807 = vunpack.c.l.b16 %v676
        %v808 = vunpack.c.l.b16 %v677
        %v809 = vunpack.c.l.b16 %v678
        %v810 = vunpack.c.l.b16 %v679
        %v811 = vpack.c.b16 %v804, %v803
        %v812 = vpack.c.b16 %v806, %v805
        %v813 = vpack.c.b16 %v808, %v807
        %v814 = vpack.c.b16 %v810, %v809
        %v823 = vunpack.c.l.b16 %v704
        %v824 = vunpack.c.l.b16 %v705
        %v825 = vunpack.c.l.b16 %v706
        %v826 = vunpack.c.l.b16 %v707
        %v827 = vunpack.c.l.b16 %v708
        %v828 = vunpack.c.l.b16 %v709
        %v829 = vunpack.c.l.b16 %v710
        %v830 = vunpack.c.l.b16 %v711
        %v831 = vpack.c.b16 %v824, %v823
        %v832 = vpack.c.b16 %v826, %v825
        %v833 = vpack.c.b16 %v828, %v827
        %v834 = vpack.c.b16 %v830, %v829
        %vm835 = vcmask 523264
        %v837 = vsel %vm835, %v811, 0
        %v840 = vsel %vm835, %v812, 0
        %v843 = vsel %vm835, %v813, 0
        %v846 = vsel %vm835, %v814, 0
        %v849 = vsel %vm835, %v831, 0
        %v852 = vsel %vm835, %v832, 0
        %v855 = vsel %vm835, %v833, 0
        %v858 = vsel %vm835, %v834, 0
        %860 = vmatprep.subr.bf16.mxu0 0
        %861 = vmatpush1.bf16.xpose.msra.mxu0 %v849
        %862 = vmatprep.subr.bf16.mxu0 0
        %863 = vmatpush1.bf16.xpose.msra.mxu0 %v852
        %864 = vmatprep.subr.bf16.mxu0 0
        %865 = vmatpush1.bf16.xpose.msra.mxu0 %v855
        %866 = vmatprep.subr.bf16.mxu0 0
        %867 = vmatpush1.bf16.xpose.msra.mxu0 %v858
        %868 = vmatprep.subr.bf16.mxu0 0
        %869 = vmatpush1.bf16.xpose.msra.mxu0 0
        %870 = vmatprep.subr.bf16.mxu0 0
        %871 = vmatpush1.bf16.xpose.msra.mxu0 0
        %872 = vmatprep.subr.bf16.mxu0 0
        %873 = vmatpush1.bf16.xpose.msra.mxu0 0
        %874 = vmatprep.subr.bf16.mxu0 0
        %875 = vmatpush1.bf16.xpose.msra.mxu0 0
        %876 = vmatprep.subr.bf16.mxu0 0
        %877 = vmatpush1.bf16.xpose.msra.mxu0 0
        %878 = vmatprep.subr.bf16.mxu0 0
        %879 = vmatpush1.bf16.xpose.msra.mxu0 0
        %880 = vmatprep.subr.bf16.mxu0 0
        %881 = vmatpush1.bf16.xpose.msra.mxu0 0
        %882 = vmatprep.subr.bf16.mxu0 0
        %883 = vmatpush1.bf16.xpose.msra.mxu0 0
        %884 = vmatprep.subr.bf16.mxu0 0
        %885 = vmatpush1.bf16.xpose.msra.mxu0 0
        %886 = vmatprep.subr.bf16.mxu0 0
        %887 = vmatpush1.bf16.xpose.msra.mxu0 0
        %888 = vmatprep.subr.bf16.mxu0 0
        %889 = vmatpush1.bf16.xpose.msra.mxu0 0
        %890 = vmatprep.subr.bf16.mxu0 0
        %891 = vmatpush1.bf16.xpose.msra.mxu0 0
        %892 = vmatprep.mubr.bf16.mxu0 0
        %893 = vmatmul.mubr.bf16.gmra.mrb[0].mxu0 %v837
        %v894 = vpop.f32.mrb[0].mxu0
        %v895 = vadd.f32 %v787, %v894
        %v896 = vpop.f32.mrb[0].mxu0
        %v897 = vpop.f32.mrb[0].mxu0
        %v898 = vadd.f32 %v788, %v897
        %v899 = vpop.f32.mrb[0].mxu0
        %900 = vmatprep.mubr.bf16.mxu0 0
        %901 = vmatmul.mubr.bf16.gmra.mrb[0].mxu0 %v840
        %v902 = vpop.f32.mrb[0].mxu0
        %v903 = vadd.f32 %v789, %v902
        %v904 = vpop.f32.mrb[0].mxu0
        %v905 = vpop.f32.mrb[0].mxu0
        %v906 = vadd.f32 %v790, %v905
        %v907 = vpop.f32.mrb[0].mxu0
        %908 = vmatprep.mubr.bf16.mxu0 0
        %909 = vmatmul.mubr.bf16.gmra.mrb[0].mxu0 %v843
        %v910 = vpop.f32.mrb[0].mxu0
        %v911 = vadd.f32 %v791, %v910
        %v912 = vpop.f32.mrb[0].mxu0
        %v913 = vpop.f32.mrb[0].mxu0
        %v914 = vadd.f32 %v792, %v913
        %v915 = vpop.f32.mrb[0].mxu0
        %916 = vmatprep.mubr.bf16.mxu0 0
        %917 = vmatmul.mubr.bf16.gmra.mrb[0].mxu0 %v846
        %v918 = vpop.f32.mrb[0].mxu0
        %v919 = vadd.f32 %v793, %v918
        %v920 = vpop.f32.mrb[0].mxu0
        %v921 = vpop.f32.mrb[0].mxu0
        %v922 = vadd.f32 %v794, %v921
        %v923 = vpop.f32.mrb[0].mxu0
        %924 = vdwg.mxu0
        %v933 = vunpack.c.l.b16 %v680
        %v934 = vunpack.c.l.b16 %v681
        %v935 = vunpack.c.l.b16 %v682
        %v936 = vunpack.c.l.b16 %v683
        %v937 = vunpack.c.l.b16 %v684
        %v938 = vunpack.c.l.b16 %v685
        %v939 = vunpack.c.l.b16 %v686
        %v940 = vunpack.c.l.b16 %v687
        %v941 = vpack.c.b16 %v934, %v933
        %v942 = vpack.c.b16 %v936, %v935
        %v943 = vpack.c.b16 %v938, %v937
        %v944 = vpack.c.b16 %v940, %v939
        %v953 = vunpack.c.l.b16 %v712
        %v954 = vunpack.c.l.b16 %v713
        %v955 = vunpack.c.l.b16 %v714
        %v956 = vunpack.c.l.b16 %v715
        %v957 = vunpack.c.l.b16 %v716
        %v958 = vunpack.c.l.b16 %v717
        %v959 = vunpack.c.l.b16 %v718
        %v960 = vunpack.c.l.b16 %v719
        %v961 = vpack.c.b16 %v954, %v953
        %v962 = vpack.c.b16 %v956, %v955
        %v963 = vpack.c.b16 %v958, %v957
        %v964 = vpack.c.b16 %v960, %v959
        %v966 = vsel %vm835, %v941, 0
        %v969 = vsel %vm835, %v942, 0
        %v972 = vsel %vm835, %v943, 0
        %v975 = vsel %vm835, %v944, 0
        %v978 = vsel %vm835, %v961, 0
        %v981 = vsel %vm835, %v962, 0
        %v984 = vsel %vm835, %v963, 0
        %v987 = vsel %vm835, %v964, 0
        %989 = vmatprep.subr.bf16.mxu0 0
        %990 = vmatpush1.bf16.xpose.msra.mxu0 %v978
        %991 = vmatprep.subr.bf16.mxu0 0
        %992 = vmatpush1.bf16.xpose.msra.mxu0 %v981
        %993 = vmatprep.subr.bf16.mxu0 0
        %994 = vmatpush1.bf16.xpose.msra.mxu0 %v984
        %995 = vmatprep.subr.bf16.mxu0 0
        %996 = vmatpush1.bf16.xpose.msra.mxu0 %v987
        %997 = vmatprep.subr.bf16.mxu0 0
        %998 = vmatpush1.bf16.xpose.msra.mxu0 0
        %999 = vmatprep.subr.bf16.mxu0 0
        %1000 = vmatpush1.bf16.xpose.msra.mxu0 0
        %1001 = vmatprep.subr.bf16.mxu0 0
        %1002 = vmatpush1.bf16.xpose.msra.mxu0 0
        %1003 = vmatprep.subr.bf16.mxu0 0
        %1004 = vmatpush1.bf16.xpose.msra.mxu0 0
        %1005 = vmatprep.subr.bf16.mxu0 0
        %1006 = vmatpush1.bf16.xpose.msra.mxu0 0
        %1007 = vmatprep.subr.bf16.mxu0 0
        %1008 = vmatpush1.bf16.xpose.msra.mxu0 0
        %1009 = vmatprep.subr.bf16.mxu0 0
        %1010 = vmatpush1.bf16.xpose.msra.mxu0 0
        %1011 = vmatprep.subr.bf16.mxu0 0
        %1012 = vmatpush1.bf16.xpose.msra.mxu0 0
        %1013 = vmatprep.subr.bf16.mxu0 0
        %1014 = vmatpush1.bf16.xpose.msra.mxu0 0
        %1015 = vmatprep.subr.bf16.mxu0 0
        %1016 = vmatpush1.bf16.xpose.msra.mxu0 0
        %1017 = vmatprep.subr.bf16.mxu0 0
        %1018 = vmatpush1.bf16.xpose.msra.mxu0 0
        %1019 = vmatprep.subr.bf16.mxu0 0
        %1020 = vmatpush1.bf16.xpose.msra.mxu0 0
        %1021 = vmatprep.mubr.bf16.mxu0 0
        %1022 = vmatmul.mubr.bf16.gmra.mrb[0].mxu0 %v966
        %v1023 = vpop.f32.mrb[0].mxu0
        %v1024 = vadd.f32 %v787, %v1023
        %v1025 = vpop.f32.mrb[0].mxu0
        %v1026 = vpop.f32.mrb[0].mxu0
        %v1027 = vadd.f32 %v788, %v1026
        %v1028 = vpop.f32.mrb[0].mxu0
        %1029 = vmatprep.mubr.bf16.mxu0 0
        %1030 = vmatmul.mubr.bf16.gmra.mrb[0].mxu0 %v969
        %v1031 = vpop.f32.mrb[0].mxu0
        %v1032 = vadd.f32 %v789, %v1031
        %v1033 = vpop.f32.mrb[0].mxu0
        %v1034 = vpop.f32.mrb[0].mxu0
        %v1035 = vadd.f32 %v790, %v1034
        %v1036 = vpop.f32.mrb[0].mxu0
        %1037 = vmatprep.mubr.bf16.mxu0 0
        %1038 = vmatmul.mubr.bf16.gmra.mrb[0].mxu0 %v972
        %v1039 = vpop.f32.mrb[0].mxu0
        %v1040 = vadd.f32 %v791, %v1039
        %v1041 = vpop.f32.mrb[0].mxu0
        %v1042 = vpop.f32.mrb[0].mxu0
        %v1043 = vadd.f32 %v792, %v1042
        %v1044 = vpop.f32.mrb[0].mxu0
        %1045 = vmatprep.mubr.bf16.mxu0 0
        %1046 = vmatmul.mubr.bf16.gmra.mrb[0].mxu0 %v975
        %v1047 = vpop.f32.mrb[0].mxu0
        %v1048 = vadd.f32 %v793, %v1047
        %v1049 = vpop.f32.mrb[0].mxu0
        %v1050 = vpop.f32.mrb[0].mxu0
        %v1051 = vadd.f32 %v794, %v1050
        %v1052 = vpop.f32.mrb[0].mxu0
        %1053 = vdwg.mxu0
        %v1062 = vunpack.c.l.b16 %v688
        %v1063 = vunpack.c.l.b16 %v689
        %v1064 = vunpack.c.l.b16 %v690
        %v1065 = vunpack.c.l.b16 %v691
        %v1066 = vunpack.c.l.b16 %v692
        %v1067 = vunpack.c.l.b16 %v693
        %v1068 = vunpack.c.l.b16 %v694
        %v1069 = vunpack.c.l.b16 %v695
        %v1070 = vpack.c.b16 %v1063, %v1062
        %v1071 = vpack.c.b16 %v1065, %v1064
        %v1072 = vpack.c.b16 %v1067, %v1066
        %v1073 = vpack.c.b16 %v1069, %v1068
        %v1082 = vunpack.c.l.b16 %v720
        %v1083 = vunpack.c.l.b16 %v721
        %v1084 = vunpack.c.l.b16 %v722
        %v1085 = vunpack.c.l.b16 %v723
        %v1086 = vunpack.c.l.b16 %v724
        %v1087 = vunpack.c.l.b16 %v725
        %v1088 = vunpack.c.l.b16 %v726
        %v1089 = vunpack.c.l.b16 %v727
        %v1090 = vpack.c.b16 %v1083, %v1082
        %v1091 = vpack.c.b16 %v1085, %v1084
        %v1092 = vpack.c.b16 %v1087, %v1086
        %v1093 = vpack.c.b16 %v1089, %v1088
        %v1095 = vsel %vm835, %v1070, 0
        %v1098 = vsel %vm835, %v1071, 0
        %v1101 = vsel %vm835, %v1072, 0
        %v1104 = vsel %vm835, %v1073, 0
        %v1107 = vsel %vm835, %v1090, 0
        %v1110 = vsel %vm835, %v1091, 0
        %v1113 = vsel %vm835, %v1092, 0
        %v1116 = vsel %vm835, %v1093, 0
        %1118 = vmatprep.subr.bf16.mxu0 0
        %1119 = vmatpush1.bf16.xpose.msra.mxu0 %v1107
        %1120 = vmatprep.subr.bf16.mxu0 0
        %1121 = vmatpush1.bf16.xpose.msra.mxu0 %v1110
        %1122 = vmatprep.subr.bf16.mxu0 0
        %1123 = vmatpush1.bf16.xpose.msra.mxu0 %v1113
        %1124 = vmatprep.subr.bf16.mxu0 0
        %1125 = vmatpush1.bf16.xpose.msra.mxu0 %v1116
        %1126 = vmatprep.subr.bf16.mxu0 0
        %1127 = vmatpush1.bf16.xpose.msra.mxu0 0
        %1128 = vmatprep.subr.bf16.mxu0 0
        %1129 = vmatpush1.bf16.xpose.msra.mxu0 0
        %1130 = vmatprep.subr.bf16.mxu0 0
        %1131 = vmatpush1.bf16.xpose.msra.mxu0 0
        %1132 = vmatprep.subr.bf16.mxu0 0
        %1133 = vmatpush1.bf16.xpose.msra.mxu0 0
        %1134 = vmatprep.subr.bf16.mxu0 0
        %1135 = vmatpush1.bf16.xpose.msra.mxu0 0
        %1136 = vmatprep.subr.bf16.mxu0 0
        %1137 = vmatpush1.bf16.xpose.msra.mxu0 0
        %1138 = vmatprep.subr.bf16.mxu0 0
        %1139 = vmatpush1.bf16.xpose.msra.mxu0 0
        %1140 = vmatprep.subr.bf16.mxu0 0
        %1141 = vmatpush1.bf16.xpose.msra.mxu0 0
        %1142 = vmatprep.subr.bf16.mxu0 0
        %1143 = vmatpush1.bf16.xpose.msra.mxu0 0
        %1144 = vmatprep.subr.bf16.mxu0 0
        %1145 = vmatpush1.bf16.xpose.msra.mxu0 0
        %1146 = vmatprep.subr.bf16.mxu0 0
        %1147 = vmatpush1.bf16.xpose.msra.mxu0 0
        %1148 = vmatprep.subr.bf16.mxu0 0
        %1149 = vmatpush1.bf16.xpose.msra.mxu0 0
        %1150 = vmatprep.mubr.bf16.mxu0 0
        %1151 = vmatmul.mubr.bf16.gmra.mrb[0].mxu0 %v1095
        %v1152 = vpop.f32.mrb[0].mxu0
        %v1153 = vadd.f32 %v787, %v1152
        %v1154 = vpop.f32.mrb[0].mxu0
        %v1155 = vpop.f32.mrb[0].mxu0
        %v1156 = vadd.f32 %v788, %v1155
        %v1157 = vpop.f32.mrb[0].mxu0
        %1158 = vmatprep.mubr.bf16.mxu0 0
        %1159 = vmatmul.mubr.bf16.gmra.mrb[0].mxu0 %v1098
        %v1160 = vpop.f32.mrb[0].mxu0
        %v1161 = vadd.f32 %v789, %v1160
        %v1162 = vpop.f32.mrb[0].mxu0
        %v1163 = vpop.f32.mrb[0].mxu0
        %v1164 = vadd.f32 %v790, %v1163
        %v1165 = vpop.f32.mrb[0].mxu0
        %1166 = vmatprep.mubr.bf16.mxu0 0
        %1167 = vmatmul.mubr.bf16.gmra.mrb[0].mxu0 %v1101
        %v1168 = vpop.f32.mrb[0].mxu0
        %v1169 = vadd.f32 %v791, %v1168
        %v1170 = vpop.f32.mrb[0].mxu0
        %v1171 = vpop.f32.mrb[0].mxu0
        %v1172 = vadd.f32 %v792, %v1171
        %v1173 = vpop.f32.mrb[0].mxu0
        %1174 = vmatprep.mubr.bf16.mxu0 0
        %1175 = vmatmul.mubr.bf16.gmra.mrb[0].mxu0 %v1104
        %v1176 = vpop.f32.mrb[0].mxu0
        %v1177 = vadd.f32 %v793, %v1176
        %v1178 = vpop.f32.mrb[0].mxu0
        %v1179 = vpop.f32.mrb[0].mxu0
        %v1180 = vadd.f32 %v794, %v1179
        %v1181 = vpop.f32.mrb[0].mxu0
        %1182 = vdwg.mxu0
        %v1191 = vunpack.c.l.b16 %v696
        %v1192 = vunpack.c.l.b16 %v697
        %v1193 = vunpack.c.l.b16 %v698
        %v1194 = vunpack.c.l.b16 %v699
        %v1195 = vunpack.c.l.b16 %v700
        %v1196 = vunpack.c.l.b16 %v701
        %v1197 = vunpack.c.l.b16 %v702
        %v1198 = vunpack.c.l.b16 %v703
        %v1199 = vpack.c.b16 %v1192, %v1191
        %v1200 = vpack.c.b16 %v1194, %v1193
        %v1201 = vpack.c.b16 %v1196, %v1195
        %v1202 = vpack.c.b16 %v1198, %v1197
        %v1211 = vunpack.c.l.b16 %v728
        %v1212 = vunpack.c.l.b16 %v729
        %v1213 = vunpack.c.l.b16 %v730
        %v1214 = vunpack.c.l.b16 %v731
        %v1215 = vunpack.c.l.b16 %v732
        %v1216 = vunpack.c.l.b16 %v733
        %v1217 = vunpack.c.l.b16 %v734
        %v1218 = vunpack.c.l.b16 %v735
        %v1219 = vpack.c.b16 %v1212, %v1211
        %v1220 = vpack.c.b16 %v1214, %v1213
        %v1221 = vpack.c.b16 %v1216, %v1215
        %v1222 = vpack.c.b16 %v1218, %v1217
        %v1224 = vsel %vm835, %v1199, 0
        %v1227 = vsel %vm835, %v1200, 0
        %v1230 = vsel %vm835, %v1201, 0
        %v1233 = vsel %vm835, %v1202, 0
        %v1236 = vsel %vm835, %v1219, 0
        %v1239 = vsel %vm835, %v1220, 0
        %v1242 = vsel %vm835, %v1221, 0
        %v1245 = vsel %vm835, %v1222, 0
        %1247 = vmatprep.subr.bf16.mxu0 0
        %1248 = vmatpush1.bf16.xpose.msra.mxu0 %v1236
        %1249 = vmatprep.subr.bf16.mxu0 0
        %1250 = vmatpush1.bf16.xpose.msra.mxu0 %v1239
        %1251 = vmatprep.subr.bf16.mxu0 0
        %1252 = vmatpush1.bf16.xpose.msra.mxu0 %v1242
        %1253 = vmatprep.subr.bf16.mxu0 0
        %1254 = vmatpush1.bf16.xpose.msra.mxu0 %v1245
        %1255 = vmatprep.subr.bf16.mxu0 0
        %1256 = vmatpush1.bf16.xpose.msra.mxu0 0
        %1257 = vmatprep.subr.bf16.mxu0 0
        %1258 = vmatpush1.bf16.xpose.msra.mxu0 0
        %1259 = vmatprep.subr.bf16.mxu0 0
        %1260 = vmatpush1.bf16.xpose.msra.mxu0 0
        %1261 = vmatprep.subr.bf16.mxu0 0
        %1262 = vmatpush1.bf16.xpose.msra.mxu0 0
        %1263 = vmatprep.subr.bf16.mxu0 0
        %1264 = vmatpush1.bf16.xpose.msra.mxu0 0
        %1265 = vmatprep.subr.bf16.mxu0 0
        %1266 = vmatpush1.bf16.xpose.msra.mxu0 0
        %1267 = vmatprep.subr.bf16.mxu0 0
        %1268 = vmatpush1.bf16.xpose.msra.mxu0 0
        %1269 = vmatprep.subr.bf16.mxu0 0
        %1270 = vmatpush1.bf16.xpose.msra.mxu0 0
        %1271 = vmatprep.subr.bf16.mxu0 0
        %1272 = vmatpush1.bf16.xpose.msra.mxu0 0
        %1273 = vmatprep.subr.bf16.mxu0 0
        %1274 = vmatpush1.bf16.xpose.msra.mxu0 0
        %1275 = vmatprep.subr.bf16.mxu0 0
        %1276 = vmatpush1.bf16.xpose.msra.mxu0 0
        %1277 = vmatprep.subr.bf16.mxu0 0
        %1278 = vmatpush1.bf16.xpose.msra.mxu0 0
        %1279 = vmatprep.mubr.bf16.mxu0 0
        %1280 = vmatmul.mubr.bf16.gmra.mrb[0].mxu0 %v1224
        %v1281 = vpop.f32.mrb[0].mxu0
        %v1282 = vadd.f32 %v787, %v1281
        %v1283 = vpop.f32.mrb[0].mxu0
        %v1284 = vpop.f32.mrb[0].mxu0
        %v1285 = vadd.f32 %v788, %v1284
        %v1286 = vpop.f32.mrb[0].mxu0
        %1287 = vmatprep.mubr.bf16.mxu0 0
        %1288 = vmatmul.mubr.bf16.gmra.mrb[0].mxu0 %v1227
        %v1289 = vpop.f32.mrb[0].mxu0
        %v1290 = vadd.f32 %v789, %v1289
        %v1291 = vpop.f32.mrb[0].mxu0
        %v1292 = vpop.f32.mrb[0].mxu0
        %v1293 = vadd.f32 %v790, %v1292
        %v1294 = vpop.f32.mrb[0].mxu0
        %1295 = vmatprep.mubr.bf16.mxu0 0
        %1296 = vmatmul.mubr.bf16.gmra.mrb[0].mxu0 %v1230
        %v1297 = vpop.f32.mrb[0].mxu0
        %v1298 = vadd.f32 %v791, %v1297
        %v1299 = vpop.f32.mrb[0].mxu0
        %v1300 = vpop.f32.mrb[0].mxu0
        %v1301 = vadd.f32 %v792, %v1300
        %v1302 = vpop.f32.mrb[0].mxu0
        %1303 = vmatprep.mubr.bf16.mxu0 0
        %1304 = vmatmul.mubr.bf16.gmra.mrb[0].mxu0 %v1233
        %v1305 = vpop.f32.mrb[0].mxu0
        %v1306 = vadd.f32 %v793, %v1305
        %v1307 = vpop.f32.mrb[0].mxu0
        %v1308 = vpop.f32.mrb[0].mxu0
        %v1309 = vadd.f32 %v794, %v1308
        %v1310 = vpop.f32.mrb[0].mxu0
        %1311 = vdwg.mxu0
        %v1312 = vsel %vm835, %v895, -inf
        %1313 = vmax.xlane.f32.xlu0 %v1312
        %v1314 = vpop.xlane.xlu0 %1313
        %v1315 = vsel %vm835, %v898, -inf
        %1316 = vmax.xlane.f32.xlu0 %v1315
        %v1317 = vpop.xlane.xlu0 %1316
        %v1318 = vsel %vm835, %v903, -inf
        %1319 = vmax.xlane.f32.xlu0 %v1318
        %v1320 = vpop.xlane.xlu0 %1319
        %v1321 = vsel %vm835, %v906, -inf
        %1322 = vmax.xlane.f32.xlu0 %v1321
        %v1323 = vpop.xlane.xlu0 %1322
        %v1324 = vsel %vm835, %v911, -inf
        %1325 = vmax.xlane.f32.xlu0 %v1324
        %v1326 = vpop.xlane.xlu0 %1325
        %v1327 = vsel %vm835, %v914, -inf
        %1328 = vmax.xlane.f32.xlu0 %v1327
        %v1329 = vpop.xlane.xlu0 %1328
        %v1330 = vsel %vm835, %v919, -inf
        %1331 = vmax.xlane.f32.xlu0 %v1330
        %v1332 = vpop.xlane.xlu0 %1331
        %v1333 = vsel %vm835, %v922, -inf
        %1334 = vmax.xlane.f32.xlu0 %v1333
        %v1335 = vpop.xlane.xlu0 %1334
        %v1336 = vsel %vm835, %v1024, -inf
        %1337 = vmax.xlane.f32.xlu0 %v1336
        %v1338 = vpop.xlane.xlu0 %1337
        %v1339 = vsel %vm835, %v1027, -inf
        %1340 = vmax.xlane.f32.xlu0 %v1339
        %v1341 = vpop.xlane.xlu0 %1340
        %v1342 = vsel %vm835, %v1032, -inf
        %1343 = vmax.xlane.f32.xlu0 %v1342
        %v1344 = vpop.xlane.xlu0 %1343
        %v1345 = vsel %vm835, %v1035, -inf
        %1346 = vmax.xlane.f32.xlu0 %v1345
        %v1347 = vpop.xlane.xlu0 %1346
        %v1348 = vsel %vm835, %v1040, -inf
        %1349 = vmax.xlane.f32.xlu0 %v1348
        %v1350 = vpop.xlane.xlu0 %1349
        %v1351 = vsel %vm835, %v1043, -inf
        %1352 = vmax.xlane.f32.xlu0 %v1351
        %v1353 = vpop.xlane.xlu0 %1352
        %v1354 = vsel %vm835, %v1048, -inf
        %1355 = vmax.xlane.f32.xlu0 %v1354
        %v1356 = vpop.xlane.xlu0 %1355
        %v1357 = vsel %vm835, %v1051, -inf
        %1358 = vmax.xlane.f32.xlu0 %v1357
        %v1359 = vpop.xlane.xlu0 %1358
        %v1360 = vsel %vm835, %v1153, -inf
        %1361 = vmax.xlane.f32.xlu0 %v1360
        %v1362 = vpop.xlane.xlu0 %1361
        %v1363 = vsel %vm835, %v1156, -inf
        %1364 = vmax.xlane.f32.xlu0 %v1363
        %v1365 = vpop.xlane.xlu0 %1364
        %v1366 = vsel %vm835, %v1161, -inf
        %1367 = vmax.xlane.f32.xlu0 %v1366
        %v1368 = vpop.xlane.xlu0 %1367
        %v1369 = vsel %vm835, %v1164, -inf
        %1370 = vmax.xlane.f32.xlu0 %v1369
        %v1371 = vpop.xlane.xlu0 %1370
        %v1372 = vsel %vm835, %v1169, -inf
        %1373 = vmax.xlane.f32.xlu0 %v1372
        %v1374 = vpop.xlane.xlu0 %1373
        %v1375 = vsel %vm835, %v1172, -inf
        %1376 = vmax.xlane.f32.xlu0 %v1375
        %v1377 = vpop.xlane.xlu0 %1376
        %v1378 = vsel %vm835, %v1177, -inf
        %1379 = vmax.xlane.f32.xlu0 %v1378
        %v1380 = vpop.xlane.xlu0 %1379
        %v1381 = vsel %vm835, %v1180, -inf
        %1382 = vmax.xlane.f32.xlu0 %v1381
        %v1383 = vpop.xlane.xlu0 %1382
        %v1384 = vsel %vm835, %v1282, -inf
        %1385 = vmax.xlane.f32.xlu0 %v1384
        %v1386 = vpop.xlane.xlu0 %1385
        %v1387 = vsel %vm835, %v1285, -inf
        %1388 = vmax.xlane.f32.xlu0 %v1387
        %v1389 = vpop.xlane.xlu0 %1388
        %v1390 = vsel %vm835, %v1290, -inf
        %1391 = vmax.xlane.f32.xlu0 %v1390
        %v1392 = vpop.xlane.xlu0 %1391
        %v1393 = vsel %vm835, %v1293, -inf
        %1394 = vmax.xlane.f32.xlu0 %v1393
        %v1395 = vpop.xlane.xlu0 %1394
        %v1396 = vsel %vm835, %v1298, -inf
        %1397 = vmax.xlane.f32.xlu0 %v1396
        %v1398 = vpop.xlane.xlu0 %1397
        %v1399 = vsel %vm835, %v1301, -inf
        %1400 = vmax.xlane.f32.xlu0 %v1399
        %v1401 = vpop.xlane.xlu0 %1400
        %v1402 = vsel %vm835, %v1306, -inf
        %1403 = vmax.xlane.f32.xlu0 %v1402
        %v1404 = vpop.xlane.xlu0 %1403
        %v1405 = vsel %vm835, %v1309, -inf
        %1406 = vmax.xlane.f32.xlu0 %v1405
        %v1407 = vpop.xlane.xlu0 %1406
        %v1408 = vsub.f32 %v895, %v1314
        %v1409 = vsub.f32 %v898, %v1317
        %v1410 = vsub.f32 %v903, %v1320
        %v1411 = vsub.f32 %v906, %v1323
        %v1412 = vsub.f32 %v911, %v1326
        %v1413 = vsub.f32 %v914, %v1329
        %v1414 = vsub.f32 %v919, %v1332
        %v1415 = vsub.f32 %v922, %v1335
        %v1416 = vsub.f32 %v1024, %v1338
        %v1417 = vsub.f32 %v1027, %v1341
        %v1418 = vsub.f32 %v1032, %v1344
        %v1419 = vsub.f32 %v1035, %v1347
        %v1420 = vsub.f32 %v1040, %v1350
        %v1421 = vsub.f32 %v1043, %v1353
        %v1422 = vsub.f32 %v1048, %v1356
        %v1423 = vsub.f32 %v1051, %v1359
        %v1424 = vsub.f32 %v1153, %v1362
        %v1425 = vsub.f32 %v1156, %v1365
        %v1426 = vsub.f32 %v1161, %v1368
        %v1427 = vsub.f32 %v1164, %v1371
        %v1428 = vsub.f32 %v1169, %v1374
        %v1429 = vsub.f32 %v1172, %v1377
        %v1430 = vsub.f32 %v1177, %v1380
        %v1431 = vsub.f32 %v1180, %v1383
        %v1432 = vsub.f32 %v1282, %v1386
        %v1433 = vsub.f32 %v1285, %v1389
        %v1434 = vsub.f32 %v1290, %v1392
        %v1435 = vsub.f32 %v1293, %v1395
        %v1436 = vsub.f32 %v1298, %v1398
        %v1437 = vsub.f32 %v1301, %v1401
        %v1438 = vsub.f32 %v1306, %v1404
        %v1439 = vsub.f32 %v1309, %v1407
        %v1440 = vmul.f32 %v1408, 1.442695
        %v1441 = vpow.pop %v1440
        %v1442 = vmul.f32 %v1409, 1.442695
        %v1443 = vpow.pop %v1442
        %v1444 = vmul.f32 %v1410, 1.442695
        %v1445 = vpow.pop %v1444
        %v1446 = vmul.f32 %v1411, 1.442695
        %v1447 = vpow.pop %v1446
        %v1448 = vmul.f32 %v1412, 1.442695
        %v1449 = vpow.pop %v1448
        %v1450 = vmul.f32 %v1413, 1.442695
        %v1451 = vpow.pop %v1450
        %v1452 = vmul.f32 %v1414, 1.442695
        %v1453 = vpow.pop %v1452
        %v1454 = vmul.f32 %v1415, 1.442695
        %v1455 = vpow.pop %v1454
        %v1456 = vmul.f32 %v1416, 1.442695
        %v1457 = vpow.pop %v1456
        %v1458 = vmul.f32 %v1417, 1.442695
        %v1459 = vpow.pop %v1458
        %v1460 = vmul.f32 %v1418, 1.442695
        %v1461 = vpow.pop %v1460
        %v1462 = vmul.f32 %v1419, 1.442695
        %v1463 = vpow.pop %v1462
        %v1464 = vmul.f32 %v1420, 1.442695
        %v1465 = vpow.pop %v1464
        %v1466 = vmul.f32 %v1421, 1.442695
        %v1467 = vpow.pop %v1466
        %v1468 = vmul.f32 %v1422, 1.442695
        %v1469 = vpow.pop %v1468
        %v1470 = vmul.f32 %v1423, 1.442695
        %v1471 = vpow.pop %v1470
        %v1472 = vmul.f32 %v1424, 1.442695
        %v1473 = vpow.pop %v1472
        %v1474 = vmul.f32 %v1425, 1.442695
        %v1475 = vpow.pop %v1474
        %v1476 = vmul.f32 %v1426, 1.442695
        %v1477 = vpow.pop %v1476
        %v1478 = vmul.f32 %v1427, 1.442695
        %v1479 = vpow.pop %v1478
        %v1480 = vmul.f32 %v1428, 1.442695
        %v1481 = vpow.pop %v1480
        %v1482 = vmul.f32 %v1429, 1.442695
        %v1483 = vpow.pop %v1482
        %v1484 = vmul.f32 %v1430, 1.442695
        %v1485 = vpow.pop %v1484
        %v1486 = vmul.f32 %v1431, 1.442695
        %v1487 = vpow.pop %v1486
        %v1488 = vmul.f32 %v1432, 1.442695
        %v1489 = vpow.pop %v1488
        %v1490 = vmul.f32 %v1433, 1.442695
        %v1491 = vpow.pop %v1490
        %v1492 = vmul.f32 %v1434, 1.442695
        %v1493 = vpow.pop %v1492
        %v1494 = vmul.f32 %v1435, 1.442695
        %v1495 = vpow.pop %v1494
        %v1496 = vmul.f32 %v1436, 1.442695
        %v1497 = vpow.pop %v1496
        %v1498 = vmul.f32 %v1437, 1.442695
        %v1499 = vpow.pop %v1498
        %v1500 = vmul.f32 %v1438, 1.442695
        %v1501 = vpow.pop %v1500
        %v1502 = vmul.f32 %v1439, 1.442695
        %v1503 = vpow.pop %v1502
        %v1504 = vsel %vm835, %v1441, 0.0
        %1505 = vadd.xlane.f32.xlu0 %v1504
        %v1506 = vpop.xlane.xlu0 %1505
        %v1507 = vsel %vm835, %v1443, 0.0
        %1508 = vadd.xlane.f32.xlu0 %v1507
        %v1509 = vpop.xlane.xlu0 %1508
        %v1510 = vsel %vm835, %v1445, 0.0
        %1511 = vadd.xlane.f32.xlu0 %v1510
        %v1512 = vpop.xlane.xlu0 %1511
        %v1513 = vsel %vm835, %v1447, 0.0
        %1514 = vadd.xlane.f32.xlu0 %v1513
        %v1515 = vpop.xlane.xlu0 %1514
        %v1516 = vsel %vm835, %v1449, 0.0
        %1517 = vadd.xlane.f32.xlu0 %v1516
        %v1518 = vpop.xlane.xlu0 %1517
        %v1519 = vsel %vm835, %v1451, 0.0
        %1520 = vadd.xlane.f32.xlu0 %v1519
        %v1521 = vpop.xlane.xlu0 %1520
        %v1522 = vsel %vm835, %v1453, 0.0
        %1523 = vadd.xlane.f32.xlu0 %v1522
        %v1524 = vpop.xlane.xlu0 %1523
        %v1525 = vsel %vm835, %v1455, 0.0
        %1526 = vadd.xlane.f32.xlu0 %v1525
        %v1527 = vpop.xlane.xlu0 %1526
        %v1528 = vsel %vm835, %v1457, 0.0
        %1529 = vadd.xlane.f32.xlu0 %v1528
        %v1530 = vpop.xlane.xlu0 %1529
        %v1531 = vsel %vm835, %v1459, 0.0
        %1532 = vadd.xlane.f32.xlu0 %v1531
        %v1533 = vpop.xlane.xlu0 %1532
        %v1534 = vsel %vm835, %v1461, 0.0
        %1535 = vadd.xlane.f32.xlu0 %v1534
        %v1536 = vpop.xlane.xlu0 %1535
        %v1537 = vsel %vm835, %v1463, 0.0
        %1538 = vadd.xlane.f32.xlu0 %v1537
        %v1539 = vpop.xlane.xlu0 %1538
        %v1540 = vsel %vm835, %v1465, 0.0
        %1541 = vadd.xlane.f32.xlu0 %v1540
        %v1542 = vpop.xlane.xlu0 %1541
        %v1543 = vsel %vm835, %v1467, 0.0
        %1544 = vadd.xlane.f32.xlu0 %v1543
        %v1545 = vpop.xlane.xlu0 %1544
        %v1546 = vsel %vm835, %v1469, 0.0
        %1547 = vadd.xlane.f32.xlu0 %v1546
        %v1548 = vpop.xlane.xlu0 %1547
        %v1549 = vsel %vm835, %v1471, 0.0
        %1550 = vadd.xlane.f32.xlu0 %v1549
        %v1551 = vpop.xlane.xlu0 %1550
        %v1552 = vsel %vm835, %v1473, 0.0
        %1553 = vadd.xlane.f32.xlu0 %v1552
        %v1554 = vpop.xlane.xlu0 %1553
        %v1555 = vsel %vm835, %v1475, 0.0
        %1556 = vadd.xlane.f32.xlu0 %v1555
        %v1557 = vpop.xlane.xlu0 %1556
        %v1558 = vsel %vm835, %v1477, 0.0
        %1559 = vadd.xlane.f32.xlu0 %v1558
        %v1560 = vpop.xlane.xlu0 %1559
        %v1561 = vsel %vm835, %v1479, 0.0
        %1562 = vadd.xlane.f32.xlu0 %v1561
        %v1563 = vpop.xlane.xlu0 %1562
        %v1564 = vsel %vm835, %v1481, 0.0
        %1565 = vadd.xlane.f32.xlu0 %v1564
        %v1566 = vpop.xlane.xlu0 %1565
        %v1567 = vsel %vm835, %v1483, 0.0
        %1568 = vadd.xlane.f32.xlu0 %v1567
        %v1569 = vpop.xlane.xlu0 %1568
        %v1570 = vsel %vm835, %v1485, 0.0
        %1571 = vadd.xlane.f32.xlu0 %v1570
        %v1572 = vpop.xlane.xlu0 %1571
        %v1573 = vsel %vm835, %v1487, 0.0
        %1574 = vadd.xlane.f32.xlu0 %v1573
        %v1575 = vpop.xlane.xlu0 %1574
        %v1576 = vsel %vm835, %v1489, 0.0
        %1577 = vadd.xlane.f32.xlu0 %v1576
        %v1578 = vpop.xlane.xlu0 %1577
        %v1579 = vsel %vm835, %v1491, 0.0
        %1580 = vadd.xlane.f32.xlu0 %v1579
        %v1581 = vpop.xlane.xlu0 %1580
        %v1582 = vsel %vm835, %v1493, 0.0
        %1583 = vadd.xlane.f32.xlu0 %v1582
        %v1584 = vpop.xlane.xlu0 %1583
        %v1585 = vsel %vm835, %v1495, 0.0
        %1586 = vadd.xlane.f32.xlu0 %v1585
        %v1587 = vpop.xlane.xlu0 %1586
        %v1588 = vsel %vm835, %v1497, 0.0
        %1589 = vadd.xlane.f32.xlu0 %v1588
        %v1590 = vpop.xlane.xlu0 %1589
        %v1591 = vsel %vm835, %v1499, 0.0
        %1592 = vadd.xlane.f32.xlu0 %v1591
        %v1593 = vpop.xlane.xlu0 %1592
        %v1594 = vsel %vm835, %v1501, 0.0
        %1595 = vadd.xlane.f32.xlu0 %v1594
        %v1596 = vpop.xlane.xlu0 %1595
        %v1597 = vsel %vm835, %v1503, 0.0
        %1598 = vadd.xlane.f32.xlu0 %v1597
        %v1599 = vpop.xlane.xlu0 %1598
        %v1600 = vrcp.pop %v1506
        %v1601 = vrcp.pop %v1509
        %v1602 = vrcp.pop %v1512
        %v1603 = vrcp.pop %v1515
        %v1604 = vrcp.pop %v1518
        %v1605 = vrcp.pop %v1521
        %v1606 = vrcp.pop %v1524
        %v1607 = vrcp.pop %v1527
        %v1608 = vrcp.pop %v1530
        %v1609 = vrcp.pop %v1533
        %v1610 = vrcp.pop %v1536
        %v1611 = vrcp.pop %v1539
        %v1612 = vrcp.pop %v1542
        %v1613 = vrcp.pop %v1545
        %v1614 = vrcp.pop %v1548
        %v1615 = vrcp.pop %v1551
        %v1616 = vrcp.pop %v1554
        %v1617 = vrcp.pop %v1557
        %v1618 = vrcp.pop %v1560
        %v1619 = vrcp.pop %v1563
        %v1620 = vrcp.pop %v1566
        %v1621 = vrcp.pop %v1569
        %v1622 = vrcp.pop %v1572
        %v1623 = vrcp.pop %v1575
        %v1624 = vrcp.pop %v1578
        %v1625 = vrcp.pop %v1581
        %v1626 = vrcp.pop %v1584
        %v1627 = vrcp.pop %v1587
        %v1628 = vrcp.pop %v1590
        %v1629 = vrcp.pop %v1593
        %v1630 = vrcp.pop %v1596
        %v1631 = vrcp.pop %v1599
        %v1632 = vmul.f32 %v1441, %v1600
        %v1633 = vmul.f32 %v1443, %v1601
        %v1634 = vmul.f32 %v1445, %v1602
        %v1635 = vmul.f32 %v1447, %v1603
        %v1636 = vmul.f32 %v1449, %v1604
        %v1637 = vmul.f32 %v1451, %v1605
        %v1638 = vmul.f32 %v1453, %v1606
        %v1639 = vmul.f32 %v1455, %v1607
        %v1640 = vmul.f32 %v1457, %v1608
        %v1641 = vmul.f32 %v1459, %v1609
        %v1642 = vmul.f32 %v1461, %v1610
        %v1643 = vmul.f32 %v1463, %v1611
        %v1644 = vmul.f32 %v1465, %v1612
        %v1645 = vmul.f32 %v1467, %v1613
        %v1646 = vmul.f32 %v1469, %v1614
        %v1647 = vmul.f32 %v1471, %v1615
        %v1648 = vmul.f32 %v1473, %v1616
        %v1649 = vmul.f32 %v1475, %v1617
        %v1650 = vmul.f32 %v1477, %v1618
        %v1651 = vmul.f32 %v1479, %v1619
        %v1652 = vmul.f32 %v1481, %v1620
        %v1653 = vmul.f32 %v1483, %v1621
        %v1654 = vmul.f32 %v1485, %v1622
        %v1655 = vmul.f32 %v1487, %v1623
        %v1656 = vmul.f32 %v1489, %v1624
        %v1657 = vmul.f32 %v1491, %v1625
        %v1658 = vmul.f32 %v1493, %v1626
        %v1659 = vmul.f32 %v1495, %v1627
        %v1660 = vmul.f32 %v1497, %v1628
        %v1661 = vmul.f32 %v1499, %v1629
        %v1662 = vmul.f32 %v1501, %v1630
        %v1663 = vmul.f32 %v1503, %v1631
        %v1664 = vpack.c.bf16 %v1633, %v1632
        %v1665 = vpack.c.bf16 %v1635, %v1634
        %v1666 = vpack.c.bf16 %v1637, %v1636
        %v1667 = vpack.c.bf16 %v1639, %v1638
        %v1668 = vpack.c.bf16 %v1641, %v1640
        %v1669 = vpack.c.bf16 %v1643, %v1642
        %v1670 = vpack.c.bf16 %v1645, %v1644
        %v1671 = vpack.c.bf16 %v1647, %v1646
        %v1672 = vpack.c.bf16 %v1649, %v1648
        %v1673 = vpack.c.bf16 %v1651, %v1650
        %v1674 = vpack.c.bf16 %v1653, %v1652
        %v1675 = vpack.c.bf16 %v1655, %v1654
        %v1676 = vpack.c.bf16 %v1657, %v1656
        %v1677 = vpack.c.bf16 %v1659, %v1658
        %v1678 = vpack.c.bf16 %v1661, %v1660
        %v1679 = vpack.c.bf16 %v1663, %v1662
        %v1688 = vunpack.c.l.b16 %v736
        %v1689 = vunpack.c.l.b16 %v737
        %v1690 = vunpack.c.l.b16 %v738
        %v1691 = vunpack.c.l.b16 %v739
        %v1692 = vunpack.c.l.b16 %v740
        %v1693 = vunpack.c.l.b16 %v741
        %v1694 = vunpack.c.l.b16 %v742
        %v1695 = vunpack.c.l.b16 %v743
        %v1696 = vpack.c.b16 %v1689, %v1688
        %v1697 = vpack.c.b16 %v1691, %v1690
        %v1698 = vpack.c.b16 %v1693, %v1692
        %v1699 = vpack.c.b16 %v1695, %v1694
        %v1705 = vsel %vm835, %v1664, 0
        %v1708 = vsel %vm835, %v1665, 0
        %v1711 = vsel %vm835, %v1666, 0
        %v1714 = vsel %vm835, %v1667, 0
        %1716 = vmatprep.subr.bf16.mxu0 0
        %1717 = vmatpush1.bf16.msra.mxu0 %v1696
        %1718 = vmatprep.subr.bf16.mxu0 0
        %1719 = vmatpush1.bf16.msra.mxu0 %v1697
        %1720 = vmatprep.subr.bf16.mxu0 0
        %1721 = vmatpush1.bf16.msra.mxu0 %v1698
        %1722 = vmatprep.subr.bf16.mxu0 0
        %1723 = vmatpush1.bf16.msra.mxu0 %v1699
        %1724 = vmatprep.subr.bf16.mxu0 0
        %1725 = vmatpush1.bf16.msra.mxu0 0
        %1726 = vmatprep.subr.bf16.mxu0 0
        %1727 = vmatpush1.bf16.msra.mxu0 0
        %1728 = vmatprep.subr.bf16.mxu0 0
        %1729 = vmatpush1.bf16.msra.mxu0 0
        %1730 = vmatprep.subr.bf16.mxu0 0
        %1731 = vmatpush1.bf16.msra.mxu0 0
        %1732 = vmatprep.subr.bf16.mxu0 0
        %1733 = vmatpush1.bf16.msra.mxu0 0
        %1734 = vmatprep.subr.bf16.mxu0 0
        %1735 = vmatpush1.bf16.msra.mxu0 0
        %1736 = vmatprep.subr.bf16.mxu0 0
        %1737 = vmatpush1.bf16.msra.mxu0 0
        %1738 = vmatprep.subr.bf16.mxu0 0
        %1739 = vmatpush1.bf16.msra.mxu0 0
        %1740 = vmatprep.subr.bf16.mxu0 0
        %1741 = vmatpush1.bf16.msra.mxu0 0
        %1742 = vmatprep.subr.bf16.mxu0 0
        %1743 = vmatpush1.bf16.msra.mxu0 0
        %1744 = vmatprep.subr.bf16.mxu0 0
        %1745 = vmatpush1.bf16.msra.mxu0 0
        %1746 = vmatprep.subr.bf16.mxu0 0
        %1747 = vmatpush1.bf16.msra.mxu0 0
        %1748 = vmatprep.mubr.bf16.mxu0 0
        %1749 = vmatmul.mubr.bf16.gmra.mrb[0].mxu0 %v1705
        %v1750 = vpop.f32.mrb[0].mxu0
        %v1751 = vadd.f32 0.0, %v1750
        %v1752 = vpop.f32.mrb[0].mxu0
        %v1753 = vpop.f32.mrb[0].mxu0
        %v1754 = vadd.f32 0.0, %v1753
        %v1755 = vpop.f32.mrb[0].mxu0
        %1756 = vmatprep.mubr.bf16.mxu0 0
        %1757 = vmatmul.mubr.bf16.gmra.mrb[0].mxu0 %v1708
        %v1758 = vpop.f32.mrb[0].mxu0
        %v1759 = vadd.f32 0.0, %v1758
        %v1760 = vpop.f32.mrb[0].mxu0
        %v1761 = vpop.f32.mrb[0].mxu0
        %v1762 = vadd.f32 0.0, %v1761
        %v1763 = vpop.f32.mrb[0].mxu0
        %1764 = vmatprep.mubr.bf16.mxu0 0
        %1765 = vmatmul.mubr.bf16.gmra.mrb[0].mxu0 %v1711
        %v1766 = vpop.f32.mrb[0].mxu0
        %v1767 = vadd.f32 0.0, %v1766
        %v1768 = vpop.f32.mrb[0].mxu0
        %v1769 = vpop.f32.mrb[0].mxu0
        %v1770 = vadd.f32 0.0, %v1769
        %v1771 = vpop.f32.mrb[0].mxu0
        %1772 = vmatprep.mubr.bf16.mxu0 0
        %1773 = vmatmul.mubr.bf16.gmra.mrb[0].mxu0 %v1714
        %v1774 = vpop.f32.mrb[0].mxu0
        %v1775 = vadd.f32 0.0, %v1774
        %v1776 = vpop.f32.mrb[0].mxu0
        %v1777 = vpop.f32.mrb[0].mxu0
        %v1778 = vadd.f32 0.0, %v1777
        %v1779 = vpop.f32.mrb[0].mxu0
        %1780 = vdwg.mxu0
        %v1789 = vunpack.c.l.b16 %v744
        %v1790 = vunpack.c.l.b16 %v745
        %v1791 = vunpack.c.l.b16 %v746
        %v1792 = vunpack.c.l.b16 %v747
        %v1793 = vunpack.c.l.b16 %v748
        %v1794 = vunpack.c.l.b16 %v749
        %v1795 = vunpack.c.l.b16 %v750
        %v1796 = vunpack.c.l.b16 %v751
        %v1797 = vpack.c.b16 %v1790, %v1789
        %v1798 = vpack.c.b16 %v1792, %v1791
        %v1799 = vpack.c.b16 %v1794, %v1793
        %v1800 = vpack.c.b16 %v1796, %v1795
        %v1806 = vsel %vm835, %v1668, 0
        %v1809 = vsel %vm835, %v1669, 0
        %v1812 = vsel %vm835, %v1670, 0
        %v1815 = vsel %vm835, %v1671, 0
        %1817 = vmatprep.subr.bf16.mxu0 0
        %1818 = vmatpush1.bf16.msra.mxu0 %v1797
        %1819 = vmatprep.subr.bf16.mxu0 0
        %1820 = vmatpush1.bf16.msra.mxu0 %v1798
        %1821 = vmatprep.subr.bf16.mxu0 0
        %1822 = vmatpush1.bf16.msra.mxu0 %v1799
        %1823 = vmatprep.subr.bf16.mxu0 0
        %1824 = vmatpush1.bf16.msra.mxu0 %v1800
        %1825 = vmatprep.subr.bf16.mxu0 0
        %1826 = vmatpush1.bf16.msra.mxu0 0
        %1827 = vmatprep.subr.bf16.mxu0 0
        %1828 = vmatpush1.bf16.msra.mxu0 0
        %1829 = vmatprep.subr.bf16.mxu0 0
        %1830 = vmatpush1.bf16.msra.mxu0 0
        %1831 = vmatprep.subr.bf16.mxu0 0
        %1832 = vmatpush1.bf16.msra.mxu0 0
        %1833 = vmatprep.subr.bf16.mxu0 0
        %1834 = vmatpush1.bf16.msra.mxu0 0
        %1835 = vmatprep.subr.bf16.mxu0 0
        %1836 = vmatpush1.bf16.msra.mxu0 0
        %1837 = vmatprep.subr.bf16.mxu0 0
        %1838 = vmatpush1.bf16.msra.mxu0 0
        %1839 = vmatprep.subr.bf16.mxu0 0
        %1840 = vmatpush1.bf16.msra.mxu0 0
        %1841 = vmatprep.subr.bf16.mxu0 0
        %1842 = vmatpush1.bf16.msra.mxu0 0
        %1843 = vmatprep.subr.bf16.mxu0 0
        %1844 = vmatpush1.bf16.msra.mxu0 0
        %1845 = vmatprep.subr.bf16.mxu0 0
        %1846 = vmatpush1.bf16.msra.mxu0 0
        %1847 = vmatprep.subr.bf16.mxu0 0
        %1848 = vmatpush1.bf16.msra.mxu0 0
        %1849 = vmatprep.mubr.bf16.mxu0 0
        %1850 = vmatmul.mubr.bf16.gmra.mrb[0].mxu0 %v1806
        %v1851 = vpop.f32.mrb[0].mxu0
        %v1852 = vadd.f32 0.0, %v1851
        %v1853 = vpop.f32.mrb[0].mxu0
        %v1854 = vpop.f32.mrb[0].mxu0
        %v1855 = vadd.f32 0.0, %v1854
        %v1856 = vpop.f32.mrb[0].mxu0
        %1857 = vmatprep.mubr.bf16.mxu0 0
        %1858 = vmatmul.mubr.bf16.gmra.mrb[0].mxu0 %v1809
        %v1859 = vpop.f32.mrb[0].mxu0
        %v1860 = vadd.f32 0.0, %v1859
        %v1861 = vpop.f32.mrb[0].mxu0
        %v1862 = vpop.f32.mrb[0].mxu0
        %v1863 = vadd.f32 0.0, %v1862
        %v1864 = vpop.f32.mrb[0].mxu0
        %1865 = vmatprep.mubr.bf16.mxu0 0
        %1866 = vmatmul.mubr.bf16.gmra.mrb[0].mxu0 %v1812
        %v1867 = vpop.f32.mrb[0].mxu0
        %v1868 = vadd.f32 0.0, %v1867
        %v1869 = vpop.f32.mrb[0].mxu0
        %v1870 = vpop.f32.mrb[0].mxu0
        %v1871 = vadd.f32 0.0, %v1870
        %v1872 = vpop.f32.mrb[0].mxu0
        %1873 = vmatprep.mubr.bf16.mxu0 0
        %1874 = vmatmul.mubr.bf16.gmra.mrb[0].mxu0 %v1815
        %v1875 = vpop.f32.mrb[0].mxu0
        %v1876 = vadd.f32 0.0, %v1875
        %v1877 = vpop.f32.mrb[0].mxu0
        %v1878 = vpop.f32.mrb[0].mxu0
        %v1879 = vadd.f32 0.0, %v1878
        %v1880 = vpop.f32.mrb[0].mxu0
        %1881 = vdwg.mxu0
        %v1890 = vunpack.c.l.b16 %v752
        %v1891 = vunpack.c.l.b16 %v753
        %v1892 = vunpack.c.l.b16 %v754
        %v1893 = vunpack.c.l.b16 %v755
        %v1894 = vunpack.c.l.b16 %v756
        %v1895 = vunpack.c.l.b16 %v757
        %v1896 = vunpack.c.l.b16 %v758
        %v1897 = vunpack.c.l.b16 %v759
        %v1898 = vpack.c.b16 %v1891, %v1890
        %v1899 = vpack.c.b16 %v1893, %v1892
        %v1900 = vpack.c.b16 %v1895, %v1894
        %v1901 = vpack.c.b16 %v1897, %v1896
        %v1907 = vsel %vm835, %v1672, 0
        %v1910 = vsel %vm835, %v1673, 0
        %v1913 = vsel %vm835, %v1674, 0
        %v1916 = vsel %vm835, %v1675, 0
        %1918 = vmatprep.subr.bf16.mxu0 0
        %1919 = vmatpush1.bf16.msra.mxu0 %v1898
        %1920 = vmatprep.subr.bf16.mxu0 0
        %1921 = vmatpush1.bf16.msra.mxu0 %v1899
        %1922 = vmatprep.subr.bf16.mxu0 0
        %1923 = vmatpush1.bf16.msra.mxu0 %v1900
        %1924 = vmatprep.subr.bf16.mxu0 0
        %1925 = vmatpush1.bf16.msra.mxu0 %v1901
        %1926 = vmatprep.subr.bf16.mxu0 0
        %1927 = vmatpush1.bf16.msra.mxu0 0
        %1928 = vmatprep.subr.bf16.mxu0 0
        %1929 = vmatpush1.bf16.msra.mxu0 0
        %1930 = vmatprep.subr.bf16.mxu0 0
        %1931 = vmatpush1.bf16.msra.mxu0 0
        %1932 = vmatprep.subr.bf16.mxu0 0
        %1933 = vmatpush1.bf16.msra.mxu0 0
        %1934 = vmatprep.subr.bf16.mxu0 0
        %1935 = vmatpush1.bf16.msra.mxu0 0
        %1936 = vmatprep.subr.bf16.mxu0 0
        %1937 = vmatpush1.bf16.msra.mxu0 0
        %1938 = vmatprep.subr.bf16.mxu0 0
        %1939 = vmatpush1.bf16.msra.mxu0 0
        %1940 = vmatprep.subr.bf16.mxu0 0
        %1941 = vmatpush1.bf16.msra.mxu0 0
        %1942 = vmatprep.subr.bf16.mxu0 0
        %1943 = vmatpush1.bf16.msra.mxu0 0
        %1944 = vmatprep.subr.bf16.mxu0 0
        %1945 = vmatpush1.bf16.msra.mxu0 0
        %1946 = vmatprep.subr.bf16.mxu0 0
        %1947 = vmatpush1.bf16.msra.mxu0 0
        %1948 = vmatprep.subr.bf16.mxu0 0
        %1949 = vmatpush1.bf16.msra.mxu0 0
        %1950 = vmatprep.mubr.bf16.mxu0 0
        %1951 = vmatmul.mubr.bf16.gmra.mrb[0].mxu0 %v1907
        %v1952 = vpop.f32.mrb[0].mxu0
        %v1953 = vadd.f32 0.0, %v1952
        %v1954 = vpop.f32.mrb[0].mxu0
        %v1955 = vpop.f32.mrb[0].mxu0
        %v1956 = vadd.f32 0.0, %v1955
        %v1957 = vpop.f32.mrb[0].mxu0
        %1958 = vmatprep.mubr.bf16.mxu0 0
        %1959 = vmatmul.mubr.bf16.gmra.mrb[0].mxu0 %v1910
        %v1960 = vpop.f32.mrb[0].mxu0
        %v1961 = vadd.f32 0.0, %v1960
        %v1962 = vpop.f32.mrb[0].mxu0
        %v1963 = vpop.f32.mrb[0].mxu0
        %v1964 = vadd.f32 0.0, %v1963
        %v1965 = vpop.f32.mrb[0].mxu0
        %1966 = vmatprep.mubr.bf16.mxu0 0
        %1967 = vmatmul.mubr.bf16.gmra.mrb[0].mxu0 %v1913
        %v1968 = vpop.f32.mrb[0].mxu0
        %v1969 = vadd.f32 0.0, %v1968
        %v1970 = vpop.f32.mrb[0].mxu0
        %v1971 = vpop.f32.mrb[0].mxu0
        %v1972 = vadd.f32 0.0, %v1971
        %v1973 = vpop.f32.mrb[0].mxu0
        %1974 = vmatprep.mubr.bf16.mxu0 0
        %1975 = vmatmul.mubr.bf16.gmra.mrb[0].mxu0 %v1916
        %v1976 = vpop.f32.mrb[0].mxu0
        %v1977 = vadd.f32 0.0, %v1976
        %v1978 = vpop.f32.mrb[0].mxu0
        %v1979 = vpop.f32.mrb[0].mxu0
        %v1980 = vadd.f32 0.0, %v1979
        %v1981 = vpop.f32.mrb[0].mxu0
        %1982 = vdwg.mxu0
        %v1991 = vunpack.c.l.b16 %v760
        %v1992 = vunpack.c.l.b16 %v761
        %v1993 = vunpack.c.l.b16 %v762
        %v1994 = vunpack.c.l.b16 %v763
        %v1995 = vunpack.c.l.b16 %v764
        %v1996 = vunpack.c.l.b16 %v765
        %v1997 = vunpack.c.l.b16 %v766
        %v1998 = vunpack.c.l.b16 %v767
        %v1999 = vpack.c.b16 %v1992, %v1991
        %v2000 = vpack.c.b16 %v1994, %v1993
        %v2001 = vpack.c.b16 %v1996, %v1995
        %v2002 = vpack.c.b16 %v1998, %v1997
        %v2008 = vsel %vm835, %v1676, 0
        %v2011 = vsel %vm835, %v1677, 0
        %v2014 = vsel %vm835, %v1678, 0
        %v2017 = vsel %vm835, %v1679, 0
        %2019 = vmatprep.subr.bf16.mxu0 0
        %2020 = vmatpush1.bf16.msra.mxu0 %v1999
        %2021 = vmatprep.subr.bf16.mxu0 0
        %2022 = vmatpush1.bf16.msra.mxu0 %v2000
        %2023 = vmatprep.subr.bf16.mxu0 0
        %2024 = vmatpush1.bf16.msra.mxu0 %v2001
        %2025 = vmatprep.subr.bf16.mxu0 0
        %2026 = vmatpush1.bf16.msra.mxu0 %v2002
        %2027 = vmatprep.subr.bf16.mxu0 0
        %2028 = vmatpush1.bf16.msra.mxu0 0
        %2029 = vmatprep.subr.bf16.mxu0 0
        %2030 = vmatpush1.bf16.msra.mxu0 0
        %2031 = vmatprep.subr.bf16.mxu0 0
        %2032 = vmatpush1.bf16.msra.mxu0 0
        %2033 = vmatprep.subr.bf16.mxu0 0
        %2034 = vmatpush1.bf16.msra.mxu0 0
        %2035 = vmatprep.subr.bf16.mxu0 0
        %2036 = vmatpush1.bf16.msra.mxu0 0
        %2037 = vmatprep.subr.bf16.mxu0 0
        %2038 = vmatpush1.bf16.msra.mxu0 0
        %2039 = vmatprep.subr.bf16.mxu0 0
        %2040 = vmatpush1.bf16.msra.mxu0 0
        %2041 = vmatprep.subr.bf16.mxu0 0
        %2042 = vmatpush1.bf16.msra.mxu0 0
        %2043 = vmatprep.subr.bf16.mxu0 0
        %2044 = vmatpush1.bf16.msra.mxu0 0
        %2045 = vmatprep.subr.bf16.mxu0 0
        %2046 = vmatpush1.bf16.msra.mxu0 0
        %2047 = vmatprep.subr.bf16.mxu0 0
        %2048 = vmatpush1.bf16.msra.mxu0 0
        %2049 = vmatprep.subr.bf16.mxu0 0
        %2050 = vmatpush1.bf16.msra.mxu0 0
        %2051 = vmatprep.mubr.bf16.mxu0 0
        %2052 = vmatmul.mubr.bf16.gmra.mrb[0].mxu0 %v2008
        %v2053 = vpop.f32.mrb[0].mxu0
        %v2054 = vadd.f32 0.0, %v2053
        %v2055 = vpop.f32.mrb[0].mxu0
        %v2056 = vpop.f32.mrb[0].mxu0
        %v2057 = vadd.f32 0.0, %v2056
        %v2058 = vpop.f32.mrb[0].mxu0
        %2059 = vmatprep.mubr.bf16.mxu0 0
        %2060 = vmatmul.mubr.bf16.gmra.mrb[0].mxu0 %v2011
        %v2061 = vpop.f32.mrb[0].mxu0
        %v2062 = vadd.f32 0.0, %v2061
        %v2063 = vpop.f32.mrb[0].mxu0
        %v2064 = vpop.f32.mrb[0].mxu0
        %v2065 = vadd.f32 0.0, %v2064
        %v2066 = vpop.f32.mrb[0].mxu0
        %2067 = vmatprep.mubr.bf16.mxu0 0
        %2068 = vmatmul.mubr.bf16.gmra.mrb[0].mxu0 %v2014
        %v2069 = vpop.f32.mrb[0].mxu0
        %v2070 = vadd.f32 0.0, %v2069
        %v2071 = vpop.f32.mrb[0].mxu0
        %v2072 = vpop.f32.mrb[0].mxu0
        %v2073 = vadd.f32 0.0, %v2072
        %v2074 = vpop.f32.mrb[0].mxu0
        %2075 = vmatprep.mubr.bf16.mxu0 0
        %2076 = vmatmul.mubr.bf16.gmra.mrb[0].mxu0 %v2017
        %v2077 = vpop.f32.mrb[0].mxu0
        %v2078 = vadd.f32 0.0, %v2077
        %v2079 = vpop.f32.mrb[0].mxu0
        %v2080 = vpop.f32.mrb[0].mxu0
        %v2081 = vadd.f32 0.0, %v2080
        %v2082 = vpop.f32.mrb[0].mxu0
        %2083 = vdwg.mxu0
        %v2084 = vpack.c.bf16 %v1754, %v1751
        %v2085 = vpack.c.bf16 %v1762, %v1759
        %v2086 = vpack.c.bf16 %v1770, %v1767
        %v2087 = vpack.c.bf16 %v1778, %v1775
        %v2088 = vpack.c.bf16 %v1855, %v1852
        %v2089 = vpack.c.bf16 %v1863, %v1860
        %v2090 = vpack.c.bf16 %v1871, %v1868
        %v2091 = vpack.c.bf16 %v1879, %v1876
        %v2092 = vpack.c.bf16 %v1956, %v1953
        %v2093 = vpack.c.bf16 %v1964, %v1961
        %v2094 = vpack.c.bf16 %v1972, %v1969
        %v2095 = vpack.c.bf16 %v1980, %v1977
        %v2096 = vpack.c.bf16 %v2057, %v2054
        %v2097 = vpack.c.bf16 %v2065, %v2062
        %v2098 = vpack.c.bf16 %v2073, %v2070
        %v2099 = vpack.c.bf16 %v2081, %v2078
        %v2100 = vld [vmem:[#allocation10] sm:$0xff]
        %v2101 = vld [vmem:[#allocation10 + $0x8] sm:$0xff]
        %v2102 = vld [vmem:[#allocation10 + $0x10] sm:$0xff]
        %v2103 = vld [vmem:[#allocation10 + $0x18] sm:$0xff]
        %v2104 = vld [vmem:[#allocation10 + $0x20] sm:$0xff]
        %v2105 = vld [vmem:[#allocation10 + $0x28] sm:$0xff]
        %v2106 = vld [vmem:[#allocation10 + $0x30] sm:$0xff]
        %v2107 = vld [vmem:[#allocation10 + $0x38] sm:$0xff]
        %v2108 = vld [vmem:[#allocation10 + $0x40] sm:$0xff]
        %v2109 = vld [vmem:[#allocation10 + $0x48] sm:$0xff]
        %v2110 = vld [vmem:[#allocation10 + $0x50] sm:$0xff]
        %v2111 = vld [vmem:[#allocation10 + $0x58] sm:$0xff]
        %v2112 = vld [vmem:[#allocation10 + $0x60] sm:$0xff]
        %v2113 = vld [vmem:[#allocation10 + $0x68] sm:$0xff]
        %v2114 = vld [vmem:[#allocation10 + $0x70] sm:$0xff]
        %v2115 = vld [vmem:[#allocation10 + $0x78] sm:$0xff]
        %v2116 = vld [vmem:[#allocation10 + $0x80] sm:$0xff]
        %v2117 = vld [vmem:[#allocation10 + $0x88] sm:$0xff]
        %v2118 = vld [vmem:[#allocation10 + $0x90] sm:$0xff]
        %v2119 = vld [vmem:[#allocation10 + $0x98] sm:$0xff]
        %v2120 = vld [vmem:[#allocation10 + $0xa0] sm:$0xff]
        %v2121 = vld [vmem:[#allocation10 + $0xa8] sm:$0xff]
        %v2122 = vld [vmem:[#allocation10 + $0xb0] sm:$0xff]
        %v2123 = vld [vmem:[#allocation10 + $0xb8] sm:$0xff]
        %v2124 = vld [vmem:[#allocation10 + $0xc0] sm:$0xff]
        %v2125 = vld [vmem:[#allocation10 + $0xc8] sm:$0xff]
        %v2126 = vld [vmem:[#allocation10 + $0xd0] sm:$0xff]
        %v2127 = vld [vmem:[#allocation10 + $0xd8] sm:$0xff]
        %v2128 = vld [vmem:[#allocation10 + $0xe0] sm:$0xff]
        %v2129 = vld [vmem:[#allocation10 + $0xe8] sm:$0xff]
        %v2130 = vld [vmem:[#allocation10 + $0xf0] sm:$0xff]
        %v2131 = vld [vmem:[#allocation10 + $0xf8] sm:$0xff]
        %v2140 = vunpack.c.l.b16 %v2100
        %v2141 = vunpack.c.h.b16 %v2100
        %v2142 = vunpack.c.l.b16 %v2101
        %v2143 = vunpack.c.h.b16 %v2101
        %v2144 = vunpack.c.l.b16 %v2102
        %v2145 = vunpack.c.h.b16 %v2102
        %v2146 = vunpack.c.l.b16 %v2103
        %v2147 = vunpack.c.h.b16 %v2103
        %v2148 = vunpack.c.l.b16 %v2104
        %v2149 = vunpack.c.h.b16 %v2104
        %v2150 = vunpack.c.l.b16 %v2105
        %v2151 = vunpack.c.h.b16 %v2105
        %v2152 = vunpack.c.l.b16 %v2106
        %v2153 = vunpack.c.h.b16 %v2106
        %v2154 = vunpack.c.l.b16 %v2107
        %v2155 = vunpack.c.h.b16 %v2107
        %v2156 = vpack.c.b16 %v2142, %v2140
        %v2157 = vpack.c.b16 %v2143, %v2141
        %v2158 = vpack.c.b16 %v2146, %v2144
        %v2159 = vpack.c.b16 %v2147, %v2145
        %v2160 = vpack.c.b16 %v2150, %v2148
        %v2161 = vpack.c.b16 %v2151, %v2149
        %v2162 = vpack.c.b16 %v2154, %v2152
        %v2163 = vpack.c.b16 %v2155, %v2153
        %v2173 = vsel %vm835, %v2084, 0
        %v2176 = vsel %vm835, %v2085, 0
        %v2179 = vsel %vm835, %v2086, 0
        %v2182 = vsel %vm835, %v2087, 0
        %2184 = vmatprep.subr.bf16.mxu0 %v2157
        %2185 = vmatpush1.bf16.msra.mxu0 %v2156
        %2186 = vmatprep.subr.bf16.mxu0 %v2159
        %2187 = vmatpush1.bf16.msra.mxu0 %v2158
        %2188 = vmatprep.subr.bf16.mxu0 %v2161
        %2189 = vmatpush1.bf16.msra.mxu0 %v2160
        %2190 = vmatprep.subr.bf16.mxu0 %v2163
        %2191 = vmatpush1.bf16.msra.mxu0 %v2162
        %2192 = vmatprep.subr.bf16.mxu0 0
        %2193 = vmatpush1.bf16.msra.mxu0 0
        %2194 = vmatprep.subr.bf16.mxu0 0
        %2195 = vmatpush1.bf16.msra.mxu0 0
        %2196 = vmatprep.subr.bf16.mxu0 0
        %2197 = vmatpush1.bf16.msra.mxu0 0
        %2198 = vmatprep.subr.bf16.mxu0 0
        %2199 = vmatpush1.bf16.msra.mxu0 0
        %2200 = vmatprep.subr.bf16.mxu0 0
        %2201 = vmatpush1.bf16.msra.mxu0 0
        %2202 = vmatprep.subr.bf16.mxu0 0
        %2203 = vmatpush1.bf16.msra.mxu0 0
        %2204 = vmatprep.subr.bf16.mxu0 0
        %2205 = vmatpush1.bf16.msra.mxu0 0
        %2206 = vmatprep.subr.bf16.mxu0 0
        %2207 = vmatpush1.bf16.msra.mxu0 0
        %2208 = vmatprep.subr.bf16.mxu0 0
        %2209 = vmatpush1.bf16.msra.mxu0 0
        %2210 = vmatprep.subr.bf16.mxu0 0
        %2211 = vmatpush1.bf16.msra.mxu0 0
        %2212 = vmatprep.subr.bf16.mxu0 0
        %2213 = vmatpush1.bf16.msra.mxu0 0
        %2214 = vmatprep.subr.bf16.mxu0 0
        %2215 = vmatpush1.bf16.msra.mxu0 0
        %2216 = vmatprep.mubr.bf16.mxu0 0
        %2217 = vmatmul.mubr.bf16.gmra.mrb[0].mxu0 %v2173
        %v2218 = vpop.f32.mrb[0].mxu0
        %v2219 = vadd.f32 0.0, %v2218
        %v2220 = vpop.f32.mrb[0].mxu0
        %v2221 = vadd.f32 0.0, %v2220
        %v2222 = vpop.f32.mrb[0].mxu0
        %v2223 = vadd.f32 0.0, %v2222
        %v2224 = vpop.f32.mrb[0].mxu0
        %v2225 = vadd.f32 0.0, %v2224
        %2226 = vmatprep.mubr.bf16.mxu0 0
        %2227 = vmatmul.mubr.bf16.gmra.mrb[0].mxu0 %v2176
        %v2228 = vpop.f32.mrb[0].mxu0
        %v2229 = vadd.f32 0.0, %v2228
        %v2230 = vpop.f32.mrb[0].mxu0
        %v2231 = vadd.f32 0.0, %v2230
        %v2232 = vpop.f32.mrb[0].mxu0
        %v2233 = vadd.f32 0.0, %v2232
        %v2234 = vpop.f32.mrb[0].mxu0
        %v2235 = vadd.f32 0.0, %v2234
        %2236 = vmatprep.mubr.bf16.mxu0 0
        %2237 = vmatmul.mubr.bf16.gmra.mrb[0].mxu0 %v2179
        %v2238 = vpop.f32.mrb[0].mxu0
        %v2239 = vadd.f32 0.0, %v2238
        %v2240 = vpop.f32.mrb[0].mxu0
        %v2241 = vadd.f32 0.0, %v2240
        %v2242 = vpop.f32.mrb[0].mxu0
        %v2243 = vadd.f32 0.0, %v2242
        %v2244 = vpop.f32.mrb[0].mxu0
        %v2245 = vadd.f32 0.0, %v2244
        %2246 = vmatprep.mubr.bf16.mxu0 0
        %2247 = vmatmul.mubr.bf16.gmra.mrb[0].mxu0 %v2182
        %v2248 = vpop.f32.mrb[0].mxu0
        %v2249 = vadd.f32 0.0, %v2248
        %v2250 = vpop.f32.mrb[0].mxu0
        %v2251 = vadd.f32 0.0, %v2250
        %v2252 = vpop.f32.mrb[0].mxu0
        %v2253 = vadd.f32 0.0, %v2252
        %v2254 = vpop.f32.mrb[0].mxu0
        %v2255 = vadd.f32 0.0, %v2254
        %2256 = vdwg.mxu0
        %v2265 = vunpack.c.l.b16 %v2108
        %v2266 = vunpack.c.h.b16 %v2108
        %v2267 = vunpack.c.l.b16 %v2109
        %v2268 = vunpack.c.h.b16 %v2109
        %v2269 = vunpack.c.l.b16 %v2110
        %v2270 = vunpack.c.h.b16 %v2110
        %v2271 = vunpack.c.l.b16 %v2111
        %v2272 = vunpack.c.h.b16 %v2111
        %v2273 = vunpack.c.l.b16 %v2112
        %v2274 = vunpack.c.h.b16 %v2112
        %v2275 = vunpack.c.l.b16 %v2113
        %v2276 = vunpack.c.h.b16 %v2113
        %v2277 = vunpack.c.l.b16 %v2114
        %v2278 = vunpack.c.h.b16 %v2114
        %v2279 = vunpack.c.l.b16 %v2115
        %v2280 = vunpack.c.h.b16 %v2115
        %v2281 = vpack.c.b16 %v2267, %v2265
        %v2282 = vpack.c.b16 %v2268, %v2266
        %v2283 = vpack.c.b16 %v2271, %v2269
        %v2284 = vpack.c.b16 %v2272, %v2270
        %v2285 = vpack.c.b16 %v2275, %v2273
        %v2286 = vpack.c.b16 %v2276, %v2274
        %v2287 = vpack.c.b16 %v2279, %v2277
        %v2288 = vpack.c.b16 %v2280, %v2278
        %v2298 = vsel %vm835, %v2088, 0
        %v2301 = vsel %vm835, %v2089, 0
        %v2304 = vsel %vm835, %v2090, 0
        %v2307 = vsel %vm835, %v2091, 0
        %2309 = vmatprep.subr.bf16.mxu0 %v2282
        %2310 = vmatpush1.bf16.msra.mxu0 %v2281
        %2311 = vmatprep.subr.bf16.mxu0 %v2284
        %2312 = vmatpush1.bf16.msra.mxu0 %v2283
        %2313 = vmatprep.subr.bf16.mxu0 %v2286
        %2314 = vmatpush1.bf16.msra.mxu0 %v2285
        %2315 = vmatprep.subr.bf16.mxu0 %v2288
        %2316 = vmatpush1.bf16.msra.mxu0 %v2287
        %2317 = vmatprep.subr.bf16.mxu0 0
        %2318 = vmatpush1.bf16.msra.mxu0 0
        %2319 = vmatprep.subr.bf16.mxu0 0
        %2320 = vmatpush1.bf16.msra.mxu0 0
        %2321 = vmatprep.subr.bf16.mxu0 0
        %2322 = vmatpush1.bf16.msra.mxu0 0
        %2323 = vmatprep.subr.bf16.mxu0 0
        %2324 = vmatpush1.bf16.msra.mxu0 0
        %2325 = vmatprep.subr.bf16.mxu0 0
        %2326 = vmatpush1.bf16.msra.mxu0 0
        %2327 = vmatprep.subr.bf16.mxu0 0
        %2328 = vmatpush1.bf16.msra.mxu0 0
        %2329 = vmatprep.subr.bf16.mxu0 0
        %2330 = vmatpush1.bf16.msra.mxu0 0
        %2331 = vmatprep.subr.bf16.mxu0 0
        %2332 = vmatpush1.bf16.msra.mxu0 0
        %2333 = vmatprep.subr.bf16.mxu0 0
        %2334 = vmatpush1.bf16.msra.mxu0 0
        %2335 = vmatprep.subr.bf16.mxu0 0
        %2336 = vmatpush1.bf16.msra.mxu0 0
        %2337 = vmatprep.subr.bf16.mxu0 0
        %2338 = vmatpush1.bf16.msra.mxu0 0
        %2339 = vmatprep.subr.bf16.mxu0 0
        %2340 = vmatpush1.bf16.msra.mxu0 0
        %2341 = vmatprep.mubr.bf16.mxu0 0
        %2342 = vmatmul.mubr.bf16.gmra.mrb[0].mxu0 %v2298
        %v2343 = vpop.f32.mrb[0].mxu0
        %v2344 = vadd.f32 0.0, %v2343
        %v2345 = vpop.f32.mrb[0].mxu0
        %v2346 = vadd.f32 0.0, %v2345
        %v2347 = vpop.f32.mrb[0].mxu0
        %v2348 = vadd.f32 0.0, %v2347
        %v2349 = vpop.f32.mrb[0].mxu0
        %v2350 = vadd.f32 0.0, %v2349
        %2351 = vmatprep.mubr.bf16.mxu0 0
        %2352 = vmatmul.mubr.bf16.gmra.mrb[0].mxu0 %v2301
        %v2353 = vpop.f32.mrb[0].mxu0
        %v2354 = vadd.f32 0.0, %v2353
        %v2355 = vpop.f32.mrb[0].mxu0
        %v2356 = vadd.f32 0.0, %v2355
        %v2357 = vpop.f32.mrb[0].mxu0
        %v2358 = vadd.f32 0.0, %v2357
        %v2359 = vpop.f32.mrb[0].mxu0
        %v2360 = vadd.f32 0.0, %v2359
        %2361 = vmatprep.mubr.bf16.mxu0 0
        %2362 = vmatmul.mubr.bf16.gmra.mrb[0].mxu0 %v2304
        %v2363 = vpop.f32.mrb[0].mxu0
        %v2364 = vadd.f32 0.0, %v2363
        %v2365 = vpop.f32.mrb[0].mxu0
        %v2366 = vadd.f32 0.0, %v2365
        %v2367 = vpop.f32.mrb[0].mxu0
        %v2368 = vadd.f32 0.0, %v2367
        %v2369 = vpop.f32.mrb[0].mxu0
        %v2370 = vadd.f32 0.0, %v2369
        %2371 = vmatprep.mubr.bf16.mxu0 0
        %2372 = vmatmul.mubr.bf16.gmra.mrb[0].mxu0 %v2307
        %v2373 = vpop.f32.mrb[0].mxu0
        %v2374 = vadd.f32 0.0, %v2373
        %v2375 = vpop.f32.mrb[0].mxu0
        %v2376 = vadd.f32 0.0, %v2375
        %v2377 = vpop.f32.mrb[0].mxu0
        %v2378 = vadd.f32 0.0, %v2377
        %v2379 = vpop.f32.mrb[0].mxu0
        %v2380 = vadd.f32 0.0, %v2379
        %2381 = vdwg.mxu0
        %v2390 = vunpack.c.l.b16 %v2116
        %v2391 = vunpack.c.h.b16 %v2116
        %v2392 = vunpack.c.l.b16 %v2117
        %v2393 = vunpack.c.h.b16 %v2117
        %v2394 = vunpack.c.l.b16 %v2118
        %v2395 = vunpack.c.h.b16 %v2118
        %v2396 = vunpack.c.l.b16 %v2119
        %v2397 = vunpack.c.h.b16 %v2119
        %v2398 = vunpack.c.l.b16 %v2120
        %v2399 = vunpack.c.h.b16 %v2120
        %v2400 = vunpack.c.l.b16 %v2121
        %v2401 = vunpack.c.h.b16 %v2121
        %v2402 = vunpack.c.l.b16 %v2122
        %v2403 = vunpack.c.h.b16 %v2122
        %v2404 = vunpack.c.l.b16 %v2123
        %v2405 = vunpack.c.h.b16 %v2123
        %v2406 = vpack.c.b16 %v2392, %v2390
        %v2407 = vpack.c.b16 %v2393, %v2391
        %v2408 = vpack.c.b16 %v2396, %v2394
        %v2409 = vpack.c.b16 %v2397, %v2395
        %v2410 = vpack.c.b16 %v2400, %v2398
        %v2411 = vpack.c.b16 %v2401, %v2399
        %v2412 = vpack.c.b16 %v2404, %v2402
        %v2413 = vpack.c.b16 %v2405, %v2403
        %v2423 = vsel %vm835, %v2092, 0
        %v2426 = vsel %vm835, %v2093, 0
        %v2429 = vsel %vm835, %v2094, 0
        %v2432 = vsel %vm835, %v2095, 0
        %2434 = vmatprep.subr.bf16.mxu0 %v2407
        %2435 = vmatpush1.bf16.msra.mxu0 %v2406
        %2436 = vmatprep.subr.bf16.mxu0 %v2409
        %2437 = vmatpush1.bf16.msra.mxu0 %v2408
        %2438 = vmatprep.subr.bf16.mxu0 %v2411
        %2439 = vmatpush1.bf16.msra.mxu0 %v2410
        %2440 = vmatprep.subr.bf16.mxu0 %v2413
        %2441 = vmatpush1.bf16.msra.mxu0 %v2412
        %2442 = vmatprep.subr.bf16.mxu0 0
        %2443 = vmatpush1.bf16.msra.mxu0 0
        %2444 = vmatprep.subr.bf16.mxu0 0
        %2445 = vmatpush1.bf16.msra.mxu0 0
        %2446 = vmatprep.subr.bf16.mxu0 0
        %2447 = vmatpush1.bf16.msra.mxu0 0
        %2448 = vmatprep.subr.bf16.mxu0 0
        %2449 = vmatpush1.bf16.msra.mxu0 0
        %2450 = vmatprep.subr.bf16.mxu0 0
        %2451 = vmatpush1.bf16.msra.mxu0 0
        %2452 = vmatprep.subr.bf16.mxu0 0
        %2453 = vmatpush1.bf16.msra.mxu0 0
        %2454 = vmatprep.subr.bf16.mxu0 0
        %2455 = vmatpush1.bf16.msra.mxu0 0
        %2456 = vmatprep.subr.bf16.mxu0 0
        %2457 = vmatpush1.bf16.msra.mxu0 0
        %2458 = vmatprep.subr.bf16.mxu0 0
        %2459 = vmatpush1.bf16.msra.mxu0 0
        %2460 = vmatprep.subr.bf16.mxu0 0
        %2461 = vmatpush1.bf16.msra.mxu0 0
        %2462 = vmatprep.subr.bf16.mxu0 0
        %2463 = vmatpush1.bf16.msra.mxu0 0
        %2464 = vmatprep.subr.bf16.mxu0 0
        %2465 = vmatpush1.bf16.msra.mxu0 0
        %2466 = vmatprep.mubr.bf16.mxu0 0
        %2467 = vmatmul.mubr.bf16.gmra.mrb[0].mxu0 %v2423
        %v2468 = vpop.f32.mrb[0].mxu0
        %v2469 = vadd.f32 0.0, %v2468
        %v2470 = vpop.f32.mrb[0].mxu0
        %v2471 = vadd.f32 0.0, %v2470
        %v2472 = vpop.f32.mrb[0].mxu0
        %v2473 = vadd.f32 0.0, %v2472
        %v2474 = vpop.f32.mrb[0].mxu0
        %v2475 = vadd.f32 0.0, %v2474
        %2476 = vmatprep.mubr.bf16.mxu0 0
        %2477 = vmatmul.mubr.bf16.gmra.mrb[0].mxu0 %v2426
        %v2478 = vpop.f32.mrb[0].mxu0
        %v2479 = vadd.f32 0.0, %v2478
        %v2480 = vpop.f32.mrb[0].mxu0
        %v2481 = vadd.f32 0.0, %v2480
        %v2482 = vpop.f32.mrb[0].mxu0
        %v2483 = vadd.f32 0.0, %v2482
        %v2484 = vpop.f32.mrb[0].mxu0
        %v2485 = vadd.f32 0.0, %v2484
        %2486 = vmatprep.mubr.bf16.mxu0 0
        %2487 = vmatmul.mubr.bf16.gmra.mrb[0].mxu0 %v2429
        %v2488 = vpop.f32.mrb[0].mxu0
        %v2489 = vadd.f32 0.0, %v2488
        %v2490 = vpop.f32.mrb[0].mxu0
        %v2491 = vadd.f32 0.0, %v2490
        %v2492 = vpop.f32.mrb[0].mxu0
        %v2493 = vadd.f32 0.0, %v2492
        %v2494 = vpop.f32.mrb[0].mxu0
        %v2495 = vadd.f32 0.0, %v2494
        %2496 = vmatprep.mubr.bf16.mxu0 0
        %2497 = vmatmul.mubr.bf16.gmra.mrb[0].mxu0 %v2432
        %v2498 = vpop.f32.mrb[0].mxu0
        %v2499 = vadd.f32 0.0, %v2498
        %v2500 = vpop.f32.mrb[0].mxu0
        %v2501 = vadd.f32 0.0, %v2500
        %v2502 = vpop.f32.mrb[0].mxu0
        %v2503 = vadd.f32 0.0, %v2502
        %v2504 = vpop.f32.mrb[0].mxu0
        %v2505 = vadd.f32 0.0, %v2504
        %2506 = vdwg.mxu0
        %v2515 = vunpack.c.l.b16 %v2124
        %v2516 = vunpack.c.h.b16 %v2124
        %v2517 = vunpack.c.l.b16 %v2125
        %v2518 = vunpack.c.h.b16 %v2125
        %v2519 = vunpack.c.l.b16 %v2126
        %v2520 = vunpack.c.h.b16 %v2126
        %v2521 = vunpack.c.l.b16 %v2127
        %v2522 = vunpack.c.h.b16 %v2127
        %v2523 = vunpack.c.l.b16 %v2128
        %v2524 = vunpack.c.h.b16 %v2128
        %v2525 = vunpack.c.l.b16 %v2129
        %v2526 = vunpack.c.h.b16 %v2129
        %v2527 = vunpack.c.l.b16 %v2130
        %v2528 = vunpack.c.h.b16 %v2130
        %v2529 = vunpack.c.l.b16 %v2131
        %v2530 = vunpack.c.h.b16 %v2131
        %v2531 = vpack.c.b16 %v2517, %v2515
        %v2532 = vpack.c.b16 %v2518, %v2516
        %v2533 = vpack.c.b16 %v2521, %v2519
        %v2534 = vpack.c.b16 %v2522, %v2520
        %v2535 = vpack.c.b16 %v2525, %v2523
        %v2536 = vpack.c.b16 %v2526, %v2524
        %v2537 = vpack.c.b16 %v2529, %v2527
        %v2538 = vpack.c.b16 %v2530, %v2528
        %v2548 = vsel %vm835, %v2096, 0
        %v2551 = vsel %vm835, %v2097, 0
        %v2554 = vsel %vm835, %v2098, 0
        %v2557 = vsel %vm835, %v2099, 0
        %2559 = vmatprep.subr.bf16.mxu0 %v2532
        %2560 = vmatpush1.bf16.msra.mxu0 %v2531
        %2561 = vmatprep.subr.bf16.mxu0 %v2534
        %2562 = vmatpush1.bf16.msra.mxu0 %v2533
        %2563 = vmatprep.subr.bf16.mxu0 %v2536
        %2564 = vmatpush1.bf16.msra.mxu0 %v2535
        %2565 = vmatprep.subr.bf16.mxu0 %v2538
        %2566 = vmatpush1.bf16.msra.mxu0 %v2537
        %2567 = vmatprep.subr.bf16.mxu0 0
        %2568 = vmatpush1.bf16.msra.mxu0 0
        %2569 = vmatprep.subr.bf16.mxu0 0
        %2570 = vmatpush1.bf16.msra.mxu0 0
        %2571 = vmatprep.subr.bf16.mxu0 0
        %2572 = vmatpush1.bf16.msra.mxu0 0
        %2573 = vmatprep.subr.bf16.mxu0 0
        %2574 = vmatpush1.bf16.msra.mxu0 0
        %2575 = vmatprep.subr.bf16.mxu0 0
        %2576 = vmatpush1.bf16.msra.mxu0 0
        %2577 = vmatprep.subr.bf16.mxu0 0
        %2578 = vmatpush1.bf16.msra.mxu0 0
        %2579 = vmatprep.subr.bf16.mxu0 0
        %2580 = vmatpush1.bf16.msra.mxu0 0
        %2581 = vmatprep.subr.bf16.mxu0 0
        %2582 = vmatpush1.bf16.msra.mxu0 0
        %2583 = vmatprep.subr.bf16.mxu0 0
        %2584 = vmatpush1.bf16.msra.mxu0 0
        %2585 = vmatprep.subr.bf16.mxu0 0
        %2586 = vmatpush1.bf16.msra.mxu0 0
        %2587 = vmatprep.subr.bf16.mxu0 0
        %2588 = vmatpush1.bf16.msra.mxu0 0
        %2589 = vmatprep.subr.bf16.mxu0 0
        %2590 = vmatpush1.bf16.msra.mxu0 0
        %2591 = vmatprep.mubr.bf16.mxu0 0
        %2592 = vmatmul.mubr.bf16.gmra.mrb[0].mxu0 %v2548
        %v2593 = vpop.f32.mrb[0].mxu0
        %v2594 = vadd.f32 0.0, %v2593
        %v2595 = vpop.f32.mrb[0].mxu0
        %v2596 = vadd.f32 0.0, %v2595
        %v2597 = vpop.f32.mrb[0].mxu0
        %v2598 = vadd.f32 0.0, %v2597
        %v2599 = vpop.f32.mrb[0].mxu0
        %v2600 = vadd.f32 0.0, %v2599
        %2601 = vmatprep.mubr.bf16.mxu0 0
        %2602 = vmatmul.mubr.bf16.gmra.mrb[0].mxu0 %v2551
        %v2603 = vpop.f32.mrb[0].mxu0
        %v2604 = vadd.f32 0.0, %v2603
        %v2605 = vpop.f32.mrb[0].mxu0
        %v2606 = vadd.f32 0.0, %v2605
        %v2607 = vpop.f32.mrb[0].mxu0
        %v2608 = vadd.f32 0.0, %v2607
        %v2609 = vpop.f32.mrb[0].mxu0
        %v2610 = vadd.f32 0.0, %v2609
        %2611 = vmatprep.mubr.bf16.mxu0 0
        %2612 = vmatmul.mubr.bf16.gmra.mrb[0].mxu0 %v2554
        %v2613 = vpop.f32.mrb[0].mxu0
        %v2614 = vadd.f32 0.0, %v2613
        %v2615 = vpop.f32.mrb[0].mxu0
        %v2616 = vadd.f32 0.0, %v2615
        %v2617 = vpop.f32.mrb[0].mxu0
        %v2618 = vadd.f32 0.0, %v2617
        %v2619 = vpop.f32.mrb[0].mxu0
        %v2620 = vadd.f32 0.0, %v2619
        %2621 = vmatprep.mubr.bf16.mxu0 0
        %2622 = vmatmul.mubr.bf16.gmra.mrb[0].mxu0 %v2557
        %v2623 = vpop.f32.mrb[0].mxu0
        %v2624 = vadd.f32 0.0, %v2623
        %v2625 = vpop.f32.mrb[0].mxu0
        %v2626 = vadd.f32 0.0, %v2625
        %v2627 = vpop.f32.mrb[0].mxu0
        %v2628 = vadd.f32 0.0, %v2627
        %v2629 = vpop.f32.mrb[0].mxu0
        %v2630 = vadd.f32 0.0, %v2629
        %2631 = vdwg.mxu0
        %v2632 = vadd.f32 %v2219, %v2344
        %v2633 = vadd.f32 %v2632, %v2469
        %v2634 = vadd.f32 %v2633, %v2594
        %v2635 = vadd.f32 %v2221, %v2346
        %v2636 = vadd.f32 %v2635, %v2471
        %v2637 = vadd.f32 %v2636, %v2596
        %v2638 = vadd.f32 %v2223, %v2348
        %v2639 = vadd.f32 %v2638, %v2473
        %v2640 = vadd.f32 %v2639, %v2598
        %v2641 = vadd.f32 %v2225, %v2350
        %v2642 = vadd.f32 %v2641, %v2475
        %v2643 = vadd.f32 %v2642, %v2600
        %v2644 = vadd.f32 %v2229, %v2354
        %v2645 = vadd.f32 %v2644, %v2479
        %v2646 = vadd.f32 %v2645, %v2604
        %v2647 = vadd.f32 %v2231, %v2356
        %v2648 = vadd.f32 %v2647, %v2481
        %v2649 = vadd.f32 %v2648, %v2606
        %v2650 = vadd.f32 %v2233, %v2358
        %v2651 = vadd.f32 %v2650, %v2483
        %v2652 = vadd.f32 %v2651, %v2608
        %v2653 = vadd.f32 %v2235, %v2360
        %v2654 = vadd.f32 %v2653, %v2485
        %v2655 = vadd.f32 %v2654, %v2610
        %v2656 = vadd.f32 %v2239, %v2364
        %v2657 = vadd.f32 %v2656, %v2489
        %v2658 = vadd.f32 %v2657, %v2614
        %v2659 = vadd.f32 %v2241, %v2366
        %v2660 = vadd.f32 %v2659, %v2491
        %v2661 = vadd.f32 %v2660, %v2616
        %v2662 = vadd.f32 %v2243, %v2368
        %v2663 = vadd.f32 %v2662, %v2493
        %v2664 = vadd.f32 %v2663, %v2618
        %v2665 = vadd.f32 %v2245, %v2370
        %v2666 = vadd.f32 %v2665, %v2495
        %v2667 = vadd.f32 %v2666, %v2620
        %v2668 = vadd.f32 %v2249, %v2374
        %v2669 = vadd.f32 %v2668, %v2499
        %v2670 = vadd.f32 %v2669, %v2624
        %v2671 = vadd.f32 %v2251, %v2376
        %v2672 = vadd.f32 %v2671, %v2501
        %v2673 = vadd.f32 %v2672, %v2626
        %v2674 = vadd.f32 %v2253, %v2378
        %v2675 = vadd.f32 %v2674, %v2503
        %v2676 = vadd.f32 %v2675, %v2628
        %v2677 = vadd.f32 %v2255, %v2380
        %v2678 = vadd.f32 %v2677, %v2505
        %v2679 = vadd.f32 %v2678, %v2630
        %v2680 = vld [vmem:[#allocation11] sm:$0x3]
        %v2682 = vlaneseq
        %v2683 = vshrl.u32 %v2682, 7
        %v2684 = vsub.s32 0, %v2683
        %v2685 = vrot.slane %v2680, %v2684
        %v2686 = vlaneseq
        %v2687 = vshrl.u32 %v2686, 7
        %v2688 = vsub.s32 1, %v2687
        %v2689 = vrot.slane %v2680, %v2688
        %v2692 = vadd.f32 %v2634, %v2685
        %v2693 = vadd.f32 %v2637, %v2689
        %v2694 = vadd.f32 %v2640, %v2685
        %v2695 = vadd.f32 %v2643, %v2689
        %v2696 = vadd.f32 %v2646, %v2685
        %v2697 = vadd.f32 %v2649, %v2689
        %v2698 = vadd.f32 %v2652, %v2685
        %v2699 = vadd.f32 %v2655, %v2689
        %v2700 = vadd.f32 %v2658, %v2685
        %v2701 = vadd.f32 %v2661, %v2689
        %v2702 = vadd.f32 %v2664, %v2685
        %v2703 = vadd.f32 %v2667, %v2689
        %v2704 = vadd.f32 %v2670, %v2685
        %v2705 = vadd.f32 %v2673, %v2689
        %v2706 = vadd.f32 %v2676, %v2685
        %v2707 = vadd.f32 %v2679, %v2689
        %v2708 = vadd.f32 %v656, %v2692
        %v2709 = vadd.f32 %v657, %v2693
        %v2710 = vadd.f32 %v658, %v2694
        %v2711 = vadd.f32 %v659, %v2695
        %v2712 = vadd.f32 %v660, %v2696
        %v2713 = vadd.f32 %v661, %v2697
        %v2714 = vadd.f32 %v662, %v2698
        %v2715 = vadd.f32 %v663, %v2699
        %v2716 = vadd.f32 %v664, %v2700
        %v2717 = vadd.f32 %v665, %v2701
        %v2718 = vadd.f32 %v666, %v2702
        %v2719 = vadd.f32 %v667, %v2703
        %v2720 = vadd.f32 %v668, %v2704
        %v2721 = vadd.f32 %v669, %v2705
        %v2722 = vadd.f32 %v670, %v2706
        %v2723 = vadd.f32 %v671, %v2707
        %v2724 = vld [vmem:[#allocation19] sm:$0x3]
        %v2725 = vld [vmem:[#allocation20] sm:$0x3]
        %v2726 = vadd.f32 %v2708, %v2709
        %2727 = vadd.xlane.f32.xlu0 %v2726
        %v2728 = vpop.xlane.xlu0 %2727
        %v2729 = vadd.f32 %v2710, %v2711
        %2730 = vadd.xlane.f32.xlu0 %v2729
        %v2731 = vpop.xlane.xlu0 %2730
        %v2732 = vadd.f32 %v2712, %v2713
        %2733 = vadd.xlane.f32.xlu0 %v2732
        %v2734 = vpop.xlane.xlu0 %2733
        %v2735 = vadd.f32 %v2714, %v2715
        %2736 = vadd.xlane.f32.xlu0 %v2735
        %v2737 = vpop.xlane.xlu0 %2736
        %v2738 = vadd.f32 %v2716, %v2717
        %2739 = vadd.xlane.f32.xlu0 %v2738
        %v2740 = vpop.xlane.xlu0 %2739
        %v2741 = vadd.f32 %v2718, %v2719
        %2742 = vadd.xlane.f32.xlu0 %v2741
        %v2743 = vpop.xlane.xlu0 %2742
        %v2744 = vadd.f32 %v2720, %v2721
        %2745 = vadd.xlane.f32.xlu0 %v2744
        %v2746 = vpop.xlane.xlu0 %2745
        %v2747 = vadd.f32 %v2722, %v2723
        %2748 = vadd.xlane.f32.xlu0 %v2747
        %v2749 = vpop.xlane.xlu0 %2748
        %v2750 = vrcp.pop 256.0
        %v2751 = vmul.f32 %v2728, %v2750
        %v2752 = vmul.f32 %v2731, %v2750
        %v2753 = vmul.f32 %v2734, %v2750
        %v2754 = vmul.f32 %v2737, %v2750
        %v2755 = vmul.f32 %v2740, %v2750
        %v2756 = vmul.f32 %v2743, %v2750
        %v2757 = vmul.f32 %v2746, %v2750
        %v2758 = vmul.f32 %v2749, %v2750
        %v2759 = vsub.f32 %v2708, %v2751
        %v2760 = vsub.f32 %v2709, %v2751
        %v2761 = vsub.f32 %v2710, %v2752
        %v2762 = vsub.f32 %v2711, %v2752
        %v2763 = vsub.f32 %v2712, %v2753
        %v2764 = vsub.f32 %v2713, %v2753
        %v2765 = vsub.f32 %v2714, %v2754
        %v2766 = vsub.f32 %v2715, %v2754
        %v2767 = vsub.f32 %v2716, %v2755
        %v2768 = vsub.f32 %v2717, %v2755
        %v2769 = vsub.f32 %v2718, %v2756
        %v2770 = vsub.f32 %v2719, %v2756
        %v2771 = vsub.f32 %v2720, %v2757
        %v2772 = vsub.f32 %v2721, %v2757
        %v2773 = vsub.f32 %v2722, %v2758
        %v2774 = vsub.f32 %v2723, %v2758
        %v2775 = vmul.f32 %v2759, %v2759
        %v2776 = vmul.f32 %v2760, %v2760
        %v2777 = vmul.f32 %v2761, %v2761
        %v2778 = vmul.f32 %v2762, %v2762
        %v2779 = vmul.f32 %v2763, %v2763
        %v2780 = vmul.f32 %v2764, %v2764
        %v2781 = vmul.f32 %v2765, %v2765
        %v2782 = vmul.f32 %v2766, %v2766
        %v2783 = vmul.f32 %v2767, %v2767
        %v2784 = vmul.f32 %v2768, %v2768
        %v2785 = vmul.f32 %v2769, %v2769
        %v2786 = vmul.f32 %v2770, %v2770
        %v2787 = vmul.f32 %v2771, %v2771
        %v2788 = vmul.f32 %v2772, %v2772
        %v2789 = vmul.f32 %v2773, %v2773
        %v2790 = vmul.f32 %v2774, %v2774
        %v2791 = vadd.f32 %v2775, %v2776
        %2792 = vadd.xlane.f32.xlu0 %v2791
        %v2793 = vpop.xlane.xlu0 %2792
        %v2794 = vadd.f32 %v2777, %v2778
        %2795 = vadd.xlane.f32.xlu0 %v2794
        %v2796 = vpop.xlane.xlu0 %2795
        %v2797 = vadd.f32 %v2779, %v2780
        %2798 = vadd.xlane.f32.xlu0 %v2797
        %v2799 = vpop.xlane.xlu0 %2798
        %v2800 = vadd.f32 %v2781, %v2782
        %2801 = vadd.xlane.f32.xlu0 %v2800
        %v2802 = vpop.xlane.xlu0 %2801
        %v2803 = vadd.f32 %v2783, %v2784
        %2804 = vadd.xlane.f32.xlu0 %v2803
        %v2805 = vpop.xlane.xlu0 %2804
        %v2806 = vadd.f32 %v2785, %v2786
        %2807 = vadd.xlane.f32.xlu0 %v2806
        %v2808 = vpop.xlane.xlu0 %2807
        %v2809 = vadd.f32 %v2787, %v2788
        %2810 = vadd.xlane.f32.xlu0 %v2809
        %v2811 = vpop.xlane.xlu0 %2810
        %v2812 = vadd.f32 %v2789, %v2790
        %2813 = vadd.xlane.f32.xlu0 %v2812
        %v2814 = vpop.xlane.xlu0 %2813
        %v2815 = vmul.f32 %v2793, %v2750
        %v2816 = vmul.f32 %v2796, %v2750
        %v2817 = vmul.f32 %v2799, %v2750
        %v2818 = vmul.f32 %v2802, %v2750
        %v2819 = vmul.f32 %v2805, %v2750
        %v2820 = vmul.f32 %v2808, %v2750
        %v2821 = vmul.f32 %v2811, %v2750
        %v2822 = vmul.f32 %v2814, %v2750
        %v2823 = vadd.f32 %v2815, 1e-05
        %v2824 = vadd.f32 %v2816, 1e-05
        %v2825 = vadd.f32 %v2817, 1e-05
        %v2826 = vadd.f32 %v2818, 1e-05
        %v2827 = vadd.f32 %v2819, 1e-05
        %v2828 = vadd.f32 %v2820, 1e-05
        %v2829 = vadd.f32 %v2821, 1e-05
        %v2830 = vadd.f32 %v2822, 1e-05
        %v2831 = vrsqrt.pop %v2823
        %v2832 = vrsqrt.pop %v2824
        %v2833 = vrsqrt.pop %v2825
        %v2834 = vrsqrt.pop %v2826
        %v2835 = vrsqrt.pop %v2827
        %v2836 = vrsqrt.pop %v2828
        %v2837 = vrsqrt.pop %v2829
        %v2838 = vrsqrt.pop %v2830
        %v2839 = vmul.f32 %v2759, %v2831
        %v2840 = vmul.f32 %v2760, %v2831
        %v2841 = vmul.f32 %v2761, %v2832
        %v2842 = vmul.f32 %v2762, %v2832
        %v2843 = vmul.f32 %v2763, %v2833
        %v2844 = vmul.f32 %v2764, %v2833
        %v2845 = vmul.f32 %v2765, %v2834
        %v2846 = vmul.f32 %v2766, %v2834
        %v2847 = vmul.f32 %v2767, %v2835
        %v2848 = vmul.f32 %v2768, %v2835
        %v2849 = vmul.f32 %v2769, %v2836
        %v2850 = vmul.f32 %v2770, %v2836
        %v2851 = vmul.f32 %v2771, %v2837
        %v2852 = vmul.f32 %v2772, %v2837
        %v2853 = vmul.f32 %v2773, %v2838
        %v2854 = vmul.f32 %v2774, %v2838
        %v2856 = vlaneseq
        %v2857 = vshrl.u32 %v2856, 7
        %v2858 = vsub.s32 0, %v2857
        %v2859 = vrot.slane %v2724, %v2858
        %v2860 = vlaneseq
        %v2861 = vshrl.u32 %v2860, 7
        %v2862 = vsub.s32 1, %v2861
        %v2863 = vrot.slane %v2724, %v2862
        %v2866 = vmul.f32 %v2839, %v2859
        %v2867 = vmul.f32 %v2840, %v2863
        %v2868 = vmul.f32 %v2841, %v2859
        %v2869 = vmul.f32 %v2842, %v2863
        %v2870 = vmul.f32 %v2843, %v2859
        %v2871 = vmul.f32 %v2844, %v2863
        %v2872 = vmul.f32 %v2845, %v2859
        %v2873 = vmul.f32 %v2846, %v2863
        %v2874 = vmul.f32 %v2847, %v2859
        %v2875 = vmul.f32 %v2848, %v2863
        %v2876 = vmul.f32 %v2849, %v2859
        %v2877 = vmul.f32 %v2850, %v2863
        %v2878 = vmul.f32 %v2851, %v2859
        %v2879 = vmul.f32 %v2852, %v2863
        %v2880 = vmul.f32 %v2853, %v2859
        %v2881 = vmul.f32 %v2854, %v2863
        %v2883 = vlaneseq
        %v2884 = vshrl.u32 %v2883, 7
        %v2885 = vsub.s32 0, %v2884
        %v2886 = vrot.slane %v2725, %v2885
        %v2887 = vlaneseq
        %v2888 = vshrl.u32 %v2887, 7
        %v2889 = vsub.s32 1, %v2888
        %v2890 = vrot.slane %v2725, %v2889
        %v2893 = vadd.f32 %v2866, %v2886
        %v2894 = vadd.f32 %v2867, %v2890
        %v2895 = vadd.f32 %v2868, %v2886
        %v2896 = vadd.f32 %v2869, %v2890
        %v2897 = vadd.f32 %v2870, %v2886
        %v2898 = vadd.f32 %v2871, %v2890
        %v2899 = vadd.f32 %v2872, %v2886
        %v2900 = vadd.f32 %v2873, %v2890
        %v2901 = vadd.f32 %v2874, %v2886
        %v2902 = vadd.f32 %v2875, %v2890
        %v2903 = vadd.f32 %v2876, %v2886
        %v2904 = vadd.f32 %v2877, %v2890
        %v2905 = vadd.f32 %v2878, %v2886
        %v2906 = vadd.f32 %v2879, %v2890
        %v2907 = vadd.f32 %v2880, %v2886
        %v2908 = vadd.f32 %v2881, %v2890
        %v2909 = vpack.c.bf16 %v2895, %v2893
        %v2910 = vpack.c.bf16 %v2896, %v2894
        %v2911 = vpack.c.bf16 %v2899, %v2897
        %v2912 = vpack.c.bf16 %v2900, %v2898
        %v2913 = vpack.c.bf16 %v2903, %v2901
        %v2914 = vpack.c.bf16 %v2904, %v2902
        %v2915 = vpack.c.bf16 %v2907, %v2905
        %v2916 = vpack.c.bf16 %v2908, %v2906
        %v2917 = vld [vmem:[#allocation13] sm:$0xff]
        %v2918 = vld [vmem:[#allocation13 + $0x8] sm:$0xff]
        %v2919 = vld [vmem:[#allocation13 + $0x10] sm:$0xff]
        %v2920 = vld [vmem:[#allocation13 + $0x18] sm:$0xff]
        %v2921 = vld [vmem:[#allocation13 + $0x20] sm:$0xff]
        %v2922 = vld [vmem:[#allocation13 + $0x28] sm:$0xff]
        %v2923 = vld [vmem:[#allocation13 + $0x30] sm:$0xff]
        %v2924 = vld [vmem:[#allocation13 + $0x38] sm:$0xff]
        %v2925 = vld [vmem:[#allocation13 + $0x40] sm:$0xff]
        %v2926 = vld [vmem:[#allocation13 + $0x48] sm:$0xff]
        %v2927 = vld [vmem:[#allocation13 + $0x50] sm:$0xff]
        %v2928 = vld [vmem:[#allocation13 + $0x58] sm:$0xff]
        %v2929 = vld [vmem:[#allocation13 + $0x60] sm:$0xff]
        %v2930 = vld [vmem:[#allocation13 + $0x68] sm:$0xff]
        %v2931 = vld [vmem:[#allocation13 + $0x70] sm:$0xff]
        %v2932 = vld [vmem:[#allocation13 + $0x78] sm:$0xff]
        %v2933 = vld [vmem:[#allocation13 + $0x80] sm:$0xff]
        %v2934 = vld [vmem:[#allocation13 + $0x88] sm:$0xff]
        %v2935 = vld [vmem:[#allocation13 + $0x90] sm:$0xff]
        %v2936 = vld [vmem:[#allocation13 + $0x98] sm:$0xff]
        %v2937 = vld [vmem:[#allocation13 + $0xa0] sm:$0xff]
        %v2938 = vld [vmem:[#allocation13 + $0xa8] sm:$0xff]
        %v2939 = vld [vmem:[#allocation13 + $0xb0] sm:$0xff]
        %v2940 = vld [vmem:[#allocation13 + $0xb8] sm:$0xff]
        %v2941 = vld [vmem:[#allocation13 + $0xc0] sm:$0xff]
        %v2942 = vld [vmem:[#allocation13 + $0xc8] sm:$0xff]
        %v2943 = vld [vmem:[#allocation13 + $0xd0] sm:$0xff]
        %v2944 = vld [vmem:[#allocation13 + $0xd8] sm:$0xff]
        %v2945 = vld [vmem:[#allocation13 + $0xe0] sm:$0xff]
        %v2946 = vld [vmem:[#allocation13 + $0xe8] sm:$0xff]
        %v2947 = vld [vmem:[#allocation13 + $0xf0] sm:$0xff]
        %v2948 = vld [vmem:[#allocation13 + $0xf8] sm:$0xff]
        %v2949 = vld [vmem:[#allocation13 + $0x100] sm:$0xff]
        %v2950 = vld [vmem:[#allocation13 + $0x108] sm:$0xff]
        %v2951 = vld [vmem:[#allocation13 + $0x110] sm:$0xff]
        %v2952 = vld [vmem:[#allocation13 + $0x118] sm:$0xff]
        %v2953 = vld [vmem:[#allocation13 + $0x120] sm:$0xff]
        %v2954 = vld [vmem:[#allocation13 + $0x128] sm:$0xff]
        %v2955 = vld [vmem:[#allocation13 + $0x130] sm:$0xff]
        %v2956 = vld [vmem:[#allocation13 + $0x138] sm:$0xff]
        %v2957 = vld [vmem:[#allocation13 + $0x140] sm:$0xff]
        %v2958 = vld [vmem:[#allocation13 + $0x148] sm:$0xff]
        %v2959 = vld [vmem:[#allocation13 + $0x150] sm:$0xff]
        %v2960 = vld [vmem:[#allocation13 + $0x158] sm:$0xff]
        %v2961 = vld [vmem:[#allocation13 + $0x160] sm:$0xff]
        %v2962 = vld [vmem:[#allocation13 + $0x168] sm:$0xff]
        %v2963 = vld [vmem:[#allocation13 + $0x170] sm:$0xff]
        %v2964 = vld [vmem:[#allocation13 + $0x178] sm:$0xff]
        %v2965 = vld [vmem:[#allocation13 + $0x180] sm:$0xff]
        %v2966 = vld [vmem:[#allocation13 + $0x188] sm:$0xff]
        %v2967 = vld [vmem:[#allocation13 + $0x190] sm:$0xff]
        %v2968 = vld [vmem:[#allocation13 + $0x198] sm:$0xff]
        %v2969 = vld [vmem:[#allocation13 + $0x1a0] sm:$0xff]
        %v2970 = vld [vmem:[#allocation13 + $0x1a8] sm:$0xff]
        %v2971 = vld [vmem:[#allocation13 + $0x1b0] sm:$0xff]
        %v2972 = vld [vmem:[#allocation13 + $0x1b8] sm:$0xff]
        %v2973 = vld [vmem:[#allocation13 + $0x1c0] sm:$0xff]
        %v2974 = vld [vmem:[#allocation13 + $0x1c8] sm:$0xff]
        %v2975 = vld [vmem:[#allocation13 + $0x1d0] sm:$0xff]
        %v2976 = vld [vmem:[#allocation13 + $0x1d8] sm:$0xff]
        %v2977 = vld [vmem:[#allocation13 + $0x1e0] sm:$0xff]
        %v2978 = vld [vmem:[#allocation13 + $0x1e8] sm:$0xff]
        %v2979 = vld [vmem:[#allocation13 + $0x1f0] sm:$0xff]
        %v2980 = vld [vmem:[#allocation13 + $0x1f8] sm:$0xff]
        %v2981 = vld [vmem:[#allocation13 + $0x200] sm:$0xff]
        %v2982 = vld [vmem:[#allocation13 + $0x208] sm:$0xff]
        %v2983 = vld [vmem:[#allocation13 + $0x210] sm:$0xff]
        %v2984 = vld [vmem:[#allocation13 + $0x218] sm:$0xff]
        %v2985 = vld [vmem:[#allocation13 + $0x220] sm:$0xff]
        %v2986 = vld [vmem:[#allocation13 + $0x228] sm:$0xff]
        %v2987 = vld [vmem:[#allocation13 + $0x230] sm:$0xff]
        %v2988 = vld [vmem:[#allocation13 + $0x238] sm:$0xff]
        %v2989 = vld [vmem:[#allocation13 + $0x240] sm:$0xff]
        %v2990 = vld [vmem:[#allocation13 + $0x248] sm:$0xff]
        %v2991 = vld [vmem:[#allocation13 + $0x250] sm:$0xff]
        %v2992 = vld [vmem:[#allocation13 + $0x258] sm:$0xff]
        %v2993 = vld [vmem:[#allocation13 + $0x260] sm:$0xff]
        %v2994 = vld [vmem:[#allocation13 + $0x268] sm:$0xff]
        %v2995 = vld [vmem:[#allocation13 + $0x270] sm:$0xff]
        %v2996 = vld [vmem:[#allocation13 + $0x278] sm:$0xff]
        %v2997 = vld [vmem:[#allocation13 + $0x280] sm:$0xff]
        %v2998 = vld [vmem:[#allocation13 + $0x288] sm:$0xff]
        %v2999 = vld [vmem:[#allocation13 + $0x290] sm:$0xff]
        %v3000 = vld [vmem:[#allocation13 + $0x298] sm:$0xff]
        %v3001 = vld [vmem:[#allocation13 + $0x2a0] sm:$0xff]
        %v3002 = vld [vmem:[#allocation13 + $0x2a8] sm:$0xff]
        %v3003 = vld [vmem:[#allocation13 + $0x2b0] sm:$0xff]
        %v3004 = vld [vmem:[#allocation13 + $0x2b8] sm:$0xff]
        %v3005 = vld [vmem:[#allocation13 + $0x2c0] sm:$0xff]
        %v3006 = vld [vmem:[#allocation13 + $0x2c8] sm:$0xff]
        %v3007 = vld [vmem:[#allocation13 + $0x2d0] sm:$0xff]
        %v3008 = vld [vmem:[#allocation13 + $0x2d8] sm:$0xff]
        %v3009 = vld [vmem:[#allocation13 + $0x2e0] sm:$0xff]
        %v3010 = vld [vmem:[#allocation13 + $0x2e8] sm:$0xff]
        %v3011 = vld [vmem:[#allocation13 + $0x2f0] sm:$0xff]
        %v3012 = vld [vmem:[#allocation13 + $0x2f8] sm:$0xff]
        %v3013 = vld [vmem:[#allocation13 + $0x300] sm:$0xff]
        %v3014 = vld [vmem:[#allocation13 + $0x308] sm:$0xff]
        %v3015 = vld [vmem:[#allocation13 + $0x310] sm:$0xff]
        %v3016 = vld [vmem:[#allocation13 + $0x318] sm:$0xff]
        %v3017 = vld [vmem:[#allocation13 + $0x320] sm:$0xff]
        %v3018 = vld [vmem:[#allocation13 + $0x328] sm:$0xff]
        %v3019 = vld [vmem:[#allocation13 + $0x330] sm:$0xff]
        %v3020 = vld [vmem:[#allocation13 + $0x338] sm:$0xff]
        %v3021 = vld [vmem:[#allocation13 + $0x340] sm:$0xff]
        %v3022 = vld [vmem:[#allocation13 + $0x348] sm:$0xff]
        %v3023 = vld [vmem:[#allocation13 + $0x350] sm:$0xff]
        %v3024 = vld [vmem:[#allocation13 + $0x358] sm:$0xff]
        %v3025 = vld [vmem:[#allocation13 + $0x360] sm:$0xff]
        %v3026 = vld [vmem:[#allocation13 + $0x368] sm:$0xff]
        %v3027 = vld [vmem:[#allocation13 + $0x370] sm:$0xff]
        %v3028 = vld [vmem:[#allocation13 + $0x378] sm:$0xff]
        %v3029 = vld [vmem:[#allocation13 + $0x380] sm:$0xff]
        %v3030 = vld [vmem:[#allocation13 + $0x388] sm:$0xff]
        %v3031 = vld [vmem:[#allocation13 + $0x390] sm:$0xff]
        %v3032 = vld [vmem:[#allocation13 + $0x398] sm:$0xff]
        %v3033 = vld [vmem:[#allocation13 + $0x3a0] sm:$0xff]
        %v3034 = vld [vmem:[#allocation13 + $0x3a8] sm:$0xff]
        %v3035 = vld [vmem:[#allocation13 + $0x3b0] sm:$0xff]
        %v3036 = vld [vmem:[#allocation13 + $0x3b8] sm:$0xff]
        %v3037 = vld [vmem:[#allocation13 + $0x3c0] sm:$0xff]
        %v3038 = vld [vmem:[#allocation13 + $0x3c8] sm:$0xff]
        %v3039 = vld [vmem:[#allocation13 + $0x3d0] sm:$0xff]
        %v3040 = vld [vmem:[#allocation13 + $0x3d8] sm:$0xff]
        %v3041 = vld [vmem:[#allocation13 + $0x3e0] sm:$0xff]
        %v3042 = vld [vmem:[#allocation13 + $0x3e8] sm:$0xff]
        %v3043 = vld [vmem:[#allocation13 + $0x3f0] sm:$0xff]
        %v3044 = vld [vmem:[#allocation13 + $0x3f8] sm:$0xff]
        %v3045 = vld [vmem:[#allocation14] sm:$0xff]
        %v3047 = vlaneseq
        %v3048 = vshrl.u32 %v3047, 7
        %v3049 = vsub.s32 0, %v3048
        %v3050 = vrot.slane %v3045, %v3049
        %v3051 = vlaneseq
        %v3052 = vshrl.u32 %v3051, 7
        %v3053 = vsub.s32 1, %v3052
        %v3054 = vrot.slane %v3045, %v3053
        %v3055 = vlaneseq
        %v3056 = vshrl.u32 %v3055, 7
        %v3057 = vsub.s32 2, %v3056
        %v3058 = vrot.slane %v3045, %v3057
        %v3059 = vlaneseq
        %v3060 = vshrl.u32 %v3059, 7
        %v3061 = vsub.s32 3, %v3060
        %v3062 = vrot.slane %v3045, %v3061
        %v3063 = vlaneseq
        %v3064 = vshrl.u32 %v3063, 7
        %v3065 = vsub.s32 4, %v3064
        %v3066 = vrot.slane %v3045, %v3065
        %v3067 = vlaneseq
        %v3068 = vshrl.u32 %v3067, 7
        %v3069 = vsub.s32 5, %v3068
        %v3070 = vrot.slane %v3045, %v3069
        %v3071 = vlaneseq
        %v3072 = vshrl.u32 %v3071, 7
        %v3073 = vsub.s32 6, %v3072
        %v3074 = vrot.slane %v3045, %v3073
        %v3075 = vlaneseq
        %v3076 = vshrl.u32 %v3075, 7
        %v3077 = vsub.s32 7, %v3076
        %v3078 = vrot.slane %v3045, %v3077
        %v3215 = vunpack.c.l.b16 %v2917
        %v3216 = vunpack.c.h.b16 %v2917
        %v3217 = vunpack.c.l.b16 %v2918
        %v3218 = vunpack.c.h.b16 %v2918
        %v3219 = vunpack.c.l.b16 %v2919
        %v3220 = vunpack.c.h.b16 %v2919
        %v3221 = vunpack.c.l.b16 %v2920
        %v3222 = vunpack.c.h.b16 %v2920
        %v3223 = vunpack.c.l.b16 %v2921
        %v3224 = vunpack.c.h.b16 %v2921
        %v3225 = vunpack.c.l.b16 %v2922
        %v3226 = vunpack.c.h.b16 %v2922
        %v3227 = vunpack.c.l.b16 %v2923
        %v3228 = vunpack.c.h.b16 %v2923
        %v3229 = vunpack.c.l.b16 %v2924
        %v3230 = vunpack.c.h.b16 %v2924
        %v3231 = vunpack.c.l.b16 %v2925
        %v3232 = vunpack.c.h.b16 %v2925
        %v3233 = vunpack.c.l.b16 %v2926
        %v3234 = vunpack.c.h.b16 %v2926
        %v3235 = vunpack.c.l.b16 %v2927
        %v3236 = vunpack.c.h.b16 %v2927
        %v3237 = vunpack.c.l.b16 %v2928
        %v3238 = vunpack.c.h.b16 %v2928
        %v3239 = vunpack.c.l.b16 %v2929
        %v3240 = vunpack.c.h.b16 %v2929
        %v3241 = vunpack.c.l.b16 %v2930
        %v3242 = vunpack.c.h.b16 %v2930
        %v3243 = vunpack.c.l.b16 %v2931
        %v3244 = vunpack.c.h.b16 %v2931
        %v3245 = vunpack.c.l.b16 %v2932
        %v3246 = vunpack.c.h.b16 %v2932
        %v3247 = vunpack.c.l.b16 %v2933
        %v3248 = vunpack.c.h.b16 %v2933
        %v3249 = vunpack.c.l.b16 %v2934
        %v3250 = vunpack.c.h.b16 %v2934
        %v3251 = vunpack.c.l.b16 %v2935
        %v3252 = vunpack.c.h.b16 %v2935
        %v3253 = vunpack.c.l.b16 %v2936
        %v3254 = vunpack.c.h.b16 %v2936
        %v3255 = vunpack.c.l.b16 %v2937
        %v3256 = vunpack.c.h.b16 %v2937
        %v3257 = vunpack.c.l.b16 %v2938
        %v3258 = vunpack.c.h.b16 %v2938
        %v3259 = vunpack.c.l.b16 %v2939
        %v3260 = vunpack.c.h.b16 %v2939
        %v3261 = vunpack.c.l.b16 %v2940
        %v3262 = vunpack.c.h.b16 %v2940
        %v3263 = vunpack.c.l.b16 %v2941
        %v3264 = vunpack.c.h.b16 %v2941
        %v3265 = vunpack.c.l.b16 %v2942
        %v3266 = vunpack.c.h.b16 %v2942
        %v3267 = vunpack.c.l.b16 %v2943
        %v3268 = vunpack.c.h.b16 %v2943
        %v3269 = vunpack.c.l.b16 %v2944
        %v3270 = vunpack.c.h.b16 %v2944
        %v3271 = vunpack.c.l.b16 %v2945
        %v3272 = vunpack.c.h.b16 %v2945
        %v3273 = vunpack.c.l.b16 %v2946
        %v3274 = vunpack.c.h.b16 %v2946
        %v3275 = vunpack.c.l.b16 %v2947
        %v3276 = vunpack.c.h.b16 %v2947
        %v3277 = vunpack.c.l.b16 %v2948
        %v3278 = vunpack.c.h.b16 %v2948
        %v3279 = vunpack.c.l.b16 %v2949
        %v3280 = vunpack.c.h.b16 %v2949
        %v3281 = vunpack.c.l.b16 %v2950
        %v3282 = vunpack.c.h.b16 %v2950
        %v3283 = vunpack.c.l.b16 %v2951
        %v3284 = vunpack.c.h.b16 %v2951
        %v3285 = vunpack.c.l.b16 %v2952
        %v3286 = vunpack.c.h.b16 %v2952
        %v3287 = vunpack.c.l.b16 %v2953
        %v3288 = vunpack.c.h.b16 %v2953
        %v3289 = vunpack.c.l.b16 %v2954
        %v3290 = vunpack.c.h.b16 %v2954
        %v3291 = vunpack.c.l.b16 %v2955
        %v3292 = vunpack.c.h.b16 %v2955
        %v3293 = vunpack.c.l.b16 %v2956
        %v3294 = vunpack.c.h.b16 %v2956
        %v3295 = vunpack.c.l.b16 %v2957
        %v3296 = vunpack.c.h.b16 %v2957
        %v3297 = vunpack.c.l.b16 %v2958
        %v3298 = vunpack.c.h.b16 %v2958
        %v3299 = vunpack.c.l.b16 %v2959
        %v3300 = vunpack.c.h.b16 %v2959
        %v3301 = vunpack.c.l.b16 %v2960
        %v3302 = vunpack.c.h.b16 %v2960
        %v3303 = vunpack.c.l.b16 %v2961
        %v3304 = vunpack.c.h.b16 %v2961
        %v3305 = vunpack.c.l.b16 %v2962
        %v3306 = vunpack.c.h.b16 %v2962
        %v3307 = vunpack.c.l.b16 %v2963
        %v3308 = vunpack.c.h.b16 %v2963
        %v3309 = vunpack.c.l.b16 %v2964
        %v3310 = vunpack.c.h.b16 %v2964
        %v3311 = vunpack.c.l.b16 %v2965
        %v3312 = vunpack.c.h.b16 %v2965
        %v3313 = vunpack.c.l.b16 %v2966
        %v3314 = vunpack.c.h.b16 %v2966
        %v3315 = vunpack.c.l.b16 %v2967
        %v3316 = vunpack.c.h.b16 %v2967
        %v3317 = vunpack.c.l.b16 %v2968
        %v3318 = vunpack.c.h.b16 %v2968
        %v3319 = vunpack.c.l.b16 %v2969
        %v3320 = vunpack.c.h.b16 %v2969
        %v3321 = vunpack.c.l.b16 %v2970
        %v3322 = vunpack.c.h.b16 %v2970
        %v3323 = vunpack.c.l.b16 %v2971
        %v3324 = vunpack.c.h.b16 %v2971
        %v3325 = vunpack.c.l.b16 %v2972
        %v3326 = vunpack.c.h.b16 %v2972
        %v3327 = vunpack.c.l.b16 %v2973
        %v3328 = vunpack.c.h.b16 %v2973
        %v3329 = vunpack.c.l.b16 %v2974
        %v3330 = vunpack.c.h.b16 %v2974
        %v3331 = vunpack.c.l.b16 %v2975
        %v3332 = vunpack.c.h.b16 %v2975
        %v3333 = vunpack.c.l.b16 %v2976
        %v3334 = vunpack.c.h.b16 %v2976
        %v3335 = vunpack.c.l.b16 %v2977
        %v3336 = vunpack.c.h.b16 %v2977
        %v3337 = vunpack.c.l.b16 %v2978
        %v3338 = vunpack.c.h.b16 %v2978
        %v3339 = vunpack.c.l.b16 %v2979
        %v3340 = vunpack.c.h.b16 %v2979
        %v3341 = vunpack.c.l.b16 %v2980
        %v3342 = vunpack.c.h.b16 %v2980
        %v3343 = vunpack.c.l.b16 %v2981
        %v3344 = vunpack.c.h.b16 %v2981
        %v3345 = vunpack.c.l.b16 %v2982
        %v3346 = vunpack.c.h.b16 %v2982
        %v3347 = vunpack.c.l.b16 %v2983
        %v3348 = vunpack.c.h.b16 %v2983
        %v3349 = vunpack.c.l.b16 %v2984
        %v3350 = vunpack.c.h.b16 %v2984
        %v3351 = vunpack.c.l.b16 %v2985
        %v3352 = vunpack.c.h.b16 %v2985
        %v3353 = vunpack.c.l.b16 %v2986
        %v3354 = vunpack.c.h.b16 %v2986
        %v3355 = vunpack.c.l.b16 %v2987
        %v3356 = vunpack.c.h.b16 %v2987
        %v3357 = vunpack.c.l.b16 %v2988
        %v3358 = vunpack.c.h.b16 %v2988
        %v3359 = vunpack.c.l.b16 %v2989
        %v3360 = vunpack.c.h.b16 %v2989
        %v3361 = vunpack.c.l.b16 %v2990
        %v3362 = vunpack.c.h.b16 %v2990
        %v3363 = vunpack.c.l.b16 %v2991
        %v3364 = vunpack.c.h.b16 %v2991
        %v3365 = vunpack.c.l.b16 %v2992
        %v3366 = vunpack.c.h.b16 %v2992
        %v3367 = vunpack.c.l.b16 %v2993
        %v3368 = vunpack.c.h.b16 %v2993
        %v3369 = vunpack.c.l.b16 %v2994
        %v3370 = vunpack.c.h.b16 %v2994
        %v3371 = vunpack.c.l.b16 %v2995
        %v3372 = vunpack.c.h.b16 %v2995
        %v3373 = vunpack.c.l.b16 %v2996
        %v3374 = vunpack.c.h.b16 %v2996
        %v3375 = vunpack.c.l.b16 %v2997
        %v3376 = vunpack.c.h.b16 %v2997
        %v3377 = vunpack.c.l.b16 %v2998
        %v3378 = vunpack.c.h.b16 %v2998
        %v3379 = vunpack.c.l.b16 %v2999
        %v3380 = vunpack.c.h.b16 %v2999
        %v3381 = vunpack.c.l.b16 %v3000
        %v3382 = vunpack.c.h.b16 %v3000
        %v3383 = vunpack.c.l.b16 %v3001
        %v3384 = vunpack.c.h.b16 %v3001
        %v3385 = vunpack.c.l.b16 %v3002
        %v3386 = vunpack.c.h.b16 %v3002
        %v3387 = vunpack.c.l.b16 %v3003
        %v3388 = vunpack.c.h.b16 %v3003
        %v3389 = vunpack.c.l.b16 %v3004
        %v3390 = vunpack.c.h.b16 %v3004
        %v3391 = vunpack.c.l.b16 %v3005
        %v3392 = vunpack.c.h.b16 %v3005
        %v3393 = vunpack.c.l.b16 %v3006
        %v3394 = vunpack.c.h.b16 %v3006
        %v3395 = vunpack.c.l.b16 %v3007
        %v3396 = vunpack.c.h.b16 %v3007
        %v3397 = vunpack.c.l.b16 %v3008
        %v3398 = vunpack.c.h.b16 %v3008
        %v3399 = vunpack.c.l.b16 %v3009
        %v3400 = vunpack.c.h.b16 %v3009
        %v3401 = vunpack.c.l.b16 %v3010
        %v3402 = vunpack.c.h.b16 %v3010
        %v3403 = vunpack.c.l.b16 %v3011
        %v3404 = vunpack.c.h.b16 %v3011
        %v3405 = vunpack.c.l.b16 %v3012
        %v3406 = vunpack.c.h.b16 %v3012
        %v3407 = vunpack.c.l.b16 %v3013
        %v3408 = vunpack.c.h.b16 %v3013
        %v3409 = vunpack.c.l.b16 %v3014
        %v3410 = vunpack.c.h.b16 %v3014
        %v3411 = vunpack.c.l.b16 %v3015
        %v3412 = vunpack.c.h.b16 %v3015
        %v3413 = vunpack.c.l.b16 %v3016
        %v3414 = vunpack.c.h.b16 %v3016
        %v3415 = vunpack.c.l.b16 %v3017
        %v3416 = vunpack.c.h.b16 %v3017
        %v3417 = vunpack.c.l.b16 %v3018
        %v3418 = vunpack.c.h.b16 %v3018
        %v3419 = vunpack.c.l.b16 %v3019
        %v3420 = vunpack.c.h.b16 %v3019
        %v3421 = vunpack.c.l.b16 %v3020
        %v3422 = vunpack.c.h.b16 %v3020
        %v3423 = vunpack.c.l.b16 %v3021
        %v3424 = vunpack.c.h.b16 %v3021
        %v3425 = vunpack.c.l.b16 %v3022
        %v3426 = vunpack.c.h.b16 %v3022
        %v3427 = vunpack.c.l.b16 %v3023
        %v3428 = vunpack.c.h.b16 %v3023
        %v3429 = vunpack.c.l.b16 %v3024
        %v3430 = vunpack.c.h.b16 %v3024
        %v3431 = vunpack.c.l.b16 %v3025
        %v3432 = vunpack.c.h.b16 %v3025
        %v3433 = vunpack.c.l.b16 %v3026
        %v3434 = vunpack.c.h.b16 %v3026
        %v3435 = vunpack.c.l.b16 %v3027
        %v3436 = vunpack.c.h.b16 %v3027
        %v3437 = vunpack.c.l.b16 %v3028
        %v3438 = vunpack.c.h.b16 %v3028
        %v3439 = vunpack.c.l.b16 %v3029
        %v3440 = vunpack.c.h.b16 %v3029
        %v3441 = vunpack.c.l.b16 %v3030
        %v3442 = vunpack.c.h.b16 %v3030
        %v3443 = vunpack.c.l.b16 %v3031
        %v3444 = vunpack.c.h.b16 %v3031
        %v3445 = vunpack.c.l.b16 %v3032
        %v3446 = vunpack.c.h.b16 %v3032
        %v3447 = vunpack.c.l.b16 %v3033
        %v3448 = vunpack.c.h.b16 %v3033
        %v3449 = vunpack.c.l.b16 %v3034
        %v3450 = vunpack.c.h.b16 %v3034
        %v3451 = vunpack.c.l.b16 %v3035
        %v3452 = vunpack.c.h.b16 %v3035
        %v3453 = vunpack.c.l.b16 %v3036
        %v3454 = vunpack.c.h.b16 %v3036
        %v3455 = vunpack.c.l.b16 %v3037
        %v3456 = vunpack.c.h.b16 %v3037
        %v3457 = vunpack.c.l.b16 %v3038
        %v3458 = vunpack.c.h.b16 %v3038
        %v3459 = vunpack.c.l.b16 %v3039
        %v3460 = vunpack.c.h.b16 %v3039
        %v3461 = vunpack.c.l.b16 %v3040
        %v3462 = vunpack.c.h.b16 %v3040
        %v3463 = vunpack.c.l.b16 %v3041
        %v3464 = vunpack.c.h.b16 %v3041
        %v3465 = vunpack.c.l.b16 %v3042
        %v3466 = vunpack.c.h.b16 %v3042
        %v3467 = vunpack.c.l.b16 %v3043
        %v3468 = vunpack.c.h.b16 %v3043
        %v3469 = vunpack.c.l.b16 %v3044
        %v3470 = vunpack.c.h.b16 %v3044
        %v3471 = vpack.c.b16 %v3223, %v3215
        %v3472 = vpack.c.b16 %v3224, %v3216
        %v3473 = vpack.c.b16 %v3225, %v3217
        %v3474 = vpack.c.b16 %v3226, %v3218
        %v3475 = vpack.c.b16 %v3227, %v3219
        %v3476 = vpack.c.b16 %v3228, %v3220
        %v3477 = vpack.c.b16 %v3229, %v3221
        %v3478 = vpack.c.b16 %v3230, %v3222
        %v3479 = vpack.c.b16 %v3239, %v3231
        %v3480 = vpack.c.b16 %v3240, %v3232
        %v3481 = vpack.c.b16 %v3241, %v3233
        %v3482 = vpack.c.b16 %v3242, %v3234
        %v3483 = vpack.c.b16 %v3243, %v3235
        %v3484 = vpack.c.b16 %v3244, %v3236
        %v3485 = vpack.c.b16 %v3245, %v3237
        %v3486 = vpack.c.b16 %v3246, %v3238
        %v3487 = vpack.c.b16 %v3255, %v3247
        %v3488 = vpack.c.b16 %v3256, %v3248
        %v3489 = vpack.c.b16 %v3257, %v3249
        %v3490 = vpack.c.b16 %v3258, %v3250
        %v3491 = vpack.c.b16 %v3259, %v3251
        %v3492 = vpack.c.b16 %v3260, %v3252
        %v3493 = vpack.c.b16 %v3261, %v3253
        %v3494 = vpack.c.b16 %v3262, %v3254
        %v3495 = vpack.c.b16 %v3271, %v3263
        %v3496 = vpack.c.b16 %v3272, %v3264
        %v3497 = vpack.c.b16 %v3273, %v3265
        %v3498 = vpack.c.b16 %v3274, %v3266
        %v3499 = vpack.c.b16 %v3275, %v3267
        %v3500 = vpack.c.b16 %v3276, %v3268
        %v3501 = vpack.c.b16 %v3277, %v3269
        %v3502 = vpack.c.b16 %v3278, %v3270
        %v3503 = vpack.c.b16 %v3287, %v3279
        %v3504 = vpack.c.b16 %v3288, %v3280
        %v3505 = vpack.c.b16 %v3289, %v3281
        %v3506 = vpack.c.b16 %v3290, %v3282
        %v3507 = vpack.c.b16 %v3291, %v3283
        %v3508 = vpack.c.b16 %v3292, %v3284
        %v3509 = vpack.c.b16 %v3293, %v3285
        %v3510 = vpack.c.b16 %v3294, %v3286
        %v3511 = vpack.c.b16 %v3303, %v3295
        %v3512 = vpack.c.b16 %v3304, %v3296
        %v3513 = vpack.c.b16 %v3305, %v3297
        %v3514 = vpack.c.b16 %v3306, %v3298
        %v3515 = vpack.c.b16 %v3307, %v3299
        %v3516 = vpack.c.b16 %v3308, %v3300
        %v3517 = vpack.c.b16 %v3309, %v3301
        %v3518 = vpack.c.b16 %v3310, %v3302
        %v3519 = vpack.c.b16 %v3319, %v3311
        %v3520 = vpack.c.b16 %v3320, %v3312
        %v3521 = vpack.c.b16 %v3321, %v3313
        %v3522 = vpack.c.b16 %v3322, %v3314
        %v3523 = vpack.c.b16 %v3323, %v3315
        %v3524 = vpack.c.b16 %v3324, %v3316
        %v3525 = vpack.c.b16 %v3325, %v3317
        %v3526 = vpack.c.b16 %v3326, %v3318
        %v3527 = vpack.c.b16 %v3335, %v3327
        %v3528 = vpack.c.b16 %v3336, %v3328
        %v3529 = vpack.c.b16 %v3337, %v3329
        %v3530 = vpack.c.b16 %v3338, %v3330
        %v3531 = vpack.c.b16 %v3339, %v3331
        %v3532 = vpack.c.b16 %v3340, %v3332
        %v3533 = vpack.c.b16 %v3341, %v3333
        %v3534 = vpack.c.b16 %v3342, %v3334
        %v3535 = vpack.c.b16 %v3351, %v3343
        %v3536 = vpack.c.b16 %v3352, %v3344
        %v3537 = vpack.c.b16 %v3353, %v3345
        %v3538 = vpack.c.b16 %v3354, %v3346
        %v3539 = vpack.c.b16 %v3355, %v3347
        %v3540 = vpack.c.b16 %v3356, %v3348
        %v3541 = vpack.c.b16 %v3357, %v3349
        %v3542 = vpack.c.b16 %v3358, %v3350
        %v3543 = vpack.c.b16 %v3367, %v3359
        %v3544 = vpack.c.b16 %v3368, %v3360
        %v3545 = vpack.c.b16 %v3369, %v3361
        %v3546 = vpack.c.b16 %v3370, %v3362
        %v3547 = vpack.c.b16 %v3371, %v3363
        %v3548 = vpack.c.b16 %v3372, %v3364
        %v3549 = vpack.c.b16 %v3373, %v3365
        %v3550 = vpack.c.b16 %v3374, %v3366
        %v3551 = vpack.c.b16 %v3383, %v3375
        %v3552 = vpack.c.b16 %v3384, %v3376
        %v3553 = vpack.c.b16 %v3385, %v3377
        %v3554 = vpack.c.b16 %v3386, %v3378
        %v3555 = vpack.c.b16 %v3387, %v3379
        %v3556 = vpack.c.b16 %v3388, %v3380
        %v3557 = vpack.c.b16 %v3389, %v3381
        %v3558 = vpack.c.b16 %v3390, %v3382
        %v3559 = vpack.c.b16 %v3399, %v3391
        %v3560 = vpack.c.b16 %v3400, %v3392
        %v3561 = vpack.c.b16 %v3401, %v3393
        %v3562 = vpack.c.b16 %v3402, %v3394
        %v3563 = vpack.c.b16 %v3403, %v3395
        %v3564 = vpack.c.b16 %v3404, %v3396
        %v3565 = vpack.c.b16 %v3405, %v3397
        %v3566 = vpack.c.b16 %v3406, %v3398
        %v3567 = vpack.c.b16 %v3415, %v3407
        %v3568 = vpack.c.b16 %v3416, %v3408
        %v3569 = vpack.c.b16 %v3417, %v3409
        %v3570 = vpack.c.b16 %v3418, %v3410
        %v3571 = vpack.c.b16 %v3419, %v3411
        %v3572 = vpack.c.b16 %v3420, %v3412
        %v3573 = vpack.c.b16 %v3421, %v3413
        %v3574 = vpack.c.b16 %v3422, %v3414
        %v3575 = vpack.c.b16 %v3431, %v3423
        %v3576 = vpack.c.b16 %v3432, %v3424
        %v3577 = vpack.c.b16 %v3433, %v3425
        %v3578 = vpack.c.b16 %v3434, %v3426
        %v3579 = vpack.c.b16 %v3435, %v3427
        %v3580 = vpack.c.b16 %v3436, %v3428
        %v3581 = vpack.c.b16 %v3437, %v3429
        %v3582 = vpack.c.b16 %v3438, %v3430
        %v3583 = vpack.c.b16 %v3447, %v3439
        %v3584 = vpack.c.b16 %v3448, %v3440
        %v3585 = vpack.c.b16 %v3449, %v3441
        %v3586 = vpack.c.b16 %v3450, %v3442
        %v3587 = vpack.c.b16 %v3451, %v3443
        %v3588 = vpack.c.b16 %v3452, %v3444
        %v3589 = vpack.c.b16 %v3453, %v3445
        %v3590 = vpack.c.b16 %v3454, %v3446
        %v3591 = vpack.c.b16 %v3463, %v3455
        %v3592 = vpack.c.b16 %v3464, %v3456
        %v3593 = vpack.c.b16 %v3465, %v3457
        %v3594 = vpack.c.b16 %v3466, %v3458
        %v3595 = vpack.c.b16 %v3467, %v3459
        %v3596 = vpack.c.b16 %v3468, %v3460
        %v3597 = vpack.c.b16 %v3469, %v3461
        %v3598 = vpack.c.b16 %v3470, %v3462
        %3727 = vmatprep.subr.bf16.mxu0 %v3472
        %3728 = vmatpush1.bf16.msra.mxu0 %v3471
        %3729 = vmatprep.subr.bf16.mxu0 %v3480
        %3730 = vmatpush1.bf16.msra.mxu0 %v3479
        %3731 = vmatprep.subr.bf16.mxu0 %v3488
        %3732 = vmatpush1.bf16.msra.mxu0 %v3487
        %3733 = vmatprep.subr.bf16.mxu0 %v3496
        %3734 = vmatpush1.bf16.msra.mxu0 %v3495
        %3735 = vmatprep.subr.bf16.mxu0 %v3504
        %3736 = vmatpush1.bf16.msra.mxu0 %v3503
        %3737 = vmatprep.subr.bf16.mxu0 %v3512
        %3738 = vmatpush1.bf16.msra.mxu0 %v3511
        %3739 = vmatprep.subr.bf16.mxu0 %v3520
        %3740 = vmatpush1.bf16.msra.mxu0 %v3519
        %3741 = vmatprep.subr.bf16.mxu0 %v3528
        %3742 = vmatpush1.bf16.msra.mxu0 %v3527
        %3743 = vmatprep.subr.bf16.mxu0 %v3536
        %3744 = vmatpush1.bf16.msra.mxu0 %v3535
        %3745 = vmatprep.subr.bf16.mxu0 %v3544
        %3746 = vmatpush1.bf16.msra.mxu0 %v3543
        %3747 = vmatprep.subr.bf16.mxu0 %v3552
        %3748 = vmatpush1.bf16.msra.mxu0 %v3551
        %3749 = vmatprep.subr.bf16.mxu0 %v3560
        %3750 = vmatpush1.bf16.msra.mxu0 %v3559
        %3751 = vmatprep.subr.bf16.mxu0 %v3568
        %3752 = vmatpush1.bf16.msra.mxu0 %v3567
        %3753 = vmatprep.subr.bf16.mxu0 %v3576
        %3754 = vmatpush1.bf16.msra.mxu0 %v3575
        %3755 = vmatprep.subr.bf16.mxu0 %v3584
        %3756 = vmatpush1.bf16.msra.mxu0 %v3583
        %3757 = vmatprep.subr.bf16.mxu0 %v3592
        %3758 = vmatpush1.bf16.msra.mxu0 %v3591
        %3759 = vmatprep.mubr.bf16.mxu0 %v2910
        %3760 = vmatmul.mubr.bf16.gmra.mrb[0].mxu0 %v2909
        %v3761 = vpop.f32.mrb[0].mxu0
        %v3762 = vadd.f32 %v3050, %v3761
        %v3763 = vpop.f32.mrb[0].mxu0
        %v3764 = vadd.f32 %v3054, %v3763
        %v3765 = vpop.f32.mrb[0].mxu0
        %v3766 = vadd.f32 %v3050, %v3765
        %v3767 = vpop.f32.mrb[0].mxu0
        %v3768 = vadd.f32 %v3054, %v3767
        %3769 = vmatprep.mubr.bf16.mxu0 %v2912
        %3770 = vmatmul.mubr.bf16.gmra.mrb[0].mxu0 %v2911
        %v3771 = vpop.f32.mrb[0].mxu0
        %v3772 = vadd.f32 %v3050, %v3771
        %v3773 = vpop.f32.mrb[0].mxu0
        %v3774 = vadd.f32 %v3054, %v3773
        %v3775 = vpop.f32.mrb[0].mxu0
        %v3776 = vadd.f32 %v3050, %v3775
        %v3777 = vpop.f32.mrb[0].mxu0
        %v3778 = vadd.f32 %v3054, %v3777
        %3779 = vmatprep.mubr.bf16.mxu0 %v2914
        %3780 = vmatmul.mubr.bf16.gmra.mrb[0].mxu0 %v2913
        %v3781 = vpop.f32.mrb[0].mxu0
        %v3782 = vadd.f32 %v3050, %v3781
        %v3783 = vpop.f32.mrb[0].mxu0
        %v3784 = vadd.f32 %v3054, %v3783
        %v3785 = vpop.f32.mrb[0].mxu0
        %v3786 = vadd.f32 %v3050, %v3785
        %v3787 = vpop.f32.mrb[0].mxu0
        %v3788 = vadd.f32 %v3054, %v3787
        %3789 = vmatprep.mubr.bf16.mxu0 %v2916
        %3790 = vmatmul.mubr.bf16.gmra.mrb[0].mxu0 %v2915
        %v3791 = vpop.f32.mrb[0].mxu0
        %v3792 = vadd.f32 %v3050, %v3791
        %v3793 = vpop.f32.mrb[0].mxu0
        %v3794 = vadd.f32 %v3054, %v3793
        %v3795 = vpop.f32.mrb[0].mxu0
        %v3796 = vadd.f32 %v3050, %v3795
        %v3797 = vpop.f32.mrb[0].mxu0
        %v3798 = vadd.f32 %v3054, %v3797
        %3799 = vdwg.mxu0
        %3800 = vmatprep.subr.bf16.mxu0 %v3474
        %3801 = vmatpush1.bf16.msra.mxu0 %v3473
        %3802 = vmatprep.subr.bf16.mxu0 %v3482
        %3803 = vmatpush1.bf16.msra.mxu0 %v3481
        %3804 = vmatprep.subr.bf16.mxu0 %v3490
        %3805 = vmatpush1.bf16.msra.mxu0 %v3489
        %3806 = vmatprep.subr.bf16.mxu0 %v3498
        %3807 = vmatpush1.bf16.msra.mxu0 %v3497
        %3808 = vmatprep.subr.bf16.mxu0 %v3506
        %3809 = vmatpush1.bf16.msra.mxu0 %v3505
        %3810 = vmatprep.subr.bf16.mxu0 %v3514
        %3811 = vmatpush1.bf16.msra.mxu0 %v3513
        %3812 = vmatprep.subr.bf16.mxu0 %v3522
        %3813 = vmatpush1.bf16.msra.mxu0 %v3521
        %3814 = vmatprep.subr.bf16.mxu0 %v3530
        %3815 = vmatpush1.bf16.msra.mxu0 %v3529
        %3816 = vmatprep.subr.bf16.mxu0 %v3538
        %3817 = vmatpush1.bf16.msra.mxu0 %v3537
        %3818 = vmatprep.subr.bf16.mxu0 %v3546
        %3819 = vmatpush1.bf16.msra.mxu0 %v3545
        %3820 = vmatprep.subr.bf16.mxu0 %v3554
        %3821 = vmatpush1.bf16.msra.mxu0 %v3553
        %3822 = vmatprep.subr.bf16.mxu0 %v3562
        %3823 = vmatpush1.bf16.msra.mxu0 %v3561
        %3824 = vmatprep.subr.bf16.mxu0 %v3570
        %3825 = vmatpush1.bf16.msra.mxu0 %v3569
        %3826 = vmatprep.subr.bf16.mxu0 %v3578
        %3827 = vmatpush1.bf16.msra.mxu0 %v3577
        %3828 = vmatprep.subr.bf16.mxu0 %v3586
        %3829 = vmatpush1.bf16.msra.mxu0 %v3585
        %3830 = vmatprep.subr.bf16.mxu0 %v3594
        %3831 = vmatpush1.bf16.msra.mxu0 %v3593
        %3832 = vmatprep.mubr.bf16.mxu0 %v2910
        %3833 = vmatmul.mubr.bf16.gmra.mrb[0].mxu0 %v2909
        %v3834 = vpop.f32.mrb[0].mxu0
        %v3835 = vadd.f32 %v3058, %v3834
        %v3836 = vpop.f32.mrb[0].mxu0
        %v3837 = vadd.f32 %v3062, %v3836
        %v3838 = vpop.f32.mrb[0].mxu0
        %v3839 = vadd.f32 %v3058, %v3838
        %v3840 = vpop.f32.mrb[0].mxu0
        %v3841 = vadd.f32 %v3062, %v3840
        %3842 = vmatprep.mubr.bf16.mxu0 %v2912
        %3843 = vmatmul.mubr.bf16.gmra.mrb[0].mxu0 %v2911
        %v3844 = vpop.f32.mrb[0].mxu0
        %v3845 = vadd.f32 %v3058, %v3844
        %v3846 = vpop.f32.mrb[0].mxu0
        %v3847 = vadd.f32 %v3062, %v3846
        %v3848 = vpop.f32.mrb[0].mxu0
        %v3849 = vadd.f32 %v3058, %v3848
        %v3850 = vpop.f32.mrb[0].mxu0
        %v3851 = vadd.f32 %v3062, %v3850
        %3852 = vmatprep.mubr.bf16.mxu0 %v2914
        %3853 = vmatmul.mubr.bf16.gmra.mrb[0].mxu0 %v2913
        %v3854 = vpop.f32.mrb[0].mxu0
        %v3855 = vadd.f32 %v3058, %v3854
        %v3856 = vpop.f32.mrb[0].mxu0
        %v3857 = vadd.f32 %v3062, %v3856
        %v3858 = vpop.f32.mrb[0].mxu0
        %v3859 = vadd.f32 %v3058, %v3858
        %v3860 = vpop.f32.mrb[0].mxu0
        %v3861 = vadd.f32 %v3062, %v3860
        %3862 = vmatprep.mubr.bf16.mxu0 %v2916
        %3863 = vmatmul.mubr.bf16.gmra.mrb[0].mxu0 %v2915
        %v3864 = vpop.f32.mrb[0].mxu0
        %v3865 = vadd.f32 %v3058, %v3864
        %v3866 = vpop.f32.mrb[0].mxu0
        %v3867 = vadd.f32 %v3062, %v3866
        %v3868 = vpop.f32.mrb[0].mxu0
        %v3869 = vadd.f32 %v3058, %v3868
        %v3870 = vpop.f32.mrb[0].mxu0
        %v3871 = vadd.f32 %v3062, %v3870
        %3872 = vdwg.mxu0
        %3873 = vmatprep.subr.bf16.mxu0 %v3476
        %3874 = vmatpush1.bf16.msra.mxu0 %v3475
        %3875 = vmatprep.subr.bf16.mxu0 %v3484
        %3876 = vmatpush1.bf16.msra.mxu0 %v3483
        %3877 = vmatprep.subr.bf16.mxu0 %v3492
        %3878 = vmatpush1.bf16.msra.mxu0 %v3491
        %3879 = vmatprep.subr.bf16.mxu0 %v3500
        %3880 = vmatpush1.bf16.msra.mxu0 %v3499
        %3881 = vmatprep.subr.bf16.mxu0 %v3508
        %3882 = vmatpush1.bf16.msra.mxu0 %v3507
        %3883 = vmatprep.subr.bf16.mxu0 %v3516
        %3884 = vmatpush1.bf16.msra.mxu0 %v3515
        %3885 = vmatprep.subr.bf16.mxu0 %v3524
        %3886 = vmatpush1.bf16.msra.mxu0 %v3523
        %3887 = vmatprep.subr.bf16.mxu0 %v3532
        %3888 = vmatpush1.bf16.msra.mxu0 %v3531
        %3889 = vmatprep.subr.bf16.mxu0 %v3540
        %3890 = vmatpush1.bf16.msra.mxu0 %v3539
        %3891 = vmatprep.subr.bf16.mxu0 %v3548
        %3892 = vmatpush1.bf16.msra.mxu0 %v3547
        %3893 = vmatprep.subr.bf16.mxu0 %v3556
        %3894 = vmatpush1.bf16.msra.mxu0 %v3555
        %3895 = vmatprep.subr.bf16.mxu0 %v3564
        %3896 = vmatpush1.bf16.msra.mxu0 %v3563
        %3897 = vmatprep.subr.bf16.mxu0 %v3572
        %3898 = vmatpush1.bf16.msra.mxu0 %v3571
        %3899 = vmatprep.subr.bf16.mxu0 %v3580
        %3900 = vmatpush1.bf16.msra.mxu0 %v3579
        %3901 = vmatprep.subr.bf16.mxu0 %v3588
        %3902 = vmatpush1.bf16.msra.mxu0 %v3587
        %3903 = vmatprep.subr.bf16.mxu0 %v3596
        %3904 = vmatpush1.bf16.msra.mxu0 %v3595
        %3905 = vmatprep.mubr.bf16.mxu0 %v2910
        %3906 = vmatmul.mubr.bf16.gmra.mrb[0].mxu0 %v2909
        %v3907 = vpop.f32.mrb[0].mxu0
        %v3908 = vadd.f32 %v3066, %v3907
        %v3909 = vpop.f32.mrb[0].mxu0
        %v3910 = vadd.f32 %v3070, %v3909
        %v3911 = vpop.f32.mrb[0].mxu0
        %v3912 = vadd.f32 %v3066, %v3911
        %v3913 = vpop.f32.mrb[0].mxu0
        %v3914 = vadd.f32 %v3070, %v3913
        %3915 = vmatprep.mubr.bf16.mxu0 %v2912
        %3916 = vmatmul.mubr.bf16.gmra.mrb[0].mxu0 %v2911
        %v3917 = vpop.f32.mrb[0].mxu0
        %v3918 = vadd.f32 %v3066, %v3917
        %v3919 = vpop.f32.mrb[0].mxu0
        %v3920 = vadd.f32 %v3070, %v3919
        %v3921 = vpop.f32.mrb[0].mxu0
        %v3922 = vadd.f32 %v3066, %v3921
        %v3923 = vpop.f32.mrb[0].mxu0
        %v3924 = vadd.f32 %v3070, %v3923
        %3925 = vmatprep.mubr.bf16.mxu0 %v2914
        %3926 = vmatmul.mubr.bf16.gmra.mrb[0].mxu0 %v2913
        %v3927 = vpop.f32.mrb[0].mxu0
        %v3928 = vadd.f32 %v3066, %v3927
        %v3929 = vpop.f32.mrb[0].mxu0
        %v3930 = vadd.f32 %v3070, %v3929
        %v3931 = vpop.f32.mrb[0].mxu0
        %v3932 = vadd.f32 %v3066, %v3931
        %v3933 = vpop.f32.mrb[0].mxu0
        %v3934 = vadd.f32 %v3070, %v3933
        %3935 = vmatprep.mubr.bf16.mxu0 %v2916
        %3936 = vmatmul.mubr.bf16.gmra.mrb[0].mxu0 %v2915
        %v3937 = vpop.f32.mrb[0].mxu0
        %v3938 = vadd.f32 %v3066, %v3937
        %v3939 = vpop.f32.mrb[0].mxu0
        %v3940 = vadd.f32 %v3070, %v3939
        %v3941 = vpop.f32.mrb[0].mxu0
        %v3942 = vadd.f32 %v3066, %v3941
        %v3943 = vpop.f32.mrb[0].mxu0
        %v3944 = vadd.f32 %v3070, %v3943
        %3945 = vdwg.mxu0
        %3946 = vmatprep.subr.bf16.mxu0 %v3478
        %3947 = vmatpush1.bf16.msra.mxu0 %v3477
        %3948 = vmatprep.subr.bf16.mxu0 %v3486
        %3949 = vmatpush1.bf16.msra.mxu0 %v3485
        %3950 = vmatprep.subr.bf16.mxu0 %v3494
        %3951 = vmatpush1.bf16.msra.mxu0 %v3493
        %3952 = vmatprep.subr.bf16.mxu0 %v3502
        %3953 = vmatpush1.bf16.msra.mxu0 %v3501
        %3954 = vmatprep.subr.bf16.mxu0 %v3510
        %3955 = vmatpush1.bf16.msra.mxu0 %v3509
        %3956 = vmatprep.subr.bf16.mxu0 %v3518
        %3957 = vmatpush1.bf16.msra.mxu0 %v3517
        %3958 = vmatprep.subr.bf16.mxu0 %v3526
        %3959 = vmatpush1.bf16.msra.mxu0 %v3525
        %3960 = vmatprep.subr.bf16.mxu0 %v3534
        %3961 = vmatpush1.bf16.msra.mxu0 %v3533
        %3962 = vmatprep.subr.bf16.mxu0 %v3542
        %3963 = vmatpush1.bf16.msra.mxu0 %v3541
        %3964 = vmatprep.subr.bf16.mxu0 %v3550
        %3965 = vmatpush1.bf16.msra.mxu0 %v3549
        %3966 = vmatprep.subr.bf16.mxu0 %v3558
        %3967 = vmatpush1.bf16.msra.mxu0 %v3557
        %3968 = vmatprep.subr.bf16.mxu0 %v3566
        %3969 = vmatpush1.bf16.msra.mxu0 %v3565
        %3970 = vmatprep.subr.bf16.mxu0 %v3574
        %3971 = vmatpush1.bf16.msra.mxu0 %v3573
        %3972 = vmatprep.subr.bf16.mxu0 %v3582
        %3973 = vmatpush1.bf16.msra.mxu0 %v3581
        %3974 = vmatprep.subr.bf16.mxu0 %v3590
        %3975 = vmatpush1.bf16.msra.mxu0 %v3589
        %3976 = vmatprep.subr.bf16.mxu0 %v3598
        %3977 = vmatpush1.bf16.msra.mxu0 %v3597
        %3978 = vmatprep.mubr.bf16.mxu0 %v2910
        %3979 = vmatmul.mubr.bf16.gmra.mrb[0].mxu0 %v2909
        %v3980 = vpop.f32.mrb[0].mxu0
        %v3981 = vadd.f32 %v3074, %v3980
        %v3982 = vpop.f32.mrb[0].mxu0
        %v3983 = vadd.f32 %v3078, %v3982
        %v3984 = vpop.f32.mrb[0].mxu0
        %v3985 = vadd.f32 %v3074, %v3984
        %v3986 = vpop.f32.mrb[0].mxu0
        %v3987 = vadd.f32 %v3078, %v3986
        %3988 = vmatprep.mubr.bf16.mxu0 %v2912
        %3989 = vmatmul.mubr.bf16.gmra.mrb[0].mxu0 %v2911
        %v3990 = vpop.f32.mrb[0].mxu0
        %v3991 = vadd.f32 %v3074, %v3990
        %v3992 = vpop.f32.mrb[0].mxu0
        %v3993 = vadd.f32 %v3078, %v3992
        %v3994 = vpop.f32.mrb[0].mxu0
        %v3995 = vadd.f32 %v3074, %v3994
        %v3996 = vpop.f32.mrb[0].mxu0
        %v3997 = vadd.f32 %v3078, %v3996
        %3998 = vmatprep.mubr.bf16.mxu0 %v2914
        %3999 = vmatmul.mubr.bf16.gmra.mrb[0].mxu0 %v2913
        %v4000 = vpop.f32.mrb[0].mxu0
        %v4001 = vadd.f32 %v3074, %v4000
        %v4002 = vpop.f32.mrb[0].mxu0
        %v4003 = vadd.f32 %v3078, %v4002
        %v4004 = vpop.f32.mrb[0].mxu0
        %v4005 = vadd.f32 %v3074, %v4004
        %v4006 = vpop.f32.mrb[0].mxu0
        %v4007 = vadd.f32 %v3078, %v4006
        %4008 = vmatprep.mubr.bf16.mxu0 %v2916
        %4009 = vmatmul.mubr.bf16.gmra.mrb[0].mxu0 %v2915
        %v4010 = vpop.f32.mrb[0].mxu0
        %v4011 = vadd.f32 %v3074, %v4010
        %v4012 = vpop.f32.mrb[0].mxu0
        %v4013 = vadd.f32 %v3078, %v4012
        %v4014 = vpop.f32.mrb[0].mxu0
        %v4015 = vadd.f32 %v3074, %v4014
        %v4016 = vpop.f32.mrb[0].mxu0
        %v4017 = vadd.f32 %v3078, %v4016
        %4018 = vdwg.mxu0
        %v4019 = vmul.f32 %v3762, 0.5
        %v4020 = vmul.f32 %v3764, 0.5
        %v4021 = vmul.f32 %v3835, 0.5
        %v4022 = vmul.f32 %v3837, 0.5
        %v4023 = vmul.f32 %v3908, 0.5
        %v4024 = vmul.f32 %v3910, 0.5
        %v4025 = vmul.f32 %v3981, 0.5
        %v4026 = vmul.f32 %v3983, 0.5
        %v4027 = vmul.f32 %v3766, 0.5
        %v4028 = vmul.f32 %v3768, 0.5
        %v4029 = vmul.f32 %v3839, 0.5
        %v4030 = vmul.f32 %v3841, 0.5
        %v4031 = vmul.f32 %v3912, 0.5
        %v4032 = vmul.f32 %v3914, 0.5
        %v4033 = vmul.f32 %v3985, 0.5
        %v4034 = vmul.f32 %v3987, 0.5
        %v4035 = vmul.f32 %v3772, 0.5
        %v4036 = vmul.f32 %v3774, 0.5
        %v4037 = vmul.f32 %v3845, 0.5
        %v4038 = vmul.f32 %v3847, 0.5
        %v4039 = vmul.f32 %v3918, 0.5
        %v4040 = vmul.f32 %v3920, 0.5
        %v4041 = vmul.f32 %v3991, 0.5
        %v4042 = vmul.f32 %v3993, 0.5
        %v4043 = vmul.f32 %v3776, 0.5
        %v4044 = vmul.f32 %v3778, 0.5
        %v4045 = vmul.f32 %v3849, 0.5
        %v4046 = vmul.f32 %v3851, 0.5
        %v4047 = vmul.f32 %v3922, 0.5
        %v4048 = vmul.f32 %v3924, 0.5
        %v4049 = vmul.f32 %v3995, 0.5
        %v4050 = vmul.f32 %v3997, 0.5
        %v4051 = vmul.f32 %v3782, 0.5
        %v4052 = vmul.f32 %v3784, 0.5
        %v4053 = vmul.f32 %v3855, 0.5
        %v4054 = vmul.f32 %v3857, 0.5
        %v4055 = vmul.f32 %v3928, 0.5
        %v4056 = vmul.f32 %v3930, 0.5
        %v4057 = vmul.f32 %v4001, 0.5
        %v4058 = vmul.f32 %v4003, 0.5
        %v4059 = vmul.f32 %v3786, 0.5
        %v4060 = vmul.f32 %v3788, 0.5
        %v4061 = vmul.f32 %v3859, 0.5
        %v4062 = vmul.f32 %v3861, 0.5
        %v4063 = vmul.f32 %v3932, 0.5
        %v4064 = vmul.f32 %v3934, 0.5
        %v4065 = vmul.f32 %v4005, 0.5
        %v4066 = vmul.f32 %v4007, 0.5
        %v4067 = vmul.f32 %v3792, 0.5
        %v4068 = vmul.f32 %v3794, 0.5
        %v4069 = vmul.f32 %v3865, 0.5
        %v4070 = vmul.f32 %v3867, 0.5
        %v4071 = vmul.f32 %v3938, 0.5
        %v4072 = vmul.f32 %v3940, 0.5
        %v4073 = vmul.f32 %v4011, 0.5
        %v4074 = vmul.f32 %v4013, 0.5
        %v4075 = vmul.f32 %v3796, 0.5
        %v4076 = vmul.f32 %v3798, 0.5
        %v4077 = vmul.f32 %v3869, 0.5
        %v4078 = vmul.f32 %v3871, 0.5
        %v4079 = vmul.f32 %v3942, 0.5
        %v4080 = vmul.f32 %v3944, 0.5
        %v4081 = vmul.f32 %v4015, 0.5
        %v4082 = vmul.f32 %v4017, 0.5
        %v4083 = vmul.f32 %v3762, %v3762
        %v4084 = vmul.f32 %v3764, %v3764
        %v4085 = vmul.f32 %v3835, %v3835
        %v4086 = vmul.f32 %v3837, %v3837
        %v4087 = vmul.f32 %v3908, %v3908
        %v4088 = vmul.f32 %v3910, %v3910
        %v4089 = vmul.f32 %v3981, %v3981
        %v4090 = vmul.f32 %v3983, %v3983
        %v4091 = vmul.f32 %v3766, %v3766
        %v4092 = vmul.f32 %v3768, %v3768
        %v4093 = vmul.f32 %v3839, %v3839
        %v4094 = vmul.f32 %v3841, %v3841
        %v4095 = vmul.f32 %v3912, %v3912
        %v4096 = vmul.f32 %v3914, %v3914
        %v4097 = vmul.f32 %v3985, %v3985
        %v4098 = vmul.f32 %v3987, %v3987
        %v4099 = vmul.f32 %v3772, %v3772
        %v4100 = vmul.f32 %v3774, %v3774
        %v4101 = vmul.f32 %v3845, %v3845
        %v4102 = vmul.f32 %v3847, %v3847
        %v4103 = vmul.f32 %v3918, %v3918
        %v4104 = vmul.f32 %v3920, %v3920
        %v4105 = vmul.f32 %v3991, %v3991
        %v4106 = vmul.f32 %v3993, %v3993
        %v4107 = vmul.f32 %v3776, %v3776
        %v4108 = vmul.f32 %v3778, %v3778
        %v4109 = vmul.f32 %v3849, %v3849
        %v4110 = vmul.f32 %v3851, %v3851
        %v4111 = vmul.f32 %v3922, %v3922
        %v4112 = vmul.f32 %v3924, %v3924
        %v4113 = vmul.f32 %v3995, %v3995
        %v4114 = vmul.f32 %v3997, %v3997
        %v4115 = vmul.f32 %v3782, %v3782
        %v4116 = vmul.f32 %v3784, %v3784
        %v4117 = vmul.f32 %v3855, %v3855
        %v4118 = vmul.f32 %v3857, %v3857
        %v4119 = vmul.f32 %v3928, %v3928
        %v4120 = vmul.f32 %v3930, %v3930
        %v4121 = vmul.f32 %v4001, %v4001
        %v4122 = vmul.f32 %v4003, %v4003
        %v4123 = vmul.f32 %v3786, %v3786
        %v4124 = vmul.f32 %v3788, %v3788
        %v4125 = vmul.f32 %v3859, %v3859
        %v4126 = vmul.f32 %v3861, %v3861
        %v4127 = vmul.f32 %v3932, %v3932
        %v4128 = vmul.f32 %v3934, %v3934
        %v4129 = vmul.f32 %v4005, %v4005
        %v4130 = vmul.f32 %v4007, %v4007
        %v4131 = vmul.f32 %v3792, %v3792
        %v4132 = vmul.f32 %v3794, %v3794
        %v4133 = vmul.f32 %v3865, %v3865
        %v4134 = vmul.f32 %v3867, %v3867
        %v4135 = vmul.f32 %v3938, %v3938
        %v4136 = vmul.f32 %v3940, %v3940
        %v4137 = vmul.f32 %v4011, %v4011
        %v4138 = vmul.f32 %v4013, %v4013
        %v4139 = vmul.f32 %v3796, %v3796
        %v4140 = vmul.f32 %v3798, %v3798
        %v4141 = vmul.f32 %v3869, %v3869
        %v4142 = vmul.f32 %v3871, %v3871
        %v4143 = vmul.f32 %v3942, %v3942
        %v4144 = vmul.f32 %v3944, %v3944
        %v4145 = vmul.f32 %v4015, %v4015
        %v4146 = vmul.f32 %v4017, %v4017
        %v4147 = vmul.f32 %v4083, %v3762
        %v4148 = vmul.f32 %v4084, %v3764
        %v4149 = vmul.f32 %v4085, %v3835
        %v4150 = vmul.f32 %v4086, %v3837
        %v4151 = vmul.f32 %v4087, %v3908
        %v4152 = vmul.f32 %v4088, %v3910
        %v4153 = vmul.f32 %v4089, %v3981
        %v4154 = vmul.f32 %v4090, %v3983
        %v4155 = vmul.f32 %v4091, %v3766
        %v4156 = vmul.f32 %v4092, %v3768
        %v4157 = vmul.f32 %v4093, %v3839
        %v4158 = vmul.f32 %v4094, %v3841
        %v4159 = vmul.f32 %v4095, %v3912
        %v4160 = vmul.f32 %v4096, %v3914
        %v4161 = vmul.f32 %v4097, %v3985
        %v4162 = vmul.f32 %v4098, %v3987
        %v4163 = vmul.f32 %v4099, %v3772
        %v4164 = vmul.f32 %v4100, %v3774
        %v4165 = vmul.f32 %v4101, %v3845
        %v4166 = vmul.f32 %v4102, %v3847
        %v4167 = vmul.f32 %v4103, %v3918
        %v4168 = vmul.f32 %v4104, %v3920
        %v4169 = vmul.f32 %v4105, %v3991
        %v4170 = vmul.f32 %v4106, %v3993
        %v4171 = vmul.f32 %v4107, %v3776
        %v4172 = vmul.f32 %v4108, %v3778
        %v4173 = vmul.f32 %v4109, %v3849
        %v4174 = vmul.f32 %v4110, %v3851
        %v4175 = vmul.f32 %v4111, %v3922
        %v4176 = vmul.f32 %v4112, %v3924
        %v4177 = vmul.f32 %v4113, %v3995
        %v4178 = vmul.f32 %v4114, %v3997
        %v4179 = vmul.f32 %v4115, %v3782
        %v4180 = vmul.f32 %v4116, %v3784
        %v4181 = vmul.f32 %v4117, %v3855
        %v4182 = vmul.f32 %v4118, %v3857
        %v4183 = vmul.f32 %v4119, %v3928
        %v4184 = vmul.f32 %v4120, %v3930
        %v4185 = vmul.f32 %v4121, %v4001
        %v4186 = vmul.f32 %v4122, %v4003
        %v4187 = vmul.f32 %v4123, %v3786
        %v4188 = vmul.f32 %v4124, %v3788
        %v4189 = vmul.f32 %v4125, %v3859
        %v4190 = vmul.f32 %v4126, %v3861
        %v4191 = vmul.f32 %v4127, %v3932
        %v4192 = vmul.f32 %v4128, %v3934
        %v4193 = vmul.f32 %v4129, %v4005
        %v4194 = vmul.f32 %v4130, %v4007
        %v4195 = vmul.f32 %v4131, %v3792
        %v4196 = vmul.f32 %v4132, %v3794
        %v4197 = vmul.f32 %v4133, %v3865
        %v4198 = vmul.f32 %v4134, %v3867
        %v4199 = vmul.f32 %v4135, %v3938
        %v4200 = vmul.f32 %v4136, %v3940
        %v4201 = vmul.f32 %v4137, %v4011
        %v4202 = vmul.f32 %v4138, %v4013
        %v4203 = vmul.f32 %v4139, %v3796
        %v4204 = vmul.f32 %v4140, %v3798
        %v4205 = vmul.f32 %v4141, %v3869
        %v4206 = vmul.f32 %v4142, %v3871
        %v4207 = vmul.f32 %v4143, %v3942
        %v4208 = vmul.f32 %v4144, %v3944
        %v4209 = vmul.f32 %v4145, %v4015
        %v4210 = vmul.f32 %v4146, %v4017
        %v4211 = vmul.f32 %v4147, 0.044715
        %v4212 = vmul.f32 %v4148, 0.044715
        %v4213 = vmul.f32 %v4149, 0.044715
        %v4214 = vmul.f32 %v4150, 0.044715
        %v4215 = vmul.f32 %v4151, 0.044715
        %v4216 = vmul.f32 %v4152, 0.044715
        %v4217 = vmul.f32 %v4153, 0.044715
        %v4218 = vmul.f32 %v4154, 0.044715
        %v4219 = vmul.f32 %v4155, 0.044715
        %v4220 = vmul.f32 %v4156, 0.044715
        %v4221 = vmul.f32 %v4157, 0.044715
        %v4222 = vmul.f32 %v4158, 0.044715
        %v4223 = vmul.f32 %v4159, 0.044715
        %v4224 = vmul.f32 %v4160, 0.044715
        %v4225 = vmul.f32 %v4161, 0.044715
        %v4226 = vmul.f32 %v4162, 0.044715
        %v4227 = vmul.f32 %v4163, 0.044715
        %v4228 = vmul.f32 %v4164, 0.044715
        %v4229 = vmul.f32 %v4165, 0.044715
        %v4230 = vmul.f32 %v4166, 0.044715
        %v4231 = vmul.f32 %v4167, 0.044715
        %v4232 = vmul.f32 %v4168, 0.044715
        %v4233 = vmul.f32 %v4169, 0.044715
        %v4234 = vmul.f32 %v4170, 0.044715
        %v4235 = vmul.f32 %v4171, 0.044715
        %v4236 = vmul.f32 %v4172, 0.044715
        %v4237 = vmul.f32 %v4173, 0.044715
        %v4238 = vmul.f32 %v4174, 0.044715
        %v4239 = vmul.f32 %v4175, 0.044715
        %v4240 = vmul.f32 %v4176, 0.044715
        %v4241 = vmul.f32 %v4177, 0.044715
        %v4242 = vmul.f32 %v4178, 0.044715
        %v4243 = vmul.f32 %v4179, 0.044715
        %v4244 = vmul.f32 %v4180, 0.044715
        %v4245 = vmul.f32 %v4181, 0.044715
        %v4246 = vmul.f32 %v4182, 0.044715
        %v4247 = vmul.f32 %v4183, 0.044715
        %v4248 = vmul.f32 %v4184, 0.044715
        %v4249 = vmul.f32 %v4185, 0.044715
        %v4250 = vmul.f32 %v4186, 0.044715
        %v4251 = vmul.f32 %v4187, 0.044715
        %v4252 = vmul.f32 %v4188, 0.044715
        %v4253 = vmul.f32 %v4189, 0.044715
        %v4254 = vmul.f32 %v4190, 0.044715
        %v4255 = vmul.f32 %v4191, 0.044715
        %v4256 = vmul.f32 %v4192, 0.044715
        %v4257 = vmul.f32 %v4193, 0.044715
        %v4258 = vmul.f32 %v4194, 0.044715
        %v4259 = vmul.f32 %v4195, 0.044715
        %v4260 = vmul.f32 %v4196, 0.044715
        %v4261 = vmul.f32 %v4197, 0.044715
        %v4262 = vmul.f32 %v4198, 0.044715
        %v4263 = vmul.f32 %v4199, 0.044715
        %v4264 = vmul.f32 %v4200, 0.044715
        %v4265 = vmul.f32 %v4201, 0.044715
        %v4266 = vmul.f32 %v4202, 0.044715
        %v4267 = vmul.f32 %v4203, 0.044715
        %v4268 = vmul.f32 %v4204, 0.044715
        %v4269 = vmul.f32 %v4205, 0.044715
        %v4270 = vmul.f32 %v4206, 0.044715
        %v4271 = vmul.f32 %v4207, 0.044715
        %v4272 = vmul.f32 %v4208, 0.044715
        %v4273 = vmul.f32 %v4209, 0.044715
        %v4274 = vmul.f32 %v4210, 0.044715
        %v4275 = vadd.f32 %v3762, %v4211
        %v4276 = vadd.f32 %v3764, %v4212
        %v4277 = vadd.f32 %v3835, %v4213
        %v4278 = vadd.f32 %v3837, %v4214
        %v4279 = vadd.f32 %v3908, %v4215
        %v4280 = vadd.f32 %v3910, %v4216
        %v4281 = vadd.f32 %v3981, %v4217
        %v4282 = vadd.f32 %v3983, %v4218
        %v4283 = vadd.f32 %v3766, %v4219
        %v4284 = vadd.f32 %v3768, %v4220
        %v4285 = vadd.f32 %v3839, %v4221
        %v4286 = vadd.f32 %v3841, %v4222
        %v4287 = vadd.f32 %v3912, %v4223
        %v4288 = vadd.f32 %v3914, %v4224
        %v4289 = vadd.f32 %v3985, %v4225
        %v4290 = vadd.f32 %v3987, %v4226
        %v4291 = vadd.f32 %v3772, %v4227
        %v4292 = vadd.f32 %v3774, %v4228
        %v4293 = vadd.f32 %v3845, %v4229
        %v4294 = vadd.f32 %v3847, %v4230
        %v4295 = vadd.f32 %v3918, %v4231
        %v4296 = vadd.f32 %v3920, %v4232
        %v4297 = vadd.f32 %v3991, %v4233
        %v4298 = vadd.f32 %v3993, %v4234
        %v4299 = vadd.f32 %v3776, %v4235
        %v4300 = vadd.f32 %v3778, %v4236
        %v4301 = vadd.f32 %v3849, %v4237
        %v4302 = vadd.f32 %v3851, %v4238
        %v4303 = vadd.f32 %v3922, %v4239
        %v4304 = vadd.f32 %v3924, %v4240
        %v4305 = vadd.f32 %v3995, %v4241
        %v4306 = vadd.f32 %v3997, %v4242
        %v4307 = vadd.f32 %v3782, %v4243
        %v4308 = vadd.f32 %v3784, %v4244
        %v4309 = vadd.f32 %v3855, %v4245
        %v4310 = vadd.f32 %v3857, %v4246
        %v4311 = vadd.f32 %v3928, %v4247
        %v4312 = vadd.f32 %v3930, %v4248
        %v4313 = vadd.f32 %v4001, %v4249
        %v4314 = vadd.f32 %v4003, %v4250
        %v4315 = vadd.f32 %v3786, %v4251
        %v4316 = vadd.f32 %v3788, %v4252
        %v4317 = vadd.f32 %v3859, %v4253
        %v4318 = vadd.f32 %v3861, %v4254
        %v4319 = vadd.f32 %v3932, %v4255
        %v4320 = vadd.f32 %v3934, %v4256
        %v4321 = vadd.f32 %v4005, %v4257
        %v4322 = vadd.f32 %v4007, %v4258
        %v4323 = vadd.f32 %v3792, %v4259
        %v4324 = vadd.f32 %v3794, %v4260
        %v4325 = vadd.f32 %v3865, %v4261
        %v4326 = vadd.f32 %v3867, %v4262
        %v4327 = vadd.f32 %v3938, %v4263
        %v4328 = vadd.f32 %v3940, %v4264
        %v4329 = vadd.f32 %v4011, %v4265
        %v4330 = vadd.f32 %v4013, %v4266
        %v4331 = vadd.f32 %v3796, %v4267
        %v4332 = vadd.f32 %v3798, %v4268
        %v4333 = vadd.f32 %v3869, %v4269
        %v4334 = vadd.f32 %v3871, %v4270
        %v4335 = vadd.f32 %v3942, %v4271
        %v4336 = vadd.f32 %v3944, %v4272
        %v4337 = vadd.f32 %v4015, %v4273
        %v4338 = vadd.f32 %v4017, %v4274
        %v4339 = vmul.f32 %v4275, 0.7978846
        %v4340 = vmul.f32 %v4276, 0.7978846
        %v4341 = vmul.f32 %v4277, 0.7978846
        %v4342 = vmul.f32 %v4278, 0.7978846
        %v4343 = vmul.f32 %v4279, 0.7978846
        %v4344 = vmul.f32 %v4280, 0.7978846
        %v4345 = vmul.f32 %v4281, 0.7978846
        %v4346 = vmul.f32 %v4282, 0.7978846
        %v4347 = vmul.f32 %v4283, 0.7978846
        %v4348 = vmul.f32 %v4284, 0.7978846
        %v4349 = vmul.f32 %v4285, 0.7978846
        %v4350 = vmul.f32 %v4286, 0.7978846
        %v4351 = vmul.f32 %v4287, 0.7978846
        %v4352 = vmul.f32 %v4288, 0.7978846
        %v4353 = vmul.f32 %v4289, 0.7978846
        %v4354 = vmul.f32 %v4290, 0.7978846
        %v4355 = vmul.f32 %v4291, 0.7978846
        %v4356 = vmul.f32 %v4292, 0.7978846
        %v4357 = vmul.f32 %v4293, 0.7978846
        %v4358 = vmul.f32 %v4294, 0.7978846
        %v4359 = vmul.f32 %v4295, 0.7978846
        %v4360 = vmul.f32 %v4296, 0.7978846
        %v4361 = vmul.f32 %v4297, 0.7978846
        %v4362 = vmul.f32 %v4298, 0.7978846
        %v4363 = vmul.f32 %v4299, 0.7978846
        %v4364 = vmul.f32 %v4300, 0.7978846
        %v4365 = vmul.f32 %v4301, 0.7978846
        %v4366 = vmul.f32 %v4302, 0.7978846
        %v4367 = vmul.f32 %v4303, 0.7978846
        %v4368 = vmul.f32 %v4304, 0.7978846
        %v4369 = vmul.f32 %v4305, 0.7978846
        %v4370 = vmul.f32 %v4306, 0.7978846
        %v4371 = vmul.f32 %v4307, 0.7978846
        %v4372 = vmul.f32 %v4308, 0.7978846
        %v4373 = vmul.f32 %v4309, 0.7978846
        %v4374 = vmul.f32 %v4310, 0.7978846
        %v4375 = vmul.f32 %v4311, 0.7978846
        %v4376 = vmul.f32 %v4312, 0.7978846
        %v4377 = vmul.f32 %v4313, 0.7978846
        %v4378 = vmul.f32 %v4314, 0.7978846
        %v4379 = vmul.f32 %v4315, 0.7978846
        %v4380 = vmul.f32 %v4316, 0.7978846
        %v4381 = vmul.f32 %v4317, 0.7978846
        %v4382 = vmul.f32 %v4318, 0.7978846
        %v4383 = vmul.f32 %v4319, 0.7978846
        %v4384 = vmul.f32 %v4320, 0.7978846
        %v4385 = vmul.f32 %v4321, 0.7978846
        %v4386 = vmul.f32 %v4322, 0.7978846
        %v4387 = vmul.f32 %v4323, 0.7978846
        %v4388 = vmul.f32 %v4324, 0.7978846
        %v4389 = vmul.f32 %v4325, 0.7978846
        %v4390 = vmul.f32 %v4326, 0.7978846
        %v4391 = vmul.f32 %v4327, 0.7978846
        %v4392 = vmul.f32 %v4328, 0.7978846
        %v4393 = vmul.f32 %v4329, 0.7978846
        %v4394 = vmul.f32 %v4330, 0.7978846
        %v4395 = vmul.f32 %v4331, 0.7978846
        %v4396 = vmul.f32 %v4332, 0.7978846
        %v4397 = vmul.f32 %v4333, 0.7978846
        %v4398 = vmul.f32 %v4334, 0.7978846
        %v4399 = vmul.f32 %v4335, 0.7978846
        %v4400 = vmul.f32 %v4336, 0.7978846
        %v4401 = vmul.f32 %v4337, 0.7978846
        %v4402 = vmul.f32 %v4338, 0.7978846
        %v4403 = vtanh.pop %v4339
        %v4404 = vtanh.pop %v4340
        %v4405 = vtanh.pop %v4341
        %v4406 = vtanh.pop %v4342
        %v4407 = vtanh.pop %v4343
        %v4408 = vtanh.pop %v4344
        %v4409 = vtanh.pop %v4345
        %v4410 = vtanh.pop %v4346
        %v4411 = vtanh.pop %v4347
        %v4412 = vtanh.pop %v4348
        %v4413 = vtanh.pop %v4349
        %v4414 = vtanh.pop %v4350
        %v4415 = vtanh.pop %v4351
        %v4416 = vtanh.pop %v4352
        %v4417 = vtanh.pop %v4353
        %v4418 = vtanh.pop %v4354
        %v4419 = vtanh.pop %v4355
        %v4420 = vtanh.pop %v4356
        %v4421 = vtanh.pop %v4357
        %v4422 = vtanh.pop %v4358
        %v4423 = vtanh.pop %v4359
        %v4424 = vtanh.pop %v4360
        %v4425 = vtanh.pop %v4361
        %v4426 = vtanh.pop %v4362
        %v4427 = vtanh.pop %v4363
        %v4428 = vtanh.pop %v4364
        %v4429 = vtanh.pop %v4365
        %v4430 = vtanh.pop %v4366
        %v4431 = vtanh.pop %v4367
        %v4432 = vtanh.pop %v4368
        %v4433 = vtanh.pop %v4369
        %v4434 = vtanh.pop %v4370
        %v4435 = vtanh.pop %v4371
        %v4436 = vtanh.pop %v4372
        %v4437 = vtanh.pop %v4373
        %v4438 = vtanh.pop %v4374
        %v4439 = vtanh.pop %v4375
        %v4440 = vtanh.pop %v4376
        %v4441 = vtanh.pop %v4377
        %v4442 = vtanh.pop %v4378
        %v4443 = vtanh.pop %v4379
        %v4444 = vtanh.pop %v4380
        %v4445 = vtanh.pop %v4381
        %v4446 = vtanh.pop %v4382
        %v4447 = vtanh.pop %v4383
        %v4448 = vtanh.pop %v4384
        %v4449 = vtanh.pop %v4385
        %v4450 = vtanh.pop %v4386
        %v4451 = vtanh.pop %v4387
        %v4452 = vtanh.pop %v4388
        %v4453 = vtanh.pop %v4389
        %v4454 = vtanh.pop %v4390
        %v4455 = vtanh.pop %v4391
        %v4456 = vtanh.pop %v4392
        %v4457 = vtanh.pop %v4393
        %v4458 = vtanh.pop %v4394
        %v4459 = vtanh.pop %v4395
        %v4460 = vtanh.pop %v4396
        %v4461 = vtanh.pop %v4397
        %v4462 = vtanh.pop %v4398
        %v4463 = vtanh.pop %v4399
        %v4464 = vtanh.pop %v4400
        %v4465 = vtanh.pop %v4401
        %v4466 = vtanh.pop %v4402
        %v4467 = vadd.f32 %v4403, 1.0
        %v4468 = vadd.f32 %v4404, 1.0
        %v4469 = vadd.f32 %v4405, 1.0
        %v4470 = vadd.f32 %v4406, 1.0
        %v4471 = vadd.f32 %v4407, 1.0
        %v4472 = vadd.f32 %v4408, 1.0
        %v4473 = vadd.f32 %v4409, 1.0
        %v4474 = vadd.f32 %v4410, 1.0
        %v4475 = vadd.f32 %v4411, 1.0
        %v4476 = vadd.f32 %v4412, 1.0
        %v4477 = vadd.f32 %v4413, 1.0
        %v4478 = vadd.f32 %v4414, 1.0
        %v4479 = vadd.f32 %v4415, 1.0
        %v4480 = vadd.f32 %v4416, 1.0
        %v4481 = vadd.f32 %v4417, 1.0
        %v4482 = vadd.f32 %v4418, 1.0
        %v4483 = vadd.f32 %v4419, 1.0
        %v4484 = vadd.f32 %v4420, 1.0
        %v4485 = vadd.f32 %v4421, 1.0
        %v4486 = vadd.f32 %v4422, 1.0
        %v4487 = vadd.f32 %v4423, 1.0
        %v4488 = vadd.f32 %v4424, 1.0
        %v4489 = vadd.f32 %v4425, 1.0
        %v4490 = vadd.f32 %v4426, 1.0
        %v4491 = vadd.f32 %v4427, 1.0
        %v4492 = vadd.f32 %v4428, 1.0
        %v4493 = vadd.f32 %v4429, 1.0
        %v4494 = vadd.f32 %v4430, 1.0
        %v4495 = vadd.f32 %v4431, 1.0
        %v4496 = vadd.f32 %v4432, 1.0
        %v4497 = vadd.f32 %v4433, 1.0
        %v4498 = vadd.f32 %v4434, 1.0
        %v4499 = vadd.f32 %v4435, 1.0
        %v4500 = vadd.f32 %v4436, 1.0
        %v4501 = vadd.f32 %v4437, 1.0
        %v4502 = vadd.f32 %v4438, 1.0
        %v4503 = vadd.f32 %v4439, 1.0
        %v4504 = vadd.f32 %v4440, 1.0
        %v4505 = vadd.f32 %v4441, 1.0
        %v4506 = vadd.f32 %v4442, 1.0
        %v4507 = vadd.f32 %v4443, 1.0
        %v4508 = vadd.f32 %v4444, 1.0
        %v4509 = vadd.f32 %v4445, 1.0
        %v4510 = vadd.f32 %v4446, 1.0
        %v4511 = vadd.f32 %v4447, 1.0
        %v4512 = vadd.f32 %v4448, 1.0
        %v4513 = vadd.f32 %v4449, 1.0
        %v4514 = vadd.f32 %v4450, 1.0
        %v4515 = vadd.f32 %v4451, 1.0
        %v4516 = vadd.f32 %v4452, 1.0
        %v4517 = vadd.f32 %v4453, 1.0
        %v4518 = vadd.f32 %v4454, 1.0
        %v4519 = vadd.f32 %v4455, 1.0
        %v4520 = vadd.f32 %v4456, 1.0
        %v4521 = vadd.f32 %v4457, 1.0
        %v4522 = vadd.f32 %v4458, 1.0
        %v4523 = vadd.f32 %v4459, 1.0
        %v4524 = vadd.f32 %v4460, 1.0
        %v4525 = vadd.f32 %v4461, 1.0
        %v4526 = vadd.f32 %v4462, 1.0
        %v4527 = vadd.f32 %v4463, 1.0
        %v4528 = vadd.f32 %v4464, 1.0
        %v4529 = vadd.f32 %v4465, 1.0
        %v4530 = vadd.f32 %v4466, 1.0
        %v4531 = vmul.f32 %v4019, %v4467
        %v4532 = vmul.f32 %v4020, %v4468
        %v4533 = vmul.f32 %v4021, %v4469
        %v4534 = vmul.f32 %v4022, %v4470
        %v4535 = vmul.f32 %v4023, %v4471
        %v4536 = vmul.f32 %v4024, %v4472
        %v4537 = vmul.f32 %v4025, %v4473
        %v4538 = vmul.f32 %v4026, %v4474
        %v4539 = vmul.f32 %v4027, %v4475
        %v4540 = vmul.f32 %v4028, %v4476
        %v4541 = vmul.f32 %v4029, %v4477
        %v4542 = vmul.f32 %v4030, %v4478
        %v4543 = vmul.f32 %v4031, %v4479
        %v4544 = vmul.f32 %v4032, %v4480
        %v4545 = vmul.f32 %v4033, %v4481
        %v4546 = vmul.f32 %v4034, %v4482
        %v4547 = vmul.f32 %v4035, %v4483
        %v4548 = vmul.f32 %v4036, %v4484
        %v4549 = vmul.f32 %v4037, %v4485
        %v4550 = vmul.f32 %v4038, %v4486
        %v4551 = vmul.f32 %v4039, %v4487
        %v4552 = vmul.f32 %v4040, %v4488
        %v4553 = vmul.f32 %v4041, %v4489
        %v4554 = vmul.f32 %v4042, %v4490
        %v4555 = vmul.f32 %v4043, %v4491
        %v4556 = vmul.f32 %v4044, %v4492
        %v4557 = vmul.f32 %v4045, %v4493
        %v4558 = vmul.f32 %v4046, %v4494
        %v4559 = vmul.f32 %v4047, %v4495
        %v4560 = vmul.f32 %v4048, %v4496
        %v4561 = vmul.f32 %v4049, %v4497
        %v4562 = vmul.f32 %v4050, %v4498
        %v4563 = vmul.f32 %v4051, %v4499
        %v4564 = vmul.f32 %v4052, %v4500
        %v4565 = vmul.f32 %v4053, %v4501
        %v4566 = vmul.f32 %v4054, %v4502
        %v4567 = vmul.f32 %v4055, %v4503
        %v4568 = vmul.f32 %v4056, %v4504
        %v4569 = vmul.f32 %v4057, %v4505
        %v4570 = vmul.f32 %v4058, %v4506
        %v4571 = vmul.f32 %v4059, %v4507
        %v4572 = vmul.f32 %v4060, %v4508
        %v4573 = vmul.f32 %v4061, %v4509
        %v4574 = vmul.f32 %v4062, %v4510
        %v4575 = vmul.f32 %v4063, %v4511
        %v4576 = vmul.f32 %v4064, %v4512
        %v4577 = vmul.f32 %v4065, %v4513
        %v4578 = vmul.f32 %v4066, %v4514
        %v4579 = vmul.f32 %v4067, %v4515
        %v4580 = vmul.f32 %v4068, %v4516
        %v4581 = vmul.f32 %v4069, %v4517
        %v4582 = vmul.f32 %v4070, %v4518
        %v4583 = vmul.f32 %v4071, %v4519
        %v4584 = vmul.f32 %v4072, %v4520
        %v4585 = vmul.f32 %v4073, %v4521
        %v4586 = vmul.f32 %v4074, %v4522
        %v4587 = vmul.f32 %v4075, %v4523
        %v4588 = vmul.f32 %v4076, %v4524
        %v4589 = vmul.f32 %v4077, %v4525
        %v4590 = vmul.f32 %v4078, %v4526
        %v4591 = vmul.f32 %v4079, %v4527
        %v4592 = vmul.f32 %v4080, %v4528
        %v4593 = vmul.f32 %v4081, %v4529
        %v4594 = vmul.f32 %v4082, %v4530
        %v4595 = vpack.c.bf16 %v4539, %v4531
        %v4596 = vpack.c.bf16 %v4540, %v4532
        %v4597 = vpack.c.bf16 %v4541, %v4533
        %v4598 = vpack.c.bf16 %v4542, %v4534
        %v4599 = vpack.c.bf16 %v4543, %v4535
        %v4600 = vpack.c.bf16 %v4544, %v4536
        %v4601 = vpack.c.bf16 %v4545, %v4537
        %v4602 = vpack.c.bf16 %v4546, %v4538
        %v4603 = vpack.c.bf16 %v4555, %v4547
        %v4604 = vpack.c.bf16 %v4556, %v4548
        %v4605 = vpack.c.bf16 %v4557, %v4549
        %v4606 = vpack.c.bf16 %v4558, %v4550
        %v4607 = vpack.c.bf16 %v4559, %v4551
        %v4608 = vpack.c.bf16 %v4560, %v4552
        %v4609 = vpack.c.bf16 %v4561, %v4553
        %v4610 = vpack.c.bf16 %v4562, %v4554
        %v4611 = vpack.c.bf16 %v4571, %v4563
        %v4612 = vpack.c.bf16 %v4572, %v4564
        %v4613 = vpack.c.bf16 %v4573, %v4565
        %v4614 = vpack.c.bf16 %v4574, %v4566
        %v4615 = vpack.c.bf16 %v4575, %v4567
        %v4616 = vpack.c.bf16 %v4576, %v4568
        %v4617 = vpack.c.bf16 %v4577, %v4569
        %v4618 = vpack.c.bf16 %v4578, %v4570
        %v4619 = vpack.c.bf16 %v4587, %v4579
        %v4620 = vpack.c.bf16 %v4588, %v4580
        %v4621 = vpack.c.bf16 %v4589, %v4581
        %v4622 = vpack.c.bf16 %v4590, %v4582
        %v4623 = vpack.c.bf16 %v4591, %v4583
        %v4624 = vpack.c.bf16 %v4592, %v4584
        %v4625 = vpack.c.bf16 %v4593, %v4585
        %v4626 = vpack.c.bf16 %v4594, %v4586
        %v4627 = vld [vmem:[#allocation16] sm:$0xff]
        %v4628 = vld [vmem:[#allocation16 + $0x8] sm:$0xff]
        %v4629 = vld [vmem:[#allocation16 + $0x10] sm:$0xff]
        %v4630 = vld [vmem:[#allocation16 + $0x18] sm:$0xff]
        %v4631 = vld [vmem:[#allocation16 + $0x20] sm:$0xff]
        %v4632 = vld [vmem:[#allocation16 + $0x28] sm:$0xff]
        %v4633 = vld [vmem:[#allocation16 + $0x30] sm:$0xff]
        %v4634 = vld [vmem:[#allocation16 + $0x38] sm:$0xff]
        %v4635 = vld [vmem:[#allocation16 + $0x40] sm:$0xff]
        %v4636 = vld [vmem:[#allocation16 + $0x48] sm:$0xff]
        %v4637 = vld [vmem:[#allocation16 + $0x50] sm:$0xff]
        %v4638 = vld [vmem:[#allocation16 + $0x58] sm:$0xff]
        %v4639 = vld [vmem:[#allocation16 + $0x60] sm:$0xff]
        %v4640 = vld [vmem:[#allocation16 + $0x68] sm:$0xff]
        %v4641 = vld [vmem:[#allocation16 + $0x70] sm:$0xff]
        %v4642 = vld [vmem:[#allocation16 + $0x78] sm:$0xff]
        %v4643 = vld [vmem:[#allocation16 + $0x80] sm:$0xff]
        %v4644 = vld [vmem:[#allocation16 + $0x88] sm:$0xff]
        %v4645 = vld [vmem:[#allocation16 + $0x90] sm:$0xff]
        %v4646 = vld [vmem:[#allocation16 + $0x98] sm:$0xff]
        %v4647 = vld [vmem:[#allocation16 + $0xa0] sm:$0xff]
        %v4648 = vld [vmem:[#allocation16 + $0xa8] sm:$0xff]
        %v4649 = vld [vmem:[#allocation16 + $0xb0] sm:$0xff]
        %v4650 = vld [vmem:[#allocation16 + $0xb8] sm:$0xff]
        %v4651 = vld [vmem:[#allocation16 + $0xc0] sm:$0xff]
        %v4652 = vld [vmem:[#allocation16 + $0xc8] sm:$0xff]
        %v4653 = vld [vmem:[#allocation16 + $0xd0] sm:$0xff]
        %v4654 = vld [vmem:[#allocation16 + $0xd8] sm:$0xff]
        %v4655 = vld [vmem:[#allocation16 + $0xe0] sm:$0xff]
        %v4656 = vld [vmem:[#allocation16 + $0xe8] sm:$0xff]
        %v4657 = vld [vmem:[#allocation16 + $0xf0] sm:$0xff]
        %v4658 = vld [vmem:[#allocation16 + $0xf8] sm:$0xff]
        %v4659 = vld [vmem:[#allocation16 + $0x100] sm:$0xff]
        %v4660 = vld [vmem:[#allocation16 + $0x108] sm:$0xff]
        %v4661 = vld [vmem:[#allocation16 + $0x110] sm:$0xff]
        %v4662 = vld [vmem:[#allocation16 + $0x118] sm:$0xff]
        %v4663 = vld [vmem:[#allocation16 + $0x120] sm:$0xff]
        %v4664 = vld [vmem:[#allocation16 + $0x128] sm:$0xff]
        %v4665 = vld [vmem:[#allocation16 + $0x130] sm:$0xff]
        %v4666 = vld [vmem:[#allocation16 + $0x138] sm:$0xff]
        %v4667 = vld [vmem:[#allocation16 + $0x140] sm:$0xff]
        %v4668 = vld [vmem:[#allocation16 + $0x148] sm:$0xff]
        %v4669 = vld [vmem:[#allocation16 + $0x150] sm:$0xff]
        %v4670 = vld [vmem:[#allocation16 + $0x158] sm:$0xff]
        %v4671 = vld [vmem:[#allocation16 + $0x160] sm:$0xff]
        %v4672 = vld [vmem:[#allocation16 + $0x168] sm:$0xff]
        %v4673 = vld [vmem:[#allocation16 + $0x170] sm:$0xff]
        %v4674 = vld [vmem:[#allocation16 + $0x178] sm:$0xff]
        %v4675 = vld [vmem:[#allocation16 + $0x180] sm:$0xff]
        %v4676 = vld [vmem:[#allocation16 + $0x188] sm:$0xff]
        %v4677 = vld [vmem:[#allocation16 + $0x190] sm:$0xff]
        %v4678 = vld [vmem:[#allocation16 + $0x198] sm:$0xff]
        %v4679 = vld [vmem:[#allocation16 + $0x1a0] sm:$0xff]
        %v4680 = vld [vmem:[#allocation16 + $0x1a8] sm:$0xff]
        %v4681 = vld [vmem:[#allocation16 + $0x1b0] sm:$0xff]
        %v4682 = vld [vmem:[#allocation16 + $0x1b8] sm:$0xff]
        %v4683 = vld [vmem:[#allocation16 + $0x1c0] sm:$0xff]
        %v4684 = vld [vmem:[#allocation16 + $0x1c8] sm:$0xff]
        %v4685 = vld [vmem:[#allocation16 + $0x1d0] sm:$0xff]
        %v4686 = vld [vmem:[#allocation16 + $0x1d8] sm:$0xff]
        %v4687 = vld [vmem:[#allocation16 + $0x1e0] sm:$0xff]
        %v4688 = vld [vmem:[#allocation16 + $0x1e8] sm:$0xff]
        %v4689 = vld [vmem:[#allocation16 + $0x1f0] sm:$0xff]
        %v4690 = vld [vmem:[#allocation16 + $0x1f8] sm:$0xff]
        %v4691 = vld [vmem:[#allocation16 + $0x200] sm:$0xff]
        %v4692 = vld [vmem:[#allocation16 + $0x208] sm:$0xff]
        %v4693 = vld [vmem:[#allocation16 + $0x210] sm:$0xff]
        %v4694 = vld [vmem:[#allocation16 + $0x218] sm:$0xff]
        %v4695 = vld [vmem:[#allocation16 + $0x220] sm:$0xff]
        %v4696 = vld [vmem:[#allocation16 + $0x228] sm:$0xff]
        %v4697 = vld [vmem:[#allocation16 + $0x230] sm:$0xff]
        %v4698 = vld [vmem:[#allocation16 + $0x238] sm:$0xff]
        %v4699 = vld [vmem:[#allocation16 + $0x240] sm:$0xff]
        %v4700 = vld [vmem:[#allocation16 + $0x248] sm:$0xff]
        %v4701 = vld [vmem:[#allocation16 + $0x250] sm:$0xff]
        %v4702 = vld [vmem:[#allocation16 + $0x258] sm:$0xff]
        %v4703 = vld [vmem:[#allocation16 + $0x260] sm:$0xff]
        %v4704 = vld [vmem:[#allocation16 + $0x268] sm:$0xff]
        %v4705 = vld [vmem:[#allocation16 + $0x270] sm:$0xff]
        %v4706 = vld [vmem:[#allocation16 + $0x278] sm:$0xff]
        %v4707 = vld [vmem:[#allocation16 + $0x280] sm:$0xff]
        %v4708 = vld [vmem:[#allocation16 + $0x288] sm:$0xff]
        %v4709 = vld [vmem:[#allocation16 + $0x290] sm:$0xff]
        %v4710 = vld [vmem:[#allocation16 + $0x298] sm:$0xff]
        %v4711 = vld [vmem:[#allocation16 + $0x2a0] sm:$0xff]
        %v4712 = vld [vmem:[#allocation16 + $0x2a8] sm:$0xff]
        %v4713 = vld [vmem:[#allocation16 + $0x2b0] sm:$0xff]
        %v4714 = vld [vmem:[#allocation16 + $0x2b8] sm:$0xff]
        %v4715 = vld [vmem:[#allocation16 + $0x2c0] sm:$0xff]
        %v4716 = vld [vmem:[#allocation16 + $0x2c8] sm:$0xff]
        %v4717 = vld [vmem:[#allocation16 + $0x2d0] sm:$0xff]
        %v4718 = vld [vmem:[#allocation16 + $0x2d8] sm:$0xff]
        %v4719 = vld [vmem:[#allocation16 + $0x2e0] sm:$0xff]
        %v4720 = vld [vmem:[#allocation16 + $0x2e8] sm:$0xff]
        %v4721 = vld [vmem:[#allocation16 + $0x2f0] sm:$0xff]
        %v4722 = vld [vmem:[#allocation16 + $0x2f8] sm:$0xff]
        %v4723 = vld [vmem:[#allocation16 + $0x300] sm:$0xff]
        %v4724 = vld [vmem:[#allocation16 + $0x308] sm:$0xff]
        %v4725 = vld [vmem:[#allocation16 + $0x310] sm:$0xff]
        %v4726 = vld [vmem:[#allocation16 + $0x318] sm:$0xff]
        %v4727 = vld [vmem:[#allocation16 + $0x320] sm:$0xff]
        %v4728 = vld [vmem:[#allocation16 + $0x328] sm:$0xff]
        %v4729 = vld [vmem:[#allocation16 + $0x330] sm:$0xff]
        %v4730 = vld [vmem:[#allocation16 + $0x338] sm:$0xff]
        %v4731 = vld [vmem:[#allocation16 + $0x340] sm:$0xff]
        %v4732 = vld [vmem:[#allocation16 + $0x348] sm:$0xff]
        %v4733 = vld [vmem:[#allocation16 + $0x350] sm:$0xff]
        %v4734 = vld [vmem:[#allocation16 + $0x358] sm:$0xff]
        %v4735 = vld [vmem:[#allocation16 + $0x360] sm:$0xff]
        %v4736 = vld [vmem:[#allocation16 + $0x368] sm:$0xff]
        %v4737 = vld [vmem:[#allocation16 + $0x370] sm:$0xff]
        %v4738 = vld [vmem:[#allocation16 + $0x378] sm:$0xff]
        %v4739 = vld [vmem:[#allocation16 + $0x380] sm:$0xff]
        %v4740 = vld [vmem:[#allocation16 + $0x388] sm:$0xff]
        %v4741 = vld [vmem:[#allocation16 + $0x390] sm:$0xff]
        %v4742 = vld [vmem:[#allocation16 + $0x398] sm:$0xff]
        %v4743 = vld [vmem:[#allocation16 + $0x3a0] sm:$0xff]
        %v4744 = vld [vmem:[#allocation16 + $0x3a8] sm:$0xff]
        %v4745 = vld [vmem:[#allocation16 + $0x3b0] sm:$0xff]
        %v4746 = vld [vmem:[#allocation16 + $0x3b8] sm:$0xff]
        %v4747 = vld [vmem:[#allocation16 + $0x3c0] sm:$0xff]
        %v4748 = vld [vmem:[#allocation16 + $0x3c8] sm:$0xff]
        %v4749 = vld [vmem:[#allocation16 + $0x3d0] sm:$0xff]
        %v4750 = vld [vmem:[#allocation16 + $0x3d8] sm:$0xff]
        %v4751 = vld [vmem:[#allocation16 + $0x3e0] sm:$0xff]
        %v4752 = vld [vmem:[#allocation16 + $0x3e8] sm:$0xff]
        %v4753 = vld [vmem:[#allocation16 + $0x3f0] sm:$0xff]
        %v4754 = vld [vmem:[#allocation16 + $0x3f8] sm:$0xff]
        %v4755 = vld [vmem:[#allocation17] sm:$0x3]
        %v4757 = vlaneseq
        %v4758 = vshrl.u32 %v4757, 7
        %v4759 = vsub.s32 0, %v4758
        %v4760 = vrot.slane %v4755, %v4759
        %v4761 = vlaneseq
        %v4762 = vshrl.u32 %v4761, 7
        %v4763 = vsub.s32 1, %v4762
        %v4764 = vrot.slane %v4755, %v4763
        %v4895 = vunpack.c.l.b16 %v4627
        %v4896 = vunpack.c.h.b16 %v4627
        %v4897 = vunpack.c.l.b16 %v4628
        %v4898 = vunpack.c.h.b16 %v4628
        %v4899 = vunpack.c.l.b16 %v4629
        %v4900 = vunpack.c.h.b16 %v4629
        %v4901 = vunpack.c.l.b16 %v4630
        %v4902 = vunpack.c.h.b16 %v4630
        %v4903 = vunpack.c.l.b16 %v4631
        %v4904 = vunpack.c.h.b16 %v4631
        %v4905 = vunpack.c.l.b16 %v4632
        %v4906 = vunpack.c.h.b16 %v4632
        %v4907 = vunpack.c.l.b16 %v4633
        %v4908 = vunpack.c.h.b16 %v4633
        %v4909 = vunpack.c.l.b16 %v4634
        %v4910 = vunpack.c.h.b16 %v4634
        %v4911 = vunpack.c.l.b16 %v4635
        %v4912 = vunpack.c.h.b16 %v4635
        %v4913 = vunpack.c.l.b16 %v4636
        %v4914 = vunpack.c.h.b16 %v4636
        %v4915 = vunpack.c.l.b16 %v4637
        %v4916 = vunpack.c.h.b16 %v4637
        %v4917 = vunpack.c.l.b16 %v4638
        %v4918 = vunpack.c.h.b16 %v4638
        %v4919 = vunpack.c.l.b16 %v4639
        %v4920 = vunpack.c.h.b16 %v4639
        %v4921 = vunpack.c.l.b16 %v4640
        %v4922 = vunpack.c.h.b16 %v4640
        %v4923 = vunpack.c.l.b16 %v4641
        %v4924 = vunpack.c.h.b16 %v4641
        %v4925 = vunpack.c.l.b16 %v4642
        %v4926 = vunpack.c.h.b16 %v4642
        %v4927 = vunpack.c.l.b16 %v4643
        %v4928 = vunpack.c.h.b16 %v4643
        %v4929 = vunpack.c.l.b16 %v4644
        %v4930 = vunpack.c.h.b16 %v4644
        %v4931 = vunpack.c.l.b16 %v4645
        %v4932 = vunpack.c.h.b16 %v4645
        %v4933 = vunpack.c.l.b16 %v4646
        %v4934 = vunpack.c.h.b16 %v4646
        %v4935 = vunpack.c.l.b16 %v4647
        %v4936 = vunpack.c.h.b16 %v4647
        %v4937 = vunpack.c.l.b16 %v4648
        %v4938 = vunpack.c.h.b16 %v4648
        %v4939 = vunpack.c.l.b16 %v4649
        %v4940 = vunpack.c.h.b16 %v4649
        %v4941 = vunpack.c.l.b16 %v4650
        %v4942 = vunpack.c.h.b16 %v4650
        %v4943 = vunpack.c.l.b16 %v4651
        %v4944 = vunpack.c.h.b16 %v4651
        %v4945 = vunpack.c.l.b16 %v4652
        %v4946 = vunpack.c.h.b16 %v4652
        %v4947 = vunpack.c.l.b16 %v4653
        %v4948 = vunpack.c.h.b16 %v4653
        %v4949 = vunpack.c.l.b16 %v4654
        %v4950 = vunpack.c.h.b16 %v4654
        %v4951 = vunpack.c.l.b16 %v4655
        %v4952 = vunpack.c.h.b16 %v4655
        %v4953 = vunpack.c.l.b16 %v4656
        %v4954 = vunpack.c.h.b16 %v4656
        %v4955 = vunpack.c.l.b16 %v4657
        %v4956 = vunpack.c.h.b16 %v4657
        %v4957 = vunpack.c.l.b16 %v4658
        %v4958 = vunpack.c.h.b16 %v4658
        %v4959 = vunpack.c.l.b16 %v4659
        %v4960 = vunpack.c.h.b16 %v4659
        %v4961 = vunpack.c.l.b16 %v4660
        %v4962 = vunpack.c.h.b16 %v4660
        %v4963 = vunpack.c.l.b16 %v4661
        %v4964 = vunpack.c.h.b16 %v4661
        %v4965 = vunpack.c.l.b16 %v4662
        %v4966 = vunpack.c.h.b16 %v4662
        %v4967 = vunpack.c.l.b16 %v4663
        %v4968 = vunpack.c.h.b16 %v4663
        %v4969 = vunpack.c.l.b16 %v4664
        %v4970 = vunpack.c.h.b16 %v4664
        %v4971 = vunpack.c.l.b16 %v4665
        %v4972 = vunpack.c.h.b16 %v4665
        %v4973 = vunpack.c.l.b16 %v4666
        %v4974 = vunpack.c.h.b16 %v4666
        %v4975 = vunpack.c.l.b16 %v4667
        %v4976 = vunpack.c.h.b16 %v4667
        %v4977 = vunpack.c.l.b16 %v4668
        %v4978 = vunpack.c.h.b16 %v4668
        %v4979 = vunpack.c.l.b16 %v4669
        %v4980 = vunpack.c.h.b16 %v4669
        %v4981 = vunpack.c.l.b16 %v4670
        %v4982 = vunpack.c.h.b16 %v4670
        %v4983 = vunpack.c.l.b16 %v4671
        %v4984 = vunpack.c.h.b16 %v4671
        %v4985 = vunpack.c.l.b16 %v4672
        %v4986 = vunpack.c.h.b16 %v4672
        %v4987 = vunpack.c.l.b16 %v4673
        %v4988 = vunpack.c.h.b16 %v4673
        %v4989 = vunpack.c.l.b16 %v4674
        %v4990 = vunpack.c.h.b16 %v4674
        %v4991 = vunpack.c.l.b16 %v4675
        %v4992 = vunpack.c.h.b16 %v4675
        %v4993 = vunpack.c.l.b16 %v4676
        %v4994 = vunpack.c.h.b16 %v4676
        %v4995 = vunpack.c.l.b16 %v4677
        %v4996 = vunpack.c.h.b16 %v4677
        %v4997 = vunpack.c.l.b16 %v4678
        %v4998 = vunpack.c.h.b16 %v4678
        %v4999 = vunpack.c.l.b16 %v4679
        %v5000 = vunpack.c.h.b16 %v4679
        %v5001 = vunpack.c.l.b16 %v4680
        %v5002 = vunpack.c.h.b16 %v4680
        %v5003 = vunpack.c.l.b16 %v4681
        %v5004 = vunpack.c.h.b16 %v4681
        %v5005 = vunpack.c.l.b16 %v4682
        %v5006 = vunpack.c.h.b16 %v4682
        %v5007 = vunpack.c.l.b16 %v4683
        %v5008 = vunpack.c.h.b16 %v4683
        %v5009 = vunpack.c.l.b16 %v4684
        %v5010 = vunpack.c.h.b16 %v4684
        %v5011 = vunpack.c.l.b16 %v4685
        %v5012 = vunpack.c.h.b16 %v4685
        %v5013 = vunpack.c.l.b16 %v4686
        %v5014 = vunpack.c.h.b16 %v4686
        %v5015 = vunpack.c.l.b16 %v4687
        %v5016 = vunpack.c.h.b16 %v4687
        %v5017 = vunpack.c.l.b16 %v4688
        %v5018 = vunpack.c.h.b16 %v4688
        %v5019 = vunpack.c.l.b16 %v4689
        %v5020 = vunpack.c.h.b16 %v4689
        %v5021 = vunpack.c.l.b16 %v4690
        %v5022 = vunpack.c.h.b16 %v4690
        %v5023 = vunpack.c.l.b16 %v4691
        %v5024 = vunpack.c.h.b16 %v4691
        %v5025 = vunpack.c.l.b16 %v4692
        %v5026 = vunpack.c.h.b16 %v4692
        %v5027 = vunpack.c.l.b16 %v4693
        %v5028 = vunpack.c.h.b16 %v4693
        %v5029 = vunpack.c.l.b16 %v4694
        %v5030 = vunpack.c.h.b16 %v4694
        %v5031 = vunpack.c.l.b16 %v4695
        %v5032 = vunpack.c.h.b16 %v4695
        %v5033 = vunpack.c.l.b16 %v4696
        %v5034 = vunpack.c.h.b16 %v4696
        %v5035 = vunpack.c.l.b16 %v4697
        %v5036 = vunpack.c.h.b16 %v4697
        %v5037 = vunpack.c.l.b16 %v4698
        %v5038 = vunpack.c.h.b16 %v4698
        %v5039 = vunpack.c.l.b16 %v4699
        %v5040 = vunpack.c.h.b16 %v4699
        %v5041 = vunpack.c.l.b16 %v4700
        %v5042 = vunpack.c.h.b16 %v4700
        %v5043 = vunpack.c.l.b16 %v4701
        %v5044 = vunpack.c.h.b16 %v4701
        %v5045 = vunpack.c.l.b16 %v4702
        %v5046 = vunpack.c.h.b16 %v4702
        %v5047 = vunpack.c.l.b16 %v4703
        %v5048 = vunpack.c.h.b16 %v4703
        %v5049 = vunpack.c.l.b16 %v4704
        %v5050 = vunpack.c.h.b16 %v4704
        %v5051 = vunpack.c.l.b16 %v4705
        %v5052 = vunpack.c.h.b16 %v4705
        %v5053 = vunpack.c.l.b16 %v4706
        %v5054 = vunpack.c.h.b16 %v4706
        %v5055 = vunpack.c.l.b16 %v4707
        %v5056 = vunpack.c.h.b16 %v4707
        %v5057 = vunpack.c.l.b16 %v4708
        %v5058 = vunpack.c.h.b16 %v4708
        %v5059 = vunpack.c.l.b16 %v4709
        %v5060 = vunpack.c.h.b16 %v4709
        %v5061 = vunpack.c.l.b16 %v4710
        %v5062 = vunpack.c.h.b16 %v4710
        %v5063 = vunpack.c.l.b16 %v4711
        %v5064 = vunpack.c.h.b16 %v4711
        %v5065 = vunpack.c.l.b16 %v4712
        %v5066 = vunpack.c.h.b16 %v4712
        %v5067 = vunpack.c.l.b16 %v4713
        %v5068 = vunpack.c.h.b16 %v4713
        %v5069 = vunpack.c.l.b16 %v4714
        %v5070 = vunpack.c.h.b16 %v4714
        %v5071 = vunpack.c.l.b16 %v4715
        %v5072 = vunpack.c.h.b16 %v4715
        %v5073 = vunpack.c.l.b16 %v4716
        %v5074 = vunpack.c.h.b16 %v4716
        %v5075 = vunpack.c.l.b16 %v4717
        %v5076 = vunpack.c.h.b16 %v4717
        %v5077 = vunpack.c.l.b16 %v4718
        %v5078 = vunpack.c.h.b16 %v4718
        %v5079 = vunpack.c.l.b16 %v4719
        %v5080 = vunpack.c.h.b16 %v4719
        %v5081 = vunpack.c.l.b16 %v4720
        %v5082 = vunpack.c.h.b16 %v4720
        %v5083 = vunpack.c.l.b16 %v4721
        %v5084 = vunpack.c.h.b16 %v4721
        %v5085 = vunpack.c.l.b16 %v4722
        %v5086 = vunpack.c.h.b16 %v4722
        %v5087 = vunpack.c.l.b16 %v4723
        %v5088 = vunpack.c.h.b16 %v4723
        %v5089 = vunpack.c.l.b16 %v4724
        %v5090 = vunpack.c.h.b16 %v4724
        %v5091 = vunpack.c.l.b16 %v4725
        %v5092 = vunpack.c.h.b16 %v4725
        %v5093 = vunpack.c.l.b16 %v4726
        %v5094 = vunpack.c.h.b16 %v4726
        %v5095 = vunpack.c.l.b16 %v4727
        %v5096 = vunpack.c.h.b16 %v4727
        %v5097 = vunpack.c.l.b16 %v4728
        %v5098 = vunpack.c.h.b16 %v4728
        %v5099 = vunpack.c.l.b16 %v4729
        %v5100 = vunpack.c.h.b16 %v4729
        %v5101 = vunpack.c.l.b16 %v4730
        %v5102 = vunpack.c.h.b16 %v4730
        %v5103 = vunpack.c.l.b16 %v4731
        %v5104 = vunpack.c.h.b16 %v4731
        %v5105 = vunpack.c.l.b16 %v4732
        %v5106 = vunpack.c.h.b16 %v4732
        %v5107 = vunpack.c.l.b16 %v4733
        %v5108 = vunpack.c.h.b16 %v4733
        %v5109 = vunpack.c.l.b16 %v4734
        %v5110 = vunpack.c.h.b16 %v4734
        %v5111 = vunpack.c.l.b16 %v4735
        %v5112 = vunpack.c.h.b16 %v4735
        %v5113 = vunpack.c.l.b16 %v4736
        %v5114 = vunpack.c.h.b16 %v4736
        %v5115 = vunpack.c.l.b16 %v4737
        %v5116 = vunpack.c.h.b16 %v4737
        %v5117 = vunpack.c.l.b16 %v4738
        %v5118 = vunpack.c.h.b16 %v4738
        %v5119 = vunpack.c.l.b16 %v4739
        %v5120 = vunpack.c.h.b16 %v4739
        %v5121 = vunpack.c.l.b16 %v4740
        %v5122 = vunpack.c.h.b16 %v4740
        %v5123 = vunpack.c.l.b16 %v4741
        %v5124 = vunpack.c.h.b16 %v4741
        %v5125 = vunpack.c.l.b16 %v4742
        %v5126 = vunpack.c.h.b16 %v4742
        %v5127 = vunpack.c.l.b16 %v4743
        %v5128 = vunpack.c.h.b16 %v4743
        %v5129 = vunpack.c.l.b16 %v4744
        %v5130 = vunpack.c.h.b16 %v4744
        %v5131 = vunpack.c.l.b16 %v4745
        %v5132 = vunpack.c.h.b16 %v4745
        %v5133 = vunpack.c.l.b16 %v4746
        %v5134 = vunpack.c.h.b16 %v4746
        %v5135 = vunpack.c.l.b16 %v4747
        %v5136 = vunpack.c.h.b16 %v4747
        %v5137 = vunpack.c.l.b16 %v4748
        %v5138 = vunpack.c.h.b16 %v4748
        %v5139 = vunpack.c.l.b16 %v4749
        %v5140 = vunpack.c.h.b16 %v4749
        %v5141 = vunpack.c.l.b16 %v4750
        %v5142 = vunpack.c.h.b16 %v4750
        %v5143 = vunpack.c.l.b16 %v4751
        %v5144 = vunpack.c.h.b16 %v4751
        %v5145 = vunpack.c.l.b16 %v4752
        %v5146 = vunpack.c.h.b16 %v4752
        %v5147 = vunpack.c.l.b16 %v4753
        %v5148 = vunpack.c.h.b16 %v4753
        %v5149 = vunpack.c.l.b16 %v4754
        %v5150 = vunpack.c.h.b16 %v4754
        %v5151 = vpack.c.b16 %v4897, %v4895
        %v5152 = vpack.c.b16 %v4898, %v4896
        %v5153 = vpack.c.b16 %v4901, %v4899
        %v5154 = vpack.c.b16 %v4902, %v4900
        %v5155 = vpack.c.b16 %v4905, %v4903
        %v5156 = vpack.c.b16 %v4906, %v4904
        %v5157 = vpack.c.b16 %v4909, %v4907
        %v5158 = vpack.c.b16 %v4910, %v4908
        %v5159 = vpack.c.b16 %v4913, %v4911
        %v5160 = vpack.c.b16 %v4914, %v4912
        %v5161 = vpack.c.b16 %v4917, %v4915
        %v5162 = vpack.c.b16 %v4918, %v4916
        %v5163 = vpack.c.b16 %v4921, %v4919
        %v5164 = vpack.c.b16 %v4922, %v4920
        %v5165 = vpack.c.b16 %v4925, %v4923
        %v5166 = vpack.c.b16 %v4926, %v4924
        %v5167 = vpack.c.b16 %v4929, %v4927
        %v5168 = vpack.c.b16 %v4930, %v4928
        %v5169 = vpack.c.b16 %v4933, %v4931
        %v5170 = vpack.c.b16 %v4934, %v4932
        %v5171 = vpack.c.b16 %v4937, %v4935
        %v5172 = vpack.c.b16 %v4938, %v4936
        %v5173 = vpack.c.b16 %v4941, %v4939
        %v5174 = vpack.c.b16 %v4942, %v4940
        %v5175 = vpack.c.b16 %v4945, %v4943
        %v5176 = vpack.c.b16 %v4946, %v4944
        %v5177 = vpack.c.b16 %v4949, %v4947
        %v5178 = vpack.c.b16 %v4950, %v4948
        %v5179 = vpack.c.b16 %v4953, %v4951
        %v5180 = vpack.c.b16 %v4954, %v4952
        %v5181 = vpack.c.b16 %v4957, %v4955
        %v5182 = vpack.c.b16 %v4958, %v4956
        %v5183 = vpack.c.b16 %v4961, %v4959
        %v5184 = vpack.c.b16 %v4962, %v4960
        %v5185 = vpack.c.b16 %v4965, %v4963
        %v5186 = vpack.c.b16 %v4966, %v4964
        %v5187 = vpack.c.b16 %v4969, %v4967
        %v5188 = vpack.c.b16 %v4970, %v4968
        %v5189 = vpack.c.b16 %v4973, %v4971
        %v5190 = vpack.c.b16 %v4974, %v4972
        %v5191 = vpack.c.b16 %v4977, %v4975
        %v5192 = vpack.c.b16 %v4978, %v4976
        %v5193 = vpack.c.b16 %v4981, %v4979
        %v5194 = vpack.c.b16 %v4982, %v4980
        %v5195 = vpack.c.b16 %v4985, %v4983
        %v5196 = vpack.c.b16 %v4986, %v4984
        %v5197 = vpack.c.b16 %v4989, %v4987
        %v5198 = vpack.c.b16 %v4990, %v4988
        %v5199 = vpack.c.b16 %v4993, %v4991
        %v5200 = vpack.c.b16 %v4994, %v4992
        %v5201 = vpack.c.b16 %v4997, %v4995
        %v5202 = vpack.c.b16 %v4998, %v4996
        %v5203 = vpack.c.b16 %v5001, %v4999
        %v5204 = vpack.c.b16 %v5002, %v5000
        %v5205 = vpack.c.b16 %v5005, %v5003
        %v5206 = vpack.c.b16 %v5006, %v5004
        %v5207 = vpack.c.b16 %v5009, %v5007
        %v5208 = vpack.c.b16 %v5010, %v5008
        %v5209 = vpack.c.b16 %v5013, %v5011
        %v5210 = vpack.c.b16 %v5014, %v5012
        %v5211 = vpack.c.b16 %v5017, %v5015
        %v5212 = vpack.c.b16 %v5018, %v5016
        %v5213 = vpack.c.b16 %v5021, %v5019
        %v5214 = vpack.c.b16 %v5022, %v5020
        %v5215 = vpack.c.b16 %v5025, %v5023
        %v5216 = vpack.c.b16 %v5026, %v5024
        %v5217 = vpack.c.b16 %v5029, %v5027
        %v5218 = vpack.c.b16 %v5030, %v5028
        %v5219 = vpack.c.b16 %v5033, %v5031
        %v5220 = vpack.c.b16 %v5034, %v5032
        %v5221 = vpack.c.b16 %v5037, %v5035
        %v5222 = vpack.c.b16 %v5038, %v5036
        %v5223 = vpack.c.b16 %v5041, %v5039
        %v5224 = vpack.c.b16 %v5042, %v5040
        %v5225 = vpack.c.b16 %v5045, %v5043
        %v5226 = vpack.c.b16 %v5046, %v5044
        %v5227 = vpack.c.b16 %v5049, %v5047
        %v5228 = vpack.c.b16 %v5050, %v5048
        %v5229 = vpack.c.b16 %v5053, %v5051
        %v5230 = vpack.c.b16 %v5054, %v5052
        %v5231 = vpack.c.b16 %v5057, %v5055
        %v5232 = vpack.c.b16 %v5058, %v5056
        %v5233 = vpack.c.b16 %v5061, %v5059
        %v5234 = vpack.c.b16 %v5062, %v5060
        %v5235 = vpack.c.b16 %v5065, %v5063
        %v5236 = vpack.c.b16 %v5066, %v5064
        %v5237 = vpack.c.b16 %v5069, %v5067
        %v5238 = vpack.c.b16 %v5070, %v5068
        %v5239 = vpack.c.b16 %v5073, %v5071
        %v5240 = vpack.c.b16 %v5074, %v5072
        %v5241 = vpack.c.b16 %v5077, %v5075
        %v5242 = vpack.c.b16 %v5078, %v5076
        %v5243 = vpack.c.b16 %v5081, %v5079
        %v5244 = vpack.c.b16 %v5082, %v5080
        %v5245 = vpack.c.b16 %v5085, %v5083
        %v5246 = vpack.c.b16 %v5086, %v5084
        %v5247 = vpack.c.b16 %v5089, %v5087
        %v5248 = vpack.c.b16 %v5090, %v5088
        %v5249 = vpack.c.b16 %v5093, %v5091
        %v5250 = vpack.c.b16 %v5094, %v5092
        %v5251 = vpack.c.b16 %v5097, %v5095
        %v5252 = vpack.c.b16 %v5098, %v5096
        %v5253 = vpack.c.b16 %v5101, %v5099
        %v5254 = vpack.c.b16 %v5102, %v5100
        %v5255 = vpack.c.b16 %v5105, %v5103
        %v5256 = vpack.c.b16 %v5106, %v5104
        %v5257 = vpack.c.b16 %v5109, %v5107
        %v5258 = vpack.c.b16 %v5110, %v5108
        %v5259 = vpack.c.b16 %v5113, %v5111
        %v5260 = vpack.c.b16 %v5114, %v5112
        %v5261 = vpack.c.b16 %v5117, %v5115
        %v5262 = vpack.c.b16 %v5118, %v5116
        %v5263 = vpack.c.b16 %v5121, %v5119
        %v5264 = vpack.c.b16 %v5122, %v5120
        %v5265 = vpack.c.b16 %v5125, %v5123
        %v5266 = vpack.c.b16 %v5126, %v5124
        %v5267 = vpack.c.b16 %v5129, %v5127
        %v5268 = vpack.c.b16 %v5130, %v5128
        %v5269 = vpack.c.b16 %v5133, %v5131
        %v5270 = vpack.c.b16 %v5134, %v5132
        %v5271 = vpack.c.b16 %v5137, %v5135
        %v5272 = vpack.c.b16 %v5138, %v5136
        %v5273 = vpack.c.b16 %v5141, %v5139
        %v5274 = vpack.c.b16 %v5142, %v5140
        %v5275 = vpack.c.b16 %v5145, %v5143
        %v5276 = vpack.c.b16 %v5146, %v5144
        %v5277 = vpack.c.b16 %v5149, %v5147
        %v5278 = vpack.c.b16 %v5150, %v5148
        %5407 = vmatprep.subr.bf16.mxu0 %v5152
        %5408 = vmatpush1.bf16.msra.mxu0 %v5151
        %5409 = vmatprep.subr.bf16.mxu0 %v5154
        %5410 = vmatpush1.bf16.msra.mxu0 %v5153
        %5411 = vmatprep.subr.bf16.mxu0 %v5156
        %5412 = vmatpush1.bf16.msra.mxu0 %v5155
        %5413 = vmatprep.subr.bf16.mxu0 %v5158
        %5414 = vmatpush1.bf16.msra.mxu0 %v5157
        %5415 = vmatprep.subr.bf16.mxu0 %v5160
        %5416 = vmatpush1.bf16.msra.mxu0 %v5159
        %5417 = vmatprep.subr.bf16.mxu0 %v5162
        %5418 = vmatpush1.bf16.msra.mxu0 %v5161
        %5419 = vmatprep.subr.bf16.mxu0 %v5164
        %5420 = vmatpush1.bf16.msra.mxu0 %v5163
        %5421 = vmatprep.subr.bf16.mxu0 %v5166
        %5422 = vmatpush1.bf16.msra.mxu0 %v5165
        %5423 = vmatprep.subr.bf16.mxu0 %v5168
        %5424 = vmatpush1.bf16.msra.mxu0 %v5167
        %5425 = vmatprep.subr.bf16.mxu0 %v5170
        %5426 = vmatpush1.bf16.msra.mxu0 %v5169
        %5427 = vmatprep.subr.bf16.mxu0 %v5172
        %5428 = vmatpush1.bf16.msra.mxu0 %v5171
        %5429 = vmatprep.subr.bf16.mxu0 %v5174
        %5430 = vmatpush1.bf16.msra.mxu0 %v5173
        %5431 = vmatprep.subr.bf16.mxu0 %v5176
        %5432 = vmatpush1.bf16.msra.mxu0 %v5175
        %5433 = vmatprep.subr.bf16.mxu0 %v5178
        %5434 = vmatpush1.bf16.msra.mxu0 %v5177
        %5435 = vmatprep.subr.bf16.mxu0 %v5180
        %5436 = vmatpush1.bf16.msra.mxu0 %v5179
        %5437 = vmatprep.subr.bf16.mxu0 %v5182
        %5438 = vmatpush1.bf16.msra.mxu0 %v5181
        %5439 = vmatprep.mubr.bf16.mxu0 %v4596
        %5440 = vmatmul.mubr.bf16.gmra.mrb[0].mxu0 %v4595
        %v5441 = vpop.f32.mrb[0].mxu0
        %v5442 = vadd.f32 %v4760, %v5441
        %v5443 = vpop.f32.mrb[0].mxu0
        %v5444 = vadd.f32 %v4764, %v5443
        %v5445 = vpop.f32.mrb[0].mxu0
        %v5446 = vadd.f32 %v4760, %v5445
        %v5447 = vpop.f32.mrb[0].mxu0
        %v5448 = vadd.f32 %v4764, %v5447
        %5449 = vmatprep.mubr.bf16.mxu0 %v4604
        %5450 = vmatmul.mubr.bf16.gmra.mrb[0].mxu0 %v4603
        %v5451 = vpop.f32.mrb[0].mxu0
        %v5452 = vadd.f32 %v4760, %v5451
        %v5453 = vpop.f32.mrb[0].mxu0
        %v5454 = vadd.f32 %v4764, %v5453
        %v5455 = vpop.f32.mrb[0].mxu0
        %v5456 = vadd.f32 %v4760, %v5455
        %v5457 = vpop.f32.mrb[0].mxu0
        %v5458 = vadd.f32 %v4764, %v5457
        %5459 = vmatprep.mubr.bf16.mxu0 %v4612
        %5460 = vmatmul.mubr.bf16.gmra.mrb[0].mxu0 %v4611
        %v5461 = vpop.f32.mrb[0].mxu0
        %v5462 = vadd.f32 %v4760, %v5461
        %v5463 = vpop.f32.mrb[0].mxu0
        %v5464 = vadd.f32 %v4764, %v5463
        %v5465 = vpop.f32.mrb[0].mxu0
        %v5466 = vadd.f32 %v4760, %v5465
        %v5467 = vpop.f32.mrb[0].mxu0
        %v5468 = vadd.f32 %v4764, %v5467
        %5469 = vmatprep.mubr.bf16.mxu0 %v4620
        %5470 = vmatmul.mubr.bf16.gmra.mrb[0].mxu0 %v4619
        %v5471 = vpop.f32.mrb[0].mxu0
        %v5472 = vadd.f32 %v4760, %v5471
        %v5473 = vpop.f32.mrb[0].mxu0
        %v5474 = vadd.f32 %v4764, %v5473
        %v5475 = vpop.f32.mrb[0].mxu0
        %v5476 = vadd.f32 %v4760, %v5475
        %v5477 = vpop.f32.mrb[0].mxu0
        %v5478 = vadd.f32 %v4764, %v5477
        %5479 = vdwg.mxu0
        %5480 = vmatprep.subr.bf16.mxu0 %v5184
        %5481 = vmatpush1.bf16.msra.mxu0 %v5183
        %5482 = vmatprep.subr.bf16.mxu0 %v5186
        %5483 = vmatpush1.bf16.msra.mxu0 %v5185
        %5484 = vmatprep.subr.bf16.mxu0 %v5188
        %5485 = vmatpush1.bf16.msra.mxu0 %v5187
        %5486 = vmatprep.subr.bf16.mxu0 %v5190
        %5487 = vmatpush1.bf16.msra.mxu0 %v5189
        %5488 = vmatprep.subr.bf16.mxu0 %v5192
        %5489 = vmatpush1.bf16.msra.mxu0 %v5191
        %5490 = vmatprep.subr.bf16.mxu0 %v5194
        %5491 = vmatpush1.bf16.msra.mxu0 %v5193
        %5492 = vmatprep.subr.bf16.mxu0 %v5196
        %5493 = vmatpush1.bf16.msra.mxu0 %v5195
        %5494 = vmatprep.subr.bf16.mxu0 %v5198
        %5495 = vmatpush1.bf16.msra.mxu0 %v5197
        %5496 = vmatprep.subr.bf16.mxu0 %v5200
        %5497 = vmatpush1.bf16.msra.mxu0 %v5199
        %5498 = vmatprep.subr.bf16.mxu0 %v5202
        %5499 = vmatpush1.bf16.msra.mxu0 %v5201
        %5500 = vmatprep.subr.bf16.mxu0 %v5204
        %5501 = vmatpush1.bf16.msra.mxu0 %v5203
        %5502 = vmatprep.subr.bf16.mxu0 %v5206
        %5503 = vmatpush1.bf16.msra.mxu0 %v5205
        %5504 = vmatprep.subr.bf16.mxu0 %v5208
        %5505 = vmatpush1.bf16.msra.mxu0 %v5207
        %5506 = vmatprep.subr.bf16.mxu0 %v5210
        %5507 = vmatpush1.bf16.msra.mxu0 %v5209
        %5508 = vmatprep.subr.bf16.mxu0 %v5212
        %5509 = vmatpush1.bf16.msra.mxu0 %v5211
        %5510 = vmatprep.subr.bf16.mxu0 %v5214
        %5511 = vmatpush1.bf16.msra.mxu0 %v5213
        %5512 = vmatprep.mubr.bf16.mxu0 %v4598
        %5513 = vmatmul.mubr.bf16.gmra.mrb[0].mxu0 %v4597
        %v5514 = vpop.f32.mrb[0].mxu0
        %v5515 = vadd.f32 %v5442, %v5514
        %v5516 = vpop.f32.mrb[0].mxu0
        %v5517 = vadd.f32 %v5444, %v5516
        %v5518 = vpop.f32.mrb[0].mxu0
        %v5519 = vadd.f32 %v5446, %v5518
        %v5520 = vpop.f32.mrb[0].mxu0
        %v5521 = vadd.f32 %v5448, %v5520
        %5522 = vmatprep.mubr.bf16.mxu0 %v4606
        %5523 = vmatmul.mubr.bf16.gmra.mrb[0].mxu0 %v4605
        %v5524 = vpop.f32.mrb[0].mxu0
        %v5525 = vadd.f32 %v5452, %v5524
        %v5526 = vpop.f32.mrb[0].mxu0
        %v5527 = vadd.f32 %v5454, %v5526
        %v5528 = vpop.f32.mrb[0].mxu0
        %v5529 = vadd.f32 %v5456, %v5528
        %v5530 = vpop.f32.mrb[0].mxu0
        %v5531 = vadd.f32 %v5458, %v5530
        %5532 = vmatprep.mubr.bf16.mxu0 %v4614
        %5533 = vmatmul.mubr.bf16.gmra.mrb[0].mxu0 %v4613
        %v5534 = vpop.f32.mrb[0].mxu0
        %v5535 = vadd.f32 %v5462, %v5534
        %v5536 = vpop.f32.mrb[0].mxu0
        %v5537 = vadd.f32 %v5464, %v5536
        %v5538 = vpop.f32.mrb[0].mxu0
        %v5539 = vadd.f32 %v5466, %v5538
        %v5540 = vpop.f32.mrb[0].mxu0
        %v5541 = vadd.f32 %v5468, %v5540
        %5542 = vmatprep.mubr.bf16.mxu0 %v4622
        %5543 = vmatmul.mubr.bf16.gmra.mrb[0].mxu0 %v4621
        %v5544 = vpop.f32.mrb[0].mxu0
        %v5545 = vadd.f32 %v5472, %v5544
        %v5546 = vpop.f32.mrb[0].mxu0
        %v5547 = vadd.f32 %v5474, %v5546
        %v5548 = vpop.f32.mrb[0].mxu0
        %v5549 = vadd.f32 %v5476, %v5548
        %v5550 = vpop.f32.mrb[0].mxu0
        %v5551 = vadd.f32 %v5478, %v5550
        %5552 = vdwg.mxu0
        %5553 = vmatprep.subr.bf16.mxu0 %v5216
        %5554 = vmatpush1.bf16.msra.mxu0 %v5215
        %5555 = vmatprep.subr.bf16.mxu0 %v5218
        %5556 = vmatpush1.bf16.msra.mxu0 %v5217
        %5557 = vmatprep.subr.bf16.mxu0 %v5220
        %5558 = vmatpush1.bf16.msra.mxu0 %v5219
        %5559 = vmatprep.subr.bf16.mxu0 %v5222
        %5560 = vmatpush1.bf16.msra.mxu0 %v5221
        %5561 = vmatprep.subr.bf16.mxu0 %v5224
        %5562 = vmatpush1.bf16.msra.mxu0 %v5223
        %5563 = vmatprep.subr.bf16.mxu0 %v5226
        %5564 = vmatpush1.bf16.msra.mxu0 %v5225
        %5565 = vmatprep.subr.bf16.mxu0 %v5228
        %5566 = vmatpush1.bf16.msra.mxu0 %v5227
        %5567 = vmatprep.subr.bf16.mxu0 %v5230
        %5568 = vmatpush1.bf16.msra.mxu0 %v5229
        %5569 = vmatprep.subr.bf16.mxu0 %v5232
        %5570 = vmatpush1.bf16.msra.mxu0 %v5231
        %5571 = vmatprep.subr.bf16.mxu0 %v5234
        %5572 = vmatpush1.bf16.msra.mxu0 %v5233
        %5573 = vmatprep.subr.bf16.mxu0 %v5236
        %5574 = vmatpush1.bf16.msra.mxu0 %v5235
        %5575 = vmatprep.subr.bf16.mxu0 %v5238
        %5576 = vmatpush1.bf16.msra.mxu0 %v5237
        %5577 = vmatprep.subr.bf16.mxu0 %v5240
        %5578 = vmatpush1.bf16.msra.mxu0 %v5239
        %5579 = vmatprep.subr.bf16.mxu0 %v5242
        %5580 = vmatpush1.bf16.msra.mxu0 %v5241
        %5581 = vmatprep.subr.bf16.mxu0 %v5244
        %5582 = vmatpush1.bf16.msra.mxu0 %v5243
        %5583 = vmatprep.subr.bf16.mxu0 %v5246
        %5584 = vmatpush1.bf16.msra.mxu0 %v5245
        %5585 = vmatprep.mubr.bf16.mxu0 %v4600
        %5586 = vmatmul.mubr.bf16.gmra.mrb[0].mxu0 %v4599
        %v5587 = vpop.f32.mrb[0].mxu0
        %v5588 = vadd.f32 %v5515, %v5587
        %v5589 = vpop.f32.mrb[0].mxu0
        %v5590 = vadd.f32 %v5517, %v5589
        %v5591 = vpop.f32.mrb[0].mxu0
        %v5592 = vadd.f32 %v5519, %v5591
        %v5593 = vpop.f32.mrb[0].mxu0
        %v5594 = vadd.f32 %v5521, %v5593
        %5595 = vmatprep.mubr.bf16.mxu0 %v4608
        %5596 = vmatmul.mubr.bf16.gmra.mrb[0].mxu0 %v4607
        %v5597 = vpop.f32.mrb[0].mxu0
        %v5598 = vadd.f32 %v5525, %v5597
        %v5599 = vpop.f32.mrb[0].mxu0
        %v5600 = vadd.f32 %v5527, %v5599
        %v5601 = vpop.f32.mrb[0].mxu0
        %v5602 = vadd.f32 %v5529, %v5601
        %v5603 = vpop.f32.mrb[0].mxu0
        %v5604 = vadd.f32 %v5531, %v5603
        %5605 = vmatprep.mubr.bf16.mxu0 %v4616
        %5606 = vmatmul.mubr.bf16.gmra.mrb[0].mxu0 %v4615
        %v5607 = vpop.f32.mrb[0].mxu0
        %v5608 = vadd.f32 %v5535, %v5607
        %v5609 = vpop.f32.mrb[0].mxu0
        %v5610 = vadd.f32 %v5537, %v5609
        %v5611 = vpop.f32.mrb[0].mxu0
        %v5612 = vadd.f32 %v5539, %v5611
        %v5613 = vpop.f32.mrb[0].mxu0
        %v5614 = vadd.f32 %v5541, %v5613
        %5615 = vmatprep.mubr.bf16.mxu0 %v4624
        %5616 = vmatmul.mubr.bf16.gmra.mrb[0].mxu0 %v4623
        %v5617 = vpop.f32.mrb[0].mxu0
        %v5618 = vadd.f32 %v5545, %v5617
        %v5619 = vpop.f32.mrb[0].mxu0
        %v5620 = vadd.f32 %v5547, %v5619
        %v5621 = vpop.f32.mrb[0].mxu0
        %v5622 = vadd.f32 %v5549, %v5621
        %v5623 = vpop.f32.mrb[0].mxu0
        %v5624 = vadd.f32 %v5551, %v5623
        %5625 = vdwg.mxu0
        %5626 = vmatprep.subr.bf16.mxu0 %v5248
        %5627 = vmatpush1.bf16.msra.mxu0 %v5247
        %5628 = vmatprep.subr.bf16.mxu0 %v5250
        %5629 = vmatpush1.bf16.msra.mxu0 %v5249
        %5630 = vmatprep.subr.bf16.mxu0 %v5252
        %5631 = vmatpush1.bf16.msra.mxu0 %v5251
        %5632 = vmatprep.subr.bf16.mxu0 %v5254
        %5633 = vmatpush1.bf16.msra.mxu0 %v5253
        %5634 = vmatprep.subr.bf16.mxu0 %v5256
        %5635 = vmatpush1.bf16.msra.mxu0 %v5255
        %5636 = vmatprep.subr.bf16.mxu0 %v5258
        %5637 = vmatpush1.bf16.msra.mxu0 %v5257
        %5638 = vmatprep.subr.bf16.mxu0 %v5260
        %5639 = vmatpush1.bf16.msra.mxu0 %v5259
        %5640 = vmatprep.subr.bf16.mxu0 %v5262
        %5641 = vmatpush1.bf16.msra.mxu0 %v5261
        %5642 = vmatprep.subr.bf16.mxu0 %v5264
        %5643 = vmatpush1.bf16.msra.mxu0 %v5263
        %5644 = vmatprep.subr.bf16.mxu0 %v5266
        %5645 = vmatpush1.bf16.msra.mxu0 %v5265
        %5646 = vmatprep.subr.bf16.mxu0 %v5268
        %5647 = vmatpush1.bf16.msra.mxu0 %v5267
        %5648 = vmatprep.subr.bf16.mxu0 %v5270
        %5649 = vmatpush1.bf16.msra.mxu0 %v5269
        %5650 = vmatprep.subr.bf16.mxu0 %v5272
        %5651 = vmatpush1.bf16.msra.mxu0 %v5271
        %5652 = vmatprep.subr.bf16.mxu0 %v5274
        %5653 = vmatpush1.bf16.msra.mxu0 %v5273
        %5654 = vmatprep.subr.bf16.mxu0 %v5276
        %5655 = vmatpush1.bf16.msra.mxu0 %v5275
        %5656 = vmatprep.subr.bf16.mxu0 %v5278
        %5657 = vmatpush1.bf16.msra.mxu0 %v5277
        %5658 = vmatprep.mubr.bf16.mxu0 %v4602
        %5659 = vmatmul.mubr.bf16.gmra.mrb[0].mxu0 %v4601
        %v5660 = vpop.f32.mrb[0].mxu0
        %v5661 = vadd.f32 %v5588, %v5660
        %v5662 = vpop.f32.mrb[0].mxu0
        %v5663 = vadd.f32 %v5590, %v5662
        %v5664 = vpop.f32.mrb[0].mxu0
        %v5665 = vadd.f32 %v5592, %v5664
        %v5666 = vpop.f32.mrb[0].mxu0
        %v5667 = vadd.f32 %v5594, %v5666
        %5668 = vmatprep.mubr.bf16.mxu0 %v4610
        %5669 = vmatmul.mubr.bf16.gmra.mrb[0].mxu0 %v4609
        %v5670 = vpop.f32.mrb[0].mxu0
        %v5671 = vadd.f32 %v5598, %v5670
        %v5672 = vpop.f32.mrb[0].mxu0
        %v5673 = vadd.f32 %v5600, %v5672
        %v5674 = vpop.f32.mrb[0].mxu0
        %v5675 = vadd.f32 %v5602, %v5674
        %v5676 = vpop.f32.mrb[0].mxu0
        %v5677 = vadd.f32 %v5604, %v5676
        %5678 = vmatprep.mubr.bf16.mxu0 %v4618
        %5679 = vmatmul.mubr.bf16.gmra.mrb[0].mxu0 %v4617
        %v5680 = vpop.f32.mrb[0].mxu0
        %v5681 = vadd.f32 %v5608, %v5680
        %v5682 = vpop.f32.mrb[0].mxu0
        %v5683 = vadd.f32 %v5610, %v5682
        %v5684 = vpop.f32.mrb[0].mxu0
        %v5685 = vadd.f32 %v5612, %v5684
        %v5686 = vpop.f32.mrb[0].mxu0
        %v5687 = vadd.f32 %v5614, %v5686
        %5688 = vmatprep.mubr.bf16.mxu0 %v4626
        %5689 = vmatmul.mubr.bf16.gmra.mrb[0].mxu0 %v4625
        %v5690 = vpop.f32.mrb[0].mxu0
        %v5691 = vadd.f32 %v5618, %v5690
        %v5692 = vpop.f32.mrb[0].mxu0
        %v5693 = vadd.f32 %v5620, %v5692
        %v5694 = vpop.f32.mrb[0].mxu0
        %v5695 = vadd.f32 %v5622, %v5694
        %v5696 = vpop.f32.mrb[0].mxu0
        %v5697 = vadd.f32 %v5624, %v5696
        %5698 = vdwg.mxu0
        %v5699 = vadd.f32 %v2708, %v5661
        %v5700 = vadd.f32 %v2709, %v5663
        %v5701 = vadd.f32 %v2710, %v5665
        %v5702 = vadd.f32 %v2711, %v5667
        %v5703 = vadd.f32 %v2712, %v5671
        %v5704 = vadd.f32 %v2713, %v5673
        %v5705 = vadd.f32 %v2714, %v5675
        %v5706 = vadd.f32 %v2715, %v5677
        %v5707 = vadd.f32 %v2716, %v5681
        %v5708 = vadd.f32 %v2717, %v5683
        %v5709 = vadd.f32 %v2718, %v5685
        %v5710 = vadd.f32 %v2719, %v5687
        %v5711 = vadd.f32 %v2720, %v5691
        %v5712 = vadd.f32 %v2721, %v5693
        %v5713 = vadd.f32 %v2722, %v5695
        %v5714 = vadd.f32 %v2723, %v5697
        %5715 = vst [vmem:[%s654] sm:$0xff] %v5699
        %5716 = vst [vmem:[%s654 + $0x8] sm:$0xff] %v5700
        %5717 = vst [vmem:[%s654 + $0x10] sm:$0xff] %v5701
        %5718 = vst [vmem:[%s654 + $0x18] sm:$0xff] %v5702
        %5719 = vst [vmem:[%s654 + $0x20] sm:$0xff] %v5703
        %5720 = vst [vmem:[%s654 + $0x28] sm:$0xff] %v5704
        %5721 = vst [vmem:[%s654 + $0x30] sm:$0xff] %v5705
        %5722 = vst [vmem:[%s654 + $0x38] sm:$0xff] %v5706
        %5723 = vst [vmem:[%s654 + $0x40] sm:$0xff] %v5707
        %5724 = vst [vmem:[%s654 + $0x48] sm:$0xff] %v5708
        %5725 = vst [vmem:[%s654 + $0x50] sm:$0xff] %v5709
        %5726 = vst [vmem:[%s654 + $0x58] sm:$0xff] %v5710
        %5727 = vst [vmem:[%s654 + $0x60] sm:$0xff] %v5711
        %5728 = vst [vmem:[%s654 + $0x68] sm:$0xff] %v5712
        %5729 = vst [vmem:[%s654 + $0x70] sm:$0xff] %v5713
        %5730 = vst [vmem:[%s654 + $0x78] sm:$0xff] %v5714
        %s5731 = sand.u32 %s319, 1
        %s5732 = scalar_lea.sflag [#allocation4], %s5731
        %s5733 = sand.u32 %s319, 1
        %s5734 = smul.addr %s5733, 128
        %s5735 = scalar_lea.vmem [#allocation22], %s5734
        // Predicated region
        $region117: #{_lambda_.3} parent=67 // pred_check
          %p5736 = pneg %p329
        $region118: #{_lambda_.3} parent=67 // pred_check_branch
          %5738 = sbr.rel (%p5736) target = $region120
        $region119: #{_lambda_.3} parent=67 // pred_region
          %s5740 = ssub.s32 2048, 2048
          %5741 = vsyncadd %s5732, %s5740
          %s5742 = smul.addr %s39, 16
          %s5743 = smul.addr %s5742, 128
          %s5744 = scalar_lea.hbm %s12, %s5743
          %s5745 = sshll.u32 %s5735, 4
          %s5746 = int_to_ptr.vmem [resolvable:$true] %s5745
          %5751 = dma.vmem_to_hbm [thread:$0]  %s5746, 2048, %s5744, %s5732, 256, 256, 16
        $region120: #{_lambda_.3} parent=67 // pred_fallthru
          _
      $region68: #{_lambda_.3} parent=5 // pred_fallthru
        _
      %p5752 = scmp.le.s32.totalorder 2, %s34
      // Predicated region
      $region121: #{_lambda_.3} parent=5 // pred_check
        %p5753 = pneg %p5752
      $region122: #{_lambda_.3} parent=5 // pred_check_branch
        %5755 = sbr.rel (%p5753) target = $region124
      $region123: #{_lambda_.3} parent=5 // pred_region
        %s5756 = ssub.s32 %s34, 2
        // Predicated region
        $region125: #{_lambda_.3} parent=123 // pred_check
          %p5757 = pneg %p335
        $region126: #{_lambda_.3} parent=123 // pred_check_branch
          %5759 = sbr.rel (%p5757) target = $region128
        $region127: #{_lambda_.3} parent=123 // pred_region
          %s5760 = sand.u32 %s320, 1
          %s5761 = scalar_lea.sflag [#allocation4], %s5760
          %s5762 = sand.u32 %s320, 1
          %s5763 = smul.addr %s5762, 128
          %s5764 = scalar_lea.vmem [#allocation22], %s5763
          %5765 = dma.done %s5761, 2048
        $region128: #{_lambda_.3} parent=123 // pred_fallthru
          _
      $region124: #{_lambda_.3} parent=5 // pred_fallthru
        _
    $region6: #{_lambda_.3} parent=1 // loop_footer
      %s38 = sadd.s32 1, %s34
    $region7: #{_lambda_.3} parent=1 // loop_footer_branch
      %33 = sbr.rel target = $region3
    $region8: #{_lambda_.3} parent=1 // loop_exit
      _
    %5766 = vsyncpa [#allocation3], 1
    %s5767 = scalar_lea.sflag [#allocation3], 1
    %5768 = vsyncpa %s5767, 1
    %5769 = vsyncpa [#allocation6], 1
    %s5770 = scalar_lea.sflag [#allocation6], 1
    %5771 = vsyncpa %s5770, 1
    %5772 = vsyncpa [#allocation9], 1
    %s5773 = scalar_lea.sflag [#allocation9], 1
    %5774 = vsyncpa %s5773, 1
    %5775 = vsyncpa [#allocation12], 1
    %5776 = vsyncpa [#allocation15], 1
    %5777 = vsyncpa [#allocation18], 1
    %5778 = vsyncpa [#allocation21], 1
    %5779 = vsyncpa [#allocation4], 1
    %s5780 = scalar_lea.sflag [#allocation4], 1
    %5781 = vsyncpa %s5780, 1

</llo_original>
